<compile_context>
chip_gen: v5e
topology: v5e:2x2
jax: 0.10.0
libtpu: 0.0.40
codegen_flags: <defaults>
</compile_context>

<pallas_src>
import functools

import numpy as np
import jax
import jax.numpy as jnp
from jax import lax
from jax.experimental import pallas as pl
from jax.experimental.pallas import tpu as pltpu


def _round_up(x, n):
    return ((x + n - 1) // n) * n


# ---------------------------------------------------------------------------
# Static per-level geometry of the stacked padded-flat layout
# ---------------------------------------------------------------------------
# A group of `g` images (one grid step) is stacked vertically; each image gets
# its own 1-pixel zero border, so the stacked padded grid is (g*(h+2), w+2)
# per channel, stored flat along the lane axis.  The 3x3 tap (kh, kw) for
# conv-anchor k (flat index of the window's top-left corner) is the contiguous
# lane slice [kh*wp + kw + k], which makes each conv 9 accumulated matmuls
# over one long, lane-dense axis.
def _geom(g, h, w):
    hp, wp = h + 2, w + 2
    n = _round_up(g * hp * wp, 128)               # conv span (lanes), 128-dense
    lx = _round_up(n + 2 * wp + 2, 128)           # packed input length
    s_int = _round_up(wp + 1, 128)                # aligned hidden interior start
    s_off = s_int - (wp + 1)                      # hidden buffer head offset
    lh = _round_up(s_off + 2 * wp + 2 + n, 128)   # hidden buffer length

    # Validity mask over the n anchor lanes: 1.0 where the anchor is a real
    # output pixel (inside an image, not in the zero border / round-up tail).
    k = np.arange(n)
    row, col = k // wp, k % wp
    valid = (col < w) & (row % hp < h) & (row // hp < g)
    mask = valid.astype(np.float32).reshape(1, n)
    return dict(g=g, h=h, w=w, hp=hp, wp=wp, n=n, lx=lx,
                s_off=s_off, s_int=s_int, lh=lh, mask=mask)


# Constant selection matrix mapping conv2 outputs (flat anchors of this level)
# to the NEXT level's packed padded-flat input: 4 entries of 0.25 per pooled
# pixel, so `y2 @ sel` does AvgPool2d(2) + relayout + zero padding of the next
# level's input in one (otherwise idle) MXU matmul.
def _pool_select_matrix(gm, gm_next):
    g, hp, wp, n = gm["g"], gm["hp"], gm["wp"], gm["n"]
    h2, w2 = gm_next["h"], gm_next["w"]
    hp2, wp2, lx2 = gm_next["hp"], gm_next["wp"], gm_next["lx"]
    gi, ho, wo, dr, dc = np.meshgrid(np.arange(g), np.arange(h2),
                                     np.arange(w2), np.arange(2),
                                     np.arange(2), indexing="ij")
    k = ((gi * hp + 2 * ho + dr) * wp + 2 * wo + dc).ravel()
    j = ((gi * hp2 + ho + 1) * wp2 + wo + 1).ravel()
    sel = np.zeros((n, lx2), np.float32)
    sel[k, j] = 0.25
    return sel


# ---------------------------------------------------------------------------
# Fused Encoder-level kernel
# ---------------------------------------------------------------------------
def _encoder_kernel(*refs, cin, cout, wp, n, s_off, has_pool):
    """conv3x3 + LeakyReLU + conv3x3 + LeakyReLU (+ fused AvgPool2d(2))."""
    if has_pool:
        (x_ref, w1_ref, b1_ref, w2_ref, b2_ref, mask_ref, sel_ref,
         enc_ref, pool_ref, h_ref) = refs
    else:
        (x_ref, w1_ref, b1_ref, w2_ref, b2_ref, mask_ref,
         enc_ref, h_ref) = refs
        sel_ref = pool_ref = None

    neg = 0.01                        # nn.LeakyReLU() default negative slope
    s_int = s_off + wp + 1            # multiple of 128 by construction
    lh = h_ref.shape[1]

    def conv_taps(w_ref, buf_ref, base, k_size):
        acc = jnp.zeros((cout, n), jnp.float32)
        for t in range(9):
            off = base + (t // 3) * wp + (t % 3)
            tap = buf_ref[:, off:off + n]
            if k_size == 1:           # K=1 "matmul" -> plain VPU broadcast-mul
                acc = acc + (w_ref[t].astype(jnp.float32) *
                             tap.astype(jnp.float32))
            else:
                acc = acc + jnp.dot(w_ref[t], tap,
                                    preferred_element_type=jnp.float32)
        return acc

    # ---- conv1 (+bias, LeakyReLU); junk anchors zeroed by the mask ----
    y1 = conv_taps(w1_ref, x_ref.at[0], 0, cin) + b1_ref[...]
    y1 = jnp.where(y1 >= 0.0, y1, neg * y1) * mask_ref[...]

    # ---- hidden activation stays resident in VMEM (aligned padded-flat) ----
    h_ref[:, 0:s_int] = jnp.zeros((cout, s_int), jnp.bfloat16)
    h_ref[:, s_int:s_int + n] = y1.astype(jnp.bfloat16)          # aligned store
    h_ref[:, s_int + n:lh] = jnp.zeros((cout, lh - s_int - n), jnp.bfloat16)

    # ---- conv2 (+bias, LeakyReLU) ----
    y2 = conv_taps(w2_ref, h_ref, s_off, cout) + b2_ref[...]
    y2 = jnp.where(y2 >= 0.0, y2, neg * y2)
    enc_ref[0] = y2                                              # lane-dense f32

    # ---- fused AvgPool2d(2), written directly in next level's input layout ----
    if has_pool:
        pooled = jnp.dot(y2.astype(jnp.bfloat16), sel_ref[...],
                         preferred_element_type=jnp.float32)
        pool_ref[0] = pooled.astype(jnp.bfloat16)


def _encoder_level(xf, p, gm, gm_next, n_blk):
    cout, cin = p["w1"].shape[:2]
    n, lx, wp, s_off, lh = gm["n"], gm["lx"], gm["wp"], gm["s_off"], gm["lh"]

    # Weights packed as (tap, cout, cin) so w[t] is the (cout, cin) tap matrix.
    w1 = jnp.transpose(p["w1"].reshape(cout, cin, 9), (2, 0, 1)).astype(jnp.bfloat16)
    w2 = jnp.transpose(p["w2"].reshape(cout, cout, 9), (2, 0, 1)).astype(jnp.bfloat16)
    b1 = p["b1"].reshape(cout, 1).astype(jnp.float32)
    b2 = p["b2"].reshape(cout, 1).astype(jnp.float32)
    mask = jnp.asarray(gm["mask"])

    has_pool = gm_next is not None
    inputs = [xf, w1, b1, w2, b2, mask]
    in_specs = [
        pl.BlockSpec((1, cin, lx), lambda i: (i, 0, 0)),
        pl.BlockSpec((9, cout, cin), lambda i: (0, 0, 0)),
        pl.BlockSpec((cout, 1), lambda i: (0, 0)),
        pl.BlockSpec((9, cout, cout), lambda i: (0, 0, 0)),
        pl.BlockSpec((cout, 1), lambda i: (0, 0)),
        pl.BlockSpec((1, n), lambda i: (0, 0)),
    ]
    out_shape = [jax.ShapeDtypeStruct((n_blk, cout, n), jnp.float32)]
    out_specs = [pl.BlockSpec((1, cout, n), lambda i: (i, 0, 0))]
    if has_pool:
        lx2 = gm_next["lx"]
        sel = jnp.asarray(_pool_select_matrix(gm, gm_next)).astype(jnp.bfloat16)
        inputs.append(sel)
        in_specs.append(pl.BlockSpec((n, lx2), lambda i: (0, 0)))
        out_shape.append(jax.ShapeDtypeStruct((n_blk, cout, lx2), jnp.bfloat16))
        out_specs.append(pl.BlockSpec((1, cout, lx2), lambda i: (i, 0, 0)))

    kernel = functools.partial(_encoder_kernel, cin=cin, cout=cout, wp=wp,
                               n=n, s_off=s_off, has_pool=has_pool)
    outs = pl.pallas_call(
        kernel,
        out_shape=tuple(out_shape),
        grid=(n_blk,),
        in_specs=in_specs,
        out_specs=tuple(out_specs),
        scratch_shapes=[pltpu.VMEM((cout, lh), jnp.bfloat16)],
        compiler_params=pltpu.CompilerParams(
            dimension_semantics=("parallel",)),
    )(*inputs)
    if has_pool:
        enc_flat, pooled = outs
    else:
        (enc_flat,) = outs
        pooled = None
    return enc_flat, pooled


# ---------------------------------------------------------------------------
# Host-side layout plumbing (level-0 packing and encoding extraction only)
# ---------------------------------------------------------------------------
def _pack_input(x, n_blk, gm):
    b, cin, h, w = x.shape
    g, hp, wp, lx = gm["g"], gm["hp"], gm["wp"], gm["lx"]
    xp = jnp.pad(x, ((0, 0), (0, 0), (1, 1), (1, 1)))
    xp = xp.reshape(n_blk, g, cin, hp, wp).transpose(0, 2, 1, 3, 4)
    xf = xp.reshape(n_blk, cin, g * hp * wp)
    xf = jnp.pad(xf, ((0, 0), (0, 0), (0, lx - g * hp * wp)))
    return xf.astype(jnp.bfloat16)


def _unpack_enc(enc_flat, n_blk, gm):
    g, h, w, hp, wp = gm["g"], gm["h"], gm["w"], gm["hp"], gm["wp"]
    cout = enc_flat.shape[1]
    e = enc_flat[:, :, :g * hp * wp].reshape(n_blk, cout, g, hp, wp)
    e = e[:, :, :, :h, :w]
    e = jnp.transpose(e, (0, 2, 1, 3, 4))
    return e.reshape(n_blk * g, cout, h, w)


# ---------------------------------------------------------------------------
# EncodingPyramid.forward
# ---------------------------------------------------------------------------
def encoding_pyramid_forward(params, src, tgt):
    """Returns (src_encodings, tgt_encodings), one list entry per Encoder."""
    n_src = src.shape[0]
    x = jnp.concatenate([src, tgt], axis=0)     # siamese: shared weights
    b, _, h, w = x.shape

    # Two balanced grid steps when possible (keeps both v7x TensorCores busy;
    # only 2 grid-step overheads on single-core v5e/v6e).
    n_blk = 2 if (b >= 2 and b % 2 == 0) else 1
    g = b // n_blk

    geoms = []
    hh, ww = h, w
    for _ in params:
        geoms.append(_geom(g, hh, ww))
        hh, ww = hh // 2, ww // 2

    xf = _pack_input(x, n_blk, geoms[0])
    src_encs, tgt_encs = [], []
    for li, p in enumerate(params):
        gm = geoms[li]
        gm_next = geoms[li + 1] if li + 1 < len(params) else None
        enc_flat, xf = _encoder_level(xf, p, gm, gm_next, n_blk)
        enc = _unpack_enc(enc_flat, n_blk, gm)
        src_encs.append(enc[:n_src])
        tgt_encs.append(enc[n_src:])
    return src_encs, tgt_encs


def init_encoder_params(key, infm, outfm, a=0.01):
    """Mirrors Encoder: Conv2d(infm,outfm,3,p=1) / Conv2d(outfm,outfm,3,p=1)
    with kaiming_uniform_(a=LeakyReLU default slope) weight init."""
    k1, k2, k3, k4 = jax.random.split(key, 4)

    def kaiming_uniform(k, shape, fan_in):
        gain = np.sqrt(2.0 / (1.0 + a * a))
        bound = gain * np.sqrt(3.0 / fan_in)
        return jax.random.uniform(k, shape, jnp.float32, -bound, bound)

    def bias_uniform(k, shape, fan_in):
        bound = 1.0 / np.sqrt(fan_in)
        return jax.random.uniform(k, shape, jnp.float32, -bound, bound)

    return {
        "w1": kaiming_uniform(k1, (outfm, infm, 3, 3), infm * 9),
        "b1": bias_uniform(k2, (outfm,), infm * 9),
        "w2": kaiming_uniform(k3, (outfm, outfm, 3, 3), outfm * 9),
        "b2": bias_uniform(k4, (outfm,), outfm * 9),
    }


# ---------------------------------------------------------------------------
# Pure-JAX f32 reference for a correctness spot check
# ---------------------------------------------------------------------------
def _ref_conv3x3(x, w, b):
    y = lax.conv_general_dilated(x, w, window_strides=(1, 1), padding="SAME",
                                 dimension_numbers=("NCHW", "OIHW", "NCHW"))
    return y + b.reshape(1, -1, 1, 1)


def _ref_forward(params, src, tgt):
    n = src.shape[0]
    x = jnp.concatenate([src, tgt], axis=0)
    src_encs, tgt_encs = [], []
    for p in params:
        y = _ref_conv3x3(x, p["w1"], p["b1"])
        y = jnp.where(y >= 0, y, 0.01 * y)
        y = _ref_conv3x3(y, p["w2"], p["b2"])
        y = jnp.where(y >= 0, y, 0.01 * y)
        src_encs.append(y[:n])
        tgt_encs.append(y[n:])
        bb, cc, hh, ww = y.shape
        x = y.reshape(bb, cc, hh // 2, 2, ww // 2, 2).mean(axis=(3, 5))
    return src_encs, tgt_encs


if __name__ == "__main__":
    key = jax.random.PRNGKey(0)
    kp, ks, kt = jax.random.split(key, 3)

    feature_list = [1, 2, 4, 8]          # EncodingPyramid([1, 2, 4, 8])
    keys = jax.random.split(kp, len(feature_list) - 1)
    params = [init_encoder_params(k, i, o)
              for k, i, o in zip(keys, feature_list[:-1], feature_list[1:])]

    src = jax.random.normal(ks, (2, 1, 16, 16), jnp.float32)
    tgt = jax.random.normal(kt, (2, 1, 16, 16), jnp.float32)

    fwd = jax.jit(encoding_pyramid_forward)
    src_encs, tgt_encs = fwd(params, src, tgt)
    src_encs = [jax.block_until_ready(e) for e in src_encs]
    tgt_encs = [jax.block_until_ready(e) for e in tgt_encs]

    expected = [(2, 2, 16, 16), (2, 4, 8, 8), (2, 8, 4, 4)]
    assert [tuple(e.shape) for e in src_encs] == expected
    assert [tuple(e.shape) for e in tgt_encs] == expected
    assert all(bool(jnp.all(jnp.isfinite(e))) for e in src_encs + tgt_encs)

    # Spot check vs. pure-JAX f32 reference (kernel runs the MXU in bf16,
    # so allow a small relative-to-max deviation).
    ref_src, ref_tgt = _ref_forward(params, src, tgt)
    for got, ref in zip(src_encs + tgt_encs, ref_src + ref_tgt):
        err = float(jnp.max(jnp.abs(got - ref)) /
                    (jnp.max(jnp.abs(ref)) + 1e-6))
        assert err < 0.1, err

    print("KERNEL_OK")
</pallas_src>

<mosaic_0001>
module attributes {stable_mosaic.version = 11 : i64} {
  func.func @_encoder_kernel(%arg0: i32, %arg1: memref<1x1x896xbf16, #tpu.memory_space<vmem>>, %arg2: memref<9x2x1xbf16, #tpu.memory_space<vmem>>, %arg3: memref<2x1xf32, #tpu.memory_space<vmem>>, %arg4: memref<9x2x2xbf16, #tpu.memory_space<vmem>>, %arg5: memref<2x1xf32, #tpu.memory_space<vmem>>, %arg6: memref<1x768xf32, #tpu.memory_space<vmem>>, %arg7: memref<768x384xbf16, #tpu.memory_space<vmem>>, %arg8: memref<1x2x768xf32, #tpu.memory_space<vmem>>, %arg9: memref<1x2x384xbf16, #tpu.memory_space<vmem>>, %arg10: memref<2x1024xbf16, #tpu.memory_space<vmem>>) attributes {dimension_semantics = [#tpu.dimension_semantics<parallel>], iteration_bounds = array<i64: 2>, scalar_prefetch = 0 : i64, scratch_operands = 1 : i64, tpu.core_type = #tpu.core_type<tc>, window_params = [{transform_indices = @transform_0, window_bounds = array<i64: 1, 1, 896>}, {pipeline_mode = #tpu.pipeline_mode<synchronous>, transform_indices = @transform_1, window_bounds = array<i64: 9, 2, 1>}, {pipeline_mode = #tpu.pipeline_mode<synchronous>, transform_indices = @transform_2, window_bounds = array<i64: 2, 1>}, {pipeline_mode = #tpu.pipeline_mode<synchronous>, transform_indices = @transform_3, window_bounds = array<i64: 9, 2, 2>}, {pipeline_mode = #tpu.pipeline_mode<synchronous>, transform_indices = @transform_4, window_bounds = array<i64: 2, 1>}, {pipeline_mode = #tpu.pipeline_mode<synchronous>, transform_indices = @transform_5, window_bounds = array<i64: 1, 768>}, {pipeline_mode = #tpu.pipeline_mode<synchronous>, transform_indices = @transform_6, window_bounds = array<i64: 768, 384>}, {transform_indices = @transform_7, window_bounds = array<i64: 1, 2, 768>}, {transform_indices = @transform_8, window_bounds = array<i64: 1, 2, 384>}]} {
    %cst = arith.constant 0.000000e+00 : f32
    %0 = vector.broadcast %cst : f32 to vector<2x768xf32>
    %c0_i32 = arith.constant 0 : i32
    %c0_i32_0 = arith.constant 0 : i32
    %c0_i32_1 = arith.constant 0 : i32
    %1 = tpu.memref_slice %arg1[%c0_i32, %c0_i32_0, %c0_i32_1] : memref<1x1x896xbf16, #tpu.memory_space<vmem>> -> memref<1x1x896xbf16, #tpu.memory_space<vmem>>
    %2 = tpu.memref_squeeze %1 : memref<1x1x896xbf16, #tpu.memory_space<vmem>> -> memref<1x896xbf16, #tpu.memory_space<vmem>>
    %c0 = arith.constant 0 : index
    %c0_2 = arith.constant 0 : index
    %3 = vector.load %2[%c0, %c0_2] : memref<1x896xbf16, #tpu.memory_space<vmem>>, vector<1x768xbf16>
    %c0_3 = arith.constant 0 : index
    %c0_4 = arith.constant 0 : index
    %c0_5 = arith.constant 0 : index
    %4 = vector.load %arg2[%c0_3, %c0_4, %c0_5] : memref<9x2x1xbf16, #tpu.memory_space<vmem>>, vector<1x2x1xbf16>
    %5 = vector.shape_cast %4 : vector<1x2x1xbf16> to vector<2x1xbf16>
    %6 = arith.extf %5 : vector<2x1xbf16> to vector<2x1xf32>
    %7 = arith.extf %3 : vector<1x768xbf16> to vector<1x768xf32>
    %8 = vector.broadcast %6 : vector<2x1xf32> to vector<2x768xf32>
    %9 = vector.broadcast %7 : vector<1x768xf32> to vector<2x768xf32>
    %10 = arith.mulf %8, %9 : vector<2x768xf32>
    %11 = arith.addf %0, %10 : vector<2x768xf32>
    %c0_i32_6 = arith.constant 0 : i32
    %c0_i32_7 = arith.constant 0 : i32
    %c0_i32_8 = arith.constant 0 : i32
    %12 = tpu.memref_slice %arg1[%c0_i32_6, %c0_i32_7, %c0_i32_8] : memref<1x1x896xbf16, #tpu.memory_space<vmem>> -> memref<1x1x896xbf16, #tpu.memory_space<vmem>>
    %13 = tpu.memref_squeeze %12 : memref<1x1x896xbf16, #tpu.memory_space<vmem>> -> memref<1x896xbf16, #tpu.memory_space<vmem>>
    %c0_9 = arith.constant 0 : index
    %c1 = arith.constant 1 : index
    %14 = vector.load %13[%c0_9, %c1] : memref<1x896xbf16, #tpu.memory_space<vmem>>, vector<1x768xbf16>
    %c1_10 = arith.constant 1 : index
    %c0_11 = arith.constant 0 : index
    %c0_12 = arith.constant 0 : index
    %15 = vector.load %arg2[%c1_10, %c0_11, %c0_12] : memref<9x2x1xbf16, #tpu.memory_space<vmem>>, vector<1x2x1xbf16>
    %16 = vector.shape_cast %15 : vector<1x2x1xbf16> to vector<2x1xbf16>
    %17 = arith.extf %16 : vector<2x1xbf16> to vector<2x1xf32>
    %18 = arith.extf %14 : vector<1x768xbf16> to vector<1x768xf32>
    %19 = vector.broadcast %17 : vector<2x1xf32> to vector<2x768xf32>
    %20 = vector.broadcast %18 : vector<1x768xf32> to vector<2x768xf32>
    %21 = arith.mulf %19, %20 : vector<2x768xf32>
    %22 = arith.addf %11, %21 : vector<2x768xf32>
    %c0_i32_13 = arith.constant 0 : i32
    %c0_i32_14 = arith.constant 0 : i32
    %c0_i32_15 = arith.constant 0 : i32
    %23 = tpu.memref_slice %arg1[%c0_i32_13, %c0_i32_14, %c0_i32_15] : memref<1x1x896xbf16, #tpu.memory_space<vmem>> -> memref<1x1x896xbf16, #tpu.memory_space<vmem>>
    %24 = tpu.memref_squeeze %23 : memref<1x1x896xbf16, #tpu.memory_space<vmem>> -> memref<1x896xbf16, #tpu.memory_space<vmem>>
    %c0_16 = arith.constant 0 : index
    %c2 = arith.constant 2 : index
    %25 = vector.load %24[%c0_16, %c2] : memref<1x896xbf16, #tpu.memory_space<vmem>>, vector<1x768xbf16>
    %c2_17 = arith.constant 2 : index
    %c0_18 = arith.constant 0 : index
    %c0_19 = arith.constant 0 : index
    %26 = vector.load %arg2[%c2_17, %c0_18, %c0_19] : memref<9x2x1xbf16, #tpu.memory_space<vmem>>, vector<1x2x1xbf16>
    %27 = vector.shape_cast %26 : vector<1x2x1xbf16> to vector<2x1xbf16>
    %28 = arith.extf %27 : vector<2x1xbf16> to vector<2x1xf32>
    %29 = arith.extf %25 : vector<1x768xbf16> to vector<1x768xf32>
    %30 = vector.broadcast %28 : vector<2x1xf32> to vector<2x768xf32>
    %31 = vector.broadcast %29 : vector<1x768xf32> to vector<2x768xf32>
    %32 = arith.mulf %30, %31 : vector<2x768xf32>
    %33 = arith.addf %22, %32 : vector<2x768xf32>
    %c0_i32_20 = arith.constant 0 : i32
    %c0_i32_21 = arith.constant 0 : i32
    %c0_i32_22 = arith.constant 0 : i32
    %34 = tpu.memref_slice %arg1[%c0_i32_20, %c0_i32_21, %c0_i32_22] : memref<1x1x896xbf16, #tpu.memory_space<vmem>> -> memref<1x1x896xbf16, #tpu.memory_space<vmem>>
    %35 = tpu.memref_squeeze %34 : memref<1x1x896xbf16, #tpu.memory_space<vmem>> -> memref<1x896xbf16, #tpu.memory_space<vmem>>
    %c0_23 = arith.constant 0 : index
    %c18 = arith.constant 18 : index
    %36 = vector.load %35[%c0_23, %c18] : memref<1x896xbf16, #tpu.memory_space<vmem>>, vector<1x768xbf16>
    %c3 = arith.constant 3 : index
    %c0_24 = arith.constant 0 : index
    %c0_25 = arith.constant 0 : index
    %37 = vector.load %arg2[%c3, %c0_24, %c0_25] : memref<9x2x1xbf16, #tpu.memory_space<vmem>>, vector<1x2x1xbf16>
    %38 = vector.shape_cast %37 : vector<1x2x1xbf16> to vector<2x1xbf16>
    %39 = arith.extf %38 : vector<2x1xbf16> to vector<2x1xf32>
    %40 = arith.extf %36 : vector<1x768xbf16> to vector<1x768xf32>
    %41 = vector.broadcast %39 : vector<2x1xf32> to vector<2x768xf32>
    %42 = vector.broadcast %40 : vector<1x768xf32> to vector<2x768xf32>
    %43 = arith.mulf %41, %42 : vector<2x768xf32>
    %44 = arith.addf %33, %43 : vector<2x768xf32>
    %c0_i32_26 = arith.constant 0 : i32
    %c0_i32_27 = arith.constant 0 : i32
    %c0_i32_28 = arith.constant 0 : i32
    %45 = tpu.memref_slice %arg1[%c0_i32_26, %c0_i32_27, %c0_i32_28] : memref<1x1x896xbf16, #tpu.memory_space<vmem>> -> memref<1x1x896xbf16, #tpu.memory_space<vmem>>
    %46 = tpu.memref_squeeze %45 : memref<1x1x896xbf16, #tpu.memory_space<vmem>> -> memref<1x896xbf16, #tpu.memory_space<vmem>>
    %c0_29 = arith.constant 0 : index
    %c19 = arith.constant 19 : index
    %47 = vector.load %46[%c0_29, %c19] : memref<1x896xbf16, #tpu.memory_space<vmem>>, vector<1x768xbf16>
    %c4 = arith.constant 4 : index
    %c0_30 = arith.constant 0 : index
    %c0_31 = arith.constant 0 : index
    %48 = vector.load %arg2[%c4, %c0_30, %c0_31] : memref<9x2x1xbf16, #tpu.memory_space<vmem>>, vector<1x2x1xbf16>
    %49 = vector.shape_cast %48 : vector<1x2x1xbf16> to vector<2x1xbf16>
    %50 = arith.extf %49 : vector<2x1xbf16> to vector<2x1xf32>
    %51 = arith.extf %47 : vector<1x768xbf16> to vector<1x768xf32>
    %52 = vector.broadcast %50 : vector<2x1xf32> to vector<2x768xf32>
    %53 = vector.broadcast %51 : vector<1x768xf32> to vector<2x768xf32>
    %54 = arith.mulf %52, %53 : vector<2x768xf32>
    %55 = arith.addf %44, %54 : vector<2x768xf32>
    %c0_i32_32 = arith.constant 0 : i32
    %c0_i32_33 = arith.constant 0 : i32
    %c0_i32_34 = arith.constant 0 : i32
    %56 = tpu.memref_slice %arg1[%c0_i32_32, %c0_i32_33, %c0_i32_34] : memref<1x1x896xbf16, #tpu.memory_space<vmem>> -> memref<1x1x896xbf16, #tpu.memory_space<vmem>>
    %57 = tpu.memref_squeeze %56 : memref<1x1x896xbf16, #tpu.memory_space<vmem>> -> memref<1x896xbf16, #tpu.memory_space<vmem>>
    %c0_35 = arith.constant 0 : index
    %c20 = arith.constant 20 : index
    %58 = vector.load %57[%c0_35, %c20] : memref<1x896xbf16, #tpu.memory_space<vmem>>, vector<1x768xbf16>
    %c5 = arith.constant 5 : index
    %c0_36 = arith.constant 0 : index
    %c0_37 = arith.constant 0 : index
    %59 = vector.load %arg2[%c5, %c0_36, %c0_37] : memref<9x2x1xbf16, #tpu.memory_space<vmem>>, vector<1x2x1xbf16>
    %60 = vector.shape_cast %59 : vector<1x2x1xbf16> to vector<2x1xbf16>
    %61 = arith.extf %60 : vector<2x1xbf16> to vector<2x1xf32>
    %62 = arith.extf %58 : vector<1x768xbf16> to vector<1x768xf32>
    %63 = vector.broadcast %61 : vector<2x1xf32> to vector<2x768xf32>
    %64 = vector.broadcast %62 : vector<1x768xf32> to vector<2x768xf32>
    %65 = arith.mulf %63, %64 : vector<2x768xf32>
    %66 = arith.addf %55, %65 : vector<2x768xf32>
    %c0_i32_38 = arith.constant 0 : i32
    %c0_i32_39 = arith.constant 0 : i32
    %c0_i32_40 = arith.constant 0 : i32
    %67 = tpu.memref_slice %arg1[%c0_i32_38, %c0_i32_39, %c0_i32_40] : memref<1x1x896xbf16, #tpu.memory_space<vmem>> -> memref<1x1x896xbf16, #tpu.memory_space<vmem>>
    %68 = tpu.memref_squeeze %67 : memref<1x1x896xbf16, #tpu.memory_space<vmem>> -> memref<1x896xbf16, #tpu.memory_space<vmem>>
    %c0_41 = arith.constant 0 : index
    %c36 = arith.constant 36 : index
    %69 = vector.load %68[%c0_41, %c36] : memref<1x896xbf16, #tpu.memory_space<vmem>>, vector<1x768xbf16>
    %c6 = arith.constant 6 : index
    %c0_42 = arith.constant 0 : index
    %c0_43 = arith.constant 0 : index
    %70 = vector.load %arg2[%c6, %c0_42, %c0_43] : memref<9x2x1xbf16, #tpu.memory_space<vmem>>, vector<1x2x1xbf16>
    %71 = vector.shape_cast %70 : vector<1x2x1xbf16> to vector<2x1xbf16>
    %72 = arith.extf %71 : vector<2x1xbf16> to vector<2x1xf32>
    %73 = arith.extf %69 : vector<1x768xbf16> to vector<1x768xf32>
    %74 = vector.broadcast %72 : vector<2x1xf32> to vector<2x768xf32>
    %75 = vector.broadcast %73 : vector<1x768xf32> to vector<2x768xf32>
    %76 = arith.mulf %74, %75 : vector<2x768xf32>
    %77 = arith.addf %66, %76 : vector<2x768xf32>
    %c0_i32_44 = arith.constant 0 : i32
    %c0_i32_45 = arith.constant 0 : i32
    %c0_i32_46 = arith.constant 0 : i32
    %78 = tpu.memref_slice %arg1[%c0_i32_44, %c0_i32_45, %c0_i32_46] : memref<1x1x896xbf16, #tpu.memory_space<vmem>> -> memref<1x1x896xbf16, #tpu.memory_space<vmem>>
    %79 = tpu.memref_squeeze %78 : memref<1x1x896xbf16, #tpu.memory_space<vmem>> -> memref<1x896xbf16, #tpu.memory_space<vmem>>
    %c0_47 = arith.constant 0 : index
    %c37 = arith.constant 37 : index
    %80 = vector.load %79[%c0_47, %c37] : memref<1x896xbf16, #tpu.memory_space<vmem>>, vector<1x768xbf16>
    %c7 = arith.constant 7 : index
    %c0_48 = arith.constant 0 : index
    %c0_49 = arith.constant 0 : index
    %81 = vector.load %arg2[%c7, %c0_48, %c0_49] : memref<9x2x1xbf16, #tpu.memory_space<vmem>>, vector<1x2x1xbf16>
    %82 = vector.shape_cast %81 : vector<1x2x1xbf16> to vector<2x1xbf16>
    %83 = arith.extf %82 : vector<2x1xbf16> to vector<2x1xf32>
    %84 = arith.extf %80 : vector<1x768xbf16> to vector<1x768xf32>
    %85 = vector.broadcast %83 : vector<2x1xf32> to vector<2x768xf32>
    %86 = vector.broadcast %84 : vector<1x768xf32> to vector<2x768xf32>
    %87 = arith.mulf %85, %86 : vector<2x768xf32>
    %88 = arith.addf %77, %87 : vector<2x768xf32>
    %c0_i32_50 = arith.constant 0 : i32
    %c0_i32_51 = arith.constant 0 : i32
    %c0_i32_52 = arith.constant 0 : i32
    %89 = tpu.memref_slice %arg1[%c0_i32_50, %c0_i32_51, %c0_i32_52] : memref<1x1x896xbf16, #tpu.memory_space<vmem>> -> memref<1x1x896xbf16, #tpu.memory_space<vmem>>
    %90 = tpu.memref_squeeze %89 : memref<1x1x896xbf16, #tpu.memory_space<vmem>> -> memref<1x896xbf16, #tpu.memory_space<vmem>>
    %c0_53 = arith.constant 0 : index
    %c38 = arith.constant 38 : index
    %91 = vector.load %90[%c0_53, %c38] : memref<1x896xbf16, #tpu.memory_space<vmem>>, vector<1x768xbf16>
    %c8 = arith.constant 8 : index
    %c0_54 = arith.constant 0 : index
    %c0_55 = arith.constant 0 : index
    %92 = vector.load %arg2[%c8, %c0_54, %c0_55] : memref<9x2x1xbf16, #tpu.memory_space<vmem>>, vector<1x2x1xbf16>
    %93 = vector.shape_cast %92 : vector<1x2x1xbf16> to vector<2x1xbf16>
    %94 = arith.extf %93 : vector<2x1xbf16> to vector<2x1xf32>
    %95 = arith.extf %91 : vector<1x768xbf16> to vector<1x768xf32>
    %96 = vector.broadcast %94 : vector<2x1xf32> to vector<2x768xf32>
    %97 = vector.broadcast %95 : vector<1x768xf32> to vector<2x768xf32>
    %98 = arith.mulf %96, %97 : vector<2x768xf32>
    %99 = arith.addf %88, %98 : vector<2x768xf32>
    %c0_56 = arith.constant 0 : index
    %c0_57 = arith.constant 0 : index
    %100 = vector.load %arg3[%c0_56, %c0_57] : memref<2x1xf32, #tpu.memory_space<vmem>>, vector<2x1xf32>
    %101 = vector.broadcast %100 : vector<2x1xf32> to vector<2x768xf32>
    %102 = arith.addf %99, %101 : vector<2x768xf32>
    %cst_58 = arith.constant 0.000000e+00 : f32
    %103 = vector.broadcast %cst_58 : f32 to vector<2x768xf32>
    %104 = arith.cmpf oge, %102, %103 : vector<2x768xf32>
    %cst_59 = arith.constant 0.00999999977 : f32
    %105 = vector.broadcast %cst_59 : f32 to vector<2x768xf32>
    %106 = arith.mulf %105, %102 : vector<2x768xf32>
    %107 = arith.select %104, %102, %106 : vector<2x768xi1>, vector<2x768xf32>
    %c0_60 = arith.constant 0 : index
    %c0_61 = arith.constant 0 : index
    %108 = vector.load %arg6[%c0_60, %c0_61] : memref<1x768xf32, #tpu.memory_space<vmem>>, vector<1x768xf32>
    %109 = vector.broadcast %108 : vector<1x768xf32> to vector<2x768xf32>
    %110 = arith.mulf %107, %109 : vector<2x768xf32>
    %cst_62 = arith.constant 0.000000e+00 : bf16
    %111 = vector.broadcast %cst_62 : bf16 to vector<2x128xbf16>
    %c0_63 = arith.constant 0 : index
    %c0_64 = arith.constant 0 : index
    %112 = vector.load %arg10[%c0_63, %c0_64] : memref<2x1024xbf16, #tpu.memory_space<vmem>>, vector<2x128xbf16>
    tpu.vector_store %arg10[%c0_63, %c0_64], %111 {strides = array<i32>} : memref<2x1024xbf16, #tpu.memory_space<vmem>>, vector<2x128xbf16>,
    %113 = arith.truncf %110 : vector<2x768xf32> to vector<2x768xbf16>
    %c0_65 = arith.constant 0 : index
    %c128 = arith.constant 128 : index
    %114 = vector.load %arg10[%c0_65, %c128] : memref<2x1024xbf16, #tpu.memory_space<vmem>>, vector<2x768xbf16>
    tpu.vector_store %arg10[%c0_65, %c128], %113 {strides = array<i32>} : memref<2x1024xbf16, #tpu.memory_space<vmem>>, vector<2x768xbf16>,
    %cst_66 = arith.constant 0.000000e+00 : bf16
    %115 = vector.broadcast %cst_66 : bf16 to vector<2x128xbf16>
    %c0_67 = arith.constant 0 : index
    %c896 = arith.constant 896 : index
    %116 = vector.load %arg10[%c0_67, %c896] : memref<2x1024xbf16, #tpu.memory_space<vmem>>, vector<2x128xbf16>
    tpu.vector_store %arg10[%c0_67, %c896], %115 {strides = array<i32>} : memref<2x1024xbf16, #tpu.memory_space<vmem>>, vector<2x128xbf16>,
    %cst_68 = arith.constant 0.000000e+00 : f32
    %117 = vector.broadcast %cst_68 : f32 to vector<2x768xf32>
    %c0_69 = arith.constant 0 : index
    %c109 = arith.constant 109 : index
    %118 = vector.load %arg10[%c0_69, %c109] : memref<2x1024xbf16, #tpu.memory_space<vmem>>, vector<2x768xbf16>
    %c0_70 = arith.constant 0 : index
    %c0_71 = arith.constant 0 : index
    %c0_72 = arith.constant 0 : index
    %119 = vector.load %arg4[%c0_70, %c0_71, %c0_72] : memref<9x2x2xbf16, #tpu.memory_space<vmem>>, vector<1x2x2xbf16>
    %120 = vector.shape_cast %119 : vector<1x2x2xbf16> to vector<2x2xbf16>
    %cst_73 = arith.constant dense<0.000000e+00> : vector<2x768xf32>
    %121 = tpu.matmul %120, %118, %cst_73 {dimension_numbers = #tpu.dot_dimension_numbers<[1], [0], [0], [1], [0, 0, 1, 1], [], []>} : vector<2x2xbf16>, vector<2x768xbf16>, vector<2x768xf32> -> vector<2x768xf32>
    %122 = arith.addf %117, %121 : vector<2x768xf32>
    %c0_74 = arith.constant 0 : index
    %c110 = arith.constant 110 : index
    %123 = vector.load %arg10[%c0_74, %c110] : memref<2x1024xbf16, #tpu.memory_space<vmem>>, vector<2x768xbf16>
    %c1_75 = arith.constant 1 : index
    %c0_76 = arith.constant 0 : index
    %c0_77 = arith.constant 0 : index
    %124 = vector.load %arg4[%c1_75, %c0_76, %c0_77] : memref<9x2x2xbf16, #tpu.memory_space<vmem>>, vector<1x2x2xbf16>
    %125 = vector.shape_cast %124 : vector<1x2x2xbf16> to vector<2x2xbf16>
    %cst_78 = arith.constant dense<0.000000e+00> : vector<2x768xf32>
    %126 = tpu.matmul %125, %123, %cst_78 {dimension_numbers = #tpu.dot_dimension_numbers<[1], [0], [0], [1], [0, 0, 1, 1], [], []>} : vector<2x2xbf16>, vector<2x768xbf16>, vector<2x768xf32> -> vector<2x768xf32>
    %127 = arith.addf %122, %126 : vector<2x768xf32>
    %c0_79 = arith.constant 0 : index
    %c111 = arith.constant 111 : index
    %128 = vector.load %arg10[%c0_79, %c111] : memref<2x1024xbf16, #tpu.memory_space<vmem>>, vector<2x768xbf16>
    %c2_80 = arith.constant 2 : index
    %c0_81 = arith.constant 0 : index
    %c0_82 = arith.constant 0 : index
    %129 = vector.load %arg4[%c2_80, %c0_81, %c0_82] : memref<9x2x2xbf16, #tpu.memory_space<vmem>>, vector<1x2x2xbf16>
    %130 = vector.shape_cast %129 : vector<1x2x2xbf16> to vector<2x2xbf16>
    %cst_83 = arith.constant dense<0.000000e+00> : vector<2x768xf32>
    %131 = tpu.matmul %130, %128, %cst_83 {dimension_numbers = #tpu.dot_dimension_numbers<[1], [0], [0], [1], [0, 0, 1, 1], [], []>} : vector<2x2xbf16>, vector<2x768xbf16>, vector<2x768xf32> -> vector<2x768xf32>
    %132 = arith.addf %127, %131 : vector<2x768xf32>
    %c0_84 = arith.constant 0 : index
    %c127 = arith.constant 127 : index
    %133 = vector.load %arg10[%c0_84, %c127] : memref<2x1024xbf16, #tpu.memory_space<vmem>>, vector<2x768xbf16>
    %c3_85 = arith.constant 3 : index
    %c0_86 = arith.constant 0 : index
    %c0_87 = arith.constant 0 : index
    %134 = vector.load %arg4[%c3_85, %c0_86, %c0_87] : memref<9x2x2xbf16, #tpu.memory_space<vmem>>, vector<1x2x2xbf16>
    %135 = vector.shape_cast %134 : vector<1x2x2xbf16> to vector<2x2xbf16>
    %cst_88 = arith.constant dense<0.000000e+00> : vector<2x768xf32>
    %136 = tpu.matmul %135, %133, %cst_88 {dimension_numbers = #tpu.dot_dimension_numbers<[1], [0], [0], [1], [0, 0, 1, 1], [], []>} : vector<2x2xbf16>, vector<2x768xbf16>, vector<2x768xf32> -> vector<2x768xf32>
    %137 = arith.addf %132, %136 : vector<2x768xf32>
    %c0_89 = arith.constant 0 : index
    %c128_90 = arith.constant 128 : index
    %138 = vector.load %arg10[%c0_89, %c128_90] : memref<2x1024xbf16, #tpu.memory_space<vmem>>, vector<2x768xbf16>
    %c4_91 = arith.constant 4 : index
    %c0_92 = arith.constant 0 : index
    %c0_93 = arith.constant 0 : index
    %139 = vector.load %arg4[%c4_91, %c0_92, %c0_93] : memref<9x2x2xbf16, #tpu.memory_space<vmem>>, vector<1x2x2xbf16>
    %140 = vector.shape_cast %139 : vector<1x2x2xbf16> to vector<2x2xbf16>
    %cst_94 = arith.constant dense<0.000000e+00> : vector<2x768xf32>
    %141 = tpu.matmul %140, %138, %cst_94 {dimension_numbers = #tpu.dot_dimension_numbers<[1], [0], [0], [1], [0, 0, 1, 1], [], []>} : vector<2x2xbf16>, vector<2x768xbf16>, vector<2x768xf32> -> vector<2x768xf32>
    %142 = arith.addf %137, %141 : vector<2x768xf32>
    %c0_95 = arith.constant 0 : index
    %c129 = arith.constant 129 : index
    %143 = vector.load %arg10[%c0_95, %c129] : memref<2x1024xbf16, #tpu.memory_space<vmem>>, vector<2x768xbf16>
    %c5_96 = arith.constant 5 : index
    %c0_97 = arith.constant 0 : index
    %c0_98 = arith.constant 0 : index
    %144 = vector.load %arg4[%c5_96, %c0_97, %c0_98] : memref<9x2x2xbf16, #tpu.memory_space<vmem>>, vector<1x2x2xbf16>
    %145 = vector.shape_cast %144 : vector<1x2x2xbf16> to vector<2x2xbf16>
    %cst_99 = arith.constant dense<0.000000e+00> : vector<2x768xf32>
    %146 = tpu.matmul %145, %143, %cst_99 {dimension_numbers = #tpu.dot_dimension_numbers<[1], [0], [0], [1], [0, 0, 1, 1], [], []>} : vector<2x2xbf16>, vector<2x768xbf16>, vector<2x768xf32> -> vector<2x768xf32>
    %147 = arith.addf %142, %146 : vector<2x768xf32>
    %c0_100 = arith.constant 0 : index
    %c145 = arith.constant 145 : index
    %148 = vector.load %arg10[%c0_100, %c145] : memref<2x1024xbf16, #tpu.memory_space<vmem>>, vector<2x768xbf16>
    %c6_101 = arith.constant 6 : index
    %c0_102 = arith.constant 0 : index
    %c0_103 = arith.constant 0 : index
    %149 = vector.load %arg4[%c6_101, %c0_102, %c0_103] : memref<9x2x2xbf16, #tpu.memory_space<vmem>>, vector<1x2x2xbf16>
    %150 = vector.shape_cast %149 : vector<1x2x2xbf16> to vector<2x2xbf16>
    %cst_104 = arith.constant dense<0.000000e+00> : vector<2x768xf32>
    %151 = tpu.matmul %150, %148, %cst_104 {dimension_numbers = #tpu.dot_dimension_numbers<[1], [0], [0], [1], [0, 0, 1, 1], [], []>} : vector<2x2xbf16>, vector<2x768xbf16>, vector<2x768xf32> -> vector<2x768xf32>
    %152 = arith.addf %147, %151 : vector<2x768xf32>
    %c0_105 = arith.constant 0 : index
    %c146 = arith.constant 146 : index
    %153 = vector.load %arg10[%c0_105, %c146] : memref<2x1024xbf16, #tpu.memory_space<vmem>>, vector<2x768xbf16>
    %c7_106 = arith.constant 7 : index
    %c0_107 = arith.constant 0 : index
    %c0_108 = arith.constant 0 : index
    %154 = vector.load %arg4[%c7_106, %c0_107, %c0_108] : memref<9x2x2xbf16, #tpu.memory_space<vmem>>, vector<1x2x2xbf16>
    %155 = vector.shape_cast %154 : vector<1x2x2xbf16> to vector<2x2xbf16>
    %cst_109 = arith.constant dense<0.000000e+00> : vector<2x768xf32>
    %156 = tpu.matmul %155, %153, %cst_109 {dimension_numbers = #tpu.dot_dimension_numbers<[1], [0], [0], [1], [0, 0, 1, 1], [], []>} : vector<2x2xbf16>, vector<2x768xbf16>, vector<2x768xf32> -> vector<2x768xf32>
    %157 = arith.addf %152, %156 : vector<2x768xf32>
    %c0_110 = arith.constant 0 : index
    %c147 = arith.constant 147 : index
    %158 = vector.load %arg10[%c0_110, %c147] : memref<2x1024xbf16, #tpu.memory_space<vmem>>, vector<2x768xbf16>
    %c8_111 = arith.constant 8 : index
    %c0_112 = arith.constant 0 : index
    %c0_113 = arith.constant 0 : index
    %159 = vector.load %arg4[%c8_111, %c0_112, %c0_113] : memref<9x2x2xbf16, #tpu.memory_space<vmem>>, vector<1x2x2xbf16>
    %160 = vector.shape_cast %159 : vector<1x2x2xbf16> to vector<2x2xbf16>
    %cst_114 = arith.constant dense<0.000000e+00> : vector<2x768xf32>
    %161 = tpu.matmul %160, %158, %cst_114 {dimension_numbers = #tpu.dot_dimension_numbers<[1], [0], [0], [1], [0, 0, 1, 1], [], []>} : vector<2x2xbf16>, vector<2x768xbf16>, vector<2x768xf32> -> vector<2x768xf32>
    %162 = arith.addf %157, %161 : vector<2x768xf32>
    %c0_115 = arith.constant 0 : index
    %c0_116 = arith.constant 0 : index
    %163 = vector.load %arg5[%c0_115, %c0_116] : memref<2x1xf32, #tpu.memory_space<vmem>>, vector<2x1xf32>
    %164 = vector.broadcast %163 : vector<2x1xf32> to vector<2x768xf32>
    %165 = arith.addf %162, %164 : vector<2x768xf32>
    %cst_117 = arith.constant 0.000000e+00 : f32
    %166 = vector.broadcast %cst_117 : f32 to vector<2x768xf32>
    %167 = arith.cmpf oge, %165, %166 : vector<2x768xf32>
    %cst_118 = arith.constant 0.00999999977 : f32
    %168 = vector.broadcast %cst_118 : f32 to vector<2x768xf32>
    %169 = arith.mulf %168, %165 : vector<2x768xf32>
    %170 = arith.select %167, %165, %169 : vector<2x768xi1>, vector<2x768xf32>
    %c0_119 = arith.constant 0 : index
    %c0_120 = arith.constant 0 : index
    %c0_121 = arith.constant 0 : index
    %171 = vector.load %arg8[%c0_119, %c0_120, %c0_121] : memref<1x2x768xf32, #tpu.memory_space<vmem>>, vector<1x2x768xf32>
    %172 = vector.shape_cast %171 : vector<1x2x768xf32> to vector<2x768xf32>
    %173 = vector.shape_cast %170 : vector<2x768xf32> to vector<1x2x768xf32>
    tpu.vector_store %arg8[%c0_119, %c0_120, %c0_121], %173 {strides = array<i32>} : memref<1x2x768xf32, #tpu.memory_space<vmem>>, vector<1x2x768xf32>,
    %174 = arith.truncf %170 : vector<2x768xf32> to vector<2x768xbf16>
    %c0_122 = arith.constant 0 : index
    %c0_123 = arith.constant 0 : index
    %175 = vector.load %arg7[%c0_122, %c0_123] : memref<768x384xbf16, #tpu.memory_space<vmem>>, vector<768x384xbf16>
    %cst_124 = arith.constant dense<0.000000e+00> : vector<2x384xf32>
    %176 = tpu.matmul %174, %175, %cst_124 {dimension_numbers = #tpu.dot_dimension_numbers<[1], [0], [0], [1], [0, 0, 1, 1], [], []>} : vector<2x768xbf16>, vector<768x384xbf16>, vector<2x384xf32> -> vector<2x384xf32>
    %177 = arith.truncf %176 : vector<2x384xf32> to vector<2x384xbf16>
    %c0_125 = arith.constant 0 : index
    %c0_126 = arith.constant 0 : index
    %c0_127 = arith.constant 0 : index
    %178 = vector.load %arg9[%c0_125, %c0_126, %c0_127] : memref<1x2x384xbf16, #tpu.memory_space<vmem>>, vector<1x2x384xbf16>
    %179 = vector.shape_cast %178 : vector<1x2x384xbf16> to vector<2x384xbf16>
    %180 = vector.shape_cast %177 : vector<2x384xbf16> to vector<1x2x384xbf16>
    tpu.vector_store %arg9[%c0_125, %c0_126, %c0_127], %180 {strides = array<i32>} : memref<1x2x384xbf16, #tpu.memory_space<vmem>>, vector<1x2x384xbf16>,
    return
  }
  func.func @transform_0(%arg0: i32) -> (i32, i32, i32) {
    %c0_i32 = arith.constant 0 : i32
    %c0_i32_0 = arith.constant 0 : i32
    %c0_i32_1 = arith.constant 0 : i32
    return %arg0, %c0_i32, %c0_i32_0 : i32, i32, i32
  }
  func.func @transform_1(%arg0: i32) -> (i32, i32, i32) {
    %c0_i32 = arith.constant 0 : i32
    %c0_i32_0 = arith.constant 0 : i32
    %c0_i32_1 = arith.constant 0 : i32
    %c0_i32_2 = arith.constant 0 : i32
    return %c0_i32, %c0_i32_0, %c0_i32_1 : i32, i32, i32
  }
  func.func @transform_2(%arg0: i32) -> (i32, i32) {
    %c0_i32 = arith.constant 0 : i32
    %c0_i32_0 = arith.constant 0 : i32
    %c0_i32_1 = arith.constant 0 : i32
    return %c0_i32, %c0_i32_0 : i32, i32
  }
  func.func @transform_3(%arg0: i32) -> (i32, i32, i32) {
    %c0_i32 = arith.constant 0 : i32
    %c0_i32_0 = arith.constant 0 : i32
    %c0_i32_1 = arith.constant 0 : i32
    %c0_i32_2 = arith.constant 0 : i32
    return %c0_i32, %c0_i32_0, %c0_i32_1 : i32, i32, i32
  }
  func.func @transform_4(%arg0: i32) -> (i32, i32) {
    %c0_i32 = arith.constant 0 : i32
    %c0_i32_0 = arith.constant 0 : i32
    %c0_i32_1 = arith.constant 0 : i32
    return %c0_i32, %c0_i32_0 : i32, i32
  }
  func.func @transform_5(%arg0: i32) -> (i32, i32) {
    %c0_i32 = arith.constant 0 : i32
    %c0_i32_0 = arith.constant 0 : i32
    %c0_i32_1 = arith.constant 0 : i32
    return %c0_i32, %c0_i32_0 : i32, i32
  }
  func.func @transform_6(%arg0: i32) -> (i32, i32) {
    %c0_i32 = arith.constant 0 : i32
    %c0_i32_0 = arith.constant 0 : i32
    %c0_i32_1 = arith.constant 0 : i32
    return %c0_i32, %c0_i32_0 : i32, i32
  }
  func.func @transform_7(%arg0: i32) -> (i32, i32, i32) {
    %c0_i32 = arith.constant 0 : i32
    %c0_i32_0 = arith.constant 0 : i32
    %c0_i32_1 = arith.constant 0 : i32
    return %arg0, %c0_i32, %c0_i32_0 : i32, i32, i32
  }
  func.func @transform_8(%arg0: i32) -> (i32, i32, i32) {
    %c0_i32 = arith.constant 0 : i32
    %c0_i32_0 = arith.constant 0 : i32
    %c0_i32_1 = arith.constant 0 : i32
    return %arg0, %c0_i32, %c0_i32_0 : i32, i32, i32
  }
}

module attributes {stable_mosaic.version = 11 : i64} {
  func.func @_encoder_kernel(%arg0: i32, %arg1: memref<1x2x384xbf16, #tpu.memory_space<vmem>>, %arg2: memref<9x4x2xbf16, #tpu.memory_space<vmem>>, %arg3: memref<4x1xf32, #tpu.memory_space<vmem>>, %arg4: memref<9x4x4xbf16, #tpu.memory_space<vmem>>, %arg5: memref<4x1xf32, #tpu.memory_space<vmem>>, %arg6: memref<1x256xf32, #tpu.memory_space<vmem>>, %arg7: memref<256x256xbf16, #tpu.memory_space<vmem>>, %arg8: memref<1x4x256xf32, #tpu.memory_space<vmem>>, %arg9: memref<1x4x256xbf16, #tpu.memory_space<vmem>>, %arg10: memref<4x512xbf16, #tpu.memory_space<vmem>>) attributes {dimension_semantics = [#tpu.dimension_semantics<parallel>], iteration_bounds = array<i64: 2>, scalar_prefetch = 0 : i64, scratch_operands = 1 : i64, tpu.core_type = #tpu.core_type<tc>, window_params = [{transform_indices = @transform_0, window_bounds = array<i64: 1, 2, 384>}, {pipeline_mode = #tpu.pipeline_mode<synchronous>, transform_indices = @transform_1, window_bounds = array<i64: 9, 4, 2>}, {pipeline_mode = #tpu.pipeline_mode<synchronous>, transform_indices = @transform_2, window_bounds = array<i64: 4, 1>}, {pipeline_mode = #tpu.pipeline_mode<synchronous>, transform_indices = @transform_3, window_bounds = array<i64: 9, 4, 4>}, {pipeline_mode = #tpu.pipeline_mode<synchronous>, transform_indices = @transform_4, window_bounds = array<i64: 4, 1>}, {pipeline_mode = #tpu.pipeline_mode<synchronous>, transform_indices = @transform_5, window_bounds = array<i64: 1, 256>}, {pipeline_mode = #tpu.pipeline_mode<synchronous>, transform_indices = @transform_6, window_bounds = array<i64: 256, 256>}, {transform_indices = @transform_7, window_bounds = array<i64: 1, 4, 256>}, {transform_indices = @transform_8, window_bounds = array<i64: 1, 4, 256>}]} {
    %cst = arith.constant 0.000000e+00 : f32
    %0 = vector.broadcast %cst : f32 to vector<4x256xf32>
    %c0_i32 = arith.constant 0 : i32
    %c0_i32_0 = arith.constant 0 : i32
    %c0_i32_1 = arith.constant 0 : i32
    %1 = tpu.memref_slice %arg1[%c0_i32, %c0_i32_0, %c0_i32_1] : memref<1x2x384xbf16, #tpu.memory_space<vmem>> -> memref<1x2x384xbf16, #tpu.memory_space<vmem>>
    %2 = tpu.memref_squeeze %1 : memref<1x2x384xbf16, #tpu.memory_space<vmem>> -> memref<2x384xbf16, #tpu.memory_space<vmem>>
    %c0 = arith.constant 0 : index
    %c0_2 = arith.constant 0 : index
    %3 = vector.load %2[%c0, %c0_2] : memref<2x384xbf16, #tpu.memory_space<vmem>>, vector<2x256xbf16>
    %c0_3 = arith.constant 0 : index
    %c0_4 = arith.constant 0 : index
    %c0_5 = arith.constant 0 : index
    %4 = vector.load %arg2[%c0_3, %c0_4, %c0_5] : memref<9x4x2xbf16, #tpu.memory_space<vmem>>, vector<1x4x2xbf16>
    %5 = vector.shape_cast %4 : vector<1x4x2xbf16> to vector<4x2xbf16>
    %cst_6 = arith.constant dense<0.000000e+00> : vector<4x256xf32>
    %6 = tpu.matmul %5, %3, %cst_6 {dimension_numbers = #tpu.dot_dimension_numbers<[1], [0], [0], [1], [0, 0, 1, 1], [], []>} : vector<4x2xbf16>, vector<2x256xbf16>, vector<4x256xf32> -> vector<4x256xf32>
    %7 = arith.addf %0, %6 : vector<4x256xf32>
    %c0_i32_7 = arith.constant 0 : i32
    %c0_i32_8 = arith.constant 0 : i32
    %c0_i32_9 = arith.constant 0 : i32
    %8 = tpu.memref_slice %arg1[%c0_i32_7, %c0_i32_8, %c0_i32_9] : memref<1x2x384xbf16, #tpu.memory_space<vmem>> -> memref<1x2x384xbf16, #tpu.memory_space<vmem>>
    %9 = tpu.memref_squeeze %8 : memref<1x2x384xbf16, #tpu.memory_space<vmem>> -> memref<2x384xbf16, #tpu.memory_space<vmem>>
    %c0_10 = arith.constant 0 : index
    %c1 = arith.constant 1 : index
    %10 = vector.load %9[%c0_10, %c1] : memref<2x384xbf16, #tpu.memory_space<vmem>>, vector<2x256xbf16>
    %c1_11 = arith.constant 1 : index
    %c0_12 = arith.constant 0 : index
    %c0_13 = arith.constant 0 : index
    %11 = vector.load %arg2[%c1_11, %c0_12, %c0_13] : memref<9x4x2xbf16, #tpu.memory_space<vmem>>, vector<1x4x2xbf16>
    %12 = vector.shape_cast %11 : vector<1x4x2xbf16> to vector<4x2xbf16>
    %cst_14 = arith.constant dense<0.000000e+00> : vector<4x256xf32>
    %13 = tpu.matmul %12, %10, %cst_14 {dimension_numbers = #tpu.dot_dimension_numbers<[1], [0], [0], [1], [0, 0, 1, 1], [], []>} : vector<4x2xbf16>, vector<2x256xbf16>, vector<4x256xf32> -> vector<4x256xf32>
    %14 = arith.addf %7, %13 : vector<4x256xf32>
    %c0_i32_15 = arith.constant 0 : i32
    %c0_i32_16 = arith.constant 0 : i32
    %c0_i32_17 = arith.constant 0 : i32
    %15 = tpu.memref_slice %arg1[%c0_i32_15, %c0_i32_16, %c0_i32_17] : memref<1x2x384xbf16, #tpu.memory_space<vmem>> -> memref<1x2x384xbf16, #tpu.memory_space<vmem>>
    %16 = tpu.memref_squeeze %15 : memref<1x2x384xbf16, #tpu.memory_space<vmem>> -> memref<2x384xbf16, #tpu.memory_space<vmem>>
    %c0_18 = arith.constant 0 : index
    %c2 = arith.constant 2 : index
    %17 = vector.load %16[%c0_18, %c2] : memref<2x384xbf16, #tpu.memory_space<vmem>>, vector<2x256xbf16>
    %c2_19 = arith.constant 2 : index
    %c0_20 = arith.constant 0 : index
    %c0_21 = arith.constant 0 : index
    %18 = vector.load %arg2[%c2_19, %c0_20, %c0_21] : memref<9x4x2xbf16, #tpu.memory_space<vmem>>, vector<1x4x2xbf16>
    %19 = vector.shape_cast %18 : vector<1x4x2xbf16> to vector<4x2xbf16>
    %cst_22 = arith.constant dense<0.000000e+00> : vector<4x256xf32>
    %20 = tpu.matmul %19, %17, %cst_22 {dimension_numbers = #tpu.dot_dimension_numbers<[1], [0], [0], [1], [0, 0, 1, 1], [], []>} : vector<4x2xbf16>, vector<2x256xbf16>, vector<4x256xf32> -> vector<4x256xf32>
    %21 = arith.addf %14, %20 : vector<4x256xf32>
    %c0_i32_23 = arith.constant 0 : i32
    %c0_i32_24 = arith.constant 0 : i32
    %c0_i32_25 = arith.constant 0 : i32
    %22 = tpu.memref_slice %arg1[%c0_i32_23, %c0_i32_24, %c0_i32_25] : memref<1x2x384xbf16, #tpu.memory_space<vmem>> -> memref<1x2x384xbf16, #tpu.memory_space<vmem>>
    %23 = tpu.memref_squeeze %22 : memref<1x2x384xbf16, #tpu.memory_space<vmem>> -> memref<2x384xbf16, #tpu.memory_space<vmem>>
    %c0_26 = arith.constant 0 : index
    %c10 = arith.constant 10 : index
    %24 = vector.load %23[%c0_26, %c10] : memref<2x384xbf16, #tpu.memory_space<vmem>>, vector<2x256xbf16>
    %c3 = arith.constant 3 : index
    %c0_27 = arith.constant 0 : index
    %c0_28 = arith.constant 0 : index
    %25 = vector.load %arg2[%c3, %c0_27, %c0_28] : memref<9x4x2xbf16, #tpu.memory_space<vmem>>, vector<1x4x2xbf16>
    %26 = vector.shape_cast %25 : vector<1x4x2xbf16> to vector<4x2xbf16>
    %cst_29 = arith.constant dense<0.000000e+00> : vector<4x256xf32>
    %27 = tpu.matmul %26, %24, %cst_29 {dimension_numbers = #tpu.dot_dimension_numbers<[1], [0], [0], [1], [0, 0, 1, 1], [], []>} : vector<4x2xbf16>, vector<2x256xbf16>, vector<4x256xf32> -> vector<4x256xf32>
    %28 = arith.addf %21, %27 : vector<4x256xf32>
    %c0_i32_30 = arith.constant 0 : i32
    %c0_i32_31 = arith.constant 0 : i32
    %c0_i32_32 = arith.constant 0 : i32
    %29 = tpu.memref_slice %arg1[%c0_i32_30, %c0_i32_31, %c0_i32_32] : memref<1x2x384xbf16, #tpu.memory_space<vmem>> -> memref<1x2x384xbf16, #tpu.memory_space<vmem>>
    %30 = tpu.memref_squeeze %29 : memref<1x2x384xbf16, #tpu.memory_space<vmem>> -> memref<2x384xbf16, #tpu.memory_space<vmem>>
    %c0_33 = arith.constant 0 : index
    %c11 = arith.constant 11 : index
    %31 = vector.load %30[%c0_33, %c11] : memref<2x384xbf16, #tpu.memory_space<vmem>>, vector<2x256xbf16>
    %c4 = arith.constant 4 : index
    %c0_34 = arith.constant 0 : index
    %c0_35 = arith.constant 0 : index
    %32 = vector.load %arg2[%c4, %c0_34, %c0_35] : memref<9x4x2xbf16, #tpu.memory_space<vmem>>, vector<1x4x2xbf16>
    %33 = vector.shape_cast %32 : vector<1x4x2xbf16> to vector<4x2xbf16>
    %cst_36 = arith.constant dense<0.000000e+00> : vector<4x256xf32>
    %34 = tpu.matmul %33, %31, %cst_36 {dimension_numbers = #tpu.dot_dimension_numbers<[1], [0], [0], [1], [0, 0, 1, 1], [], []>} : vector<4x2xbf16>, vector<2x256xbf16>, vector<4x256xf32> -> vector<4x256xf32>
    %35 = arith.addf %28, %34 : vector<4x256xf32>
    %c0_i32_37 = arith.constant 0 : i32
    %c0_i32_38 = arith.constant 0 : i32
    %c0_i32_39 = arith.constant 0 : i32
    %36 = tpu.memref_slice %arg1[%c0_i32_37, %c0_i32_38, %c0_i32_39] : memref<1x2x384xbf16, #tpu.memory_space<vmem>> -> memref<1x2x384xbf16, #tpu.memory_space<vmem>>
    %37 = tpu.memref_squeeze %36 : memref<1x2x384xbf16, #tpu.memory_space<vmem>> -> memref<2x384xbf16, #tpu.memory_space<vmem>>
    %c0_40 = arith.constant 0 : index
    %c12 = arith.constant 12 : index
    %38 = vector.load %37[%c0_40, %c12] : memref<2x384xbf16, #tpu.memory_space<vmem>>, vector<2x256xbf16>
    %c5 = arith.constant 5 : index
    %c0_41 = arith.constant 0 : index
    %c0_42 = arith.constant 0 : index
    %39 = vector.load %arg2[%c5, %c0_41, %c0_42] : memref<9x4x2xbf16, #tpu.memory_space<vmem>>, vector<1x4x2xbf16>
    %40 = vector.shape_cast %39 : vector<1x4x2xbf16> to vector<4x2xbf16>
    %cst_43 = arith.constant dense<0.000000e+00> : vector<4x256xf32>
    %41 = tpu.matmul %40, %38, %cst_43 {dimension_numbers = #tpu.dot_dimension_numbers<[1], [0], [0], [1], [0, 0, 1, 1], [], []>} : vector<4x2xbf16>, vector<2x256xbf16>, vector<4x256xf32> -> vector<4x256xf32>
    %42 = arith.addf %35, %41 : vector<4x256xf32>
    %c0_i32_44 = arith.constant 0 : i32
    %c0_i32_45 = arith.constant 0 : i32
    %c0_i32_46 = arith.constant 0 : i32
    %43 = tpu.memref_slice %arg1[%c0_i32_44, %c0_i32_45, %c0_i32_46] : memref<1x2x384xbf16, #tpu.memory_space<vmem>> -> memref<1x2x384xbf16, #tpu.memory_space<vmem>>
    %44 = tpu.memref_squeeze %43 : memref<1x2x384xbf16, #tpu.memory_space<vmem>> -> memref<2x384xbf16, #tpu.memory_space<vmem>>
    %c0_47 = arith.constant 0 : index
    %c20 = arith.constant 20 : index
    %45 = vector.load %44[%c0_47, %c20] : memref<2x384xbf16, #tpu.memory_space<vmem>>, vector<2x256xbf16>
    %c6 = arith.constant 6 : index
    %c0_48 = arith.constant 0 : index
    %c0_49 = arith.constant 0 : index
    %46 = vector.load %arg2[%c6, %c0_48, %c0_49] : memref<9x4x2xbf16, #tpu.memory_space<vmem>>, vector<1x4x2xbf16>
    %47 = vector.shape_cast %46 : vector<1x4x2xbf16> to vector<4x2xbf16>
    %cst_50 = arith.constant dense<0.000000e+00> : vector<4x256xf32>
    %48 = tpu.matmul %47, %45, %cst_50 {dimension_numbers = #tpu.dot_dimension_numbers<[1], [0], [0], [1], [0, 0, 1, 1], [], []>} : vector<4x2xbf16>, vector<2x256xbf16>, vector<4x256xf32> -> vector<4x256xf32>
    %49 = arith.addf %42, %48 : vector<4x256xf32>
    %c0_i32_51 = arith.constant 0 : i32
    %c0_i32_52 = arith.constant 0 : i32
    %c0_i32_53 = arith.constant 0 : i32
    %50 = tpu.memref_slice %arg1[%c0_i32_51, %c0_i32_52, %c0_i32_53] : memref<1x2x384xbf16, #tpu.memory_space<vmem>> -> memref<1x2x384xbf16, #tpu.memory_space<vmem>>
    %51 = tpu.memref_squeeze %50 : memref<1x2x384xbf16, #tpu.memory_space<vmem>> -> memref<2x384xbf16, #tpu.memory_space<vmem>>
    %c0_54 = arith.constant 0 : index
    %c21 = arith.constant 21 : index
    %52 = vector.load %51[%c0_54, %c21] : memref<2x384xbf16, #tpu.memory_space<vmem>>, vector<2x256xbf16>
    %c7 = arith.constant 7 : index
    %c0_55 = arith.constant 0 : index
    %c0_56 = arith.constant 0 : index
    %53 = vector.load %arg2[%c7, %c0_55, %c0_56] : memref<9x4x2xbf16, #tpu.memory_space<vmem>>, vector<1x4x2xbf16>
    %54 = vector.shape_cast %53 : vector<1x4x2xbf16> to vector<4x2xbf16>
    %cst_57 = arith.constant dense<0.000000e+00> : vector<4x256xf32>
    %55 = tpu.matmul %54, %52, %cst_57 {dimension_numbers = #tpu.dot_dimension_numbers<[1], [0], [0], [1], [0, 0, 1, 1], [], []>} : vector<4x2xbf16>, vector<2x256xbf16>, vector<4x256xf32> -> vector<4x256xf32>
    %56 = arith.addf %49, %55 : vector<4x256xf32>
    %c0_i32_58 = arith.constant 0 : i32
    %c0_i32_59 = arith.constant 0 : i32
    %c0_i32_60 = arith.constant 0 : i32
    %57 = tpu.memref_slice %arg1[%c0_i32_58, %c0_i32_59, %c0_i32_60] : memref<1x2x384xbf16, #tpu.memory_space<vmem>> -> memref<1x2x384xbf16, #tpu.memory_space<vmem>>
    %58 = tpu.memref_squeeze %57 : memref<1x2x384xbf16, #tpu.memory_space<vmem>> -> memref<2x384xbf16, #tpu.memory_space<vmem>>
    %c0_61 = arith.constant 0 : index
    %c22 = arith.constant 22 : index
    %59 = vector.load %58[%c0_61, %c22] : memref<2x384xbf16, #tpu.memory_space<vmem>>, vector<2x256xbf16>
    %c8 = arith.constant 8 : index
    %c0_62 = arith.constant 0 : index
    %c0_63 = arith.constant 0 : index
    %60 = vector.load %arg2[%c8, %c0_62, %c0_63] : memref<9x4x2xbf16, #tpu.memory_space<vmem>>, vector<1x4x2xbf16>
    %61 = vector.shape_cast %60 : vector<1x4x2xbf16> to vector<4x2xbf16>
    %cst_64 = arith.constant dense<0.000000e+00> : vector<4x256xf32>
    %62 = tpu.matmul %61, %59, %cst_64 {dimension_numbers = #tpu.dot_dimension_numbers<[1], [0], [0], [1], [0, 0, 1, 1], [], []>} : vector<4x2xbf16>, vector<2x256xbf16>, vector<4x256xf32> -> vector<4x256xf32>
    %63 = arith.addf %56, %62 : vector<4x256xf32>
    %c0_65 = arith.constant 0 : index
    %c0_66 = arith.constant 0 : index
    %64 = vector.load %arg3[%c0_65, %c0_66] : memref<4x1xf32, #tpu.memory_space<vmem>>, vector<4x1xf32>
    %65 = vector.broadcast %64 : vector<4x1xf32> to vector<4x256xf32>
    %66 = arith.addf %63, %65 : vector<4x256xf32>
    %cst_67 = arith.constant 0.000000e+00 : f32
    %67 = vector.broadcast %cst_67 : f32 to vector<4x256xf32>
    %68 = arith.cmpf oge, %66, %67 : vector<4x256xf32>
    %cst_68 = arith.constant 0.00999999977 : f32
    %69 = vector.broadcast %cst_68 : f32 to vector<4x256xf32>
    %70 = arith.mulf %69, %66 : vector<4x256xf32>
    %71 = arith.select %68, %66, %70 : vector<4x256xi1>, vector<4x256xf32>
    %c0_69 = arith.constant 0 : index
    %c0_70 = arith.constant 0 : index
    %72 = vector.load %arg6[%c0_69, %c0_70] : memref<1x256xf32, #tpu.memory_space<vmem>>, vector<1x256xf32>
    %73 = vector.broadcast %72 : vector<1x256xf32> to vector<4x256xf32>
    %74 = arith.mulf %71, %73 : vector<4x256xf32>
    %cst_71 = arith.constant 0.000000e+00 : bf16
    %75 = vector.broadcast %cst_71 : bf16 to vector<4x128xbf16>
    %c0_72 = arith.constant 0 : index
    %c0_73 = arith.constant 0 : index
    %76 = vector.load %arg10[%c0_72, %c0_73] : memref<4x512xbf16, #tpu.memory_space<vmem>>, vector<4x128xbf16>
    tpu.vector_store %arg10[%c0_72, %c0_73], %75 {strides = array<i32>} : memref<4x512xbf16, #tpu.memory_space<vmem>>, vector<4x128xbf16>,
    %77 = arith.truncf %74 : vector<4x256xf32> to vector<4x256xbf16>
    %c0_74 = arith.constant 0 : index
    %c128 = arith.constant 128 : index
    %78 = vector.load %arg10[%c0_74, %c128] : memref<4x512xbf16, #tpu.memory_space<vmem>>, vector<4x256xbf16>
    tpu.vector_store %arg10[%c0_74, %c128], %77 {strides = array<i32>} : memref<4x512xbf16, #tpu.memory_space<vmem>>, vector<4x256xbf16>,
    %cst_75 = arith.constant 0.000000e+00 : bf16
    %79 = vector.broadcast %cst_75 : bf16 to vector<4x128xbf16>
    %c0_76 = arith.constant 0 : index
    %c384 = arith.constant 384 : index
    %80 = vector.load %arg10[%c0_76, %c384] : memref<4x512xbf16, #tpu.memory_space<vmem>>, vector<4x128xbf16>
    tpu.vector_store %arg10[%c0_76, %c384], %79 {strides = array<i32>} : memref<4x512xbf16, #tpu.memory_space<vmem>>, vector<4x128xbf16>,
    %cst_77 = arith.constant 0.000000e+00 : f32
    %81 = vector.broadcast %cst_77 : f32 to vector<4x256xf32>
    %c0_78 = arith.constant 0 : index
    %c117 = arith.constant 117 : index
    %82 = vector.load %arg10[%c0_78, %c117] : memref<4x512xbf16, #tpu.memory_space<vmem>>, vector<4x256xbf16>
    %c0_79 = arith.constant 0 : index
    %c0_80 = arith.constant 0 : index
    %c0_81 = arith.constant 0 : index
    %83 = vector.load %arg4[%c0_79, %c0_80, %c0_81] : memref<9x4x4xbf16, #tpu.memory_space<vmem>>, vector<1x4x4xbf16>
    %84 = vector.shape_cast %83 : vector<1x4x4xbf16> to vector<4x4xbf16>
    %cst_82 = arith.constant dense<0.000000e+00> : vector<4x256xf32>
    %85 = tpu.matmul %84, %82, %cst_82 {dimension_numbers = #tpu.dot_dimension_numbers<[1], [0], [0], [1], [0, 0, 1, 1], [], []>} : vector<4x4xbf16>, vector<4x256xbf16>, vector<4x256xf32> -> vector<4x256xf32>
    %86 = arith.addf %81, %85 : vector<4x256xf32>
    %c0_83 = arith.constant 0 : index
    %c118 = arith.constant 118 : index
    %87 = vector.load %arg10[%c0_83, %c118] : memref<4x512xbf16, #tpu.memory_space<vmem>>, vector<4x256xbf16>
    %c1_84 = arith.constant 1 : index
    %c0_85 = arith.constant 0 : index
    %c0_86 = arith.constant 0 : index
    %88 = vector.load %arg4[%c1_84, %c0_85, %c0_86] : memref<9x4x4xbf16, #tpu.memory_space<vmem>>, vector<1x4x4xbf16>
    %89 = vector.shape_cast %88 : vector<1x4x4xbf16> to vector<4x4xbf16>
    %cst_87 = arith.constant dense<0.000000e+00> : vector<4x256xf32>
    %90 = tpu.matmul %89, %87, %cst_87 {dimension_numbers = #tpu.dot_dimension_numbers<[1], [0], [0], [1], [0, 0, 1, 1], [], []>} : vector<4x4xbf16>, vector<4x256xbf16>, vector<4x256xf32> -> vector<4x256xf32>
    %91 = arith.addf %86, %90 : vector<4x256xf32>
    %c0_88 = arith.constant 0 : index
    %c119 = arith.constant 119 : index
    %92 = vector.load %arg10[%c0_88, %c119] : memref<4x512xbf16, #tpu.memory_space<vmem>>, vector<4x256xbf16>
    %c2_89 = arith.constant 2 : index
    %c0_90 = arith.constant 0 : index
    %c0_91 = arith.constant 0 : index
    %93 = vector.load %arg4[%c2_89, %c0_90, %c0_91] : memref<9x4x4xbf16, #tpu.memory_space<vmem>>, vector<1x4x4xbf16>
    %94 = vector.shape_cast %93 : vector<1x4x4xbf16> to vector<4x4xbf16>
    %cst_92 = arith.constant dense<0.000000e+00> : vector<4x256xf32>
    %95 = tpu.matmul %94, %92, %cst_92 {dimension_numbers = #tpu.dot_dimension_numbers<[1], [0], [0], [1], [0, 0, 1, 1], [], []>} : vector<4x4xbf16>, vector<4x256xbf16>, vector<4x256xf32> -> vector<4x256xf32>
    %96 = arith.addf %91, %95 : vector<4x256xf32>
    %c0_93 = arith.constant 0 : index
    %c127 = arith.constant 127 : index
    %97 = vector.load %arg10[%c0_93, %c127] : memref<4x512xbf16, #tpu.memory_space<vmem>>, vector<4x256xbf16>
    %c3_94 = arith.constant 3 : index
    %c0_95 = arith.constant 0 : index
    %c0_96 = arith.constant 0 : index
    %98 = vector.load %arg4[%c3_94, %c0_95, %c0_96] : memref<9x4x4xbf16, #tpu.memory_space<vmem>>, vector<1x4x4xbf16>
    %99 = vector.shape_cast %98 : vector<1x4x4xbf16> to vector<4x4xbf16>
    %cst_97 = arith.constant dense<0.000000e+00> : vector<4x256xf32>
    %100 = tpu.matmul %99, %97, %cst_97 {dimension_numbers = #tpu.dot_dimension_numbers<[1], [0], [0], [1], [0, 0, 1, 1], [], []>} : vector<4x4xbf16>, vector<4x256xbf16>, vector<4x256xf32> -> vector<4x256xf32>
    %101 = arith.addf %96, %100 : vector<4x256xf32>
    %c0_98 = arith.constant 0 : index
    %c128_99 = arith.constant 128 : index
    %102 = vector.load %arg10[%c0_98, %c128_99] : memref<4x512xbf16, #tpu.memory_space<vmem>>, vector<4x256xbf16>
    %c4_100 = arith.constant 4 : index
    %c0_101 = arith.constant 0 : index
    %c0_102 = arith.constant 0 : index
    %103 = vector.load %arg4[%c4_100, %c0_101, %c0_102] : memref<9x4x4xbf16, #tpu.memory_space<vmem>>, vector<1x4x4xbf16>
    %104 = vector.shape_cast %103 : vector<1x4x4xbf16> to vector<4x4xbf16>
    %cst_103 = arith.constant dense<0.000000e+00> : vector<4x256xf32>
    %105 = tpu.matmul %104, %102, %cst_103 {dimension_numbers = #tpu.dot_dimension_numbers<[1], [0], [0], [1], [0, 0, 1, 1], [], []>} : vector<4x4xbf16>, vector<4x256xbf16>, vector<4x256xf32> -> vector<4x256xf32>
    %106 = arith.addf %101, %105 : vector<4x256xf32>
    %c0_104 = arith.constant 0 : index
    %c129 = arith.constant 129 : index
    %107 = vector.load %arg10[%c0_104, %c129] : memref<4x512xbf16, #tpu.memory_space<vmem>>, vector<4x256xbf16>
    %c5_105 = arith.constant 5 : index
    %c0_106 = arith.constant 0 : index
    %c0_107 = arith.constant 0 : index
    %108 = vector.load %arg4[%c5_105, %c0_106, %c0_107] : memref<9x4x4xbf16, #tpu.memory_space<vmem>>, vector<1x4x4xbf16>
    %109 = vector.shape_cast %108 : vector<1x4x4xbf16> to vector<4x4xbf16>
    %cst_108 = arith.constant dense<0.000000e+00> : vector<4x256xf32>
    %110 = tpu.matmul %109, %107, %cst_108 {dimension_numbers = #tpu.dot_dimension_numbers<[1], [0], [0], [1], [0, 0, 1, 1], [], []>} : vector<4x4xbf16>, vector<4x256xbf16>, vector<4x256xf32> -> vector<4x256xf32>
    %111 = arith.addf %106, %110 : vector<4x256xf32>
    %c0_109 = arith.constant 0 : index
    %c137 = arith.constant 137 : index
    %112 = vector.load %arg10[%c0_109, %c137] : memref<4x512xbf16, #tpu.memory_space<vmem>>, vector<4x256xbf16>
    %c6_110 = arith.constant 6 : index
    %c0_111 = arith.constant 0 : index
    %c0_112 = arith.constant 0 : index
    %113 = vector.load %arg4[%c6_110, %c0_111, %c0_112] : memref<9x4x4xbf16, #tpu.memory_space<vmem>>, vector<1x4x4xbf16>
    %114 = vector.shape_cast %113 : vector<1x4x4xbf16> to vector<4x4xbf16>
    %cst_113 = arith.constant dense<0.000000e+00> : vector<4x256xf32>
    %115 = tpu.matmul %114, %112, %cst_113 {dimension_numbers = #tpu.dot_dimension_numbers<[1], [0], [0], [1], [0, 0, 1, 1], [], []>} : vector<4x4xbf16>, vector<4x256xbf16>, vector<4x256xf32> -> vector<4x256xf32>
    %116 = arith.addf %111, %115 : vector<4x256xf32>
    %c0_114 = arith.constant 0 : index
    %c138 = arith.constant 138 : index
    %117 = vector.load %arg10[%c0_114, %c138] : memref<4x512xbf16, #tpu.memory_space<vmem>>, vector<4x256xbf16>
    %c7_115 = arith.constant 7 : index
    %c0_116 = arith.constant 0 : index
    %c0_117 = arith.constant 0 : index
    %118 = vector.load %arg4[%c7_115, %c0_116, %c0_117] : memref<9x4x4xbf16, #tpu.memory_space<vmem>>, vector<1x4x4xbf16>
    %119 = vector.shape_cast %118 : vector<1x4x4xbf16> to vector<4x4xbf16>
    %cst_118 = arith.constant dense<0.000000e+00> : vector<4x256xf32>
    %120 = tpu.matmul %119, %117, %cst_118 {dimension_numbers = #tpu.dot_dimension_numbers<[1], [0], [0], [1], [0, 0, 1, 1], [], []>} : vector<4x4xbf16>, vector<4x256xbf16>, vector<4x256xf32> -> vector<4x256xf32>
    %121 = arith.addf %116, %120 : vector<4x256xf32>
    %c0_119 = arith.constant 0 : index
    %c139 = arith.constant 139 : index
    %122 = vector.load %arg10[%c0_119, %c139] : memref<4x512xbf16, #tpu.memory_space<vmem>>, vector<4x256xbf16>
    %c8_120 = arith.constant 8 : index
    %c0_121 = arith.constant 0 : index
    %c0_122 = arith.constant 0 : index
    %123 = vector.load %arg4[%c8_120, %c0_121, %c0_122] : memref<9x4x4xbf16, #tpu.memory_space<vmem>>, vector<1x4x4xbf16>
    %124 = vector.shape_cast %123 : vector<1x4x4xbf16> to vector<4x4xbf16>
    %cst_123 = arith.constant dense<0.000000e+00> : vector<4x256xf32>
    %125 = tpu.matmul %124, %122, %cst_123 {dimension_numbers = #tpu.dot_dimension_numbers<[1], [0], [0], [1], [0, 0, 1, 1], [], []>} : vector<4x4xbf16>, vector<4x256xbf16>, vector<4x256xf32> -> vector<4x256xf32>
    %126 = arith.addf %121, %125 : vector<4x256xf32>
    %c0_124 = arith.constant 0 : index
    %c0_125 = arith.constant 0 : index
    %127 = vector.load %arg5[%c0_124, %c0_125] : memref<4x1xf32, #tpu.memory_space<vmem>>, vector<4x1xf32>
    %128 = vector.broadcast %127 : vector<4x1xf32> to vector<4x256xf32>
    %129 = arith.addf %126, %128 : vector<4x256xf32>
    %cst_126 = arith.constant 0.000000e+00 : f32
    %130 = vector.broadcast %cst_126 : f32 to vector<4x256xf32>
    %131 = arith.cmpf oge, %129, %130 : vector<4x256xf32>
    %cst_127 = arith.constant 0.00999999977 : f32
    %132 = vector.broadcast %cst_127 : f32 to vector<4x256xf32>
    %133 = arith.mulf %132, %129 : vector<4x256xf32>
    %134 = arith.select %131, %129, %133 : vector<4x256xi1>, vector<4x256xf32>
    %c0_128 = arith.constant 0 : index
    %c0_129 = arith.constant 0 : index
    %c0_130 = arith.constant 0 : index
    %135 = vector.load %arg8[%c0_128, %c0_129, %c0_130] : memref<1x4x256xf32, #tpu.memory_space<vmem>>, vector<1x4x256xf32>
    %136 = vector.shape_cast %135 : vector<1x4x256xf32> to vector<4x256xf32>
    %137 = vector.shape_cast %134 : vector<4x256xf32> to vector<1x4x256xf32>
    tpu.vector_store %arg8[%c0_128, %c0_129, %c0_130], %137 {strides = array<i32>} : memref<1x4x256xf32, #tpu.memory_space<vmem>>, vector<1x4x256xf32>,
    %138 = arith.truncf %134 : vector<4x256xf32> to vector<4x256xbf16>
    %c0_131 = arith.constant 0 : index
    %c0_132 = arith.constant 0 : index
    %139 = vector.load %arg7[%c0_131, %c0_132] : memref<256x256xbf16, #tpu.memory_space<vmem>>, vector<256x256xbf16>
    %cst_133 = arith.constant dense<0.000000e+00> : vector<4x256xf32>
    %140 = tpu.matmul %138, %139, %cst_133 {dimension_numbers = #tpu.dot_dimension_numbers<[1], [0], [0], [1], [0, 0, 1, 1], [], []>} : vector<4x256xbf16>, vector<256x256xbf16>, vector<4x256xf32> -> vector<4x256xf32>
    %141 = arith.truncf %140 : vector<4x256xf32> to vector<4x256xbf16>
    %c0_134 = arith.constant 0 : index
    %c0_135 = arith.constant 0 : index
    %c0_136 = arith.constant 0 : index
    %142 = vector.load %arg9[%c0_134, %c0_135, %c0_136] : memref<1x4x256xbf16, #tpu.memory_space<vmem>>, vector<1x4x256xbf16>
    %143 = vector.shape_cast %142 : vector<1x4x256xbf16> to vector<4x256xbf16>
    %144 = vector.shape_cast %141 : vector<4x256xbf16> to vector<1x4x256xbf16>
    tpu.vector_store %arg9[%c0_134, %c0_135, %c0_136], %144 {strides = array<i32>} : memref<1x4x256xbf16, #tpu.memory_space<vmem>>, vector<1x4x256xbf16>,
    return
  }
  func.func @transform_0(%arg0: i32) -> (i32, i32, i32) {
    %c0_i32 = arith.constant 0 : i32
    %c0_i32_0 = arith.constant 0 : i32
    %c0_i32_1 = arith.constant 0 : i32
    return %arg0, %c0_i32, %c0_i32_0 : i32, i32, i32
  }
  func.func @transform_1(%arg0: i32) -> (i32, i32, i32) {
    %c0_i32 = arith.constant 0 : i32
    %c0_i32_0 = arith.constant 0 : i32
    %c0_i32_1 = arith.constant 0 : i32
    %c0_i32_2 = arith.constant 0 : i32
    return %c0_i32, %c0_i32_0, %c0_i32_1 : i32, i32, i32
  }
  func.func @transform_2(%arg0: i32) -> (i32, i32) {
    %c0_i32 = arith.constant 0 : i32
    %c0_i32_0 = arith.constant 0 : i32
    %c0_i32_1 = arith.constant 0 : i32
    return %c0_i32, %c0_i32_0 : i32, i32
  }
  func.func @transform_3(%arg0: i32) -> (i32, i32, i32) {
    %c0_i32 = arith.constant 0 : i32
    %c0_i32_0 = arith.constant 0 : i32
    %c0_i32_1 = arith.constant 0 : i32
    %c0_i32_2 = arith.constant 0 : i32
    return %c0_i32, %c0_i32_0, %c0_i32_1 : i32, i32, i32
  }
  func.func @transform_4(%arg0: i32) -> (i32, i32) {
    %c0_i32 = arith.constant 0 : i32
    %c0_i32_0 = arith.constant 0 : i32
    %c0_i32_1 = arith.constant 0 : i32
    return %c0_i32, %c0_i32_0 : i32, i32
  }
  func.func @transform_5(%arg0: i32) -> (i32, i32) {
    %c0_i32 = arith.constant 0 : i32
    %c0_i32_0 = arith.constant 0 : i32
    %c0_i32_1 = arith.constant 0 : i32
    return %c0_i32, %c0_i32_0 : i32, i32
  }
  func.func @transform_6(%arg0: i32) -> (i32, i32) {
    %c0_i32 = arith.constant 0 : i32
    %c0_i32_0 = arith.constant 0 : i32
    %c0_i32_1 = arith.constant 0 : i32
    return %c0_i32, %c0_i32_0 : i32, i32
  }
  func.func @transform_7(%arg0: i32) -> (i32, i32, i32) {
    %c0_i32 = arith.constant 0 : i32
    %c0_i32_0 = arith.constant 0 : i32
    %c0_i32_1 = arith.constant 0 : i32
    return %arg0, %c0_i32, %c0_i32_0 : i32, i32, i32
  }
  func.func @transform_8(%arg0: i32) -> (i32, i32, i32) {
    %c0_i32 = arith.constant 0 : i32
    %c0_i32_0 = arith.constant 0 : i32
    %c0_i32_1 = arith.constant 0 : i32
    return %arg0, %c0_i32, %c0_i32_0 : i32, i32, i32
  }
}

module attributes {stable_mosaic.version = 11 : i64} {
  func.func @_encoder_kernel(%arg0: i32, %arg1: memref<1x4x256xbf16, #tpu.memory_space<vmem>>, %arg2: memref<9x8x4xbf16, #tpu.memory_space<vmem>>, %arg3: memref<8x1xf32, #tpu.memory_space<vmem>>, %arg4: memref<9x8x8xbf16, #tpu.memory_space<vmem>>, %arg5: memref<8x1xf32, #tpu.memory_space<vmem>>, %arg6: memref<1x128xf32, #tpu.memory_space<vmem>>, %arg7: memref<1x8x128xf32, #tpu.memory_space<vmem>>, %arg8: memref<8x384xbf16, #tpu.memory_space<vmem>>) attributes {dimension_semantics = [#tpu.dimension_semantics<parallel>], iteration_bounds = array<i64: 2>, scalar_prefetch = 0 : i64, scratch_operands = 1 : i64, tpu.core_type = #tpu.core_type<tc>, window_params = [{transform_indices = @transform_0, window_bounds = array<i64: 1, 4, 256>}, {pipeline_mode = #tpu.pipeline_mode<synchronous>, transform_indices = @transform_1, window_bounds = array<i64: 9, 8, 4>}, {pipeline_mode = #tpu.pipeline_mode<synchronous>, transform_indices = @transform_2, window_bounds = array<i64: 8, 1>}, {pipeline_mode = #tpu.pipeline_mode<synchronous>, transform_indices = @transform_3, window_bounds = array<i64: 9, 8, 8>}, {pipeline_mode = #tpu.pipeline_mode<synchronous>, transform_indices = @transform_4, window_bounds = array<i64: 8, 1>}, {pipeline_mode = #tpu.pipeline_mode<synchronous>, transform_indices = @transform_5, window_bounds = array<i64: 1, 128>}, {transform_indices = @transform_6, window_bounds = array<i64: 1, 8, 128>}]} {
    %cst = arith.constant 0.000000e+00 : f32
    %0 = vector.broadcast %cst : f32 to vector<8x128xf32>
    %c0_i32 = arith.constant 0 : i32
    %c0_i32_0 = arith.constant 0 : i32
    %c0_i32_1 = arith.constant 0 : i32
    %1 = tpu.memref_slice %arg1[%c0_i32, %c0_i32_0, %c0_i32_1] : memref<1x4x256xbf16, #tpu.memory_space<vmem>> -> memref<1x4x256xbf16, #tpu.memory_space<vmem>>
    %2 = tpu.memref_squeeze %1 : memref<1x4x256xbf16, #tpu.memory_space<vmem>> -> memref<4x256xbf16, #tpu.memory_space<vmem>>
    %c0 = arith.constant 0 : index
    %c0_2 = arith.constant 0 : index
    %3 = vector.load %2[%c0, %c0_2] : memref<4x256xbf16, #tpu.memory_space<vmem>>, vector<4x128xbf16>
    %c0_3 = arith.constant 0 : index
    %c0_4 = arith.constant 0 : index
    %c0_5 = arith.constant 0 : index
    %4 = vector.load %arg2[%c0_3, %c0_4, %c0_5] : memref<9x8x4xbf16, #tpu.memory_space<vmem>>, vector<1x8x4xbf16>
    %5 = vector.shape_cast %4 : vector<1x8x4xbf16> to vector<8x4xbf16>
    %cst_6 = arith.constant dense<0.000000e+00> : vector<8x128xf32>
    %6 = tpu.matmul %5, %3, %cst_6 {dimension_numbers = #tpu.dot_dimension_numbers<[1], [0], [0], [1], [0, 0, 1, 1], [], []>} : vector<8x4xbf16>, vector<4x128xbf16>, vector<8x128xf32> -> vector<8x128xf32>
    %7 = arith.addf %0, %6 : vector<8x128xf32>
    %c0_i32_7 = arith.constant 0 : i32
    %c0_i32_8 = arith.constant 0 : i32
    %c0_i32_9 = arith.constant 0 : i32
    %8 = tpu.memref_slice %arg1[%c0_i32_7, %c0_i32_8, %c0_i32_9] : memref<1x4x256xbf16, #tpu.memory_space<vmem>> -> memref<1x4x256xbf16, #tpu.memory_space<vmem>>
    %9 = tpu.memref_squeeze %8 : memref<1x4x256xbf16, #tpu.memory_space<vmem>> -> memref<4x256xbf16, #tpu.memory_space<vmem>>
    %c0_10 = arith.constant 0 : index
    %c1 = arith.constant 1 : index
    %10 = vector.load %9[%c0_10, %c1] : memref<4x256xbf16, #tpu.memory_space<vmem>>, vector<4x128xbf16>
    %c1_11 = arith.constant 1 : index
    %c0_12 = arith.constant 0 : index
    %c0_13 = arith.constant 0 : index
    %11 = vector.load %arg2[%c1_11, %c0_12, %c0_13] : memref<9x8x4xbf16, #tpu.memory_space<vmem>>, vector<1x8x4xbf16>
    %12 = vector.shape_cast %11 : vector<1x8x4xbf16> to vector<8x4xbf16>
    %cst_14 = arith.constant dense<0.000000e+00> : vector<8x128xf32>
    %13 = tpu.matmul %12, %10, %cst_14 {dimension_numbers = #tpu.dot_dimension_numbers<[1], [0], [0], [1], [0, 0, 1, 1], [], []>} : vector<8x4xbf16>, vector<4x128xbf16>, vector<8x128xf32> -> vector<8x128xf32>
    %14 = arith.addf %7, %13 : vector<8x128xf32>
    %c0_i32_15 = arith.constant 0 : i32
    %c0_i32_16 = arith.constant 0 : i32
    %c0_i32_17 = arith.constant 0 : i32
    %15 = tpu.memref_slice %arg1[%c0_i32_15, %c0_i32_16, %c0_i32_17] : memref<1x4x256xbf16, #tpu.memory_space<vmem>> -> memref<1x4x256xbf16, #tpu.memory_space<vmem>>
    %16 = tpu.memref_squeeze %15 : memref<1x4x256xbf16, #tpu.memory_space<vmem>> -> memref<4x256xbf16, #tpu.memory_space<vmem>>
    %c0_18 = arith.constant 0 : index
    %c2 = arith.constant 2 : index
    %17 = vector.load %16[%c0_18, %c2] : memref<4x256xbf16, #tpu.memory_space<vmem>>, vector<4x128xbf16>
    %c2_19 = arith.constant 2 : index
    %c0_20 = arith.constant 0 : index
    %c0_21 = arith.constant 0 : index
    %18 = vector.load %arg2[%c2_19, %c0_20, %c0_21] : memref<9x8x4xbf16, #tpu.memory_space<vmem>>, vector<1x8x4xbf16>
    %19 = vector.shape_cast %18 : vector<1x8x4xbf16> to vector<8x4xbf16>
    %cst_22 = arith.constant dense<0.000000e+00> : vector<8x128xf32>
    %20 = tpu.matmul %19, %17, %cst_22 {dimension_numbers = #tpu.dot_dimension_numbers<[1], [0], [0], [1], [0, 0, 1, 1], [], []>} : vector<8x4xbf16>, vector<4x128xbf16>, vector<8x128xf32> -> vector<8x128xf32>
    %21 = arith.addf %14, %20 : vector<8x128xf32>
    %c0_i32_23 = arith.constant 0 : i32
    %c0_i32_24 = arith.constant 0 : i32
    %c0_i32_25 = arith.constant 0 : i32
    %22 = tpu.memref_slice %arg1[%c0_i32_23, %c0_i32_24, %c0_i32_25] : memref<1x4x256xbf16, #tpu.memory_space<vmem>> -> memref<1x4x256xbf16, #tpu.memory_space<vmem>>
    %23 = tpu.memref_squeeze %22 : memref<1x4x256xbf16, #tpu.memory_space<vmem>> -> memref<4x256xbf16, #tpu.memory_space<vmem>>
    %c0_26 = arith.constant 0 : index
    %c6 = arith.constant 6 : index
    %24 = vector.load %23[%c0_26, %c6] : memref<4x256xbf16, #tpu.memory_space<vmem>>, vector<4x128xbf16>
    %c3 = arith.constant 3 : index
    %c0_27 = arith.constant 0 : index
    %c0_28 = arith.constant 0 : index
    %25 = vector.load %arg2[%c3, %c0_27, %c0_28] : memref<9x8x4xbf16, #tpu.memory_space<vmem>>, vector<1x8x4xbf16>
    %26 = vector.shape_cast %25 : vector<1x8x4xbf16> to vector<8x4xbf16>
    %cst_29 = arith.constant dense<0.000000e+00> : vector<8x128xf32>
    %27 = tpu.matmul %26, %24, %cst_29 {dimension_numbers = #tpu.dot_dimension_numbers<[1], [0], [0], [1], [0, 0, 1, 1], [], []>} : vector<8x4xbf16>, vector<4x128xbf16>, vector<8x128xf32> -> vector<8x128xf32>
    %28 = arith.addf %21, %27 : vector<8x128xf32>
    %c0_i32_30 = arith.constant 0 : i32
    %c0_i32_31 = arith.constant 0 : i32
    %c0_i32_32 = arith.constant 0 : i32
    %29 = tpu.memref_slice %arg1[%c0_i32_30, %c0_i32_31, %c0_i32_32] : memref<1x4x256xbf16, #tpu.memory_space<vmem>> -> memref<1x4x256xbf16, #tpu.memory_space<vmem>>
    %30 = tpu.memref_squeeze %29 : memref<1x4x256xbf16, #tpu.memory_space<vmem>> -> memref<4x256xbf16, #tpu.memory_space<vmem>>
    %c0_33 = arith.constant 0 : index
    %c7 = arith.constant 7 : index
    %31 = vector.load %30[%c0_33, %c7] : memref<4x256xbf16, #tpu.memory_space<vmem>>, vector<4x128xbf16>
    %c4 = arith.constant 4 : index
    %c0_34 = arith.constant 0 : index
    %c0_35 = arith.constant 0 : index
    %32 = vector.load %arg2[%c4, %c0_34, %c0_35] : memref<9x8x4xbf16, #tpu.memory_space<vmem>>, vector<1x8x4xbf16>
    %33 = vector.shape_cast %32 : vector<1x8x4xbf16> to vector<8x4xbf16>
    %cst_36 = arith.constant dense<0.000000e+00> : vector<8x128xf32>
    %34 = tpu.matmul %33, %31, %cst_36 {dimension_numbers = #tpu.dot_dimension_numbers<[1], [0], [0], [1], [0, 0, 1, 1], [], []>} : vector<8x4xbf16>, vector<4x128xbf16>, vector<8x128xf32> -> vector<8x128xf32>
    %35 = arith.addf %28, %34 : vector<8x128xf32>
    %c0_i32_37 = arith.constant 0 : i32
    %c0_i32_38 = arith.constant 0 : i32
    %c0_i32_39 = arith.constant 0 : i32
    %36 = tpu.memref_slice %arg1[%c0_i32_37, %c0_i32_38, %c0_i32_39] : memref<1x4x256xbf16, #tpu.memory_space<vmem>> -> memref<1x4x256xbf16, #tpu.memory_space<vmem>>
    %37 = tpu.memref_squeeze %36 : memref<1x4x256xbf16, #tpu.memory_space<vmem>> -> memref<4x256xbf16, #tpu.memory_space<vmem>>
    %c0_40 = arith.constant 0 : index
    %c8 = arith.constant 8 : index
    %38 = vector.load %37[%c0_40, %c8] : memref<4x256xbf16, #tpu.memory_space<vmem>>, vector<4x128xbf16>
    %c5 = arith.constant 5 : index
    %c0_41 = arith.constant 0 : index
    %c0_42 = arith.constant 0 : index
    %39 = vector.load %arg2[%c5, %c0_41, %c0_42] : memref<9x8x4xbf16, #tpu.memory_space<vmem>>, vector<1x8x4xbf16>
    %40 = vector.shape_cast %39 : vector<1x8x4xbf16> to vector<8x4xbf16>
    %cst_43 = arith.constant dense<0.000000e+00> : vector<8x128xf32>
    %41 = tpu.matmul %40, %38, %cst_43 {dimension_numbers = #tpu.dot_dimension_numbers<[1], [0], [0], [1], [0, 0, 1, 1], [], []>} : vector<8x4xbf16>, vector<4x128xbf16>, vector<8x128xf32> -> vector<8x128xf32>
    %42 = arith.addf %35, %41 : vector<8x128xf32>
    %c0_i32_44 = arith.constant 0 : i32
    %c0_i32_45 = arith.constant 0 : i32
    %c0_i32_46 = arith.constant 0 : i32
    %43 = tpu.memref_slice %arg1[%c0_i32_44, %c0_i32_45, %c0_i32_46] : memref<1x4x256xbf16, #tpu.memory_space<vmem>> -> memref<1x4x256xbf16, #tpu.memory_space<vmem>>
    %44 = tpu.memref_squeeze %43 : memref<1x4x256xbf16, #tpu.memory_space<vmem>> -> memref<4x256xbf16, #tpu.memory_space<vmem>>
    %c0_47 = arith.constant 0 : index
    %c12 = arith.constant 12 : index
    %45 = vector.load %44[%c0_47, %c12] : memref<4x256xbf16, #tpu.memory_space<vmem>>, vector<4x128xbf16>
    %c6_48 = arith.constant 6 : index
    %c0_49 = arith.constant 0 : index
    %c0_50 = arith.constant 0 : index
    %46 = vector.load %arg2[%c6_48, %c0_49, %c0_50] : memref<9x8x4xbf16, #tpu.memory_space<vmem>>, vector<1x8x4xbf16>
    %47 = vector.shape_cast %46 : vector<1x8x4xbf16> to vector<8x4xbf16>
    %cst_51 = arith.constant dense<0.000000e+00> : vector<8x128xf32>
    %48 = tpu.matmul %47, %45, %cst_51 {dimension_numbers = #tpu.dot_dimension_numbers<[1], [0], [0], [1], [0, 0, 1, 1], [], []>} : vector<8x4xbf16>, vector<4x128xbf16>, vector<8x128xf32> -> vector<8x128xf32>
    %49 = arith.addf %42, %48 : vector<8x128xf32>
    %c0_i32_52 = arith.constant 0 : i32
    %c0_i32_53 = arith.constant 0 : i32
    %c0_i32_54 = arith.constant 0 : i32
    %50 = tpu.memref_slice %arg1[%c0_i32_52, %c0_i32_53, %c0_i32_54] : memref<1x4x256xbf16, #tpu.memory_space<vmem>> -> memref<1x4x256xbf16, #tpu.memory_space<vmem>>
    %51 = tpu.memref_squeeze %50 : memref<1x4x256xbf16, #tpu.memory_space<vmem>> -> memref<4x256xbf16, #tpu.memory_space<vmem>>
    %c0_55 = arith.constant 0 : index
    %c13 = arith.constant 13 : index
    %52 = vector.load %51[%c0_55, %c13] : memref<4x256xbf16, #tpu.memory_space<vmem>>, vector<4x128xbf16>
    %c7_56 = arith.constant 7 : index
    %c0_57 = arith.constant 0 : index
    %c0_58 = arith.constant 0 : index
    %53 = vector.load %arg2[%c7_56, %c0_57, %c0_58] : memref<9x8x4xbf16, #tpu.memory_space<vmem>>, vector<1x8x4xbf16>
    %54 = vector.shape_cast %53 : vector<1x8x4xbf16> to vector<8x4xbf16>
    %cst_59 = arith.constant dense<0.000000e+00> : vector<8x128xf32>
    %55 = tpu.matmul %54, %52, %cst_59 {dimension_numbers = #tpu.dot_dimension_numbers<[1], [0], [0], [1], [0, 0, 1, 1], [], []>} : vector<8x4xbf16>, vector<4x128xbf16>, vector<8x128xf32> -> vector<8x128xf32>
    %56 = arith.addf %49, %55 : vector<8x128xf32>
    %c0_i32_60 = arith.constant 0 : i32
    %c0_i32_61 = arith.constant 0 : i32
    %c0_i32_62 = arith.constant 0 : i32
    %57 = tpu.memref_slice %arg1[%c0_i32_60, %c0_i32_61, %c0_i32_62] : memref<1x4x256xbf16, #tpu.memory_space<vmem>> -> memref<1x4x256xbf16, #tpu.memory_space<vmem>>
    %58 = tpu.memref_squeeze %57 : memref<1x4x256xbf16, #tpu.memory_space<vmem>> -> memref<4x256xbf16, #tpu.memory_space<vmem>>
    %c0_63 = arith.constant 0 : index
    %c14 = arith.constant 14 : index
    %59 = vector.load %58[%c0_63, %c14] : memref<4x256xbf16, #tpu.memory_space<vmem>>, vector<4x128xbf16>
    %c8_64 = arith.constant 8 : index
    %c0_65 = arith.constant 0 : index
    %c0_66 = arith.constant 0 : index
    %60 = vector.load %arg2[%c8_64, %c0_65, %c0_66] : memref<9x8x4xbf16, #tpu.memory_space<vmem>>, vector<1x8x4xbf16>
    %61 = vector.shape_cast %60 : vector<1x8x4xbf16> to vector<8x4xbf16>
    %cst_67 = arith.constant dense<0.000000e+00> : vector<8x128xf32>
    %62 = tpu.matmul %61, %59, %cst_67 {dimension_numbers = #tpu.dot_dimension_numbers<[1], [0], [0], [1], [0, 0, 1, 1], [], []>} : vector<8x4xbf16>, vector<4x128xbf16>, vector<8x128xf32> -> vector<8x128xf32>
    %63 = arith.addf %56, %62 : vector<8x128xf32>
    %c0_68 = arith.constant 0 : index
    %c0_69 = arith.constant 0 : index
    %64 = vector.load %arg3[%c0_68, %c0_69] : memref<8x1xf32, #tpu.memory_space<vmem>>, vector<8x1xf32>
    %65 = vector.broadcast %64 : vector<8x1xf32> to vector<8x128xf32>
    %66 = arith.addf %63, %65 : vector<8x128xf32>
    %cst_70 = arith.constant 0.000000e+00 : f32
    %67 = vector.broadcast %cst_70 : f32 to vector<8x128xf32>
    %68 = arith.cmpf oge, %66, %67 : vector<8x128xf32>
    %cst_71 = arith.constant 0.00999999977 : f32
    %69 = vector.broadcast %cst_71 : f32 to vector<8x128xf32>
    %70 = arith.mulf %69, %66 : vector<8x128xf32>
    %71 = arith.select %68, %66, %70 : vector<8x128xi1>, vector<8x128xf32>
    %c0_72 = arith.constant 0 : index
    %c0_73 = arith.constant 0 : index
    %72 = vector.load %arg6[%c0_72, %c0_73] : memref<1x128xf32, #tpu.memory_space<vmem>>, vector<1x128xf32>
    %73 = vector.broadcast %72 : vector<1x128xf32> to vector<8x128xf32>
    %74 = arith.mulf %71, %73 : vector<8x128xf32>
    %cst_74 = arith.constant 0.000000e+00 : bf16
    %75 = vector.broadcast %cst_74 : bf16 to vector<8x128xbf16>
    %c0_75 = arith.constant 0 : index
    %c0_76 = arith.constant 0 : index
    %76 = vector.load %arg8[%c0_75, %c0_76] : memref<8x384xbf16, #tpu.memory_space<vmem>>, vector<8x128xbf16>
    tpu.vector_store %arg8[%c0_75, %c0_76], %75 {strides = array<i32>} : memref<8x384xbf16, #tpu.memory_space<vmem>>, vector<8x128xbf16>,
    %77 = arith.truncf %74 : vector<8x128xf32> to vector<8x128xbf16>
    %c0_77 = arith.constant 0 : index
    %c128 = arith.constant 128 : index
    %78 = vector.load %arg8[%c0_77, %c128] : memref<8x384xbf16, #tpu.memory_space<vmem>>, vector<8x128xbf16>
    tpu.vector_store %arg8[%c0_77, %c128], %77 {strides = array<i32>} : memref<8x384xbf16, #tpu.memory_space<vmem>>, vector<8x128xbf16>,
    %cst_78 = arith.constant 0.000000e+00 : bf16
    %79 = vector.broadcast %cst_78 : bf16 to vector<8x128xbf16>
    %c0_79 = arith.constant 0 : index
    %c256 = arith.constant 256 : index
    %80 = vector.load %arg8[%c0_79, %c256] : memref<8x384xbf16, #tpu.memory_space<vmem>>, vector<8x128xbf16>
    tpu.vector_store %arg8[%c0_79, %c256], %79 {strides = array<i32>} : memref<8x384xbf16, #tpu.memory_space<vmem>>, vector<8x128xbf16>,
    %cst_80 = arith.constant 0.000000e+00 : f32
    %81 = vector.broadcast %cst_80 : f32 to vector<8x128xf32>
    %c0_81 = arith.constant 0 : index
    %c121 = arith.constant 121 : index
    %82 = vector.load %arg8[%c0_81, %c121] : memref<8x384xbf16, #tpu.memory_space<vmem>>, vector<8x128xbf16>
    %c0_82 = arith.constant 0 : index
    %c0_83 = arith.constant 0 : index
    %c0_84 = arith.constant 0 : index
    %83 = vector.load %arg4[%c0_82, %c0_83, %c0_84] : memref<9x8x8xbf16, #tpu.memory_space<vmem>>, vector<1x8x8xbf16>
    %84 = vector.shape_cast %83 : vector<1x8x8xbf16> to vector<8x8xbf16>
    %cst_85 = arith.constant dense<0.000000e+00> : vector<8x128xf32>
    %85 = tpu.matmul %84, %82, %cst_85 {dimension_numbers = #tpu.dot_dimension_numbers<[1], [0], [0], [1], [0, 0, 1, 1], [], []>} : vector<8x8xbf16>, vector<8x128xbf16>, vector<8x128xf32> -> vector<8x128xf32>
    %86 = arith.addf %81, %85 : vector<8x128xf32>
    %c0_86 = arith.constant 0 : index
    %c122 = arith.constant 122 : index
    %87 = vector.load %arg8[%c0_86, %c122] : memref<8x384xbf16, #tpu.memory_space<vmem>>, vector<8x128xbf16>
    %c1_87 = arith.constant 1 : index
    %c0_88 = arith.constant 0 : index
    %c0_89 = arith.constant 0 : index
    %88 = vector.load %arg4[%c1_87, %c0_88, %c0_89] : memref<9x8x8xbf16, #tpu.memory_space<vmem>>, vector<1x8x8xbf16>
    %89 = vector.shape_cast %88 : vector<1x8x8xbf16> to vector<8x8xbf16>
    %cst_90 = arith.constant dense<0.000000e+00> : vector<8x128xf32>
    %90 = tpu.matmul %89, %87, %cst_90 {dimension_numbers = #tpu.dot_dimension_numbers<[1], [0], [0], [1], [0, 0, 1, 1], [], []>} : vector<8x8xbf16>, vector<8x128xbf16>, vector<8x128xf32> -> vector<8x128xf32>
    %91 = arith.addf %86, %90 : vector<8x128xf32>
    %c0_91 = arith.constant 0 : index
    %c123 = arith.constant 123 : index
    %92 = vector.load %arg8[%c0_91, %c123] : memref<8x384xbf16, #tpu.memory_space<vmem>>, vector<8x128xbf16>
    %c2_92 = arith.constant 2 : index
    %c0_93 = arith.constant 0 : index
    %c0_94 = arith.constant 0 : index
    %93 = vector.load %arg4[%c2_92, %c0_93, %c0_94] : memref<9x8x8xbf16, #tpu.memory_space<vmem>>, vector<1x8x8xbf16>
    %94 = vector.shape_cast %93 : vector<1x8x8xbf16> to vector<8x8xbf16>
    %cst_95 = arith.constant dense<0.000000e+00> : vector<8x128xf32>
    %95 = tpu.matmul %94, %92, %cst_95 {dimension_numbers = #tpu.dot_dimension_numbers<[1], [0], [0], [1], [0, 0, 1, 1], [], []>} : vector<8x8xbf16>, vector<8x128xbf16>, vector<8x128xf32> -> vector<8x128xf32>
    %96 = arith.addf %91, %95 : vector<8x128xf32>
    %c0_96 = arith.constant 0 : index
    %c127 = arith.constant 127 : index
    %97 = vector.load %arg8[%c0_96, %c127] : memref<8x384xbf16, #tpu.memory_space<vmem>>, vector<8x128xbf16>
    %c3_97 = arith.constant 3 : index
    %c0_98 = arith.constant 0 : index
    %c0_99 = arith.constant 0 : index
    %98 = vector.load %arg4[%c3_97, %c0_98, %c0_99] : memref<9x8x8xbf16, #tpu.memory_space<vmem>>, vector<1x8x8xbf16>
    %99 = vector.shape_cast %98 : vector<1x8x8xbf16> to vector<8x8xbf16>
    %cst_100 = arith.constant dense<0.000000e+00> : vector<8x128xf32>
    %100 = tpu.matmul %99, %97, %cst_100 {dimension_numbers = #tpu.dot_dimension_numbers<[1], [0], [0], [1], [0, 0, 1, 1], [], []>} : vector<8x8xbf16>, vector<8x128xbf16>, vector<8x128xf32> -> vector<8x128xf32>
    %101 = arith.addf %96, %100 : vector<8x128xf32>
    %c0_101 = arith.constant 0 : index
    %c128_102 = arith.constant 128 : index
    %102 = vector.load %arg8[%c0_101, %c128_102] : memref<8x384xbf16, #tpu.memory_space<vmem>>, vector<8x128xbf16>
    %c4_103 = arith.constant 4 : index
    %c0_104 = arith.constant 0 : index
    %c0_105 = arith.constant 0 : index
    %103 = vector.load %arg4[%c4_103, %c0_104, %c0_105] : memref<9x8x8xbf16, #tpu.memory_space<vmem>>, vector<1x8x8xbf16>
    %104 = vector.shape_cast %103 : vector<1x8x8xbf16> to vector<8x8xbf16>
    %cst_106 = arith.constant dense<0.000000e+00> : vector<8x128xf32>
    %105 = tpu.matmul %104, %102, %cst_106 {dimension_numbers = #tpu.dot_dimension_numbers<[1], [0], [0], [1], [0, 0, 1, 1], [], []>} : vector<8x8xbf16>, vector<8x128xbf16>, vector<8x128xf32> -> vector<8x128xf32>
    %106 = arith.addf %101, %105 : vector<8x128xf32>
    %c0_107 = arith.constant 0 : index
    %c129 = arith.constant 129 : index
    %107 = vector.load %arg8[%c0_107, %c129] : memref<8x384xbf16, #tpu.memory_space<vmem>>, vector<8x128xbf16>
    %c5_108 = arith.constant 5 : index
    %c0_109 = arith.constant 0 : index
    %c0_110 = arith.constant 0 : index
    %108 = vector.load %arg4[%c5_108, %c0_109, %c0_110] : memref<9x8x8xbf16, #tpu.memory_space<vmem>>, vector<1x8x8xbf16>
    %109 = vector.shape_cast %108 : vector<1x8x8xbf16> to vector<8x8xbf16>
    %cst_111 = arith.constant dense<0.000000e+00> : vector<8x128xf32>
    %110 = tpu.matmul %109, %107, %cst_111 {dimension_numbers = #tpu.dot_dimension_numbers<[1], [0], [0], [1], [0, 0, 1, 1], [], []>} : vector<8x8xbf16>, vector<8x128xbf16>, vector<8x128xf32> -> vector<8x128xf32>
    %111 = arith.addf %106, %110 : vector<8x128xf32>
    %c0_112 = arith.constant 0 : index
    %c133 = arith.constant 133 : index
    %112 = vector.load %arg8[%c0_112, %c133] : memref<8x384xbf16, #tpu.memory_space<vmem>>, vector<8x128xbf16>
    %c6_113 = arith.constant 6 : index
    %c0_114 = arith.constant 0 : index
    %c0_115 = arith.constant 0 : index
    %113 = vector.load %arg4[%c6_113, %c0_114, %c0_115] : memref<9x8x8xbf16, #tpu.memory_space<vmem>>, vector<1x8x8xbf16>
    %114 = vector.shape_cast %113 : vector<1x8x8xbf16> to vector<8x8xbf16>
    %cst_116 = arith.constant dense<0.000000e+00> : vector<8x128xf32>
    %115 = tpu.matmul %114, %112, %cst_116 {dimension_numbers = #tpu.dot_dimension_numbers<[1], [0], [0], [1], [0, 0, 1, 1], [], []>} : vector<8x8xbf16>, vector<8x128xbf16>, vector<8x128xf32> -> vector<8x128xf32>
    %116 = arith.addf %111, %115 : vector<8x128xf32>
    %c0_117 = arith.constant 0 : index
    %c134 = arith.constant 134 : index
    %117 = vector.load %arg8[%c0_117, %c134] : memref<8x384xbf16, #tpu.memory_space<vmem>>, vector<8x128xbf16>
    %c7_118 = arith.constant 7 : index
    %c0_119 = arith.constant 0 : index
    %c0_120 = arith.constant 0 : index
    %118 = vector.load %arg4[%c7_118, %c0_119, %c0_120] : memref<9x8x8xbf16, #tpu.memory_space<vmem>>, vector<1x8x8xbf16>
    %119 = vector.shape_cast %118 : vector<1x8x8xbf16> to vector<8x8xbf16>
    %cst_121 = arith.constant dense<0.000000e+00> : vector<8x128xf32>
    %120 = tpu.matmul %119, %117, %cst_121 {dimension_numbers = #tpu.dot_dimension_numbers<[1], [0], [0], [1], [0, 0, 1, 1], [], []>} : vector<8x8xbf16>, vector<8x128xbf16>, vector<8x128xf32> -> vector<8x128xf32>
    %121 = arith.addf %116, %120 : vector<8x128xf32>
    %c0_122 = arith.constant 0 : index
    %c135 = arith.constant 135 : index
    %122 = vector.load %arg8[%c0_122, %c135] : memref<8x384xbf16, #tpu.memory_space<vmem>>, vector<8x128xbf16>
    %c8_123 = arith.constant 8 : index
    %c0_124 = arith.constant 0 : index
    %c0_125 = arith.constant 0 : index
    %123 = vector.load %arg4[%c8_123, %c0_124, %c0_125] : memref<9x8x8xbf16, #tpu.memory_space<vmem>>, vector<1x8x8xbf16>
    %124 = vector.shape_cast %123 : vector<1x8x8xbf16> to vector<8x8xbf16>
    %cst_126 = arith.constant dense<0.000000e+00> : vector<8x128xf32>
    %125 = tpu.matmul %124, %122, %cst_126 {dimension_numbers = #tpu.dot_dimension_numbers<[1], [0], [0], [1], [0, 0, 1, 1], [], []>} : vector<8x8xbf16>, vector<8x128xbf16>, vector<8x128xf32> -> vector<8x128xf32>
    %126 = arith.addf %121, %125 : vector<8x128xf32>
    %c0_127 = arith.constant 0 : index
    %c0_128 = arith.constant 0 : index
    %127 = vector.load %arg5[%c0_127, %c0_128] : memref<8x1xf32, #tpu.memory_space<vmem>>, vector<8x1xf32>
    %128 = vector.broadcast %127 : vector<8x1xf32> to vector<8x128xf32>
    %129 = arith.addf %126, %128 : vector<8x128xf32>
    %cst_129 = arith.constant 0.000000e+00 : f32
    %130 = vector.broadcast %cst_129 : f32 to vector<8x128xf32>
    %131 = arith.cmpf oge, %129, %130 : vector<8x128xf32>
    %cst_130 = arith.constant 0.00999999977 : f32
    %132 = vector.broadcast %cst_130 : f32 to vector<8x128xf32>
    %133 = arith.mulf %132, %129 : vector<8x128xf32>
    %134 = arith.select %131, %129, %133 : vector<8x128xi1>, vector<8x128xf32>
    %c0_131 = arith.constant 0 : index
    %c0_132 = arith.constant 0 : index
    %c0_133 = arith.constant 0 : index
    %135 = vector.load %arg7[%c0_131, %c0_132, %c0_133] : memref<1x8x128xf32, #tpu.memory_space<vmem>>, vector<1x8x128xf32>
    %136 = vector.shape_cast %135 : vector<1x8x128xf32> to vector<8x128xf32>
    %137 = vector.shape_cast %134 : vector<8x128xf32> to vector<1x8x128xf32>
    tpu.vector_store %arg7[%c0_131, %c0_132, %c0_133], %137 {strides = array<i32>} : memref<1x8x128xf32, #tpu.memory_space<vmem>>, vector<1x8x128xf32>,
    return
  }
  func.func @transform_0(%arg0: i32) -> (i32, i32, i32) {
    %c0_i32 = arith.constant 0 : i32
    %c0_i32_0 = arith.constant 0 : i32
    %c0_i32_1 = arith.constant 0 : i32
    return %arg0, %c0_i32, %c0_i32_0 : i32, i32, i32
  }
  func.func @transform_1(%arg0: i32) -> (i32, i32, i32) {
    %c0_i32 = arith.constant 0 : i32
    %c0_i32_0 = arith.constant 0 : i32
    %c0_i32_1 = arith.constant 0 : i32
    %c0_i32_2 = arith.constant 0 : i32
    return %c0_i32, %c0_i32_0, %c0_i32_1 : i32, i32, i32
  }
  func.func @transform_2(%arg0: i32) -> (i32, i32) {
    %c0_i32 = arith.constant 0 : i32
    %c0_i32_0 = arith.constant 0 : i32
    %c0_i32_1 = arith.constant 0 : i32
    return %c0_i32, %c0_i32_0 : i32, i32
  }
  func.func @transform_3(%arg0: i32) -> (i32, i32, i32) {
    %c0_i32 = arith.constant 0 : i32
    %c0_i32_0 = arith.constant 0 : i32
    %c0_i32_1 = arith.constant 0 : i32
    %c0_i32_2 = arith.constant 0 : i32
    return %c0_i32, %c0_i32_0, %c0_i32_1 : i32, i32, i32
  }
  func.func @transform_4(%arg0: i32) -> (i32, i32) {
    %c0_i32 = arith.constant 0 : i32
    %c0_i32_0 = arith.constant 0 : i32
    %c0_i32_1 = arith.constant 0 : i32
    return %c0_i32, %c0_i32_0 : i32, i32
  }
  func.func @transform_5(%arg0: i32) -> (i32, i32) {
    %c0_i32 = arith.constant 0 : i32
    %c0_i32_0 = arith.constant 0 : i32
    %c0_i32_1 = arith.constant 0 : i32
    return %c0_i32, %c0_i32_0 : i32, i32
  }
  func.func @transform_6(%arg0: i32) -> (i32, i32, i32) {
    %c0_i32 = arith.constant 0 : i32
    %c0_i32_0 = arith.constant 0 : i32
    %c0_i32_1 = arith.constant 0 : i32
    return %arg0, %c0_i32, %c0_i32_0 : i32, i32, i32
  }
}

</mosaic_0001>

<llo_original>
// kernel: encoding_pyramid_forward.5
$region0: #{encoding_pyramid_forward.5}
  #allocation0 [shape = 'u32[]', space=smem, size = 0x4, offset = 0x4, fixed_abs, tag = 'smem constant byte address 0x4 - core index']
  #allocation1 [shape = 'u32[72,128]{1,0:T(1,128)}', space=vmem, size = 0x9000, scoped, tag = 'internal scratch']
  #allocation2 [shape = 'bf16[8,384]{1,0:T(8,128)(2,1)}', space=vmem, size = 0x1800, scoped, tag = 'scratch operand']
  %s0 = inlined_call_operand.vmem [shape: bf16[2,4,256], index: 0, kind: input, shape index: {}]
  %s1 = inlined_call_operand.vmem [shape: bf16[9,8,4], index: 1, kind: input, shape index: {}]
  %s2 = inlined_call_operand.vmem [shape: f32[8,1], index: 2, kind: input, shape index: {}]
  %s3 = inlined_call_operand.vmem [shape: bf16[9,8,8], index: 3, kind: input, shape index: {}]
  %s4 = inlined_call_operand.vmem [shape: f32[8,1], index: 4, kind: input, shape index: {}]
  %s5 = inlined_call_operand.vmem [shape: f32[1,128], index: 5, kind: input, shape index: {}]
  %s6 = inlined_call_operand.vmem [shape: f32[2,8,128], index: 6, kind: output, shape index: {}]
  %s7 = sld [smem:[#allocation0]]
  $region57: #{encoding_pyramid_forward.5} parent=0
    _
  %s9 = ssub.s32 1, %s7
  %s10 = scalar_select 0, %s9, %s7
  loop: start=0, step=1, limit=4
  $region2: #{encoding_pyramid_forward.5} parent=0 // loop_pre_header
    _
  $region3: #{encoding_pyramid_forward.5} parent=0 // loop_header
    %s12 = sphi 0, %s16
    %p13 = scmp.ge.s32.totalorder %s12, 4
    %s22 = sphi 0, %s24
    %s25 = sphi 0, %s22
    %s26 = sphi 0, %s25
    %s42 = sphi 0, %s26
    %s46 = sphi 0, %s46
    %s48 = sphi 0, %s46
    %s49 = sphi 0, %s48
    %s63 = sphi 0, %s49
    %s67 = sphi 0, %s67
    %s69 = sphi 0, %s67
    %s70 = sphi 0, %s69
    %s84 = sphi 0, %s70
    %s88 = sphi 0, %s88
    %s90 = sphi 0, %s88
    %s91 = sphi 0, %s90
    %s105 = sphi 0, %s91
    %s109 = sphi 0, %s109
    %s111 = sphi 0, %s109
    %s112 = sphi 0, %s111
    %s126 = sphi 0, %s112
    %s130 = sphi 0, %s130
    %s132 = sphi 0, %s130
    %s133 = sphi 0, %s132
    %s147 = sphi 0, %s133
    %s153 = sphi 0, %s155
    %s156 = sphi 0, %s153
    %s157 = sphi 0, %s156
    %s173 = sphi 0, %s157
  $region4: #{encoding_pyramid_forward.5} parent=0 // loop_header_branch
    %15 = sbr.rel (%p13) target = $region8
  $region5: #{encoding_pyramid_forward.5} parent=0 // loop_body
    %s17 = ssub.s32 %s12, 1
    %s18 = ssub.s32 %s12, 2
    %s19 = sadd.s32 %s12, 1
    %s20 = ssub.s32 %s12, %s19
    %p21 = scmp.eq.s32.totalorder %s20, 0
    %s23 = sadd.s32 %s22, 1
    %s24 = scalar_select %p21, %s22, %s23
    %p27 = pneg %p21
    %p28 = scmp.eq.s32.totalorder %s12, 1
    %p29 = por %p27, %p28
    %p30 = scmp.ne.s32.totalorder %s22, %s25
    %p31 = scmp.eq.s32.totalorder %s12, 0
    %p32 = por %p30, %p31
    %p33 = scmp.ne.s32.totalorder %s22, %s25
    %p34 = scmp.eq.s32.totalorder %s17, 1
    %p35 = por %p33, %p34
    %p36 = scmp.ne.s32.totalorder %s25, %s26
    %p37 = scmp.eq.s32.totalorder %s17, 0
    %p38 = por %p36, %p37
    %p39 = scmp.ne.s32.totalorder %s25, %s26
    %p40 = scmp.eq.s32.totalorder %s18, 1
    %p41 = por %p39, %p40
    %p43 = scmp.ne.s32.totalorder %s26, %s42
    %p44 = scmp.eq.s32.totalorder %s18, 0
    %p45 = por %p43, %p44
    %s47 = sadd.s32 %s46, 1
    %p50 = scmp.eq.s32.totalorder %s12, 1
    %p51 = scmp.ne.s32.totalorder %s46, %s48
    %p52 = scmp.eq.s32.totalorder %s12, 0
    %p53 = por %p51, %p52
    %p54 = scmp.ne.s32.totalorder %s46, %s48
    %p55 = scmp.eq.s32.totalorder %s17, 1
    %p56 = por %p54, %p55
    %p57 = scmp.ne.s32.totalorder %s48, %s49
    %p58 = scmp.eq.s32.totalorder %s17, 0
    %p59 = por %p57, %p58
    %p60 = scmp.ne.s32.totalorder %s48, %s49
    %p61 = scmp.eq.s32.totalorder %s18, 1
    %p62 = por %p60, %p61
    %p64 = scmp.ne.s32.totalorder %s49, %s63
    %p65 = scmp.eq.s32.totalorder %s18, 0
    %p66 = por %p64, %p65
    %s68 = sadd.s32 %s67, 1
    %p71 = scmp.eq.s32.totalorder %s12, 1
    %p72 = scmp.ne.s32.totalorder %s67, %s69
    %p73 = scmp.eq.s32.totalorder %s12, 0
    %p74 = por %p72, %p73
    %p75 = scmp.ne.s32.totalorder %s67, %s69
    %p76 = scmp.eq.s32.totalorder %s17, 1
    %p77 = por %p75, %p76
    %p78 = scmp.ne.s32.totalorder %s69, %s70
    %p79 = scmp.eq.s32.totalorder %s17, 0
    %p80 = por %p78, %p79
    %p81 = scmp.ne.s32.totalorder %s69, %s70
    %p82 = scmp.eq.s32.totalorder %s18, 1
    %p83 = por %p81, %p82
    %p85 = scmp.ne.s32.totalorder %s70, %s84
    %p86 = scmp.eq.s32.totalorder %s18, 0
    %p87 = por %p85, %p86
    %s89 = sadd.s32 %s88, 1
    %p92 = scmp.eq.s32.totalorder %s12, 1
    %p93 = scmp.ne.s32.totalorder %s88, %s90
    %p94 = scmp.eq.s32.totalorder %s12, 0
    %p95 = por %p93, %p94
    %p96 = scmp.ne.s32.totalorder %s88, %s90
    %p97 = scmp.eq.s32.totalorder %s17, 1
    %p98 = por %p96, %p97
    %p99 = scmp.ne.s32.totalorder %s90, %s91
    %p100 = scmp.eq.s32.totalorder %s17, 0
    %p101 = por %p99, %p100
    %p102 = scmp.ne.s32.totalorder %s90, %s91
    %p103 = scmp.eq.s32.totalorder %s18, 1
    %p104 = por %p102, %p103
    %p106 = scmp.ne.s32.totalorder %s91, %s105
    %p107 = scmp.eq.s32.totalorder %s18, 0
    %p108 = por %p106, %p107
    %s110 = sadd.s32 %s109, 1
    %p113 = scmp.eq.s32.totalorder %s12, 1
    %p114 = scmp.ne.s32.totalorder %s109, %s111
    %p115 = scmp.eq.s32.totalorder %s12, 0
    %p116 = por %p114, %p115
    %p117 = scmp.ne.s32.totalorder %s109, %s111
    %p118 = scmp.eq.s32.totalorder %s17, 1
    %p119 = por %p117, %p118
    %p120 = scmp.ne.s32.totalorder %s111, %s112
    %p121 = scmp.eq.s32.totalorder %s17, 0
    %p122 = por %p120, %p121
    %p123 = scmp.ne.s32.totalorder %s111, %s112
    %p124 = scmp.eq.s32.totalorder %s18, 1
    %p125 = por %p123, %p124
    %p127 = scmp.ne.s32.totalorder %s112, %s126
    %p128 = scmp.eq.s32.totalorder %s18, 0
    %p129 = por %p127, %p128
    %s131 = sadd.s32 %s130, 1
    %p134 = scmp.eq.s32.totalorder %s12, 1
    %p135 = scmp.ne.s32.totalorder %s130, %s132
    %p136 = scmp.eq.s32.totalorder %s12, 0
    %p137 = por %p135, %p136
    %p138 = scmp.ne.s32.totalorder %s130, %s132
    %p139 = scmp.eq.s32.totalorder %s17, 1
    %p140 = por %p138, %p139
    %p141 = scmp.ne.s32.totalorder %s132, %s133
    %p142 = scmp.eq.s32.totalorder %s17, 0
    %p143 = por %p141, %p142
    %p144 = scmp.ne.s32.totalorder %s132, %s133
    %p145 = scmp.eq.s32.totalorder %s18, 1
    %p146 = por %p144, %p145
    %p148 = scmp.ne.s32.totalorder %s133, %s147
    %p149 = scmp.eq.s32.totalorder %s18, 0
    %p150 = por %p148, %p149
    %s151 = ssub.s32 %s12, %s19
    %p152 = scmp.eq.s32.totalorder %s151, 0
    %s154 = sadd.s32 %s153, 1
    %s155 = scalar_select %p152, %s153, %s154
    %p158 = pneg %p152
    %p159 = scmp.eq.s32.totalorder %s12, 1
    %p160 = por %p158, %p159
    %p161 = scmp.ne.s32.totalorder %s153, %s156
    %p162 = scmp.eq.s32.totalorder %s12, 0
    %p163 = por %p161, %p162
    %p164 = scmp.ne.s32.totalorder %s153, %s156
    %p165 = scmp.eq.s32.totalorder %s17, 1
    %p166 = por %p164, %p165
    %p167 = scmp.ne.s32.totalorder %s156, %s157
    %p168 = scmp.eq.s32.totalorder %s17, 0
    %p169 = por %p167, %p168
    %p170 = scmp.ne.s32.totalorder %s156, %s157
    %p171 = scmp.eq.s32.totalorder %s18, 1
    %p172 = por %p170, %p171
    %p174 = scmp.ne.s32.totalorder %s157, %s173
    %p175 = scmp.eq.s32.totalorder %s18, 0
    %p176 = por %p174, %p175
    %p177 = scmp.le.s32.totalorder 1, %s12
    %p178 = scmp.lt.s32.totalorder %s12, 3
    %p179 = pnand %p177, %p178
    %p180 = pneg %p179
    // Predicated region
    $region9: #{encoding_pyramid_forward.5} parent=5 // pred_check
      _
    $region10: #{encoding_pyramid_forward.5} parent=5 // pred_check_branch
      %182 = sbr.rel (%p179) target = $region12
    $region11: #{encoding_pyramid_forward.5} parent=5 // pred_region
      %s183 = ssub.s32 %s12, 1
      // Predicated region
      $region13: #{encoding_pyramid_forward.5} parent=11 // pred_check
        %p184 = pneg %p59
      $region14: #{encoding_pyramid_forward.5} parent=11 // pred_check_branch
        %186 = sbr.rel (%p184) target = $region16
      $region15: #{encoding_pyramid_forward.5} parent=11 // pred_region
        _
      $region16: #{encoding_pyramid_forward.5} parent=11 // pred_fallthru
        _
      // Predicated region
      $region17: #{encoding_pyramid_forward.5} parent=11 // pred_check
        %p187 = pneg %p80
      $region18: #{encoding_pyramid_forward.5} parent=11 // pred_check_branch
        %189 = sbr.rel (%p187) target = $region20
      $region19: #{encoding_pyramid_forward.5} parent=11 // pred_region
        _
      $region20: #{encoding_pyramid_forward.5} parent=11 // pred_fallthru
        _
      // Predicated region
      $region21: #{encoding_pyramid_forward.5} parent=11 // pred_check
        %p190 = pneg %p101
      $region22: #{encoding_pyramid_forward.5} parent=11 // pred_check_branch
        %192 = sbr.rel (%p190) target = $region24
      $region23: #{encoding_pyramid_forward.5} parent=11 // pred_region
        _
      $region24: #{encoding_pyramid_forward.5} parent=11 // pred_fallthru
        _
      // Predicated region
      $region25: #{encoding_pyramid_forward.5} parent=11 // pred_check
        %p193 = pneg %p122
      $region26: #{encoding_pyramid_forward.5} parent=11 // pred_check_branch
        %195 = sbr.rel (%p193) target = $region28
      $region27: #{encoding_pyramid_forward.5} parent=11 // pred_region
        _
      $region28: #{encoding_pyramid_forward.5} parent=11 // pred_fallthru
        _
      // Predicated region
      $region29: #{encoding_pyramid_forward.5} parent=11 // pred_check
        %p196 = pneg %p143
      $region30: #{encoding_pyramid_forward.5} parent=11 // pred_check_branch
        %198 = sbr.rel (%p196) target = $region32
      $region31: #{encoding_pyramid_forward.5} parent=11 // pred_region
        _
      $region32: #{encoding_pyramid_forward.5} parent=11 // pred_fallthru
        _
    $region12: #{encoding_pyramid_forward.5} parent=5 // pred_fallthru
      _
    %p199 = scmp.lt.s32.totalorder %s12, 2
    // Predicated region
    $region33: #{encoding_pyramid_forward.5} parent=5 // pred_check
      %p200 = pneg %p199
    $region34: #{encoding_pyramid_forward.5} parent=5 // pred_check_branch
      %202 = sbr.rel (%p200) target = $region36
    $region35: #{encoding_pyramid_forward.5} parent=5 // pred_region
      // Predicated region
      $region37: #{encoding_pyramid_forward.5} parent=35 // pred_check
        %p203 = pneg %p32
      $region38: #{encoding_pyramid_forward.5} parent=35 // pred_check_branch
        %205 = sbr.rel (%p203) target = $region40
      $region39: #{encoding_pyramid_forward.5} parent=35 // pred_region
        %p206 = scmp.lt.s32.totalorder %s12, 1
        %s207 = scalar_select %p206, %s12, 1
        %s208 = smul.addr %s207, 2
        %s209 = smul.addr %s208, 2
        %s210 = scalar_lea.vmem %s0, %s209
      $region40: #{encoding_pyramid_forward.5} parent=35 // pred_fallthru
        _
    $region36: #{encoding_pyramid_forward.5} parent=5 // pred_fallthru
      _
    %p211 = scmp.le.s32.totalorder 1, %s12
    %p212 = scmp.lt.s32.totalorder %s12, 3
    %p213 = pnand %p211, %p212
    %p214 = pneg %p213
    // Predicated region
    $region41: #{encoding_pyramid_forward.5} parent=5 // pred_check
      _
    $region42: #{encoding_pyramid_forward.5} parent=5 // pred_check_branch
      %216 = sbr.rel (%p213) target = $region44
    $region43: #{encoding_pyramid_forward.5} parent=5 // pred_region
      %s217 = ssub.s32 %s12, 1
      %p218 = scmp.lt.s32.totalorder %s17, 1
      %s219 = scalar_select %p218, %s17, 1
      %s220 = smul.addr %s219, 2
      %s221 = smul.addr %s220, 2
      %s222 = scalar_lea.vmem %s0, %s221
      %p223 = pneg %p38
      %p224 = pneg %p35
      %p225 = pneg %p59
      %p226 = pneg %p56
      %p227 = pneg %p80
      %p228 = pneg %p77
      %p229 = pneg %p101
      %p230 = pneg %p98
      %p231 = pneg %p122
      %p232 = pneg %p119
      %p233 = pneg %p143
      %p234 = pneg %p140
      %p235 = pneg %p169
      %p236 = pneg %p166
      %p237 = scmp.lt.s32.totalorder %s17, 1
      %s238 = scalar_select %p237, %s17, 1
      %s239 = smul.addr %s238, 8
      %s240 = scalar_lea.vmem %s6, %s239
      %p241 = scmp.lt.s32.totalorder %s17, 1
      %s242 = scalar_select %p241, %s17, 1
      %s243 = smul.addr %s242, 2
      %s244 = smul.addr %s243, 2
      %s245 = scalar_lea.vmem %s0, %s244
      %p246 = scmp.lt.s32.totalorder %s17, 1
      %s247 = scalar_select %p246, %s17, 1
      %s248 = smul.addr %s247, 8
      %s249 = scalar_lea.vmem %s6, %s248
      %v251 = vld [vmem:[%s245] sm:$0x3]
      %v252 = vld [vmem:[%s1] sm:$0xf]
      %v253 = vld [vmem:[%s245] sm:$0xf]
      %s254 = scalar_lea.vmem %s1, 4
      %v255 = vld [vmem:[%s254] sm:$0xf]
      %257 = vst [vmem:[#allocation1] ss:$4 sm:$0xff] %v253
      %v258 = vld.sshfl [vmem:[#allocation1] sm:$0xff pattern:$0x73625140]
      %v260 = vld.sshfl [vmem:[#allocation1 + $0x8] sm:$0xff pattern:$0x73625140]
      %262 = vrot.lane.b32.xlu0 %v258, 127
      %v263 = vpop.permute.xlu0 %262
      %264 = vrot.lane.b32.xlu0 %v260, 127
      %v265 = vpop.permute.xlu0 %264
      %vm266 = vcmask 1039360
      %v267 = vsel %vm266, %v263, %v265
      %vm268 = vcmask 31744
      %v270 = vsel %vm268, %v255, 0
      %vm272 = vcmask 1041408
      %v274 = vsel %vm272, %v267, 0
      %276 = vmatpush.bf16.msra.mxu0 0
      %277 = vmatpush.bf16.msra.mxu0 0
      %278 = vmatpush.bf16.msra.mxu0 0
      %279 = vmatpush.bf16.msra.mxu0 0
      %280 = vmatpush.bf16.msra.mxu0 0
      %281 = vmatpush.bf16.msra.mxu0 0
      %282 = vmatpush.bf16.msra.mxu0 0
      %283 = vmatpush.bf16.msra.mxu0 %v274
      %284 = vmatmul.bf16.gmra.mxu0 %v270
      %v285 = vpop.f32.mrf.mxu0
      %v286 = vadd.f32 0.0, %v285
      %v287 = vpop.f32.mrf.mxu0
      %288 = vdwg.mxu0
      %v290 = vsel %vm268, %v252, 0
      %v293 = vsel %vm272, %v251, 0
      %295 = vmatpush.bf16.msra.mxu0 0
      %296 = vmatpush.bf16.msra.mxu0 0
      %297 = vmatpush.bf16.msra.mxu0 0
      %298 = vmatpush.bf16.msra.mxu0 0
      %299 = vmatpush.bf16.msra.mxu0 0
      %300 = vmatpush.bf16.msra.mxu0 0
      %301 = vmatpush.bf16.msra.mxu0 0
      %302 = vmatpush.bf16.msra.mxu0 %v293
      %303 = vmatmul.bf16.gmra.mxu0 %v290
      %v304 = vpop.f32.mrf.mxu0
      %v305 = vadd.f32 %v286, %v304
      %v306 = vpop.f32.mrf.mxu0
      %307 = vdwg.mxu0
      %v308 = vld [vmem:[%s245] sm:$0xf]
      %s309 = scalar_lea.vmem %s1, 8
      %v310 = vld [vmem:[%s309] sm:$0xf]
      %312 = vst [vmem:[#allocation1] ss:$4 sm:$0xff] %v308
      %v313 = vld.sshfl [vmem:[#allocation1] sm:$0xff pattern:$0x73625140]
      %v315 = vld.sshfl [vmem:[#allocation1 + $0x8] sm:$0xff pattern:$0x73625140]
      %317 = vrot.lane.b32.xlu0 %v313, 126
      %v318 = vpop.permute.xlu0 %317
      %319 = vrot.lane.b32.xlu0 %v315, 126
      %v320 = vpop.permute.xlu0 %319
      %vm321 = vcmask 1031168
      %v322 = vsel %vm321, %v318, %v320
      %v324 = vsel %vm268, %v310, 0
      %v327 = vsel %vm272, %v322, 0
      %329 = vmatpush.bf16.msra.mxu0 0
      %330 = vmatpush.bf16.msra.mxu0 0
      %331 = vmatpush.bf16.msra.mxu0 0
      %332 = vmatpush.bf16.msra.mxu0 0
      %333 = vmatpush.bf16.msra.mxu0 0
      %334 = vmatpush.bf16.msra.mxu0 0
      %335 = vmatpush.bf16.msra.mxu0 0
      %336 = vmatpush.bf16.msra.mxu0 %v327
      %337 = vmatmul.bf16.gmra.mxu0 %v324
      %v338 = vpop.f32.mrf.mxu0
      %v339 = vadd.f32 0.0, %v338
      %v340 = vpop.f32.mrf.mxu0
      %341 = vdwg.mxu0
      %v342 = vadd.f32 %v305, %v339
      %v343 = vld [vmem:[%s245] sm:$0xf]
      %s344 = scalar_lea.vmem %s1, 12
      %v345 = vld [vmem:[%s344] sm:$0xf]
      %347 = vst [vmem:[#allocation1] ss:$4 sm:$0xff] %v343
      %v348 = vld.sshfl [vmem:[#allocation1] sm:$0xff pattern:$0x73625140]
      %v350 = vld.sshfl [vmem:[#allocation1 + $0x8] sm:$0xff pattern:$0x73625140]
      %352 = vrot.lane.b32.xlu0 %v348, 122
      %v353 = vpop.permute.xlu0 %352
      %354 = vrot.lane.b32.xlu0 %v350, 122
      %v355 = vpop.permute.xlu0 %354
      %vm356 = vcmask 998400
      %v357 = vsel %vm356, %v353, %v355
      %v359 = vsel %vm268, %v345, 0
      %v362 = vsel %vm272, %v357, 0
      %364 = vmatpush.bf16.msra.mxu0 0
      %365 = vmatpush.bf16.msra.mxu0 0
      %366 = vmatpush.bf16.msra.mxu0 0
      %367 = vmatpush.bf16.msra.mxu0 0
      %368 = vmatpush.bf16.msra.mxu0 0
      %369 = vmatpush.bf16.msra.mxu0 0
      %370 = vmatpush.bf16.msra.mxu0 0
      %371 = vmatpush.bf16.msra.mxu0 %v362
      %372 = vmatmul.bf16.gmra.mxu0 %v359
      %v373 = vpop.f32.mrf.mxu0
      %v374 = vadd.f32 0.0, %v373
      %v375 = vpop.f32.mrf.mxu0
      %376 = vdwg.mxu0
      %v377 = vadd.f32 %v342, %v374
      %v378 = vld [vmem:[%s245] sm:$0xf]
      %s379 = scalar_lea.vmem %s1, 16
      %v380 = vld [vmem:[%s379] sm:$0xf]
      %382 = vst [vmem:[#allocation1] ss:$4 sm:$0xff] %v378
      %v383 = vld.sshfl [vmem:[#allocation1] sm:$0xff pattern:$0x73625140]
      %v385 = vld.sshfl [vmem:[#allocation1 + $0x8] sm:$0xff pattern:$0x73625140]
      %387 = vrot.lane.b32.xlu0 %v383, 121
      %v388 = vpop.permute.xlu0 %387
      %389 = vrot.lane.b32.xlu0 %v385, 121
      %v390 = vpop.permute.xlu0 %389
      %vm391 = vcmask 990208
      %v392 = vsel %vm391, %v388, %v390
      %v394 = vsel %vm268, %v380, 0
      %v397 = vsel %vm272, %v392, 0
      %399 = vmatpush.bf16.msra.mxu0 0
      %400 = vmatpush.bf16.msra.mxu0 0
      %401 = vmatpush.bf16.msra.mxu0 0
      %402 = vmatpush.bf16.msra.mxu0 0
      %403 = vmatpush.bf16.msra.mxu0 0
      %404 = vmatpush.bf16.msra.mxu0 0
      %405 = vmatpush.bf16.msra.mxu0 0
      %406 = vmatpush.bf16.msra.mxu0 %v397
      %407 = vmatmul.bf16.gmra.mxu0 %v394
      %v408 = vpop.f32.mrf.mxu0
      %v409 = vadd.f32 0.0, %v408
      %v410 = vpop.f32.mrf.mxu0
      %411 = vdwg.mxu0
      %v412 = vadd.f32 %v377, %v409
      %v413 = vld [vmem:[%s245] sm:$0xf]
      %s414 = scalar_lea.vmem %s1, 20
      %v415 = vld [vmem:[%s414] sm:$0xf]
      %417 = vst [vmem:[#allocation1] ss:$4 sm:$0xff] %v413
      %v418 = vld.sshfl [vmem:[#allocation1] sm:$0xff pattern:$0x73625140]
      %v420 = vld.sshfl [vmem:[#allocation1 + $0x8] sm:$0xff pattern:$0x73625140]
      %422 = vrot.lane.b32.xlu0 %v418, 120
      %v423 = vpop.permute.xlu0 %422
      %424 = vrot.lane.b32.xlu0 %v420, 120
      %v425 = vpop.permute.xlu0 %424
      %vm426 = vcmask 982016
      %v427 = vsel %vm426, %v423, %v425
      %v429 = vsel %vm268, %v415, 0
      %v432 = vsel %vm272, %v427, 0
      %434 = vmatpush.bf16.msra.mxu0 0
      %435 = vmatpush.bf16.msra.mxu0 0
      %436 = vmatpush.bf16.msra.mxu0 0
      %437 = vmatpush.bf16.msra.mxu0 0
      %438 = vmatpush.bf16.msra.mxu0 0
      %439 = vmatpush.bf16.msra.mxu0 0
      %440 = vmatpush.bf16.msra.mxu0 0
      %441 = vmatpush.bf16.msra.mxu0 %v432
      %442 = vmatmul.bf16.gmra.mxu0 %v429
      %v443 = vpop.f32.mrf.mxu0
      %v444 = vadd.f32 0.0, %v443
      %v445 = vpop.f32.mrf.mxu0
      %446 = vdwg.mxu0
      %v447 = vadd.f32 %v412, %v444
      %v448 = vld [vmem:[%s245] sm:$0xf]
      %s449 = scalar_lea.vmem %s1, 24
      %v450 = vld [vmem:[%s449] sm:$0xf]
      %452 = vst [vmem:[#allocation1] ss:$4 sm:$0xff] %v448
      %v453 = vld.sshfl [vmem:[#allocation1] sm:$0xff pattern:$0x73625140]
      %v455 = vld.sshfl [vmem:[#allocation1 + $0x8] sm:$0xff pattern:$0x73625140]
      %457 = vrot.lane.b32.xlu0 %v453, 116
      %v458 = vpop.permute.xlu0 %457
      %459 = vrot.lane.b32.xlu0 %v455, 116
      %v460 = vpop.permute.xlu0 %459
      %vm461 = vcmask 949248
      %v462 = vsel %vm461, %v458, %v460
      %v464 = vsel %vm268, %v450, 0
      %v467 = vsel %vm272, %v462, 0
      %469 = vmatpush.bf16.msra.mxu0 0
      %470 = vmatpush.bf16.msra.mxu0 0
      %471 = vmatpush.bf16.msra.mxu0 0
      %472 = vmatpush.bf16.msra.mxu0 0
      %473 = vmatpush.bf16.msra.mxu0 0
      %474 = vmatpush.bf16.msra.mxu0 0
      %475 = vmatpush.bf16.msra.mxu0 0
      %476 = vmatpush.bf16.msra.mxu0 %v467
      %477 = vmatmul.bf16.gmra.mxu0 %v464
      %v478 = vpop.f32.mrf.mxu0
      %v479 = vadd.f32 0.0, %v478
      %v480 = vpop.f32.mrf.mxu0
      %481 = vdwg.mxu0
      %v482 = vadd.f32 %v447, %v479
      %v483 = vld [vmem:[%s245] sm:$0xf]
      %s484 = scalar_lea.vmem %s1, 28
      %v485 = vld [vmem:[%s484] sm:$0xf]
      %487 = vst [vmem:[#allocation1] ss:$4 sm:$0xff] %v483
      %v488 = vld.sshfl [vmem:[#allocation1] sm:$0xff pattern:$0x73625140]
      %v490 = vld.sshfl [vmem:[#allocation1 + $0x8] sm:$0xff pattern:$0x73625140]
      %492 = vrot.lane.b32.xlu0 %v488, 115
      %v493 = vpop.permute.xlu0 %492
      %494 = vrot.lane.b32.xlu0 %v490, 115
      %v495 = vpop.permute.xlu0 %494
      %vm496 = vcmask 941056
      %v497 = vsel %vm496, %v493, %v495
      %v499 = vsel %vm268, %v485, 0
      %v502 = vsel %vm272, %v497, 0
      %504 = vmatpush.bf16.msra.mxu0 0
      %505 = vmatpush.bf16.msra.mxu0 0
      %506 = vmatpush.bf16.msra.mxu0 0
      %507 = vmatpush.bf16.msra.mxu0 0
      %508 = vmatpush.bf16.msra.mxu0 0
      %509 = vmatpush.bf16.msra.mxu0 0
      %510 = vmatpush.bf16.msra.mxu0 0
      %511 = vmatpush.bf16.msra.mxu0 %v502
      %512 = vmatmul.bf16.gmra.mxu0 %v499
      %v513 = vpop.f32.mrf.mxu0
      %v514 = vadd.f32 0.0, %v513
      %v515 = vpop.f32.mrf.mxu0
      %516 = vdwg.mxu0
      %v517 = vadd.f32 %v482, %v514
      %v518 = vld [vmem:[%s245] sm:$0xf]
      %s519 = scalar_lea.vmem %s1, 32
      %v520 = vld [vmem:[%s519] sm:$0xf]
      %522 = vst [vmem:[#allocation1] ss:$4 sm:$0xff] %v518
      %v523 = vld.sshfl [vmem:[#allocation1] sm:$0xff pattern:$0x73625140]
      %v525 = vld.sshfl [vmem:[#allocation1 + $0x8] sm:$0xff pattern:$0x73625140]
      %527 = vrot.lane.b32.xlu0 %v523, 114
      %v528 = vpop.permute.xlu0 %527
      %529 = vrot.lane.b32.xlu0 %v525, 114
      %v530 = vpop.permute.xlu0 %529
      %vm531 = vcmask 932864
      %v532 = vsel %vm531, %v528, %v530
      %v534 = vsel %vm268, %v520, 0
      %v537 = vsel %vm272, %v532, 0
      %539 = vmatpush.bf16.msra.mxu0 0
      %540 = vmatpush.bf16.msra.mxu0 0
      %541 = vmatpush.bf16.msra.mxu0 0
      %542 = vmatpush.bf16.msra.mxu0 0
      %543 = vmatpush.bf16.msra.mxu0 0
      %544 = vmatpush.bf16.msra.mxu0 0
      %545 = vmatpush.bf16.msra.mxu0 0
      %546 = vmatpush.bf16.msra.mxu0 %v537
      %547 = vmatmul.bf16.gmra.mxu0 %v534
      %v548 = vpop.f32.mrf.mxu0
      %v549 = vadd.f32 0.0, %v548
      %v550 = vpop.f32.mrf.mxu0
      %551 = vdwg.mxu0
      %v552 = vadd.f32 %v517, %v549
      %v553 = vld [vmem:[%s2] sm:$0xff]
      %555 = vset.pattern.permute.xlu0 0
      %556 = vperm.xlu0 %555, %v553
      %v557 = vpop.permute.xlu0 %556
      %v559 = vadd.f32 %v552, %v557
      %vm560 = vcmp.ge.f32.partialorder %v559, 0.0
      %v561 = vmul.f32 %v559, 0.01
      %v562 = vsel %vm560, %v559, %v561
      %v563 = vld [vmem:[%s5] sm:$0x1]
      %v565 = vperm.slane %v563, 0
      %v567 = vmul.f32 %v562, %v565
      %568 = vst [vmem:[#allocation2] sm:$0xf] 0
      %v569 = vpack.c.bf16 %v567, %v567
      %570 = vst [vmem:[#allocation2 + $0x4] sm:$0xf] %v569
      %571 = vst [vmem:[#allocation2 + $0x8] sm:$0xf] 0
      %v572 = vld [vmem:[#allocation2] sm:$0xff]
      %v573 = vld [vmem:[%s3] sm:$0xf]
      %s574 = scalar_lea.vmem %s3, 4
      %v575 = vld [vmem:[%s574] sm:$0xf]
      %v577 = vunpack.c.l.b16 %v572
      %v578 = vunpack.c.h.b16 %v572
      %v579 = vpack.c.b16 %v577, %v577
      %v580 = vpack.c.b16 %v578, %v578
      %581 = vrot.lane.b32.xlu0 %v579, 6
      %v582 = vpop.permute.xlu0 %581
      %583 = vrot.lane.b32.xlu0 %v580, 6
      %v584 = vpop.permute.xlu0 %583
      %vm585 = vcmask 48128
      %v586 = vsel %vm585, %v582, %v584
      %vm587 = vcmask 64512
      %v589 = vsel %vm587, %v575, 0
      %vm591 = vcmask 1043456
      %v593 = vsel %vm591, %v586, 0
      %595 = vmatpush.bf16.msra.mxu0 0
      %596 = vmatpush.bf16.msra.mxu0 0
      %597 = vmatpush.bf16.msra.mxu0 0
      %598 = vmatpush.bf16.msra.mxu0 0
      %599 = vmatpush.bf16.msra.mxu0 0
      %600 = vmatpush.bf16.msra.mxu0 0
      %601 = vmatpush.bf16.msra.mxu0 0
      %602 = vmatpush.bf16.msra.mxu0 %v593
      %603 = vmatmul.bf16.gmra.mxu0 %v589
      %v604 = vpop.f32.mrf.mxu0
      %v605 = vadd.f32 0.0, %v604
      %v606 = vpop.f32.mrf.mxu0
      %607 = vdwg.mxu0
      %608 = vrot.lane.b32.xlu0 %v579, 7
      %v609 = vpop.permute.xlu0 %608
      %610 = vrot.lane.b32.xlu0 %v580, 7
      %v611 = vpop.permute.xlu0 %610
      %vm612 = vcmask 56320
      %v613 = vsel %vm612, %v609, %v611
      %v615 = vsel %vm587, %v573, 0
      %v618 = vsel %vm591, %v613, 0
      %620 = vmatpush.bf16.msra.mxu0 0
      %621 = vmatpush.bf16.msra.mxu0 0
      %622 = vmatpush.bf16.msra.mxu0 0
      %623 = vmatpush.bf16.msra.mxu0 0
      %624 = vmatpush.bf16.msra.mxu0 0
      %625 = vmatpush.bf16.msra.mxu0 0
      %626 = vmatpush.bf16.msra.mxu0 0
      %627 = vmatpush.bf16.msra.mxu0 %v618
      %628 = vmatmul.bf16.gmra.mxu0 %v615
      %v629 = vpop.f32.mrf.mxu0
      %v630 = vadd.f32 %v605, %v629
      %v631 = vpop.f32.mrf.mxu0
      %632 = vdwg.mxu0
      %s633 = scalar_lea.vmem %s3, 8
      %v634 = vld [vmem:[%s633] sm:$0xf]
      %635 = vrot.lane.b32.xlu0 %v579, 5
      %v636 = vpop.permute.xlu0 %635
      %637 = vrot.lane.b32.xlu0 %v580, 5
      %v638 = vpop.permute.xlu0 %637
      %vm639 = vcmask 39936
      %v640 = vsel %vm639, %v636, %v638
      %v642 = vsel %vm587, %v634, 0
      %v645 = vsel %vm591, %v640, 0
      %647 = vmatpush.bf16.msra.mxu0 0
      %648 = vmatpush.bf16.msra.mxu0 0
      %649 = vmatpush.bf16.msra.mxu0 0
      %650 = vmatpush.bf16.msra.mxu0 0
      %651 = vmatpush.bf16.msra.mxu0 0
      %652 = vmatpush.bf16.msra.mxu0 0
      %653 = vmatpush.bf16.msra.mxu0 0
      %654 = vmatpush.bf16.msra.mxu0 %v645
      %655 = vmatmul.bf16.gmra.mxu0 %v642
      %v656 = vpop.f32.mrf.mxu0
      %v657 = vadd.f32 0.0, %v656
      %v658 = vpop.f32.mrf.mxu0
      %659 = vdwg.mxu0
      %v660 = vadd.f32 %v630, %v657
      %s661 = scalar_lea.vmem %s3, 12
      %v662 = vld [vmem:[%s661] sm:$0xf]
      %663 = vrot.lane.b32.xlu0 %v579, 1
      %v664 = vpop.permute.xlu0 %663
      %665 = vrot.lane.b32.xlu0 %v580, 1
      %v666 = vpop.permute.xlu0 %665
      %vm667 = vcmask 7168
      %v668 = vsel %vm667, %v664, %v666
      %v670 = vsel %vm587, %v662, 0
      %v673 = vsel %vm591, %v668, 0
      %675 = vmatpush.bf16.msra.mxu0 0
      %676 = vmatpush.bf16.msra.mxu0 0
      %677 = vmatpush.bf16.msra.mxu0 0
      %678 = vmatpush.bf16.msra.mxu0 0
      %679 = vmatpush.bf16.msra.mxu0 0
      %680 = vmatpush.bf16.msra.mxu0 0
      %681 = vmatpush.bf16.msra.mxu0 0
      %682 = vmatpush.bf16.msra.mxu0 %v673
      %683 = vmatmul.bf16.gmra.mxu0 %v670
      %v684 = vpop.f32.mrf.mxu0
      %v685 = vadd.f32 0.0, %v684
      %v686 = vpop.f32.mrf.mxu0
      %687 = vdwg.mxu0
      %v688 = vadd.f32 %v660, %v685
      %v689 = vld [vmem:[#allocation2 + $0x4] sm:$0xf]
      %s690 = scalar_lea.vmem %s3, 16
      %v691 = vld [vmem:[%s690] sm:$0xf]
      %v693 = vsel %vm587, %v691, 0
      %v696 = vsel %vm591, %v689, 0
      %698 = vmatpush.bf16.msra.mxu0 0
      %699 = vmatpush.bf16.msra.mxu0 0
      %700 = vmatpush.bf16.msra.mxu0 0
      %701 = vmatpush.bf16.msra.mxu0 0
      %702 = vmatpush.bf16.msra.mxu0 0
      %703 = vmatpush.bf16.msra.mxu0 0
      %704 = vmatpush.bf16.msra.mxu0 0
      %705 = vmatpush.bf16.msra.mxu0 %v696
      %706 = vmatmul.bf16.gmra.mxu0 %v693
      %v707 = vpop.f32.mrf.mxu0
      %v708 = vadd.f32 0.0, %v707
      %v709 = vpop.f32.mrf.mxu0
      %710 = vdwg.mxu0
      %v711 = vadd.f32 %v688, %v708
      %v712 = vld [vmem:[#allocation2 + $0x4] sm:$0xff]
      %s713 = scalar_lea.vmem %s3, 20
      %v714 = vld [vmem:[%s713] sm:$0xf]
      %v716 = vunpack.c.l.b16 %v712
      %v717 = vunpack.c.h.b16 %v712
      %v718 = vpack.c.b16 %v716, %v716
      %v719 = vpack.c.b16 %v717, %v717
      %720 = vrot.lane.b32.xlu0 %v718, 127
      %v721 = vpop.permute.xlu0 %720
      %722 = vrot.lane.b32.xlu0 %v719, 127
      %v723 = vpop.permute.xlu0 %722
      %v724 = vsel %vm266, %v721, %v723
      %v726 = vsel %vm587, %v714, 0
      %v729 = vsel %vm591, %v724, 0
      %731 = vmatpush.bf16.msra.mxu0 0
      %732 = vmatpush.bf16.msra.mxu0 0
      %733 = vmatpush.bf16.msra.mxu0 0
      %734 = vmatpush.bf16.msra.mxu0 0
      %735 = vmatpush.bf16.msra.mxu0 0
      %736 = vmatpush.bf16.msra.mxu0 0
      %737 = vmatpush.bf16.msra.mxu0 0
      %738 = vmatpush.bf16.msra.mxu0 %v729
      %739 = vmatmul.bf16.gmra.mxu0 %v726
      %v740 = vpop.f32.mrf.mxu0
      %v741 = vadd.f32 0.0, %v740
      %v742 = vpop.f32.mrf.mxu0
      %743 = vdwg.mxu0
      %v744 = vadd.f32 %v711, %v741
      %s745 = scalar_lea.vmem %s3, 24
      %v746 = vld [vmem:[%s745] sm:$0xf]
      %747 = vrot.lane.b32.xlu0 %v718, 123
      %v748 = vpop.permute.xlu0 %747
      %749 = vrot.lane.b32.xlu0 %v719, 123
      %v750 = vpop.permute.xlu0 %749
      %vm751 = vcmask 1006592
      %v752 = vsel %vm751, %v748, %v750
      %v754 = vsel %vm587, %v746, 0
      %v757 = vsel %vm591, %v752, 0
      %759 = vmatpush.bf16.msra.mxu0 0
      %760 = vmatpush.bf16.msra.mxu0 0
      %761 = vmatpush.bf16.msra.mxu0 0
      %762 = vmatpush.bf16.msra.mxu0 0
      %763 = vmatpush.bf16.msra.mxu0 0
      %764 = vmatpush.bf16.msra.mxu0 0
      %765 = vmatpush.bf16.msra.mxu0 0
      %766 = vmatpush.bf16.msra.mxu0 %v757
      %767 = vmatmul.bf16.gmra.mxu0 %v754
      %v768 = vpop.f32.mrf.mxu0
      %v769 = vadd.f32 0.0, %v768
      %v770 = vpop.f32.mrf.mxu0
      %771 = vdwg.mxu0
      %v772 = vadd.f32 %v744, %v769
      %s773 = scalar_lea.vmem %s3, 28
      %v774 = vld [vmem:[%s773] sm:$0xf]
      %775 = vrot.lane.b32.xlu0 %v718, 122
      %v776 = vpop.permute.xlu0 %775
      %777 = vrot.lane.b32.xlu0 %v719, 122
      %v778 = vpop.permute.xlu0 %777
      %v779 = vsel %vm356, %v776, %v778
      %v781 = vsel %vm587, %v774, 0
      %v784 = vsel %vm591, %v779, 0
      %786 = vmatpush.bf16.msra.mxu0 0
      %787 = vmatpush.bf16.msra.mxu0 0
      %788 = vmatpush.bf16.msra.mxu0 0
      %789 = vmatpush.bf16.msra.mxu0 0
      %790 = vmatpush.bf16.msra.mxu0 0
      %791 = vmatpush.bf16.msra.mxu0 0
      %792 = vmatpush.bf16.msra.mxu0 0
      %793 = vmatpush.bf16.msra.mxu0 %v784
      %794 = vmatmul.bf16.gmra.mxu0 %v781
      %v795 = vpop.f32.mrf.mxu0
      %v796 = vadd.f32 0.0, %v795
      %v797 = vpop.f32.mrf.mxu0
      %798 = vdwg.mxu0
      %v799 = vadd.f32 %v772, %v796
      %s800 = scalar_lea.vmem %s3, 32
      %v801 = vld [vmem:[%s800] sm:$0xf]
      %802 = vrot.lane.b32.xlu0 %v718, 121
      %v803 = vpop.permute.xlu0 %802
      %804 = vrot.lane.b32.xlu0 %v719, 121
      %v805 = vpop.permute.xlu0 %804
      %v806 = vsel %vm391, %v803, %v805
      %v808 = vsel %vm587, %v801, 0
      %v811 = vsel %vm591, %v806, 0
      %813 = vmatpush.bf16.msra.mxu0 0
      %814 = vmatpush.bf16.msra.mxu0 0
      %815 = vmatpush.bf16.msra.mxu0 0
      %816 = vmatpush.bf16.msra.mxu0 0
      %817 = vmatpush.bf16.msra.mxu0 0
      %818 = vmatpush.bf16.msra.mxu0 0
      %819 = vmatpush.bf16.msra.mxu0 0
      %820 = vmatpush.bf16.msra.mxu0 %v811
      %821 = vmatmul.bf16.gmra.mxu0 %v808
      %v822 = vpop.f32.mrf.mxu0
      %v823 = vadd.f32 0.0, %v822
      %v824 = vpop.f32.mrf.mxu0
      %825 = vdwg.mxu0
      %v826 = vadd.f32 %v799, %v823
      %v827 = vld [vmem:[%s4] sm:$0xff]
      %829 = vset.pattern.permute.xlu0 0
      %830 = vperm.xlu0 %829, %v827
      %v831 = vpop.permute.xlu0 %830
      %v833 = vadd.f32 %v826, %v831
      %vm834 = vcmp.ge.f32.partialorder %v833, 0.0
      %v835 = vmul.f32 %v833, 0.01
      %v836 = vsel %vm834, %v833, %v835
      %837 = vst [vmem:[%s249] sm:$0xff] %v836
      %p838 = scmp.lt.s32.totalorder %s17, 1
      %s839 = scalar_select %p838, %s17, 1
      %s840 = smul.addr %s839, 8
      %s841 = scalar_lea.vmem %s6, %s840
      // Predicated region
      $region45: #{encoding_pyramid_forward.5} parent=43 // pred_check
        %p842 = pneg %p166
      $region46: #{encoding_pyramid_forward.5} parent=43 // pred_check_branch
        %844 = sbr.rel (%p842) target = $region48
      $region47: #{encoding_pyramid_forward.5} parent=43 // pred_region
        _
      $region48: #{encoding_pyramid_forward.5} parent=43 // pred_fallthru
        _
    $region44: #{encoding_pyramid_forward.5} parent=5 // pred_fallthru
      _
    %p845 = scmp.le.s32.totalorder 2, %s12
    // Predicated region
    $region49: #{encoding_pyramid_forward.5} parent=5 // pred_check
      %p846 = pneg %p845
    $region50: #{encoding_pyramid_forward.5} parent=5 // pred_check_branch
      %848 = sbr.rel (%p846) target = $region52
    $region51: #{encoding_pyramid_forward.5} parent=5 // pred_region
      %s849 = ssub.s32 %s12, 2
      // Predicated region
      $region53: #{encoding_pyramid_forward.5} parent=51 // pred_check
        %p850 = pneg %p172
      $region54: #{encoding_pyramid_forward.5} parent=51 // pred_check_branch
        %852 = sbr.rel (%p850) target = $region56
      $region55: #{encoding_pyramid_forward.5} parent=51 // pred_region
        %p853 = scmp.lt.s32.totalorder %s18, 1
        %s854 = scalar_select %p853, %s18, 1
        %s855 = smul.addr %s854, 8
        %s856 = scalar_lea.vmem %s6, %s855
      $region56: #{encoding_pyramid_forward.5} parent=51 // pred_fallthru
        _
    $region52: #{encoding_pyramid_forward.5} parent=5 // pred_fallthru
      _
  $region6: #{encoding_pyramid_forward.5} parent=0 // loop_footer
    %s16 = sadd.s32 1, %s12
  $region7: #{encoding_pyramid_forward.5} parent=0 // loop_footer_branch
    %11 = sbr.rel target = $region3
  $region8: #{encoding_pyramid_forward.5} parent=0 // loop_exit
    _

// kernel: encoding_pyramid_forward.4
$region0: #{encoding_pyramid_forward.4}
  #allocation0 [shape = 'u32[]', space=smem, size = 0x4, offset = 0x4, fixed_abs, tag = 'smem constant byte address 0x4 - core index']
  #allocation1 [shape = 'u32[72,128]{1,0:T(1,128)}', space=vmem, size = 0x9000, scoped, tag = 'internal scratch']
  #allocation2 [shape = 'bf16[4,512]{1,0:T(4,128)(2,1)}', space=vmem, size = 0x1000, scoped, tag = 'scratch operand']
  %s0 = inlined_call_operand.vmem [shape: bf16[2,2,384], index: 0, kind: input, shape index: {}]
  %s1 = inlined_call_operand.vmem [shape: bf16[9,4,2], index: 1, kind: input, shape index: {}]
  %s2 = inlined_call_operand.vmem [shape: f32[4,1], index: 2, kind: input, shape index: {}]
  %s3 = inlined_call_operand.vmem [shape: bf16[9,4,4], index: 3, kind: input, shape index: {}]
  %s4 = inlined_call_operand.vmem [shape: f32[4,1], index: 4, kind: input, shape index: {}]
  %s5 = inlined_call_operand.vmem [shape: f32[1,256], index: 5, kind: input, shape index: {}]
  %s6 = inlined_call_operand.hbm [shape: bf16[256,256], index: 6, kind: input, shape index: {}]
  %s7 = inlined_call_operand.vmem [shape: f32[2,4,256], index: 7, kind: output, shape index: {0}]
  %s8 = inlined_call_operand.vmem [shape: bf16[2,4,256], index: 8, kind: output, shape index: {1}]
  %9 = xla_tuple %s7, %s8
  %s10 = sld [smem:[#allocation0]]
  $region73: #{encoding_pyramid_forward.4} parent=0
    _
  %s12 = ssub.s32 1, %s10
  %s13 = scalar_select 0, %s12, %s10
  $region1: #{encoding_pyramid_forward.4} parent=0
    #allocation3 [shape = 'u8[131072]{0}', space=vmem, size = 0x20000, scoped, tag = 'input window, operand 6, single buffered']
    #allocation4 [shape = 's32[2]{0}', space=sflag, size = 0x8, scoped, tag = 'scoped memory for encoding_pyramid_forward.4']
    %14 = vsyncpa [#allocation4], 0
    loop: start=0, step=1, limit=4
    $region2: #{encoding_pyramid_forward.4} parent=1 // loop_pre_header
      _
    $region3: #{encoding_pyramid_forward.4} parent=1 // loop_header
      %s16 = sphi 0, %s20
      %p17 = scmp.ge.s32.totalorder %s16, 4
      %s26 = sphi 0, %s28
      %s29 = sphi 0, %s26
      %s30 = sphi 0, %s29
      %s46 = sphi 0, %s30
      %s50 = sphi 0, %s50
      %s52 = sphi 0, %s50
      %s53 = sphi 0, %s52
      %s67 = sphi 0, %s53
      %s71 = sphi 0, %s71
      %s73 = sphi 0, %s71
      %s74 = sphi 0, %s73
      %s88 = sphi 0, %s74
      %s92 = sphi 0, %s92
      %s94 = sphi 0, %s92
      %s95 = sphi 0, %s94
      %s109 = sphi 0, %s95
      %s113 = sphi 0, %s113
      %s115 = sphi 0, %s113
      %s116 = sphi 0, %s115
      %s130 = sphi 0, %s116
      %s134 = sphi 0, %s134
      %s136 = sphi 0, %s134
      %s137 = sphi 0, %s136
      %s151 = sphi 0, %s137
      %s155 = sphi 0, %s155
      %s157 = sphi 0, %s155
      %s158 = sphi 0, %s157
      %s172 = sphi 0, %s158
      %s178 = sphi 0, %s180
      %s181 = sphi 0, %s178
      %s182 = sphi 0, %s181
      %s198 = sphi 0, %s182
      %s204 = sphi 0, %s206
      %s207 = sphi 0, %s204
      %s208 = sphi 0, %s207
      %s224 = sphi 0, %s208
    $region4: #{encoding_pyramid_forward.4} parent=1 // loop_header_branch
      %19 = sbr.rel (%p17) target = $region8
    $region5: #{encoding_pyramid_forward.4} parent=1 // loop_body
      %s21 = ssub.s32 %s16, 1
      %s22 = ssub.s32 %s16, 2
      %s23 = sadd.s32 %s16, 1
      %s24 = ssub.s32 %s16, %s23
      %p25 = scmp.eq.s32.totalorder %s24, 0
      %s27 = sadd.s32 %s26, 1
      %s28 = scalar_select %p25, %s26, %s27
      %p31 = pneg %p25
      %p32 = scmp.eq.s32.totalorder %s16, 1
      %p33 = por %p31, %p32
      %p34 = scmp.ne.s32.totalorder %s26, %s29
      %p35 = scmp.eq.s32.totalorder %s16, 0
      %p36 = por %p34, %p35
      %p37 = scmp.ne.s32.totalorder %s26, %s29
      %p38 = scmp.eq.s32.totalorder %s21, 1
      %p39 = por %p37, %p38
      %p40 = scmp.ne.s32.totalorder %s29, %s30
      %p41 = scmp.eq.s32.totalorder %s21, 0
      %p42 = por %p40, %p41
      %p43 = scmp.ne.s32.totalorder %s29, %s30
      %p44 = scmp.eq.s32.totalorder %s22, 1
      %p45 = por %p43, %p44
      %p47 = scmp.ne.s32.totalorder %s30, %s46
      %p48 = scmp.eq.s32.totalorder %s22, 0
      %p49 = por %p47, %p48
      %s51 = sadd.s32 %s50, 1
      %p54 = scmp.eq.s32.totalorder %s16, 1
      %p55 = scmp.ne.s32.totalorder %s50, %s52
      %p56 = scmp.eq.s32.totalorder %s16, 0
      %p57 = por %p55, %p56
      %p58 = scmp.ne.s32.totalorder %s50, %s52
      %p59 = scmp.eq.s32.totalorder %s21, 1
      %p60 = por %p58, %p59
      %p61 = scmp.ne.s32.totalorder %s52, %s53
      %p62 = scmp.eq.s32.totalorder %s21, 0
      %p63 = por %p61, %p62
      %p64 = scmp.ne.s32.totalorder %s52, %s53
      %p65 = scmp.eq.s32.totalorder %s22, 1
      %p66 = por %p64, %p65
      %p68 = scmp.ne.s32.totalorder %s53, %s67
      %p69 = scmp.eq.s32.totalorder %s22, 0
      %p70 = por %p68, %p69
      %s72 = sadd.s32 %s71, 1
      %p75 = scmp.eq.s32.totalorder %s16, 1
      %p76 = scmp.ne.s32.totalorder %s71, %s73
      %p77 = scmp.eq.s32.totalorder %s16, 0
      %p78 = por %p76, %p77
      %p79 = scmp.ne.s32.totalorder %s71, %s73
      %p80 = scmp.eq.s32.totalorder %s21, 1
      %p81 = por %p79, %p80
      %p82 = scmp.ne.s32.totalorder %s73, %s74
      %p83 = scmp.eq.s32.totalorder %s21, 0
      %p84 = por %p82, %p83
      %p85 = scmp.ne.s32.totalorder %s73, %s74
      %p86 = scmp.eq.s32.totalorder %s22, 1
      %p87 = por %p85, %p86
      %p89 = scmp.ne.s32.totalorder %s74, %s88
      %p90 = scmp.eq.s32.totalorder %s22, 0
      %p91 = por %p89, %p90
      %s93 = sadd.s32 %s92, 1
      %p96 = scmp.eq.s32.totalorder %s16, 1
      %p97 = scmp.ne.s32.totalorder %s92, %s94
      %p98 = scmp.eq.s32.totalorder %s16, 0
      %p99 = por %p97, %p98
      %p100 = scmp.ne.s32.totalorder %s92, %s94
      %p101 = scmp.eq.s32.totalorder %s21, 1
      %p102 = por %p100, %p101
      %p103 = scmp.ne.s32.totalorder %s94, %s95
      %p104 = scmp.eq.s32.totalorder %s21, 0
      %p105 = por %p103, %p104
      %p106 = scmp.ne.s32.totalorder %s94, %s95
      %p107 = scmp.eq.s32.totalorder %s22, 1
      %p108 = por %p106, %p107
      %p110 = scmp.ne.s32.totalorder %s95, %s109
      %p111 = scmp.eq.s32.totalorder %s22, 0
      %p112 = por %p110, %p111
      %s114 = sadd.s32 %s113, 1
      %p117 = scmp.eq.s32.totalorder %s16, 1
      %p118 = scmp.ne.s32.totalorder %s113, %s115
      %p119 = scmp.eq.s32.totalorder %s16, 0
      %p120 = por %p118, %p119
      %p121 = scmp.ne.s32.totalorder %s113, %s115
      %p122 = scmp.eq.s32.totalorder %s21, 1
      %p123 = por %p121, %p122
      %p124 = scmp.ne.s32.totalorder %s115, %s116
      %p125 = scmp.eq.s32.totalorder %s21, 0
      %p126 = por %p124, %p125
      %p127 = scmp.ne.s32.totalorder %s115, %s116
      %p128 = scmp.eq.s32.totalorder %s22, 1
      %p129 = por %p127, %p128
      %p131 = scmp.ne.s32.totalorder %s116, %s130
      %p132 = scmp.eq.s32.totalorder %s22, 0
      %p133 = por %p131, %p132
      %s135 = sadd.s32 %s134, 1
      %p138 = scmp.eq.s32.totalorder %s16, 1
      %p139 = scmp.ne.s32.totalorder %s134, %s136
      %p140 = scmp.eq.s32.totalorder %s16, 0
      %p141 = por %p139, %p140
      %p142 = scmp.ne.s32.totalorder %s134, %s136
      %p143 = scmp.eq.s32.totalorder %s21, 1
      %p144 = por %p142, %p143
      %p145 = scmp.ne.s32.totalorder %s136, %s137
      %p146 = scmp.eq.s32.totalorder %s21, 0
      %p147 = por %p145, %p146
      %p148 = scmp.ne.s32.totalorder %s136, %s137
      %p149 = scmp.eq.s32.totalorder %s22, 1
      %p150 = por %p148, %p149
      %p152 = scmp.ne.s32.totalorder %s137, %s151
      %p153 = scmp.eq.s32.totalorder %s22, 0
      %p154 = por %p152, %p153
      %s156 = sadd.s32 %s155, 1
      %p159 = scmp.eq.s32.totalorder %s16, 1
      %p160 = scmp.ne.s32.totalorder %s155, %s157
      %p161 = scmp.eq.s32.totalorder %s16, 0
      %p162 = por %p160, %p161
      %p163 = scmp.ne.s32.totalorder %s155, %s157
      %p164 = scmp.eq.s32.totalorder %s21, 1
      %p165 = por %p163, %p164
      %p166 = scmp.ne.s32.totalorder %s157, %s158
      %p167 = scmp.eq.s32.totalorder %s21, 0
      %p168 = por %p166, %p167
      %p169 = scmp.ne.s32.totalorder %s157, %s158
      %p170 = scmp.eq.s32.totalorder %s22, 1
      %p171 = por %p169, %p170
      %p173 = scmp.ne.s32.totalorder %s158, %s172
      %p174 = scmp.eq.s32.totalorder %s22, 0
      %p175 = por %p173, %p174
      %s176 = ssub.s32 %s16, %s23
      %p177 = scmp.eq.s32.totalorder %s176, 0
      %s179 = sadd.s32 %s178, 1
      %s180 = scalar_select %p177, %s178, %s179
      %p183 = pneg %p177
      %p184 = scmp.eq.s32.totalorder %s16, 1
      %p185 = por %p183, %p184
      %p186 = scmp.ne.s32.totalorder %s178, %s181
      %p187 = scmp.eq.s32.totalorder %s16, 0
      %p188 = por %p186, %p187
      %p189 = scmp.ne.s32.totalorder %s178, %s181
      %p190 = scmp.eq.s32.totalorder %s21, 1
      %p191 = por %p189, %p190
      %p192 = scmp.ne.s32.totalorder %s181, %s182
      %p193 = scmp.eq.s32.totalorder %s21, 0
      %p194 = por %p192, %p193
      %p195 = scmp.ne.s32.totalorder %s181, %s182
      %p196 = scmp.eq.s32.totalorder %s22, 1
      %p197 = por %p195, %p196
      %p199 = scmp.ne.s32.totalorder %s182, %s198
      %p200 = scmp.eq.s32.totalorder %s22, 0
      %p201 = por %p199, %p200
      %s202 = ssub.s32 %s16, %s23
      %p203 = scmp.eq.s32.totalorder %s202, 0
      %s205 = sadd.s32 %s204, 1
      %s206 = scalar_select %p203, %s204, %s205
      %p209 = pneg %p203
      %p210 = scmp.eq.s32.totalorder %s16, 1
      %p211 = por %p209, %p210
      %p212 = scmp.ne.s32.totalorder %s204, %s207
      %p213 = scmp.eq.s32.totalorder %s16, 0
      %p214 = por %p212, %p213
      %p215 = scmp.ne.s32.totalorder %s204, %s207
      %p216 = scmp.eq.s32.totalorder %s21, 1
      %p217 = por %p215, %p216
      %p218 = scmp.ne.s32.totalorder %s207, %s208
      %p219 = scmp.eq.s32.totalorder %s21, 0
      %p220 = por %p218, %p219
      %p221 = scmp.ne.s32.totalorder %s207, %s208
      %p222 = scmp.eq.s32.totalorder %s22, 1
      %p223 = por %p221, %p222
      %p225 = scmp.ne.s32.totalorder %s208, %s224
      %p226 = scmp.eq.s32.totalorder %s22, 0
      %p227 = por %p225, %p226
      %p228 = scmp.le.s32.totalorder 1, %s16
      %p229 = scmp.lt.s32.totalorder %s16, 3
      %p230 = pnand %p228, %p229
      %p231 = pneg %p230
      // Predicated region
      $region9: #{encoding_pyramid_forward.4} parent=5 // pred_check
        _
      $region10: #{encoding_pyramid_forward.4} parent=5 // pred_check_branch
        %233 = sbr.rel (%p230) target = $region12
      $region11: #{encoding_pyramid_forward.4} parent=5 // pred_region
        %s234 = ssub.s32 %s16, 1
        // Predicated region
        $region13: #{encoding_pyramid_forward.4} parent=11 // pred_check
          %p235 = pneg %p63
        $region14: #{encoding_pyramid_forward.4} parent=11 // pred_check_branch
          %237 = sbr.rel (%p235) target = $region16
        $region15: #{encoding_pyramid_forward.4} parent=11 // pred_region
          _
        $region16: #{encoding_pyramid_forward.4} parent=11 // pred_fallthru
          _
        // Predicated region
        $region17: #{encoding_pyramid_forward.4} parent=11 // pred_check
          %p238 = pneg %p84
        $region18: #{encoding_pyramid_forward.4} parent=11 // pred_check_branch
          %240 = sbr.rel (%p238) target = $region20
        $region19: #{encoding_pyramid_forward.4} parent=11 // pred_region
          _
        $region20: #{encoding_pyramid_forward.4} parent=11 // pred_fallthru
          _
        // Predicated region
        $region21: #{encoding_pyramid_forward.4} parent=11 // pred_check
          %p241 = pneg %p105
        $region22: #{encoding_pyramid_forward.4} parent=11 // pred_check_branch
          %243 = sbr.rel (%p241) target = $region24
        $region23: #{encoding_pyramid_forward.4} parent=11 // pred_region
          _
        $region24: #{encoding_pyramid_forward.4} parent=11 // pred_fallthru
          _
        // Predicated region
        $region25: #{encoding_pyramid_forward.4} parent=11 // pred_check
          %p244 = pneg %p126
        $region26: #{encoding_pyramid_forward.4} parent=11 // pred_check_branch
          %246 = sbr.rel (%p244) target = $region28
        $region27: #{encoding_pyramid_forward.4} parent=11 // pred_region
          _
        $region28: #{encoding_pyramid_forward.4} parent=11 // pred_fallthru
          _
        // Predicated region
        $region29: #{encoding_pyramid_forward.4} parent=11 // pred_check
          %p247 = pneg %p147
        $region30: #{encoding_pyramid_forward.4} parent=11 // pred_check_branch
          %249 = sbr.rel (%p247) target = $region32
        $region31: #{encoding_pyramid_forward.4} parent=11 // pred_region
          _
        $region32: #{encoding_pyramid_forward.4} parent=11 // pred_fallthru
          _
        // Predicated region
        $region33: #{encoding_pyramid_forward.4} parent=11 // pred_check
          %p250 = pneg %p168
        $region34: #{encoding_pyramid_forward.4} parent=11 // pred_check_branch
          %252 = sbr.rel (%p250) target = $region36
        $region35: #{encoding_pyramid_forward.4} parent=11 // pred_region
          %254 = vsyncadd [#allocation4], 0
          %s255 = sshll.u32 %s6, 4
          %s256 = int_to_ptr.hbm [resolvable:$true] %s255
          %s257 = sshll.u32 [#allocation3], 4
          %s258 = int_to_ptr.vmem [resolvable:$true] %s257
          %263 = dma.hbm_to_vmem [thread:$0]  %s256, 4096, %s258, [#allocation4], 128, 128, 8
        $region36: #{encoding_pyramid_forward.4} parent=11 // pred_fallthru
          _
      $region12: #{encoding_pyramid_forward.4} parent=5 // pred_fallthru
        _
      %p264 = scmp.lt.s32.totalorder %s16, 2
      // Predicated region
      $region37: #{encoding_pyramid_forward.4} parent=5 // pred_check
        %p265 = pneg %p264
      $region38: #{encoding_pyramid_forward.4} parent=5 // pred_check_branch
        %267 = sbr.rel (%p265) target = $region40
      $region39: #{encoding_pyramid_forward.4} parent=5 // pred_region
        // Predicated region
        $region41: #{encoding_pyramid_forward.4} parent=39 // pred_check
          %p268 = pneg %p36
        $region42: #{encoding_pyramid_forward.4} parent=39 // pred_check_branch
          %270 = sbr.rel (%p268) target = $region44
        $region43: #{encoding_pyramid_forward.4} parent=39 // pred_region
          %p271 = scmp.lt.s32.totalorder %s16, 1
          %s272 = scalar_select %p271, %s16, 1
          %s273 = smul.addr %s272, 3
          %s274 = scalar_lea.vmem %s0, %s273
        $region44: #{encoding_pyramid_forward.4} parent=39 // pred_fallthru
          _
      $region40: #{encoding_pyramid_forward.4} parent=5 // pred_fallthru
        _
      %p275 = scmp.le.s32.totalorder 1, %s16
      %p276 = scmp.lt.s32.totalorder %s16, 3
      %p277 = pnand %p275, %p276
      %p278 = pneg %p277
      // Predicated region
      $region45: #{encoding_pyramid_forward.4} parent=5 // pred_check
        _
      $region46: #{encoding_pyramid_forward.4} parent=5 // pred_check_branch
        %280 = sbr.rel (%p277) target = $region48
      $region47: #{encoding_pyramid_forward.4} parent=5 // pred_region
        %s281 = ssub.s32 %s16, 1
        // Predicated region
        $region49: #{encoding_pyramid_forward.4} parent=47 // pred_check
          %p282 = pneg %p168
        $region50: #{encoding_pyramid_forward.4} parent=47 // pred_check_branch
          %284 = sbr.rel (%p282) target = $region52
        $region51: #{encoding_pyramid_forward.4} parent=47 // pred_region
          %286 = dma.done [#allocation4], 4096
        $region52: #{encoding_pyramid_forward.4} parent=47 // pred_fallthru
          _
        %p287 = scmp.lt.s32.totalorder %s21, 1
        %s288 = scalar_select %p287, %s21, 1
        %s289 = smul.addr %s288, 3
        %s290 = scalar_lea.vmem %s0, %s289
        %p291 = pneg %p42
        %p292 = pneg %p39
        %p293 = pneg %p63
        %p294 = pneg %p60
        %p295 = pneg %p84
        %p296 = pneg %p81
        %p297 = pneg %p105
        %p298 = pneg %p102
        %p299 = pneg %p126
        %p300 = pneg %p123
        %p301 = pneg %p147
        %p302 = pneg %p144
        %p303 = pneg %p168
        %p304 = pneg %p165
        %p305 = pneg %p194
        %p306 = pneg %p191
        %p307 = scmp.lt.s32.totalorder %s21, 1
        %s308 = scalar_select %p307, %s21, 1
        %s309 = smul.addr %s308, 2
        %s310 = smul.addr %s309, 4
        %s311 = scalar_lea.vmem %s7, %s310
        %p312 = pneg %p220
        %p313 = pneg %p217
        %p314 = scmp.lt.s32.totalorder %s21, 1
        %s315 = scalar_select %p314, %s21, 1
        %s316 = smul.addr %s315, 2
        %s317 = smul.addr %s316, 2
        %s318 = scalar_lea.vmem %s8, %s317
        %p319 = scmp.lt.s32.totalorder %s21, 1
        %s320 = scalar_select %p319, %s21, 1
        %s321 = smul.addr %s320, 3
        %s322 = scalar_lea.vmem %s0, %s321
        %p323 = scmp.lt.s32.totalorder %s21, 1
        %s324 = scalar_select %p323, %s21, 1
        %s325 = smul.addr %s324, 2
        %s326 = smul.addr %s325, 4
        %s327 = scalar_lea.vmem %s7, %s326
        %p328 = scmp.lt.s32.totalorder %s21, 1
        %s329 = scalar_select %p328, %s21, 1
        %s330 = smul.addr %s329, 2
        %s331 = smul.addr %s330, 2
        %s332 = scalar_lea.vmem %s8, %s331
        %v334 = vld [vmem:[%s322] sm:$0x3]
        %v335 = vld [vmem:[%s1] sm:$0x3]
        %v336 = vld [vmem:[%s322] sm:$0x7]
        %s337 = scalar_lea.vmem %s1, 2
        %v338 = vld [vmem:[%s337] sm:$0x3]
        %340 = vst [vmem:[#allocation1] ss:$9 sm:$0xff] %v336
        %v341 = vld [vmem:[#allocation1] sm:$0xff]
        %v343 = vld [vmem:[#allocation1 + $0x9] sm:$0xff]
        %v345 = vld [vmem:[#allocation1 + $0x12] sm:$0xff]
        %347 = vrot.lane.b32.xlu0 %v341, 127
        %v348 = vpop.permute.xlu0 %347
        %349 = vrot.lane.b32.xlu0 %v343, 127
        %v350 = vpop.permute.xlu0 %349
        %351 = vrot.lane.b32.xlu0 %v345, 127
        %v352 = vpop.permute.xlu0 %351
        %vm353 = vcmask 1039360
        %v354 = vsel %vm353, %v348, %v350
        %v355 = vsel %vm353, %v350, %v352
        %vm356 = vcmask 15360
        %v358 = vsel %vm356, %v338, 0
        %vm360 = vcmask 1040384
        %v362 = vsel %vm360, %v354, 0
        %v365 = vsel %vm360, %v355, 0
        %367 = vmatpush.bf16.msra.mxu0 0
        %368 = vmatpush.bf16.msra.mxu0 0
        %369 = vmatpush.bf16.msra.mxu0 0
        %370 = vmatpush.bf16.msra.mxu0 0
        %371 = vmatpush.bf16.msra.mxu0 0
        %372 = vmatpush.bf16.msra.mxu0 0
        %373 = vmatpush.bf16.msra.mxu0 0
        %374 = vmatpush.bf16.msra.mxu0 %v362
        %375 = vmatmul.bf16.gmra.mxu0 %v358
        %v376 = vpop.f32.mrf.mxu0
        %v377 = vadd.f32 0.0, %v376
        %v378 = vpop.f32.mrf.mxu0
        %379 = vdwg.mxu0
        %380 = vmatpush.bf16.msra.mxu0 0
        %381 = vmatpush.bf16.msra.mxu0 0
        %382 = vmatpush.bf16.msra.mxu0 0
        %383 = vmatpush.bf16.msra.mxu0 0
        %384 = vmatpush.bf16.msra.mxu0 0
        %385 = vmatpush.bf16.msra.mxu0 0
        %386 = vmatpush.bf16.msra.mxu0 0
        %387 = vmatpush.bf16.msra.mxu0 %v365
        %388 = vmatmul.bf16.gmra.mxu0 %v358
        %v389 = vpop.f32.mrf.mxu0
        %v390 = vadd.f32 0.0, %v389
        %v391 = vpop.f32.mrf.mxu0
        %392 = vdwg.mxu0
        %394 = vst [vmem:[#allocation1] ss:$9 sm:$0xff] %v334
        %v395 = vld [vmem:[#allocation1] sm:$0xff]
        %v396 = vld [vmem:[#allocation1 + $0x9] sm:$0xff]
        %v398 = vsel %vm356, %v335, 0
        %v400 = vsel %vm360, %v395, 0
        %v402 = vsel %vm360, %v396, 0
        %404 = vmatpush.bf16.msra.mxu0 0
        %405 = vmatpush.bf16.msra.mxu0 0
        %406 = vmatpush.bf16.msra.mxu0 0
        %407 = vmatpush.bf16.msra.mxu0 0
        %408 = vmatpush.bf16.msra.mxu0 0
        %409 = vmatpush.bf16.msra.mxu0 0
        %410 = vmatpush.bf16.msra.mxu0 0
        %411 = vmatpush.bf16.msra.mxu0 %v400
        %412 = vmatmul.bf16.gmra.mxu0 %v398
        %v413 = vpop.f32.mrf.mxu0
        %v414 = vadd.f32 %v377, %v413
        %v415 = vpop.f32.mrf.mxu0
        %416 = vdwg.mxu0
        %417 = vmatpush.bf16.msra.mxu0 0
        %418 = vmatpush.bf16.msra.mxu0 0
        %419 = vmatpush.bf16.msra.mxu0 0
        %420 = vmatpush.bf16.msra.mxu0 0
        %421 = vmatpush.bf16.msra.mxu0 0
        %422 = vmatpush.bf16.msra.mxu0 0
        %423 = vmatpush.bf16.msra.mxu0 0
        %424 = vmatpush.bf16.msra.mxu0 %v402
        %425 = vmatmul.bf16.gmra.mxu0 %v398
        %v426 = vpop.f32.mrf.mxu0
        %v427 = vadd.f32 %v390, %v426
        %v428 = vpop.f32.mrf.mxu0
        %429 = vdwg.mxu0
        %v430 = vld [vmem:[%s322] sm:$0x7]
        %s431 = scalar_lea.vmem %s1, 4
        %v432 = vld [vmem:[%s431] sm:$0x3]
        %434 = vst [vmem:[#allocation1] ss:$9 sm:$0xff] %v430
        %v435 = vld [vmem:[#allocation1] sm:$0xff]
        %v437 = vld [vmem:[#allocation1 + $0x9] sm:$0xff]
        %v439 = vld [vmem:[#allocation1 + $0x12] sm:$0xff]
        %441 = vrot.lane.b32.xlu0 %v435, 126
        %v442 = vpop.permute.xlu0 %441
        %443 = vrot.lane.b32.xlu0 %v437, 126
        %v444 = vpop.permute.xlu0 %443
        %445 = vrot.lane.b32.xlu0 %v439, 126
        %v446 = vpop.permute.xlu0 %445
        %vm447 = vcmask 1031168
        %v448 = vsel %vm447, %v442, %v444
        %v449 = vsel %vm447, %v444, %v446
        %v451 = vsel %vm356, %v432, 0
        %v454 = vsel %vm360, %v448, 0
        %v457 = vsel %vm360, %v449, 0
        %459 = vmatpush.bf16.msra.mxu0 0
        %460 = vmatpush.bf16.msra.mxu0 0
        %461 = vmatpush.bf16.msra.mxu0 0
        %462 = vmatpush.bf16.msra.mxu0 0
        %463 = vmatpush.bf16.msra.mxu0 0
        %464 = vmatpush.bf16.msra.mxu0 0
        %465 = vmatpush.bf16.msra.mxu0 0
        %466 = vmatpush.bf16.msra.mxu0 %v454
        %467 = vmatmul.bf16.gmra.mxu0 %v451
        %v468 = vpop.f32.mrf.mxu0
        %v469 = vadd.f32 0.0, %v468
        %v470 = vpop.f32.mrf.mxu0
        %471 = vdwg.mxu0
        %472 = vmatpush.bf16.msra.mxu0 0
        %473 = vmatpush.bf16.msra.mxu0 0
        %474 = vmatpush.bf16.msra.mxu0 0
        %475 = vmatpush.bf16.msra.mxu0 0
        %476 = vmatpush.bf16.msra.mxu0 0
        %477 = vmatpush.bf16.msra.mxu0 0
        %478 = vmatpush.bf16.msra.mxu0 0
        %479 = vmatpush.bf16.msra.mxu0 %v457
        %480 = vmatmul.bf16.gmra.mxu0 %v451
        %v481 = vpop.f32.mrf.mxu0
        %v482 = vadd.f32 0.0, %v481
        %v483 = vpop.f32.mrf.mxu0
        %484 = vdwg.mxu0
        %v485 = vadd.f32 %v414, %v469
        %v486 = vadd.f32 %v427, %v482
        %v487 = vld [vmem:[%s322] sm:$0x7]
        %s488 = scalar_lea.vmem %s1, 6
        %v489 = vld [vmem:[%s488] sm:$0x3]
        %491 = vst [vmem:[#allocation1] ss:$9 sm:$0xff] %v487
        %v492 = vld [vmem:[#allocation1] sm:$0xff]
        %v494 = vld [vmem:[#allocation1 + $0x9] sm:$0xff]
        %v496 = vld [vmem:[#allocation1 + $0x12] sm:$0xff]
        %498 = vrot.lane.b32.xlu0 %v492, 118
        %v499 = vpop.permute.xlu0 %498
        %500 = vrot.lane.b32.xlu0 %v494, 118
        %v501 = vpop.permute.xlu0 %500
        %502 = vrot.lane.b32.xlu0 %v496, 118
        %v503 = vpop.permute.xlu0 %502
        %vm504 = vcmask 965632
        %v505 = vsel %vm504, %v499, %v501
        %v506 = vsel %vm504, %v501, %v503
        %v508 = vsel %vm356, %v489, 0
        %v511 = vsel %vm360, %v505, 0
        %v514 = vsel %vm360, %v506, 0
        %516 = vmatpush.bf16.msra.mxu0 0
        %517 = vmatpush.bf16.msra.mxu0 0
        %518 = vmatpush.bf16.msra.mxu0 0
        %519 = vmatpush.bf16.msra.mxu0 0
        %520 = vmatpush.bf16.msra.mxu0 0
        %521 = vmatpush.bf16.msra.mxu0 0
        %522 = vmatpush.bf16.msra.mxu0 0
        %523 = vmatpush.bf16.msra.mxu0 %v511
        %524 = vmatmul.bf16.gmra.mxu0 %v508
        %v525 = vpop.f32.mrf.mxu0
        %v526 = vadd.f32 0.0, %v525
        %v527 = vpop.f32.mrf.mxu0
        %528 = vdwg.mxu0
        %529 = vmatpush.bf16.msra.mxu0 0
        %530 = vmatpush.bf16.msra.mxu0 0
        %531 = vmatpush.bf16.msra.mxu0 0
        %532 = vmatpush.bf16.msra.mxu0 0
        %533 = vmatpush.bf16.msra.mxu0 0
        %534 = vmatpush.bf16.msra.mxu0 0
        %535 = vmatpush.bf16.msra.mxu0 0
        %536 = vmatpush.bf16.msra.mxu0 %v514
        %537 = vmatmul.bf16.gmra.mxu0 %v508
        %v538 = vpop.f32.mrf.mxu0
        %v539 = vadd.f32 0.0, %v538
        %v540 = vpop.f32.mrf.mxu0
        %541 = vdwg.mxu0
        %v542 = vadd.f32 %v485, %v526
        %v543 = vadd.f32 %v486, %v539
        %v544 = vld [vmem:[%s322] sm:$0x7]
        %s545 = scalar_lea.vmem %s1, 8
        %v546 = vld [vmem:[%s545] sm:$0x3]
        %548 = vst [vmem:[#allocation1] ss:$9 sm:$0xff] %v544
        %v549 = vld [vmem:[#allocation1] sm:$0xff]
        %v551 = vld [vmem:[#allocation1 + $0x9] sm:$0xff]
        %v553 = vld [vmem:[#allocation1 + $0x12] sm:$0xff]
        %555 = vrot.lane.b32.xlu0 %v549, 117
        %v556 = vpop.permute.xlu0 %555
        %557 = vrot.lane.b32.xlu0 %v551, 117
        %v558 = vpop.permute.xlu0 %557
        %559 = vrot.lane.b32.xlu0 %v553, 117
        %v560 = vpop.permute.xlu0 %559
        %vm561 = vcmask 957440
        %v562 = vsel %vm561, %v556, %v558
        %v563 = vsel %vm561, %v558, %v560
        %v565 = vsel %vm356, %v546, 0
        %v568 = vsel %vm360, %v562, 0
        %v571 = vsel %vm360, %v563, 0
        %573 = vmatpush.bf16.msra.mxu0 0
        %574 = vmatpush.bf16.msra.mxu0 0
        %575 = vmatpush.bf16.msra.mxu0 0
        %576 = vmatpush.bf16.msra.mxu0 0
        %577 = vmatpush.bf16.msra.mxu0 0
        %578 = vmatpush.bf16.msra.mxu0 0
        %579 = vmatpush.bf16.msra.mxu0 0
        %580 = vmatpush.bf16.msra.mxu0 %v568
        %581 = vmatmul.bf16.gmra.mxu0 %v565
        %v582 = vpop.f32.mrf.mxu0
        %v583 = vadd.f32 0.0, %v582
        %v584 = vpop.f32.mrf.mxu0
        %585 = vdwg.mxu0
        %586 = vmatpush.bf16.msra.mxu0 0
        %587 = vmatpush.bf16.msra.mxu0 0
        %588 = vmatpush.bf16.msra.mxu0 0
        %589 = vmatpush.bf16.msra.mxu0 0
        %590 = vmatpush.bf16.msra.mxu0 0
        %591 = vmatpush.bf16.msra.mxu0 0
        %592 = vmatpush.bf16.msra.mxu0 0
        %593 = vmatpush.bf16.msra.mxu0 %v571
        %594 = vmatmul.bf16.gmra.mxu0 %v565
        %v595 = vpop.f32.mrf.mxu0
        %v596 = vadd.f32 0.0, %v595
        %v597 = vpop.f32.mrf.mxu0
        %598 = vdwg.mxu0
        %v599 = vadd.f32 %v542, %v583
        %v600 = vadd.f32 %v543, %v596
        %v601 = vld [vmem:[%s322] sm:$0x7]
        %s602 = scalar_lea.vmem %s1, 10
        %v603 = vld [vmem:[%s602] sm:$0x3]
        %605 = vst [vmem:[#allocation1] ss:$9 sm:$0xff] %v601
        %v606 = vld [vmem:[#allocation1] sm:$0xff]
        %v608 = vld [vmem:[#allocation1 + $0x9] sm:$0xff]
        %v610 = vld [vmem:[#allocation1 + $0x12] sm:$0xff]
        %612 = vrot.lane.b32.xlu0 %v606, 116
        %v613 = vpop.permute.xlu0 %612
        %614 = vrot.lane.b32.xlu0 %v608, 116
        %v615 = vpop.permute.xlu0 %614
        %616 = vrot.lane.b32.xlu0 %v610, 116
        %v617 = vpop.permute.xlu0 %616
        %vm618 = vcmask 949248
        %v619 = vsel %vm618, %v613, %v615
        %v620 = vsel %vm618, %v615, %v617
        %v622 = vsel %vm356, %v603, 0
        %v625 = vsel %vm360, %v619, 0
        %v628 = vsel %vm360, %v620, 0
        %630 = vmatpush.bf16.msra.mxu0 0
        %631 = vmatpush.bf16.msra.mxu0 0
        %632 = vmatpush.bf16.msra.mxu0 0
        %633 = vmatpush.bf16.msra.mxu0 0
        %634 = vmatpush.bf16.msra.mxu0 0
        %635 = vmatpush.bf16.msra.mxu0 0
        %636 = vmatpush.bf16.msra.mxu0 0
        %637 = vmatpush.bf16.msra.mxu0 %v625
        %638 = vmatmul.bf16.gmra.mxu0 %v622
        %v639 = vpop.f32.mrf.mxu0
        %v640 = vadd.f32 0.0, %v639
        %v641 = vpop.f32.mrf.mxu0
        %642 = vdwg.mxu0
        %643 = vmatpush.bf16.msra.mxu0 0
        %644 = vmatpush.bf16.msra.mxu0 0
        %645 = vmatpush.bf16.msra.mxu0 0
        %646 = vmatpush.bf16.msra.mxu0 0
        %647 = vmatpush.bf16.msra.mxu0 0
        %648 = vmatpush.bf16.msra.mxu0 0
        %649 = vmatpush.bf16.msra.mxu0 0
        %650 = vmatpush.bf16.msra.mxu0 %v628
        %651 = vmatmul.bf16.gmra.mxu0 %v622
        %v652 = vpop.f32.mrf.mxu0
        %v653 = vadd.f32 0.0, %v652
        %v654 = vpop.f32.mrf.mxu0
        %655 = vdwg.mxu0
        %v656 = vadd.f32 %v599, %v640
        %v657 = vadd.f32 %v600, %v653
        %v658 = vld [vmem:[%s322] sm:$0x7]
        %s659 = scalar_lea.vmem %s1, 12
        %v660 = vld [vmem:[%s659] sm:$0x3]
        %662 = vst [vmem:[#allocation1] ss:$9 sm:$0xff] %v658
        %v663 = vld [vmem:[#allocation1] sm:$0xff]
        %v665 = vld [vmem:[#allocation1 + $0x9] sm:$0xff]
        %v667 = vld [vmem:[#allocation1 + $0x12] sm:$0xff]
        %669 = vrot.lane.b32.xlu0 %v663, 108
        %v670 = vpop.permute.xlu0 %669
        %671 = vrot.lane.b32.xlu0 %v665, 108
        %v672 = vpop.permute.xlu0 %671
        %673 = vrot.lane.b32.xlu0 %v667, 108
        %v674 = vpop.permute.xlu0 %673
        %vm675 = vcmask 883712
        %v676 = vsel %vm675, %v670, %v672
        %v677 = vsel %vm675, %v672, %v674
        %v679 = vsel %vm356, %v660, 0
        %v682 = vsel %vm360, %v676, 0
        %v685 = vsel %vm360, %v677, 0
        %687 = vmatpush.bf16.msra.mxu0 0
        %688 = vmatpush.bf16.msra.mxu0 0
        %689 = vmatpush.bf16.msra.mxu0 0
        %690 = vmatpush.bf16.msra.mxu0 0
        %691 = vmatpush.bf16.msra.mxu0 0
        %692 = vmatpush.bf16.msra.mxu0 0
        %693 = vmatpush.bf16.msra.mxu0 0
        %694 = vmatpush.bf16.msra.mxu0 %v682
        %695 = vmatmul.bf16.gmra.mxu0 %v679
        %v696 = vpop.f32.mrf.mxu0
        %v697 = vadd.f32 0.0, %v696
        %v698 = vpop.f32.mrf.mxu0
        %699 = vdwg.mxu0
        %700 = vmatpush.bf16.msra.mxu0 0
        %701 = vmatpush.bf16.msra.mxu0 0
        %702 = vmatpush.bf16.msra.mxu0 0
        %703 = vmatpush.bf16.msra.mxu0 0
        %704 = vmatpush.bf16.msra.mxu0 0
        %705 = vmatpush.bf16.msra.mxu0 0
        %706 = vmatpush.bf16.msra.mxu0 0
        %707 = vmatpush.bf16.msra.mxu0 %v685
        %708 = vmatmul.bf16.gmra.mxu0 %v679
        %v709 = vpop.f32.mrf.mxu0
        %v710 = vadd.f32 0.0, %v709
        %v711 = vpop.f32.mrf.mxu0
        %712 = vdwg.mxu0
        %v713 = vadd.f32 %v656, %v697
        %v714 = vadd.f32 %v657, %v710
        %v715 = vld [vmem:[%s322] sm:$0x7]
        %s716 = scalar_lea.vmem %s1, 14
        %v717 = vld [vmem:[%s716] sm:$0x3]
        %719 = vst [vmem:[#allocation1] ss:$9 sm:$0xff] %v715
        %v720 = vld [vmem:[#allocation1] sm:$0xff]
        %v722 = vld [vmem:[#allocation1 + $0x9] sm:$0xff]
        %v724 = vld [vmem:[#allocation1 + $0x12] sm:$0xff]
        %726 = vrot.lane.b32.xlu0 %v720, 107
        %v727 = vpop.permute.xlu0 %726
        %728 = vrot.lane.b32.xlu0 %v722, 107
        %v729 = vpop.permute.xlu0 %728
        %730 = vrot.lane.b32.xlu0 %v724, 107
        %v731 = vpop.permute.xlu0 %730
        %vm732 = vcmask 875520
        %v733 = vsel %vm732, %v727, %v729
        %v734 = vsel %vm732, %v729, %v731
        %v736 = vsel %vm356, %v717, 0
        %v739 = vsel %vm360, %v733, 0
        %v742 = vsel %vm360, %v734, 0
        %744 = vmatpush.bf16.msra.mxu0 0
        %745 = vmatpush.bf16.msra.mxu0 0
        %746 = vmatpush.bf16.msra.mxu0 0
        %747 = vmatpush.bf16.msra.mxu0 0
        %748 = vmatpush.bf16.msra.mxu0 0
        %749 = vmatpush.bf16.msra.mxu0 0
        %750 = vmatpush.bf16.msra.mxu0 0
        %751 = vmatpush.bf16.msra.mxu0 %v739
        %752 = vmatmul.bf16.gmra.mxu0 %v736
        %v753 = vpop.f32.mrf.mxu0
        %v754 = vadd.f32 0.0, %v753
        %v755 = vpop.f32.mrf.mxu0
        %756 = vdwg.mxu0
        %757 = vmatpush.bf16.msra.mxu0 0
        %758 = vmatpush.bf16.msra.mxu0 0
        %759 = vmatpush.bf16.msra.mxu0 0
        %760 = vmatpush.bf16.msra.mxu0 0
        %761 = vmatpush.bf16.msra.mxu0 0
        %762 = vmatpush.bf16.msra.mxu0 0
        %763 = vmatpush.bf16.msra.mxu0 0
        %764 = vmatpush.bf16.msra.mxu0 %v742
        %765 = vmatmul.bf16.gmra.mxu0 %v736
        %v766 = vpop.f32.mrf.mxu0
        %v767 = vadd.f32 0.0, %v766
        %v768 = vpop.f32.mrf.mxu0
        %769 = vdwg.mxu0
        %v770 = vadd.f32 %v713, %v754
        %v771 = vadd.f32 %v714, %v767
        %v772 = vld [vmem:[%s322] sm:$0x7]
        %s773 = scalar_lea.vmem %s1, 16
        %v774 = vld [vmem:[%s773] sm:$0x3]
        %776 = vst [vmem:[#allocation1] ss:$9 sm:$0xff] %v772
        %v777 = vld [vmem:[#allocation1] sm:$0xff]
        %v779 = vld [vmem:[#allocation1 + $0x9] sm:$0xff]
        %v781 = vld [vmem:[#allocation1 + $0x12] sm:$0xff]
        %783 = vrot.lane.b32.xlu0 %v777, 106
        %v784 = vpop.permute.xlu0 %783
        %785 = vrot.lane.b32.xlu0 %v779, 106
        %v786 = vpop.permute.xlu0 %785
        %787 = vrot.lane.b32.xlu0 %v781, 106
        %v788 = vpop.permute.xlu0 %787
        %vm789 = vcmask 867328
        %v790 = vsel %vm789, %v784, %v786
        %v791 = vsel %vm789, %v786, %v788
        %v793 = vsel %vm356, %v774, 0
        %v796 = vsel %vm360, %v790, 0
        %v799 = vsel %vm360, %v791, 0
        %801 = vmatpush.bf16.msra.mxu0 0
        %802 = vmatpush.bf16.msra.mxu0 0
        %803 = vmatpush.bf16.msra.mxu0 0
        %804 = vmatpush.bf16.msra.mxu0 0
        %805 = vmatpush.bf16.msra.mxu0 0
        %806 = vmatpush.bf16.msra.mxu0 0
        %807 = vmatpush.bf16.msra.mxu0 0
        %808 = vmatpush.bf16.msra.mxu0 %v796
        %809 = vmatmul.bf16.gmra.mxu0 %v793
        %v810 = vpop.f32.mrf.mxu0
        %v811 = vadd.f32 0.0, %v810
        %v812 = vpop.f32.mrf.mxu0
        %813 = vdwg.mxu0
        %814 = vmatpush.bf16.msra.mxu0 0
        %815 = vmatpush.bf16.msra.mxu0 0
        %816 = vmatpush.bf16.msra.mxu0 0
        %817 = vmatpush.bf16.msra.mxu0 0
        %818 = vmatpush.bf16.msra.mxu0 0
        %819 = vmatpush.bf16.msra.mxu0 0
        %820 = vmatpush.bf16.msra.mxu0 0
        %821 = vmatpush.bf16.msra.mxu0 %v799
        %822 = vmatmul.bf16.gmra.mxu0 %v793
        %v823 = vpop.f32.mrf.mxu0
        %v824 = vadd.f32 0.0, %v823
        %v825 = vpop.f32.mrf.mxu0
        %826 = vdwg.mxu0
        %v827 = vadd.f32 %v770, %v811
        %v828 = vadd.f32 %v771, %v824
        %v829 = vld [vmem:[%s2] sm:$0xf]
        %831 = vset.pattern.permute.xlu0 0
        %832 = vperm.xlu0 %831, %v829
        %v833 = vpop.permute.xlu0 %832
        %v835 = vadd.f32 %v827, %v833
        %v836 = vadd.f32 %v828, %v833
        %vm837 = vcmp.ge.f32.partialorder %v835, 0.0
        %vm838 = vcmp.ge.f32.partialorder %v836, 0.0
        %v839 = vmul.f32 %v835, 0.01
        %v840 = vmul.f32 %v836, 0.01
        %v841 = vsel %vm837, %v835, %v839
        %v842 = vsel %vm838, %v836, %v840
        %v843 = vld [vmem:[%s5] sm:$0x3]
        %v845 = vperm.slane %v843, 0
        %v846 = vperm.slane %v843, 1
        %v849 = vmul.f32 %v841, %v845
        %v850 = vmul.f32 %v842, %v846
        %851 = vst [vmem:[#allocation2] sm:$0x3] 0
        %v852 = vpack.c.bf16 %v850, %v849
        %v854 = vrot.slane %v852, 2
        %vm855 = vcmask 1041408
        %v858 = vsel %vm855, %v852, %v854
        %860 = vst [vmem:[#allocation2 + $0x2] sm:$0xf] %v858
        %861 = vst [vmem:[#allocation2 + $0x6] sm:$0x3] 0
        %v862 = vld [vmem:[#allocation2] sm:$0x3f]
        %v863 = vld [vmem:[%s3] sm:$0x3]
        %s864 = scalar_lea.vmem %s3, 2
        %v865 = vld [vmem:[%s864] sm:$0x3]
        %867 = vst [vmem:[#allocation1] ss:$4 sm:$0xff] %v862
        %v868 = vld.sshfl [vmem:[#allocation1] sm:$0xff pattern:$0x73625140]
        %v870 = vld.sshfl [vmem:[#allocation1 + $0x8] sm:$0xff pattern:$0x73625140]
        %v872 = vld.sshfl [vmem:[#allocation1 + $0x10] sm:$0xff pattern:$0x73625140]
        %874 = vrot.lane.b32.xlu0 %v868, 10
        %v875 = vpop.permute.xlu0 %874
        %876 = vrot.lane.b32.xlu0 %v870, 10
        %v877 = vpop.permute.xlu0 %876
        %878 = vrot.lane.b32.xlu0 %v872, 10
        %v879 = vpop.permute.xlu0 %878
        %vm880 = vcmask 80896
        %v881 = vsel %vm880, %v875, %v877
        %v882 = vsel %vm880, %v877, %v879
        %vm883 = vcmask 31744
        %v885 = vsel %vm883, %v865, 0
        %v888 = vsel %vm855, %v881, 0
        %v891 = vsel %vm855, %v882, 0
        %893 = vmatpush.bf16.msra.mxu0 0
        %894 = vmatpush.bf16.msra.mxu0 0
        %895 = vmatpush.bf16.msra.mxu0 0
        %896 = vmatpush.bf16.msra.mxu0 0
        %897 = vmatpush.bf16.msra.mxu0 0
        %898 = vmatpush.bf16.msra.mxu0 0
        %899 = vmatpush.bf16.msra.mxu0 0
        %900 = vmatpush.bf16.msra.mxu0 %v888
        %901 = vmatmul.bf16.gmra.mxu0 %v885
        %v902 = vpop.f32.mrf.mxu0
        %v903 = vadd.f32 0.0, %v902
        %v904 = vpop.f32.mrf.mxu0
        %905 = vdwg.mxu0
        %906 = vmatpush.bf16.msra.mxu0 0
        %907 = vmatpush.bf16.msra.mxu0 0
        %908 = vmatpush.bf16.msra.mxu0 0
        %909 = vmatpush.bf16.msra.mxu0 0
        %910 = vmatpush.bf16.msra.mxu0 0
        %911 = vmatpush.bf16.msra.mxu0 0
        %912 = vmatpush.bf16.msra.mxu0 0
        %913 = vmatpush.bf16.msra.mxu0 %v891
        %914 = vmatmul.bf16.gmra.mxu0 %v885
        %v915 = vpop.f32.mrf.mxu0
        %v916 = vadd.f32 0.0, %v915
        %v917 = vpop.f32.mrf.mxu0
        %918 = vdwg.mxu0
        %919 = vst [vmem:[#allocation1] ss:$4 sm:$0xff] %v862
        %v920 = vld.sshfl [vmem:[#allocation1] sm:$0xff pattern:$0x73625140]
        %v922 = vld.sshfl [vmem:[#allocation1 + $0x8] sm:$0xff pattern:$0x73625140]
        %v924 = vld.sshfl [vmem:[#allocation1 + $0x10] sm:$0xff pattern:$0x73625140]
        %926 = vrot.lane.b32.xlu0 %v920, 11
        %v927 = vpop.permute.xlu0 %926
        %928 = vrot.lane.b32.xlu0 %v922, 11
        %v929 = vpop.permute.xlu0 %928
        %930 = vrot.lane.b32.xlu0 %v924, 11
        %v931 = vpop.permute.xlu0 %930
        %vm932 = vcmask 89088
        %v933 = vsel %vm932, %v927, %v929
        %v934 = vsel %vm932, %v929, %v931
        %v936 = vsel %vm883, %v863, 0
        %v939 = vsel %vm855, %v933, 0
        %v942 = vsel %vm855, %v934, 0
        %944 = vmatpush.bf16.msra.mxu0 0
        %945 = vmatpush.bf16.msra.mxu0 0
        %946 = vmatpush.bf16.msra.mxu0 0
        %947 = vmatpush.bf16.msra.mxu0 0
        %948 = vmatpush.bf16.msra.mxu0 0
        %949 = vmatpush.bf16.msra.mxu0 0
        %950 = vmatpush.bf16.msra.mxu0 0
        %951 = vmatpush.bf16.msra.mxu0 %v939
        %952 = vmatmul.bf16.gmra.mxu0 %v936
        %v953 = vpop.f32.mrf.mxu0
        %v954 = vadd.f32 %v903, %v953
        %v955 = vpop.f32.mrf.mxu0
        %956 = vdwg.mxu0
        %957 = vmatpush.bf16.msra.mxu0 0
        %958 = vmatpush.bf16.msra.mxu0 0
        %959 = vmatpush.bf16.msra.mxu0 0
        %960 = vmatpush.bf16.msra.mxu0 0
        %961 = vmatpush.bf16.msra.mxu0 0
        %962 = vmatpush.bf16.msra.mxu0 0
        %963 = vmatpush.bf16.msra.mxu0 0
        %964 = vmatpush.bf16.msra.mxu0 %v942
        %965 = vmatmul.bf16.gmra.mxu0 %v936
        %v966 = vpop.f32.mrf.mxu0
        %v967 = vadd.f32 %v916, %v966
        %v968 = vpop.f32.mrf.mxu0
        %969 = vdwg.mxu0
        %v970 = vld [vmem:[#allocation2] sm:$0x3f]
        %s971 = scalar_lea.vmem %s3, 4
        %v972 = vld [vmem:[%s971] sm:$0x3]
        %974 = vst [vmem:[#allocation1] ss:$4 sm:$0xff] %v970
        %v975 = vld.sshfl [vmem:[#allocation1] sm:$0xff pattern:$0x73625140]
        %v977 = vld.sshfl [vmem:[#allocation1 + $0x8] sm:$0xff pattern:$0x73625140]
        %v979 = vld.sshfl [vmem:[#allocation1 + $0x10] sm:$0xff pattern:$0x73625140]
        %981 = vrot.lane.b32.xlu0 %v975, 9
        %v982 = vpop.permute.xlu0 %981
        %983 = vrot.lane.b32.xlu0 %v977, 9
        %v984 = vpop.permute.xlu0 %983
        %985 = vrot.lane.b32.xlu0 %v979, 9
        %v986 = vpop.permute.xlu0 %985
        %vm987 = vcmask 72704
        %v988 = vsel %vm987, %v982, %v984
        %v989 = vsel %vm987, %v984, %v986
        %v991 = vsel %vm883, %v972, 0
        %v994 = vsel %vm855, %v988, 0
        %v997 = vsel %vm855, %v989, 0
        %999 = vmatpush.bf16.msra.mxu0 0
        %1000 = vmatpush.bf16.msra.mxu0 0
        %1001 = vmatpush.bf16.msra.mxu0 0
        %1002 = vmatpush.bf16.msra.mxu0 0
        %1003 = vmatpush.bf16.msra.mxu0 0
        %1004 = vmatpush.bf16.msra.mxu0 0
        %1005 = vmatpush.bf16.msra.mxu0 0
        %1006 = vmatpush.bf16.msra.mxu0 %v994
        %1007 = vmatmul.bf16.gmra.mxu0 %v991
        %v1008 = vpop.f32.mrf.mxu0
        %v1009 = vadd.f32 0.0, %v1008
        %v1010 = vpop.f32.mrf.mxu0
        %1011 = vdwg.mxu0
        %1012 = vmatpush.bf16.msra.mxu0 0
        %1013 = vmatpush.bf16.msra.mxu0 0
        %1014 = vmatpush.bf16.msra.mxu0 0
        %1015 = vmatpush.bf16.msra.mxu0 0
        %1016 = vmatpush.bf16.msra.mxu0 0
        %1017 = vmatpush.bf16.msra.mxu0 0
        %1018 = vmatpush.bf16.msra.mxu0 0
        %1019 = vmatpush.bf16.msra.mxu0 %v997
        %1020 = vmatmul.bf16.gmra.mxu0 %v991
        %v1021 = vpop.f32.mrf.mxu0
        %v1022 = vadd.f32 0.0, %v1021
        %v1023 = vpop.f32.mrf.mxu0
        %1024 = vdwg.mxu0
        %v1025 = vadd.f32 %v954, %v1009
        %v1026 = vadd.f32 %v967, %v1022
        %v1027 = vld [vmem:[#allocation2] sm:$0x3f]
        %s1028 = scalar_lea.vmem %s3, 6
        %v1029 = vld [vmem:[%s1028] sm:$0x3]
        %1031 = vst [vmem:[#allocation1] ss:$4 sm:$0xff] %v1027
        %v1032 = vld.sshfl [vmem:[#allocation1] sm:$0xff pattern:$0x73625140]
        %v1034 = vld.sshfl [vmem:[#allocation1 + $0x8] sm:$0xff pattern:$0x73625140]
        %v1036 = vld.sshfl [vmem:[#allocation1 + $0x10] sm:$0xff pattern:$0x73625140]
        %1038 = vrot.lane.b32.xlu0 %v1032, 1
        %v1039 = vpop.permute.xlu0 %1038
        %1040 = vrot.lane.b32.xlu0 %v1034, 1
        %v1041 = vpop.permute.xlu0 %1040
        %1042 = vrot.lane.b32.xlu0 %v1036, 1
        %v1043 = vpop.permute.xlu0 %1042
        %vm1044 = vcmask 7168
        %v1045 = vsel %vm1044, %v1039, %v1041
        %v1046 = vsel %vm1044, %v1041, %v1043
        %v1048 = vsel %vm883, %v1029, 0
        %v1051 = vsel %vm855, %v1045, 0
        %v1054 = vsel %vm855, %v1046, 0
        %1056 = vmatpush.bf16.msra.mxu0 0
        %1057 = vmatpush.bf16.msra.mxu0 0
        %1058 = vmatpush.bf16.msra.mxu0 0
        %1059 = vmatpush.bf16.msra.mxu0 0
        %1060 = vmatpush.bf16.msra.mxu0 0
        %1061 = vmatpush.bf16.msra.mxu0 0
        %1062 = vmatpush.bf16.msra.mxu0 0
        %1063 = vmatpush.bf16.msra.mxu0 %v1051
        %1064 = vmatmul.bf16.gmra.mxu0 %v1048
        %v1065 = vpop.f32.mrf.mxu0
        %v1066 = vadd.f32 0.0, %v1065
        %v1067 = vpop.f32.mrf.mxu0
        %1068 = vdwg.mxu0
        %1069 = vmatpush.bf16.msra.mxu0 0
        %1070 = vmatpush.bf16.msra.mxu0 0
        %1071 = vmatpush.bf16.msra.mxu0 0
        %1072 = vmatpush.bf16.msra.mxu0 0
        %1073 = vmatpush.bf16.msra.mxu0 0
        %1074 = vmatpush.bf16.msra.mxu0 0
        %1075 = vmatpush.bf16.msra.mxu0 0
        %1076 = vmatpush.bf16.msra.mxu0 %v1054
        %1077 = vmatmul.bf16.gmra.mxu0 %v1048
        %v1078 = vpop.f32.mrf.mxu0
        %v1079 = vadd.f32 0.0, %v1078
        %v1080 = vpop.f32.mrf.mxu0
        %1081 = vdwg.mxu0
        %v1082 = vadd.f32 %v1025, %v1066
        %v1083 = vadd.f32 %v1026, %v1079
        %v1084 = vld [vmem:[#allocation2 + $0x2] sm:$0xf]
        %s1085 = scalar_lea.vmem %s3, 8
        %v1086 = vld [vmem:[%s1085] sm:$0x3]
        %1088 = vst [vmem:[#allocation1] ss:$4 sm:$0xff] %v1084
        %v1089 = vld.sshfl [vmem:[#allocation1] sm:$0xff pattern:$0x73625140]
        %v1090 = vld.sshfl [vmem:[#allocation1 + $0x8] sm:$0xff pattern:$0x73625140]
        %v1092 = vsel %vm883, %v1086, 0
        %v1094 = vsel %vm855, %v1089, 0
        %v1096 = vsel %vm855, %v1090, 0
        %1098 = vmatpush.bf16.msra.mxu0 0
        %1099 = vmatpush.bf16.msra.mxu0 0
        %1100 = vmatpush.bf16.msra.mxu0 0
        %1101 = vmatpush.bf16.msra.mxu0 0
        %1102 = vmatpush.bf16.msra.mxu0 0
        %1103 = vmatpush.bf16.msra.mxu0 0
        %1104 = vmatpush.bf16.msra.mxu0 0
        %1105 = vmatpush.bf16.msra.mxu0 %v1094
        %1106 = vmatmul.bf16.gmra.mxu0 %v1092
        %v1107 = vpop.f32.mrf.mxu0
        %v1108 = vadd.f32 0.0, %v1107
        %v1109 = vpop.f32.mrf.mxu0
        %1110 = vdwg.mxu0
        %1111 = vmatpush.bf16.msra.mxu0 0
        %1112 = vmatpush.bf16.msra.mxu0 0
        %1113 = vmatpush.bf16.msra.mxu0 0
        %1114 = vmatpush.bf16.msra.mxu0 0
        %1115 = vmatpush.bf16.msra.mxu0 0
        %1116 = vmatpush.bf16.msra.mxu0 0
        %1117 = vmatpush.bf16.msra.mxu0 0
        %1118 = vmatpush.bf16.msra.mxu0 %v1096
        %1119 = vmatmul.bf16.gmra.mxu0 %v1092
        %v1120 = vpop.f32.mrf.mxu0
        %v1121 = vadd.f32 0.0, %v1120
        %v1122 = vpop.f32.mrf.mxu0
        %1123 = vdwg.mxu0
        %v1124 = vadd.f32 %v1082, %v1108
        %v1125 = vadd.f32 %v1083, %v1121
        %v1126 = vld [vmem:[#allocation2 + $0x2] sm:$0x3f]
        %s1127 = scalar_lea.vmem %s3, 10
        %v1128 = vld [vmem:[%s1127] sm:$0x3]
        %1130 = vst [vmem:[#allocation1] ss:$4 sm:$0xff] %v1126
        %v1131 = vld.sshfl [vmem:[#allocation1] sm:$0xff pattern:$0x73625140]
        %v1133 = vld.sshfl [vmem:[#allocation1 + $0x8] sm:$0xff pattern:$0x73625140]
        %v1135 = vld.sshfl [vmem:[#allocation1 + $0x10] sm:$0xff pattern:$0x73625140]
        %1137 = vrot.lane.b32.xlu0 %v1131, 127
        %v1138 = vpop.permute.xlu0 %1137
        %1139 = vrot.lane.b32.xlu0 %v1133, 127
        %v1140 = vpop.permute.xlu0 %1139
        %1141 = vrot.lane.b32.xlu0 %v1135, 127
        %v1142 = vpop.permute.xlu0 %1141
        %v1143 = vsel %vm353, %v1138, %v1140
        %v1144 = vsel %vm353, %v1140, %v1142
        %v1146 = vsel %vm883, %v1128, 0
        %v1149 = vsel %vm855, %v1143, 0
        %v1152 = vsel %vm855, %v1144, 0
        %1154 = vmatpush.bf16.msra.mxu0 0
        %1155 = vmatpush.bf16.msra.mxu0 0
        %1156 = vmatpush.bf16.msra.mxu0 0
        %1157 = vmatpush.bf16.msra.mxu0 0
        %1158 = vmatpush.bf16.msra.mxu0 0
        %1159 = vmatpush.bf16.msra.mxu0 0
        %1160 = vmatpush.bf16.msra.mxu0 0
        %1161 = vmatpush.bf16.msra.mxu0 %v1149
        %1162 = vmatmul.bf16.gmra.mxu0 %v1146
        %v1163 = vpop.f32.mrf.mxu0
        %v1164 = vadd.f32 0.0, %v1163
        %v1165 = vpop.f32.mrf.mxu0
        %1166 = vdwg.mxu0
        %1167 = vmatpush.bf16.msra.mxu0 0
        %1168 = vmatpush.bf16.msra.mxu0 0
        %1169 = vmatpush.bf16.msra.mxu0 0
        %1170 = vmatpush.bf16.msra.mxu0 0
        %1171 = vmatpush.bf16.msra.mxu0 0
        %1172 = vmatpush.bf16.msra.mxu0 0
        %1173 = vmatpush.bf16.msra.mxu0 0
        %1174 = vmatpush.bf16.msra.mxu0 %v1152
        %1175 = vmatmul.bf16.gmra.mxu0 %v1146
        %v1176 = vpop.f32.mrf.mxu0
        %v1177 = vadd.f32 0.0, %v1176
        %v1178 = vpop.f32.mrf.mxu0
        %1179 = vdwg.mxu0
        %v1180 = vadd.f32 %v1124, %v1164
        %v1181 = vadd.f32 %v1125, %v1177
        %v1182 = vld [vmem:[#allocation2 + $0x2] sm:$0x3f]
        %s1183 = scalar_lea.vmem %s3, 12
        %v1184 = vld [vmem:[%s1183] sm:$0x3]
        %1186 = vst [vmem:[#allocation1] ss:$4 sm:$0xff] %v1182
        %v1187 = vld.sshfl [vmem:[#allocation1] sm:$0xff pattern:$0x73625140]
        %v1189 = vld.sshfl [vmem:[#allocation1 + $0x8] sm:$0xff pattern:$0x73625140]
        %v1191 = vld.sshfl [vmem:[#allocation1 + $0x10] sm:$0xff pattern:$0x73625140]
        %1193 = vrot.lane.b32.xlu0 %v1187, 119
        %v1194 = vpop.permute.xlu0 %1193
        %1195 = vrot.lane.b32.xlu0 %v1189, 119
        %v1196 = vpop.permute.xlu0 %1195
        %1197 = vrot.lane.b32.xlu0 %v1191, 119
        %v1198 = vpop.permute.xlu0 %1197
        %vm1199 = vcmask 973824
        %v1200 = vsel %vm1199, %v1194, %v1196
        %v1201 = vsel %vm1199, %v1196, %v1198
        %v1203 = vsel %vm883, %v1184, 0
        %v1206 = vsel %vm855, %v1200, 0
        %v1209 = vsel %vm855, %v1201, 0
        %1211 = vmatpush.bf16.msra.mxu0 0
        %1212 = vmatpush.bf16.msra.mxu0 0
        %1213 = vmatpush.bf16.msra.mxu0 0
        %1214 = vmatpush.bf16.msra.mxu0 0
        %1215 = vmatpush.bf16.msra.mxu0 0
        %1216 = vmatpush.bf16.msra.mxu0 0
        %1217 = vmatpush.bf16.msra.mxu0 0
        %1218 = vmatpush.bf16.msra.mxu0 %v1206
        %1219 = vmatmul.bf16.gmra.mxu0 %v1203
        %v1220 = vpop.f32.mrf.mxu0
        %v1221 = vadd.f32 0.0, %v1220
        %v1222 = vpop.f32.mrf.mxu0
        %1223 = vdwg.mxu0
        %1224 = vmatpush.bf16.msra.mxu0 0
        %1225 = vmatpush.bf16.msra.mxu0 0
        %1226 = vmatpush.bf16.msra.mxu0 0
        %1227 = vmatpush.bf16.msra.mxu0 0
        %1228 = vmatpush.bf16.msra.mxu0 0
        %1229 = vmatpush.bf16.msra.mxu0 0
        %1230 = vmatpush.bf16.msra.mxu0 0
        %1231 = vmatpush.bf16.msra.mxu0 %v1209
        %1232 = vmatmul.bf16.gmra.mxu0 %v1203
        %v1233 = vpop.f32.mrf.mxu0
        %v1234 = vadd.f32 0.0, %v1233
        %v1235 = vpop.f32.mrf.mxu0
        %1236 = vdwg.mxu0
        %v1237 = vadd.f32 %v1180, %v1221
        %v1238 = vadd.f32 %v1181, %v1234
        %v1239 = vld [vmem:[#allocation2 + $0x2] sm:$0x3f]
        %s1240 = scalar_lea.vmem %s3, 14
        %v1241 = vld [vmem:[%s1240] sm:$0x3]
        %1243 = vst [vmem:[#allocation1] ss:$4 sm:$0xff] %v1239
        %v1244 = vld.sshfl [vmem:[#allocation1] sm:$0xff pattern:$0x73625140]
        %v1246 = vld.sshfl [vmem:[#allocation1 + $0x8] sm:$0xff pattern:$0x73625140]
        %v1248 = vld.sshfl [vmem:[#allocation1 + $0x10] sm:$0xff pattern:$0x73625140]
        %1250 = vrot.lane.b32.xlu0 %v1244, 118
        %v1251 = vpop.permute.xlu0 %1250
        %1252 = vrot.lane.b32.xlu0 %v1246, 118
        %v1253 = vpop.permute.xlu0 %1252
        %1254 = vrot.lane.b32.xlu0 %v1248, 118
        %v1255 = vpop.permute.xlu0 %1254
        %v1256 = vsel %vm504, %v1251, %v1253
        %v1257 = vsel %vm504, %v1253, %v1255
        %v1259 = vsel %vm883, %v1241, 0
        %v1262 = vsel %vm855, %v1256, 0
        %v1265 = vsel %vm855, %v1257, 0
        %1267 = vmatpush.bf16.msra.mxu0 0
        %1268 = vmatpush.bf16.msra.mxu0 0
        %1269 = vmatpush.bf16.msra.mxu0 0
        %1270 = vmatpush.bf16.msra.mxu0 0
        %1271 = vmatpush.bf16.msra.mxu0 0
        %1272 = vmatpush.bf16.msra.mxu0 0
        %1273 = vmatpush.bf16.msra.mxu0 0
        %1274 = vmatpush.bf16.msra.mxu0 %v1262
        %1275 = vmatmul.bf16.gmra.mxu0 %v1259
        %v1276 = vpop.f32.mrf.mxu0
        %v1277 = vadd.f32 0.0, %v1276
        %v1278 = vpop.f32.mrf.mxu0
        %1279 = vdwg.mxu0
        %1280 = vmatpush.bf16.msra.mxu0 0
        %1281 = vmatpush.bf16.msra.mxu0 0
        %1282 = vmatpush.bf16.msra.mxu0 0
        %1283 = vmatpush.bf16.msra.mxu0 0
        %1284 = vmatpush.bf16.msra.mxu0 0
        %1285 = vmatpush.bf16.msra.mxu0 0
        %1286 = vmatpush.bf16.msra.mxu0 0
        %1287 = vmatpush.bf16.msra.mxu0 %v1265
        %1288 = vmatmul.bf16.gmra.mxu0 %v1259
        %v1289 = vpop.f32.mrf.mxu0
        %v1290 = vadd.f32 0.0, %v1289
        %v1291 = vpop.f32.mrf.mxu0
        %1292 = vdwg.mxu0
        %v1293 = vadd.f32 %v1237, %v1277
        %v1294 = vadd.f32 %v1238, %v1290
        %v1295 = vld [vmem:[#allocation2 + $0x2] sm:$0x3f]
        %s1296 = scalar_lea.vmem %s3, 16
        %v1297 = vld [vmem:[%s1296] sm:$0x3]
        %1299 = vst [vmem:[#allocation1] ss:$4 sm:$0xff] %v1295
        %v1300 = vld.sshfl [vmem:[#allocation1] sm:$0xff pattern:$0x73625140]
        %v1302 = vld.sshfl [vmem:[#allocation1 + $0x8] sm:$0xff pattern:$0x73625140]
        %v1304 = vld.sshfl [vmem:[#allocation1 + $0x10] sm:$0xff pattern:$0x73625140]
        %1306 = vrot.lane.b32.xlu0 %v1300, 117
        %v1307 = vpop.permute.xlu0 %1306
        %1308 = vrot.lane.b32.xlu0 %v1302, 117
        %v1309 = vpop.permute.xlu0 %1308
        %1310 = vrot.lane.b32.xlu0 %v1304, 117
        %v1311 = vpop.permute.xlu0 %1310
        %v1312 = vsel %vm561, %v1307, %v1309
        %v1313 = vsel %vm561, %v1309, %v1311
        %v1315 = vsel %vm883, %v1297, 0
        %v1318 = vsel %vm855, %v1312, 0
        %v1321 = vsel %vm855, %v1313, 0
        %1323 = vmatpush.bf16.msra.mxu0 0
        %1324 = vmatpush.bf16.msra.mxu0 0
        %1325 = vmatpush.bf16.msra.mxu0 0
        %1326 = vmatpush.bf16.msra.mxu0 0
        %1327 = vmatpush.bf16.msra.mxu0 0
        %1328 = vmatpush.bf16.msra.mxu0 0
        %1329 = vmatpush.bf16.msra.mxu0 0
        %1330 = vmatpush.bf16.msra.mxu0 %v1318
        %1331 = vmatmul.bf16.gmra.mxu0 %v1315
        %v1332 = vpop.f32.mrf.mxu0
        %v1333 = vadd.f32 0.0, %v1332
        %v1334 = vpop.f32.mrf.mxu0
        %1335 = vdwg.mxu0
        %1336 = vmatpush.bf16.msra.mxu0 0
        %1337 = vmatpush.bf16.msra.mxu0 0
        %1338 = vmatpush.bf16.msra.mxu0 0
        %1339 = vmatpush.bf16.msra.mxu0 0
        %1340 = vmatpush.bf16.msra.mxu0 0
        %1341 = vmatpush.bf16.msra.mxu0 0
        %1342 = vmatpush.bf16.msra.mxu0 0
        %1343 = vmatpush.bf16.msra.mxu0 %v1321
        %1344 = vmatmul.bf16.gmra.mxu0 %v1315
        %v1345 = vpop.f32.mrf.mxu0
        %v1346 = vadd.f32 0.0, %v1345
        %v1347 = vpop.f32.mrf.mxu0
        %1348 = vdwg.mxu0
        %v1349 = vadd.f32 %v1293, %v1333
        %v1350 = vadd.f32 %v1294, %v1346
        %v1351 = vld [vmem:[%s4] sm:$0xf]
        %1353 = vset.pattern.permute.xlu0 0
        %1354 = vperm.xlu0 %1353, %v1351
        %v1355 = vpop.permute.xlu0 %1354
        %v1357 = vadd.f32 %v1349, %v1355
        %v1358 = vadd.f32 %v1350, %v1355
        %vm1359 = vcmp.ge.f32.partialorder %v1357, 0.0
        %vm1360 = vcmp.ge.f32.partialorder %v1358, 0.0
        %v1361 = vmul.f32 %v1357, 0.01
        %v1362 = vmul.f32 %v1358, 0.01
        %v1363 = vsel %vm1359, %v1357, %v1361
        %v1364 = vsel %vm1360, %v1358, %v1362
        %v1367 = vrot.slane %v1364, 4
        %vm1368 = vcmask 1043456
        %v1369 = vsel %vm1368, %v1363, %v1367
        %1371 = vst [vmem:[%s327] sm:$0xff] %v1369
        %v1372 = vpack.c.bf16 %v1363, %v1363
        %v1373 = vpack.c.bf16 %v1364, %v1364
        %v1374 = vld [vmem:[#allocation3] sm:$0xff]
        %v1375 = vld [vmem:[#allocation3 + $0x8] sm:$0xff]
        %v1376 = vld [vmem:[#allocation3 + $0x10] sm:$0xff]
        %v1377 = vld [vmem:[#allocation3 + $0x18] sm:$0xff]
        %v1378 = vld [vmem:[#allocation3 + $0x20] sm:$0xff]
        %v1379 = vld [vmem:[#allocation3 + $0x28] sm:$0xff]
        %v1380 = vld [vmem:[#allocation3 + $0x30] sm:$0xff]
        %v1381 = vld [vmem:[#allocation3 + $0x38] sm:$0xff]
        %v1382 = vld [vmem:[#allocation3 + $0x40] sm:$0xff]
        %v1383 = vld [vmem:[#allocation3 + $0x48] sm:$0xff]
        %v1384 = vld [vmem:[#allocation3 + $0x50] sm:$0xff]
        %v1385 = vld [vmem:[#allocation3 + $0x58] sm:$0xff]
        %v1386 = vld [vmem:[#allocation3 + $0x60] sm:$0xff]
        %v1387 = vld [vmem:[#allocation3 + $0x68] sm:$0xff]
        %v1388 = vld [vmem:[#allocation3 + $0x70] sm:$0xff]
        %v1389 = vld [vmem:[#allocation3 + $0x78] sm:$0xff]
        %v1390 = vld [vmem:[#allocation3 + $0x80] sm:$0xff]
        %v1391 = vld [vmem:[#allocation3 + $0x88] sm:$0xff]
        %v1392 = vld [vmem:[#allocation3 + $0x90] sm:$0xff]
        %v1393 = vld [vmem:[#allocation3 + $0x98] sm:$0xff]
        %v1394 = vld [vmem:[#allocation3 + $0xa0] sm:$0xff]
        %v1395 = vld [vmem:[#allocation3 + $0xa8] sm:$0xff]
        %v1396 = vld [vmem:[#allocation3 + $0xb0] sm:$0xff]
        %v1397 = vld [vmem:[#allocation3 + $0xb8] sm:$0xff]
        %v1398 = vld [vmem:[#allocation3 + $0xc0] sm:$0xff]
        %v1399 = vld [vmem:[#allocation3 + $0xc8] sm:$0xff]
        %v1400 = vld [vmem:[#allocation3 + $0xd0] sm:$0xff]
        %v1401 = vld [vmem:[#allocation3 + $0xd8] sm:$0xff]
        %v1402 = vld [vmem:[#allocation3 + $0xe0] sm:$0xff]
        %v1403 = vld [vmem:[#allocation3 + $0xe8] sm:$0xff]
        %v1404 = vld [vmem:[#allocation3 + $0xf0] sm:$0xff]
        %v1405 = vld [vmem:[#allocation3 + $0xf8] sm:$0xff]
        %v1438 = vunpack.c.l.b16 %v1374
        %v1439 = vunpack.c.h.b16 %v1374
        %v1440 = vunpack.c.l.b16 %v1375
        %v1441 = vunpack.c.h.b16 %v1375
        %v1442 = vunpack.c.l.b16 %v1376
        %v1443 = vunpack.c.h.b16 %v1376
        %v1444 = vunpack.c.l.b16 %v1377
        %v1445 = vunpack.c.h.b16 %v1377
        %v1446 = vunpack.c.l.b16 %v1378
        %v1447 = vunpack.c.h.b16 %v1378
        %v1448 = vunpack.c.l.b16 %v1379
        %v1449 = vunpack.c.h.b16 %v1379
        %v1450 = vunpack.c.l.b16 %v1380
        %v1451 = vunpack.c.h.b16 %v1380
        %v1452 = vunpack.c.l.b16 %v1381
        %v1453 = vunpack.c.h.b16 %v1381
        %v1454 = vunpack.c.l.b16 %v1382
        %v1455 = vunpack.c.h.b16 %v1382
        %v1456 = vunpack.c.l.b16 %v1383
        %v1457 = vunpack.c.h.b16 %v1383
        %v1458 = vunpack.c.l.b16 %v1384
        %v1459 = vunpack.c.h.b16 %v1384
        %v1460 = vunpack.c.l.b16 %v1385
        %v1461 = vunpack.c.h.b16 %v1385
        %v1462 = vunpack.c.l.b16 %v1386
        %v1463 = vunpack.c.h.b16 %v1386
        %v1464 = vunpack.c.l.b16 %v1387
        %v1465 = vunpack.c.h.b16 %v1387
        %v1466 = vunpack.c.l.b16 %v1388
        %v1467 = vunpack.c.h.b16 %v1388
        %v1468 = vunpack.c.l.b16 %v1389
        %v1469 = vunpack.c.h.b16 %v1389
        %v1470 = vunpack.c.l.b16 %v1390
        %v1471 = vunpack.c.h.b16 %v1390
        %v1472 = vunpack.c.l.b16 %v1391
        %v1473 = vunpack.c.h.b16 %v1391
        %v1474 = vunpack.c.l.b16 %v1392
        %v1475 = vunpack.c.h.b16 %v1392
        %v1476 = vunpack.c.l.b16 %v1393
        %v1477 = vunpack.c.h.b16 %v1393
        %v1478 = vunpack.c.l.b16 %v1394
        %v1479 = vunpack.c.h.b16 %v1394
        %v1480 = vunpack.c.l.b16 %v1395
        %v1481 = vunpack.c.h.b16 %v1395
        %v1482 = vunpack.c.l.b16 %v1396
        %v1483 = vunpack.c.h.b16 %v1396
        %v1484 = vunpack.c.l.b16 %v1397
        %v1485 = vunpack.c.h.b16 %v1397
        %v1486 = vunpack.c.l.b16 %v1398
        %v1487 = vunpack.c.h.b16 %v1398
        %v1488 = vunpack.c.l.b16 %v1399
        %v1489 = vunpack.c.h.b16 %v1399
        %v1490 = vunpack.c.l.b16 %v1400
        %v1491 = vunpack.c.h.b16 %v1400
        %v1492 = vunpack.c.l.b16 %v1401
        %v1493 = vunpack.c.h.b16 %v1401
        %v1494 = vunpack.c.l.b16 %v1402
        %v1495 = vunpack.c.h.b16 %v1402
        %v1496 = vunpack.c.l.b16 %v1403
        %v1497 = vunpack.c.h.b16 %v1403
        %v1498 = vunpack.c.l.b16 %v1404
        %v1499 = vunpack.c.h.b16 %v1404
        %v1500 = vunpack.c.l.b16 %v1405
        %v1501 = vunpack.c.h.b16 %v1405
        %v1502 = vpack.c.b16 %v1440, %v1438
        %v1503 = vpack.c.b16 %v1441, %v1439
        %v1504 = vpack.c.b16 %v1444, %v1442
        %v1505 = vpack.c.b16 %v1445, %v1443
        %v1506 = vpack.c.b16 %v1448, %v1446
        %v1507 = vpack.c.b16 %v1449, %v1447
        %v1508 = vpack.c.b16 %v1452, %v1450
        %v1509 = vpack.c.b16 %v1453, %v1451
        %v1510 = vpack.c.b16 %v1456, %v1454
        %v1511 = vpack.c.b16 %v1457, %v1455
        %v1512 = vpack.c.b16 %v1460, %v1458
        %v1513 = vpack.c.b16 %v1461, %v1459
        %v1514 = vpack.c.b16 %v1464, %v1462
        %v1515 = vpack.c.b16 %v1465, %v1463
        %v1516 = vpack.c.b16 %v1468, %v1466
        %v1517 = vpack.c.b16 %v1469, %v1467
        %v1518 = vpack.c.b16 %v1472, %v1470
        %v1519 = vpack.c.b16 %v1473, %v1471
        %v1520 = vpack.c.b16 %v1476, %v1474
        %v1521 = vpack.c.b16 %v1477, %v1475
        %v1522 = vpack.c.b16 %v1480, %v1478
        %v1523 = vpack.c.b16 %v1481, %v1479
        %v1524 = vpack.c.b16 %v1484, %v1482
        %v1525 = vpack.c.b16 %v1485, %v1483
        %v1526 = vpack.c.b16 %v1488, %v1486
        %v1527 = vpack.c.b16 %v1489, %v1487
        %v1528 = vpack.c.b16 %v1492, %v1490
        %v1529 = vpack.c.b16 %v1493, %v1491
        %v1530 = vpack.c.b16 %v1496, %v1494
        %v1531 = vpack.c.b16 %v1497, %v1495
        %v1532 = vpack.c.b16 %v1500, %v1498
        %v1533 = vpack.c.b16 %v1501, %v1499
        %1566 = vmatpush.bf16.msra.mxu0 %v1516
        %1567 = vmatpush.bf16.msra.mxu0 %v1514
        %1568 = vmatpush.bf16.msra.mxu0 %v1512
        %1569 = vmatpush.bf16.msra.mxu0 %v1510
        %1570 = vmatpush.bf16.msra.mxu0 %v1508
        %1571 = vmatpush.bf16.msra.mxu0 %v1506
        %1572 = vmatpush.bf16.msra.mxu0 %v1504
        %1573 = vmatpush.bf16.msra.mxu0 %v1502
        %1574 = vmatmul.bf16.gmra.mxu0 %v1372
        %v1575 = vpop.f32.mrf.mxu0
        %v1576 = vadd.f32 0.0, %v1575
        %v1577 = vpop.f32.mrf.mxu0
        %1578 = vdwg.mxu0
        %1579 = vmatpush.bf16.msra.mxu0 %v1532
        %1580 = vmatpush.bf16.msra.mxu0 %v1530
        %1581 = vmatpush.bf16.msra.mxu0 %v1528
        %1582 = vmatpush.bf16.msra.mxu0 %v1526
        %1583 = vmatpush.bf16.msra.mxu0 %v1524
        %1584 = vmatpush.bf16.msra.mxu0 %v1522
        %1585 = vmatpush.bf16.msra.mxu0 %v1520
        %1586 = vmatpush.bf16.msra.mxu0 %v1518
        %1587 = vmatmul.bf16.gmra.mxu0 %v1373
        %v1588 = vpop.f32.mrf.mxu0
        %v1589 = vadd.f32 %v1576, %v1588
        %v1590 = vpop.f32.mrf.mxu0
        %1591 = vdwg.mxu0
        %1592 = vmatpush.bf16.msra.mxu0 %v1517
        %1593 = vmatpush.bf16.msra.mxu0 %v1515
        %1594 = vmatpush.bf16.msra.mxu0 %v1513
        %1595 = vmatpush.bf16.msra.mxu0 %v1511
        %1596 = vmatpush.bf16.msra.mxu0 %v1509
        %1597 = vmatpush.bf16.msra.mxu0 %v1507
        %1598 = vmatpush.bf16.msra.mxu0 %v1505
        %1599 = vmatpush.bf16.msra.mxu0 %v1503
        %1600 = vmatmul.bf16.gmra.mxu0 %v1372
        %v1601 = vpop.f32.mrf.mxu0
        %v1602 = vadd.f32 0.0, %v1601
        %v1603 = vpop.f32.mrf.mxu0
        %1604 = vdwg.mxu0
        %1605 = vmatpush.bf16.msra.mxu0 %v1533
        %1606 = vmatpush.bf16.msra.mxu0 %v1531
        %1607 = vmatpush.bf16.msra.mxu0 %v1529
        %1608 = vmatpush.bf16.msra.mxu0 %v1527
        %1609 = vmatpush.bf16.msra.mxu0 %v1525
        %1610 = vmatpush.bf16.msra.mxu0 %v1523
        %1611 = vmatpush.bf16.msra.mxu0 %v1521
        %1612 = vmatpush.bf16.msra.mxu0 %v1519
        %1613 = vmatmul.bf16.gmra.mxu0 %v1373
        %v1614 = vpop.f32.mrf.mxu0
        %v1615 = vadd.f32 %v1602, %v1614
        %v1616 = vpop.f32.mrf.mxu0
        %1617 = vdwg.mxu0
        %v1618 = vpack.c.bf16 %v1615, %v1589
        %v1620 = vrot.slane %v1618, 2
        %v1623 = vsel %vm855, %v1618, %v1620
        %1625 = vst [vmem:[%s332] sm:$0xf] %v1623
        %p1626 = scmp.lt.s32.totalorder %s21, 1
        %s1627 = scalar_select %p1626, %s21, 1
        %s1628 = smul.addr %s1627, 2
        %s1629 = smul.addr %s1628, 4
        %s1630 = scalar_lea.vmem %s7, %s1629
        %p1631 = scmp.lt.s32.totalorder %s21, 1
        %s1632 = scalar_select %p1631, %s21, 1
        %s1633 = smul.addr %s1632, 2
        %s1634 = smul.addr %s1633, 2
        %s1635 = scalar_lea.vmem %s8, %s1634
        // Predicated region
        $region53: #{encoding_pyramid_forward.4} parent=47 // pred_check
          %p1636 = pneg %p191
        $region54: #{encoding_pyramid_forward.4} parent=47 // pred_check_branch
          %1638 = sbr.rel (%p1636) target = $region56
        $region55: #{encoding_pyramid_forward.4} parent=47 // pred_region
          _
        $region56: #{encoding_pyramid_forward.4} parent=47 // pred_fallthru
          _
        // Predicated region
        $region57: #{encoding_pyramid_forward.4} parent=47 // pred_check
          %p1639 = pneg %p217
        $region58: #{encoding_pyramid_forward.4} parent=47 // pred_check_branch
          %1641 = sbr.rel (%p1639) target = $region60
        $region59: #{encoding_pyramid_forward.4} parent=47 // pred_region
          _
        $region60: #{encoding_pyramid_forward.4} parent=47 // pred_fallthru
          _
      $region48: #{encoding_pyramid_forward.4} parent=5 // pred_fallthru
        _
      %p1642 = scmp.le.s32.totalorder 2, %s16
      // Predicated region
      $region61: #{encoding_pyramid_forward.4} parent=5 // pred_check
        %p1643 = pneg %p1642
      $region62: #{encoding_pyramid_forward.4} parent=5 // pred_check_branch
        %1645 = sbr.rel (%p1643) target = $region64
      $region63: #{encoding_pyramid_forward.4} parent=5 // pred_region
        %s1646 = ssub.s32 %s16, 2
        // Predicated region
        $region65: #{encoding_pyramid_forward.4} parent=63 // pred_check
          %p1647 = pneg %p197
        $region66: #{encoding_pyramid_forward.4} parent=63 // pred_check_branch
          %1649 = sbr.rel (%p1647) target = $region68
        $region67: #{encoding_pyramid_forward.4} parent=63 // pred_region
          %p1650 = scmp.lt.s32.totalorder %s22, 1
          %s1651 = scalar_select %p1650, %s22, 1
          %s1652 = smul.addr %s1651, 2
          %s1653 = smul.addr %s1652, 4
          %s1654 = scalar_lea.vmem %s7, %s1653
        $region68: #{encoding_pyramid_forward.4} parent=63 // pred_fallthru
          _
        // Predicated region
        $region69: #{encoding_pyramid_forward.4} parent=63 // pred_check
          %p1655 = pneg %p223
        $region70: #{encoding_pyramid_forward.4} parent=63 // pred_check_branch
          %1657 = sbr.rel (%p1655) target = $region72
        $region71: #{encoding_pyramid_forward.4} parent=63 // pred_region
          %p1658 = scmp.lt.s32.totalorder %s22, 1
          %s1659 = scalar_select %p1658, %s22, 1
          %s1660 = smul.addr %s1659, 2
          %s1661 = smul.addr %s1660, 2
          %s1662 = scalar_lea.vmem %s8, %s1661
        $region72: #{encoding_pyramid_forward.4} parent=63 // pred_fallthru
          _
      $region64: #{encoding_pyramid_forward.4} parent=5 // pred_fallthru
        _
    $region6: #{encoding_pyramid_forward.4} parent=1 // loop_footer
      %s20 = sadd.s32 1, %s16
    $region7: #{encoding_pyramid_forward.4} parent=1 // loop_footer_branch
      %15 = sbr.rel target = $region3
    $region8: #{encoding_pyramid_forward.4} parent=1 // loop_exit
      _
    %1663 = vsyncpa [#allocation4], 1
    %s1664 = scalar_lea.sflag [#allocation4], 1
    %1665 = vsyncpa %s1664, 1

// kernel: encoding_pyramid_forward.3
$region0: #{encoding_pyramid_forward.3}
  #allocation0 [shape = 'u32[]', space=smem, size = 0x4, offset = 0x4, fixed_abs, tag = 'smem constant byte address 0x4 - core index']
  #allocation1 [shape = 'u32[72,128]{1,0:T(1,128)}', space=vmem, size = 0x9000, scoped, tag = 'internal scratch']
  #allocation2 [shape = 'bf16[2,1024]{1,0:T(2,128)(2,1)}', space=vmem, size = 0x1000, scoped, tag = 'scratch operand']
  %s0 = inlined_call_operand.vmem [shape: bf16[2,1,896], index: 0, kind: input, shape index: {}]
  %s1 = inlined_call_operand.vmem [shape: bf16[9,2,1], index: 1, kind: input, shape index: {}]
  %s2 = inlined_call_operand.vmem [shape: f32[2,1], index: 2, kind: input, shape index: {}]
  %s3 = inlined_call_operand.vmem [shape: bf16[9,2,2], index: 3, kind: input, shape index: {}]
  %s4 = inlined_call_operand.vmem [shape: f32[2,1], index: 4, kind: input, shape index: {}]
  %s5 = inlined_call_operand.vmem [shape: f32[1,768], index: 5, kind: input, shape index: {}]
  %s6 = inlined_call_operand.hbm [shape: bf16[768,384], index: 6, kind: input, shape index: {}]
  %s7 = inlined_call_operand.vmem [shape: f32[2,2,768], index: 7, kind: output, shape index: {0}]
  %s8 = inlined_call_operand.vmem [shape: bf16[2,2,384], index: 8, kind: output, shape index: {1}]
  %9 = xla_tuple %s7, %s8
  %s10 = sld [smem:[#allocation0]]
  $region73: #{encoding_pyramid_forward.3} parent=0
    _
  %s12 = ssub.s32 1, %s10
  %s13 = scalar_select 0, %s12, %s10
  $region1: #{encoding_pyramid_forward.3} parent=0
    #allocation3 [shape = 'u8[589824]{0}', space=vmem, size = 0x90000, scoped, tag = 'input window, operand 6, single buffered']
    #allocation4 [shape = 's32[2]{0}', space=sflag, size = 0x8, scoped, tag = 'scoped memory for encoding_pyramid_forward.3']
    %14 = vsyncpa [#allocation4], 0
    loop: start=0, step=1, limit=4
    $region2: #{encoding_pyramid_forward.3} parent=1 // loop_pre_header
      _
    $region3: #{encoding_pyramid_forward.3} parent=1 // loop_header
      %s16 = sphi 0, %s20
      %p17 = scmp.ge.s32.totalorder %s16, 4
      %s26 = sphi 0, %s28
      %s29 = sphi 0, %s26
      %s30 = sphi 0, %s29
      %s46 = sphi 0, %s30
      %s50 = sphi 0, %s50
      %s52 = sphi 0, %s50
      %s53 = sphi 0, %s52
      %s67 = sphi 0, %s53
      %s71 = sphi 0, %s71
      %s73 = sphi 0, %s71
      %s74 = sphi 0, %s73
      %s88 = sphi 0, %s74
      %s92 = sphi 0, %s92
      %s94 = sphi 0, %s92
      %s95 = sphi 0, %s94
      %s109 = sphi 0, %s95
      %s113 = sphi 0, %s113
      %s115 = sphi 0, %s113
      %s116 = sphi 0, %s115
      %s130 = sphi 0, %s116
      %s134 = sphi 0, %s134
      %s136 = sphi 0, %s134
      %s137 = sphi 0, %s136
      %s151 = sphi 0, %s137
      %s155 = sphi 0, %s155
      %s157 = sphi 0, %s155
      %s158 = sphi 0, %s157
      %s172 = sphi 0, %s158
      %s178 = sphi 0, %s180
      %s181 = sphi 0, %s178
      %s182 = sphi 0, %s181
      %s198 = sphi 0, %s182
      %s204 = sphi 0, %s206
      %s207 = sphi 0, %s204
      %s208 = sphi 0, %s207
      %s224 = sphi 0, %s208
    $region4: #{encoding_pyramid_forward.3} parent=1 // loop_header_branch
      %19 = sbr.rel (%p17) target = $region8
    $region5: #{encoding_pyramid_forward.3} parent=1 // loop_body
      %s21 = ssub.s32 %s16, 1
      %s22 = ssub.s32 %s16, 2
      %s23 = sadd.s32 %s16, 1
      %s24 = ssub.s32 %s16, %s23
      %p25 = scmp.eq.s32.totalorder %s24, 0
      %s27 = sadd.s32 %s26, 1
      %s28 = scalar_select %p25, %s26, %s27
      %p31 = pneg %p25
      %p32 = scmp.eq.s32.totalorder %s16, 1
      %p33 = por %p31, %p32
      %p34 = scmp.ne.s32.totalorder %s26, %s29
      %p35 = scmp.eq.s32.totalorder %s16, 0
      %p36 = por %p34, %p35
      %p37 = scmp.ne.s32.totalorder %s26, %s29
      %p38 = scmp.eq.s32.totalorder %s21, 1
      %p39 = por %p37, %p38
      %p40 = scmp.ne.s32.totalorder %s29, %s30
      %p41 = scmp.eq.s32.totalorder %s21, 0
      %p42 = por %p40, %p41
      %p43 = scmp.ne.s32.totalorder %s29, %s30
      %p44 = scmp.eq.s32.totalorder %s22, 1
      %p45 = por %p43, %p44
      %p47 = scmp.ne.s32.totalorder %s30, %s46
      %p48 = scmp.eq.s32.totalorder %s22, 0
      %p49 = por %p47, %p48
      %s51 = sadd.s32 %s50, 1
      %p54 = scmp.eq.s32.totalorder %s16, 1
      %p55 = scmp.ne.s32.totalorder %s50, %s52
      %p56 = scmp.eq.s32.totalorder %s16, 0
      %p57 = por %p55, %p56
      %p58 = scmp.ne.s32.totalorder %s50, %s52
      %p59 = scmp.eq.s32.totalorder %s21, 1
      %p60 = por %p58, %p59
      %p61 = scmp.ne.s32.totalorder %s52, %s53
      %p62 = scmp.eq.s32.totalorder %s21, 0
      %p63 = por %p61, %p62
      %p64 = scmp.ne.s32.totalorder %s52, %s53
      %p65 = scmp.eq.s32.totalorder %s22, 1
      %p66 = por %p64, %p65
      %p68 = scmp.ne.s32.totalorder %s53, %s67
      %p69 = scmp.eq.s32.totalorder %s22, 0
      %p70 = por %p68, %p69
      %s72 = sadd.s32 %s71, 1
      %p75 = scmp.eq.s32.totalorder %s16, 1
      %p76 = scmp.ne.s32.totalorder %s71, %s73
      %p77 = scmp.eq.s32.totalorder %s16, 0
      %p78 = por %p76, %p77
      %p79 = scmp.ne.s32.totalorder %s71, %s73
      %p80 = scmp.eq.s32.totalorder %s21, 1
      %p81 = por %p79, %p80
      %p82 = scmp.ne.s32.totalorder %s73, %s74
      %p83 = scmp.eq.s32.totalorder %s21, 0
      %p84 = por %p82, %p83
      %p85 = scmp.ne.s32.totalorder %s73, %s74
      %p86 = scmp.eq.s32.totalorder %s22, 1
      %p87 = por %p85, %p86
      %p89 = scmp.ne.s32.totalorder %s74, %s88
      %p90 = scmp.eq.s32.totalorder %s22, 0
      %p91 = por %p89, %p90
      %s93 = sadd.s32 %s92, 1
      %p96 = scmp.eq.s32.totalorder %s16, 1
      %p97 = scmp.ne.s32.totalorder %s92, %s94
      %p98 = scmp.eq.s32.totalorder %s16, 0
      %p99 = por %p97, %p98
      %p100 = scmp.ne.s32.totalorder %s92, %s94
      %p101 = scmp.eq.s32.totalorder %s21, 1
      %p102 = por %p100, %p101
      %p103 = scmp.ne.s32.totalorder %s94, %s95
      %p104 = scmp.eq.s32.totalorder %s21, 0
      %p105 = por %p103, %p104
      %p106 = scmp.ne.s32.totalorder %s94, %s95
      %p107 = scmp.eq.s32.totalorder %s22, 1
      %p108 = por %p106, %p107
      %p110 = scmp.ne.s32.totalorder %s95, %s109
      %p111 = scmp.eq.s32.totalorder %s22, 0
      %p112 = por %p110, %p111
      %s114 = sadd.s32 %s113, 1
      %p117 = scmp.eq.s32.totalorder %s16, 1
      %p118 = scmp.ne.s32.totalorder %s113, %s115
      %p119 = scmp.eq.s32.totalorder %s16, 0
      %p120 = por %p118, %p119
      %p121 = scmp.ne.s32.totalorder %s113, %s115
      %p122 = scmp.eq.s32.totalorder %s21, 1
      %p123 = por %p121, %p122
      %p124 = scmp.ne.s32.totalorder %s115, %s116
      %p125 = scmp.eq.s32.totalorder %s21, 0
      %p126 = por %p124, %p125
      %p127 = scmp.ne.s32.totalorder %s115, %s116
      %p128 = scmp.eq.s32.totalorder %s22, 1
      %p129 = por %p127, %p128
      %p131 = scmp.ne.s32.totalorder %s116, %s130
      %p132 = scmp.eq.s32.totalorder %s22, 0
      %p133 = por %p131, %p132
      %s135 = sadd.s32 %s134, 1
      %p138 = scmp.eq.s32.totalorder %s16, 1
      %p139 = scmp.ne.s32.totalorder %s134, %s136
      %p140 = scmp.eq.s32.totalorder %s16, 0
      %p141 = por %p139, %p140
      %p142 = scmp.ne.s32.totalorder %s134, %s136
      %p143 = scmp.eq.s32.totalorder %s21, 1
      %p144 = por %p142, %p143
      %p145 = scmp.ne.s32.totalorder %s136, %s137
      %p146 = scmp.eq.s32.totalorder %s21, 0
      %p147 = por %p145, %p146
      %p148 = scmp.ne.s32.totalorder %s136, %s137
      %p149 = scmp.eq.s32.totalorder %s22, 1
      %p150 = por %p148, %p149
      %p152 = scmp.ne.s32.totalorder %s137, %s151
      %p153 = scmp.eq.s32.totalorder %s22, 0
      %p154 = por %p152, %p153
      %s156 = sadd.s32 %s155, 1
      %p159 = scmp.eq.s32.totalorder %s16, 1
      %p160 = scmp.ne.s32.totalorder %s155, %s157
      %p161 = scmp.eq.s32.totalorder %s16, 0
      %p162 = por %p160, %p161
      %p163 = scmp.ne.s32.totalorder %s155, %s157
      %p164 = scmp.eq.s32.totalorder %s21, 1
      %p165 = por %p163, %p164
      %p166 = scmp.ne.s32.totalorder %s157, %s158
      %p167 = scmp.eq.s32.totalorder %s21, 0
      %p168 = por %p166, %p167
      %p169 = scmp.ne.s32.totalorder %s157, %s158
      %p170 = scmp.eq.s32.totalorder %s22, 1
      %p171 = por %p169, %p170
      %p173 = scmp.ne.s32.totalorder %s158, %s172
      %p174 = scmp.eq.s32.totalorder %s22, 0
      %p175 = por %p173, %p174
      %s176 = ssub.s32 %s16, %s23
      %p177 = scmp.eq.s32.totalorder %s176, 0
      %s179 = sadd.s32 %s178, 1
      %s180 = scalar_select %p177, %s178, %s179
      %p183 = pneg %p177
      %p184 = scmp.eq.s32.totalorder %s16, 1
      %p185 = por %p183, %p184
      %p186 = scmp.ne.s32.totalorder %s178, %s181
      %p187 = scmp.eq.s32.totalorder %s16, 0
      %p188 = por %p186, %p187
      %p189 = scmp.ne.s32.totalorder %s178, %s181
      %p190 = scmp.eq.s32.totalorder %s21, 1
      %p191 = por %p189, %p190
      %p192 = scmp.ne.s32.totalorder %s181, %s182
      %p193 = scmp.eq.s32.totalorder %s21, 0
      %p194 = por %p192, %p193
      %p195 = scmp.ne.s32.totalorder %s181, %s182
      %p196 = scmp.eq.s32.totalorder %s22, 1
      %p197 = por %p195, %p196
      %p199 = scmp.ne.s32.totalorder %s182, %s198
      %p200 = scmp.eq.s32.totalorder %s22, 0
      %p201 = por %p199, %p200
      %s202 = ssub.s32 %s16, %s23
      %p203 = scmp.eq.s32.totalorder %s202, 0
      %s205 = sadd.s32 %s204, 1
      %s206 = scalar_select %p203, %s204, %s205
      %p209 = pneg %p203
      %p210 = scmp.eq.s32.totalorder %s16, 1
      %p211 = por %p209, %p210
      %p212 = scmp.ne.s32.totalorder %s204, %s207
      %p213 = scmp.eq.s32.totalorder %s16, 0
      %p214 = por %p212, %p213
      %p215 = scmp.ne.s32.totalorder %s204, %s207
      %p216 = scmp.eq.s32.totalorder %s21, 1
      %p217 = por %p215, %p216
      %p218 = scmp.ne.s32.totalorder %s207, %s208
      %p219 = scmp.eq.s32.totalorder %s21, 0
      %p220 = por %p218, %p219
      %p221 = scmp.ne.s32.totalorder %s207, %s208
      %p222 = scmp.eq.s32.totalorder %s22, 1
      %p223 = por %p221, %p222
      %p225 = scmp.ne.s32.totalorder %s208, %s224
      %p226 = scmp.eq.s32.totalorder %s22, 0
      %p227 = por %p225, %p226
      %p228 = scmp.le.s32.totalorder 1, %s16
      %p229 = scmp.lt.s32.totalorder %s16, 3
      %p230 = pnand %p228, %p229
      %p231 = pneg %p230
      // Predicated region
      $region9: #{encoding_pyramid_forward.3} parent=5 // pred_check
        _
      $region10: #{encoding_pyramid_forward.3} parent=5 // pred_check_branch
        %233 = sbr.rel (%p230) target = $region12
      $region11: #{encoding_pyramid_forward.3} parent=5 // pred_region
        %s234 = ssub.s32 %s16, 1
        // Predicated region
        $region13: #{encoding_pyramid_forward.3} parent=11 // pred_check
          %p235 = pneg %p63
        $region14: #{encoding_pyramid_forward.3} parent=11 // pred_check_branch
          %237 = sbr.rel (%p235) target = $region16
        $region15: #{encoding_pyramid_forward.3} parent=11 // pred_region
          _
        $region16: #{encoding_pyramid_forward.3} parent=11 // pred_fallthru
          _
        // Predicated region
        $region17: #{encoding_pyramid_forward.3} parent=11 // pred_check
          %p238 = pneg %p84
        $region18: #{encoding_pyramid_forward.3} parent=11 // pred_check_branch
          %240 = sbr.rel (%p238) target = $region20
        $region19: #{encoding_pyramid_forward.3} parent=11 // pred_region
          _
        $region20: #{encoding_pyramid_forward.3} parent=11 // pred_fallthru
          _
        // Predicated region
        $region21: #{encoding_pyramid_forward.3} parent=11 // pred_check
          %p241 = pneg %p105
        $region22: #{encoding_pyramid_forward.3} parent=11 // pred_check_branch
          %243 = sbr.rel (%p241) target = $region24
        $region23: #{encoding_pyramid_forward.3} parent=11 // pred_region
          _
        $region24: #{encoding_pyramid_forward.3} parent=11 // pred_fallthru
          _
        // Predicated region
        $region25: #{encoding_pyramid_forward.3} parent=11 // pred_check
          %p244 = pneg %p126
        $region26: #{encoding_pyramid_forward.3} parent=11 // pred_check_branch
          %246 = sbr.rel (%p244) target = $region28
        $region27: #{encoding_pyramid_forward.3} parent=11 // pred_region
          _
        $region28: #{encoding_pyramid_forward.3} parent=11 // pred_fallthru
          _
        // Predicated region
        $region29: #{encoding_pyramid_forward.3} parent=11 // pred_check
          %p247 = pneg %p147
        $region30: #{encoding_pyramid_forward.3} parent=11 // pred_check_branch
          %249 = sbr.rel (%p247) target = $region32
        $region31: #{encoding_pyramid_forward.3} parent=11 // pred_region
          _
        $region32: #{encoding_pyramid_forward.3} parent=11 // pred_fallthru
          _
        // Predicated region
        $region33: #{encoding_pyramid_forward.3} parent=11 // pred_check
          %p250 = pneg %p168
        $region34: #{encoding_pyramid_forward.3} parent=11 // pred_check_branch
          %252 = sbr.rel (%p250) target = $region36
        $region35: #{encoding_pyramid_forward.3} parent=11 // pred_region
          %254 = vsyncadd [#allocation4], 0
          %s255 = sshll.u32 %s6, 4
          %s256 = int_to_ptr.hbm [resolvable:$true] %s255
          %s257 = sshll.u32 [#allocation3], 4
          %s258 = int_to_ptr.vmem [resolvable:$true] %s257
          %263 = dma.hbm_to_vmem [thread:$0]  %s256, 18432, %s258, [#allocation4], 192, 192, 12
        $region36: #{encoding_pyramid_forward.3} parent=11 // pred_fallthru
          _
      $region12: #{encoding_pyramid_forward.3} parent=5 // pred_fallthru
        _
      %p264 = scmp.lt.s32.totalorder %s16, 2
      // Predicated region
      $region37: #{encoding_pyramid_forward.3} parent=5 // pred_check
        %p265 = pneg %p264
      $region38: #{encoding_pyramid_forward.3} parent=5 // pred_check_branch
        %267 = sbr.rel (%p265) target = $region40
      $region39: #{encoding_pyramid_forward.3} parent=5 // pred_region
        // Predicated region
        $region41: #{encoding_pyramid_forward.3} parent=39 // pred_check
          %p268 = pneg %p36
        $region42: #{encoding_pyramid_forward.3} parent=39 // pred_check_branch
          %270 = sbr.rel (%p268) target = $region44
        $region43: #{encoding_pyramid_forward.3} parent=39 // pred_region
          %p271 = scmp.lt.s32.totalorder %s16, 1
          %s272 = scalar_select %p271, %s16, 1
          %s273 = smul.addr %s272, 7
          %s274 = scalar_lea.vmem %s0, %s273
        $region44: #{encoding_pyramid_forward.3} parent=39 // pred_fallthru
          _
      $region40: #{encoding_pyramid_forward.3} parent=5 // pred_fallthru
        _
      %p275 = scmp.le.s32.totalorder 1, %s16
      %p276 = scmp.lt.s32.totalorder %s16, 3
      %p277 = pnand %p275, %p276
      %p278 = pneg %p277
      // Predicated region
      $region45: #{encoding_pyramid_forward.3} parent=5 // pred_check
        _
      $region46: #{encoding_pyramid_forward.3} parent=5 // pred_check_branch
        %280 = sbr.rel (%p277) target = $region48
      $region47: #{encoding_pyramid_forward.3} parent=5 // pred_region
        %s281 = ssub.s32 %s16, 1
        // Predicated region
        $region49: #{encoding_pyramid_forward.3} parent=47 // pred_check
          %p282 = pneg %p168
        $region50: #{encoding_pyramid_forward.3} parent=47 // pred_check_branch
          %284 = sbr.rel (%p282) target = $region52
        $region51: #{encoding_pyramid_forward.3} parent=47 // pred_region
          %286 = dma.done [#allocation4], 18432
        $region52: #{encoding_pyramid_forward.3} parent=47 // pred_fallthru
          _
        %p287 = scmp.lt.s32.totalorder %s21, 1
        %s288 = scalar_select %p287, %s21, 1
        %s289 = smul.addr %s288, 7
        %s290 = scalar_lea.vmem %s0, %s289
        %p291 = pneg %p42
        %p292 = pneg %p39
        %p293 = pneg %p63
        %p294 = pneg %p60
        %p295 = pneg %p84
        %p296 = pneg %p81
        %p297 = pneg %p105
        %p298 = pneg %p102
        %p299 = pneg %p126
        %p300 = pneg %p123
        %p301 = pneg %p147
        %p302 = pneg %p144
        %p303 = pneg %p168
        %p304 = pneg %p165
        %p305 = pneg %p194
        %p306 = pneg %p191
        %p307 = scmp.lt.s32.totalorder %s21, 1
        %s308 = scalar_select %p307, %s21, 1
        %s309 = smul.addr %s308, 6
        %s310 = smul.addr %s309, 2
        %s311 = scalar_lea.vmem %s7, %s310
        %p312 = pneg %p220
        %p313 = pneg %p217
        %p314 = scmp.lt.s32.totalorder %s21, 1
        %s315 = scalar_select %p314, %s21, 1
        %s316 = smul.addr %s315, 3
        %s317 = scalar_lea.vmem %s8, %s316
        %p318 = scmp.lt.s32.totalorder %s21, 1
        %s319 = scalar_select %p318, %s21, 1
        %s320 = smul.addr %s319, 7
        %s321 = scalar_lea.vmem %s0, %s320
        %p322 = scmp.lt.s32.totalorder %s21, 1
        %s323 = scalar_select %p322, %s21, 1
        %s324 = smul.addr %s323, 6
        %s325 = smul.addr %s324, 2
        %s326 = scalar_lea.vmem %s7, %s325
        %p327 = scmp.lt.s32.totalorder %s21, 1
        %s328 = scalar_select %p327, %s21, 1
        %s329 = smul.addr %s328, 3
        %s330 = scalar_lea.vmem %s8, %s329
        %v332 = vld [vmem:[%s321] sm:$0x3f]
        %v333 = vld [vmem:[%s1] sm:$0x1]
        %v334 = vunpack.c.l.bf16 %v333
        %v335 = vunpack.c.l.bf16 %v332
        %v336 = vunpack.c.h.bf16 %v332
        %338 = vset.pattern.permute.xlu0 0
        %339 = vperm.xlu0 %338, %v334
        %v340 = vpop.permute.xlu0 %339
        %v343 = vunpack.c.l.s4 269488144
        %v344 = vunpack.c.0.s8 %v343
        %v345 = vperm.slane %v340, %v344
        %v348 = vperm.slane %v335, 0
        %v349 = vperm.slane %v335, 2
        %v350 = vperm.slane %v335, 4
        %v351 = vperm.slane %v335, 6
        %v352 = vperm.slane %v336, 0
        %v353 = vperm.slane %v336, 2
        %v360 = vperm.slane %v348, 0
        %v361 = vperm.slane %v349, 0
        %v362 = vperm.slane %v350, 0
        %v363 = vperm.slane %v351, 0
        %v364 = vperm.slane %v352, 0
        %v365 = vperm.slane %v353, 0
        %v372 = vrot.slane %v361, 6
        %v373 = vrot.slane %v362, 4
        %v374 = vrot.slane %v363, 2
        %v375 = vrot.slane %v365, 6
        %vm376 = vcmask 1041408
        %v377 = vsel %vm376, %v360, %v372
        %vm378 = vcmask 1045508
        %v379 = vsel %vm378, %v373, %v374
        %vm380 = vcmask 1043456
        %v381 = vsel %vm380, %v377, %v379
        %v382 = vsel %vm376, %v364, %v375
        %v385 = vmul.f32 %v345, %v381
        %v386 = vmul.f32 %v345, %v382
        %v387 = vadd.f32 %v385, 0.0
        %v388 = vadd.f32 %v386, 0.0
        %v389 = vld [vmem:[%s321] sm:$0x7f]
        %s390 = scalar_lea.vmem %s1, 1
        %v391 = vld [vmem:[%s390] sm:$0x1]
        %v392 = vunpack.c.l.bf16 %v391
        %v393 = vunpack.c.l.bf16 %v389
        %v394 = vunpack.c.h.bf16 %v389
        %396 = vset.pattern.permute.xlu0 0
        %397 = vperm.xlu0 %396, %v392
        %v398 = vpop.permute.xlu0 %397
        %v401 = vunpack.c.l.s4 269488144
        %v402 = vunpack.c.0.s8 %v401
        %v403 = vperm.slane %v398, %v402
        %v406 = vperm.slane %v393, 0
        %v407 = vperm.slane %v393, 2
        %v408 = vperm.slane %v393, 4
        %v409 = vperm.slane %v393, 6
        %v410 = vperm.slane %v394, 0
        %v411 = vperm.slane %v394, 2
        %v412 = vperm.slane %v394, 4
        %v420 = vperm.slane %v406, 0
        %v421 = vperm.slane %v407, 0
        %v422 = vperm.slane %v408, 0
        %v423 = vperm.slane %v409, 0
        %v424 = vperm.slane %v410, 0
        %v425 = vperm.slane %v411, 0
        %v426 = vperm.slane %v412, 0
        %v434 = vrot.slane %v421, 6
        %v435 = vrot.slane %v422, 4
        %v436 = vrot.slane %v423, 2
        %v437 = vrot.slane %v425, 6
        %v438 = vrot.slane %v426, 4
        %v439 = vsel %vm376, %v420, %v434
        %v440 = vsel %vm378, %v435, %v436
        %v441 = vsel %vm380, %v439, %v440
        %v442 = vsel %vm376, %v424, %v437
        %v443 = vsel %vm380, %v442, %v438
        %444 = vrot.lane.b32.xlu0 %v441, 127
        %v445 = vpop.permute.xlu0 %444
        %446 = vrot.lane.b32.xlu0 %v443, 127
        %v447 = vpop.permute.xlu0 %446
        %v448 = vrot.slane %v445, 2
        %v449 = vrot.slane %v447, 2
        %vm450 = vcmask 1045504
        %v451 = vsel %vm450, %v448, %v449
        %vm452 = vcmask 1039360
        %v453 = vsel %vm452, %v445, %v451
        %v454 = vsel %vm452, %v447, %v449
        %v457 = vmul.f32 %v403, %v453
        %v458 = vmul.f32 %v403, %v454
        %v459 = vadd.f32 %v387, %v457
        %v460 = vadd.f32 %v388, %v458
        %s461 = scalar_lea.vmem %s1, 2
        %v462 = vld [vmem:[%s461] sm:$0x1]
        %v463 = vunpack.c.l.bf16 %v462
        %465 = vset.pattern.permute.xlu0 0
        %466 = vperm.xlu0 %465, %v463
        %v467 = vpop.permute.xlu0 %466
        %v470 = vunpack.c.l.s4 269488144
        %v471 = vunpack.c.0.s8 %v470
        %v472 = vperm.slane %v467, %v471
        %473 = vrot.lane.b32.xlu0 %v441, 126
        %v474 = vpop.permute.xlu0 %473
        %475 = vrot.lane.b32.xlu0 %v443, 126
        %v476 = vpop.permute.xlu0 %475
        %v477 = vrot.slane %v474, 2
        %v478 = vrot.slane %v476, 2
        %v479 = vsel %vm450, %v477, %v478
        %vm480 = vcmask 1031168
        %v481 = vsel %vm480, %v474, %v479
        %v482 = vsel %vm480, %v476, %v478
        %v485 = vmul.f32 %v472, %v481
        %v486 = vmul.f32 %v472, %v482
        %v487 = vadd.f32 %v459, %v485
        %v488 = vadd.f32 %v460, %v486
        %s489 = scalar_lea.vmem %s1, 3
        %v490 = vld [vmem:[%s489] sm:$0x1]
        %v491 = vunpack.c.l.bf16 %v490
        %493 = vset.pattern.permute.xlu0 0
        %494 = vperm.xlu0 %493, %v491
        %v495 = vpop.permute.xlu0 %494
        %v498 = vunpack.c.l.s4 269488144
        %v499 = vunpack.c.0.s8 %v498
        %v500 = vperm.slane %v495, %v499
        %501 = vrot.lane.b32.xlu0 %v441, 110
        %v502 = vpop.permute.xlu0 %501
        %503 = vrot.lane.b32.xlu0 %v443, 110
        %v504 = vpop.permute.xlu0 %503
        %v505 = vrot.slane %v502, 2
        %v506 = vrot.slane %v504, 2
        %v507 = vsel %vm450, %v505, %v506
        %vm508 = vcmask 900096
        %v509 = vsel %vm508, %v502, %v507
        %v510 = vsel %vm508, %v504, %v506
        %v513 = vmul.f32 %v500, %v509
        %v514 = vmul.f32 %v500, %v510
        %v515 = vadd.f32 %v487, %v513
        %v516 = vadd.f32 %v488, %v514
        %s517 = scalar_lea.vmem %s1, 4
        %v518 = vld [vmem:[%s517] sm:$0x1]
        %v519 = vunpack.c.l.bf16 %v518
        %521 = vset.pattern.permute.xlu0 0
        %522 = vperm.xlu0 %521, %v519
        %v523 = vpop.permute.xlu0 %522
        %v526 = vunpack.c.l.s4 269488144
        %v527 = vunpack.c.0.s8 %v526
        %v528 = vperm.slane %v523, %v527
        %529 = vrot.lane.b32.xlu0 %v441, 109
        %v530 = vpop.permute.xlu0 %529
        %531 = vrot.lane.b32.xlu0 %v443, 109
        %v532 = vpop.permute.xlu0 %531
        %v533 = vrot.slane %v530, 2
        %v534 = vrot.slane %v532, 2
        %v535 = vsel %vm450, %v533, %v534
        %vm536 = vcmask 891904
        %v537 = vsel %vm536, %v530, %v535
        %v538 = vsel %vm536, %v532, %v534
        %v541 = vmul.f32 %v528, %v537
        %v542 = vmul.f32 %v528, %v538
        %v543 = vadd.f32 %v515, %v541
        %v544 = vadd.f32 %v516, %v542
        %s545 = scalar_lea.vmem %s1, 5
        %v546 = vld [vmem:[%s545] sm:$0x1]
        %v547 = vunpack.c.l.bf16 %v546
        %549 = vset.pattern.permute.xlu0 0
        %550 = vperm.xlu0 %549, %v547
        %v551 = vpop.permute.xlu0 %550
        %v554 = vunpack.c.l.s4 269488144
        %v555 = vunpack.c.0.s8 %v554
        %v556 = vperm.slane %v551, %v555
        %557 = vrot.lane.b32.xlu0 %v441, 108
        %v558 = vpop.permute.xlu0 %557
        %559 = vrot.lane.b32.xlu0 %v443, 108
        %v560 = vpop.permute.xlu0 %559
        %v561 = vrot.slane %v558, 2
        %v562 = vrot.slane %v560, 2
        %v563 = vsel %vm450, %v561, %v562
        %vm564 = vcmask 883712
        %v565 = vsel %vm564, %v558, %v563
        %v566 = vsel %vm564, %v560, %v562
        %v569 = vmul.f32 %v556, %v565
        %v570 = vmul.f32 %v556, %v566
        %v571 = vadd.f32 %v543, %v569
        %v572 = vadd.f32 %v544, %v570
        %s573 = scalar_lea.vmem %s1, 6
        %v574 = vld [vmem:[%s573] sm:$0x1]
        %v575 = vunpack.c.l.bf16 %v574
        %577 = vset.pattern.permute.xlu0 0
        %578 = vperm.xlu0 %577, %v575
        %v579 = vpop.permute.xlu0 %578
        %v582 = vunpack.c.l.s4 269488144
        %v583 = vunpack.c.0.s8 %v582
        %v584 = vperm.slane %v579, %v583
        %585 = vrot.lane.b32.xlu0 %v441, 92
        %v586 = vpop.permute.xlu0 %585
        %587 = vrot.lane.b32.xlu0 %v443, 92
        %v588 = vpop.permute.xlu0 %587
        %v589 = vrot.slane %v586, 2
        %v590 = vrot.slane %v588, 2
        %v591 = vsel %vm450, %v589, %v590
        %vm592 = vcmask 752640
        %v593 = vsel %vm592, %v586, %v591
        %v594 = vsel %vm592, %v588, %v590
        %v597 = vmul.f32 %v584, %v593
        %v598 = vmul.f32 %v584, %v594
        %v599 = vadd.f32 %v571, %v597
        %v600 = vadd.f32 %v572, %v598
        %s601 = scalar_lea.vmem %s1, 7
        %v602 = vld [vmem:[%s601] sm:$0x1]
        %v603 = vunpack.c.l.bf16 %v602
        %605 = vset.pattern.permute.xlu0 0
        %606 = vperm.xlu0 %605, %v603
        %v607 = vpop.permute.xlu0 %606
        %v610 = vunpack.c.l.s4 269488144
        %v611 = vunpack.c.0.s8 %v610
        %v612 = vperm.slane %v607, %v611
        %613 = vrot.lane.b32.xlu0 %v441, 91
        %v614 = vpop.permute.xlu0 %613
        %615 = vrot.lane.b32.xlu0 %v443, 91
        %v616 = vpop.permute.xlu0 %615
        %v617 = vrot.slane %v614, 2
        %v618 = vrot.slane %v616, 2
        %v619 = vsel %vm450, %v617, %v618
        %vm620 = vcmask 744448
        %v621 = vsel %vm620, %v614, %v619
        %v622 = vsel %vm620, %v616, %v618
        %v625 = vmul.f32 %v612, %v621
        %v626 = vmul.f32 %v612, %v622
        %v627 = vadd.f32 %v599, %v625
        %v628 = vadd.f32 %v600, %v626
        %s629 = scalar_lea.vmem %s1, 8
        %v630 = vld [vmem:[%s629] sm:$0x1]
        %v631 = vunpack.c.l.bf16 %v630
        %633 = vset.pattern.permute.xlu0 0
        %634 = vperm.xlu0 %633, %v631
        %v635 = vpop.permute.xlu0 %634
        %v638 = vunpack.c.l.s4 269488144
        %v639 = vunpack.c.0.s8 %v638
        %v640 = vperm.slane %v635, %v639
        %641 = vrot.lane.b32.xlu0 %v441, 90
        %v642 = vpop.permute.xlu0 %641
        %643 = vrot.lane.b32.xlu0 %v443, 90
        %v644 = vpop.permute.xlu0 %643
        %v645 = vrot.slane %v642, 2
        %v646 = vrot.slane %v644, 2
        %v647 = vsel %vm450, %v645, %v646
        %vm648 = vcmask 736256
        %v649 = vsel %vm648, %v642, %v647
        %v650 = vsel %vm648, %v644, %v646
        %v653 = vmul.f32 %v640, %v649
        %v654 = vmul.f32 %v640, %v650
        %v655 = vadd.f32 %v627, %v653
        %v656 = vadd.f32 %v628, %v654
        %v657 = vld [vmem:[%s2] sm:$0x3]
        %659 = vset.pattern.permute.xlu0 0
        %660 = vperm.xlu0 %659, %v657
        %v661 = vpop.permute.xlu0 %660
        %v663 = vunpack.c.l.s4 269488144
        %v664 = vunpack.c.0.s8 %v663
        %v665 = vperm.slane %v661, %v664
        %v667 = vadd.f32 %v655, %v665
        %v668 = vadd.f32 %v656, %v665
        %vm669 = vcmp.ge.f32.partialorder %v667, 0.0
        %vm670 = vcmp.ge.f32.partialorder %v668, 0.0
        %v671 = vmul.f32 %v667, 0.01
        %v672 = vmul.f32 %v668, 0.01
        %v673 = vsel %vm669, %v667, %v671
        %v674 = vsel %vm670, %v668, %v672
        %v675 = vld [vmem:[%s5] sm:$0x3f]
        %v677 = vperm.slane %v675, 0
        %v678 = vperm.slane %v675, 1
        %v679 = vperm.slane %v675, 2
        %v680 = vperm.slane %v675, 3
        %v681 = vperm.slane %v675, 4
        %v682 = vperm.slane %v675, 5
        %v683 = vrot.slane %v678, 6
        %v684 = vrot.slane %v679, 4
        %v685 = vrot.slane %v680, 2
        %v686 = vrot.slane %v682, 6
        %v687 = vsel %vm376, %v677, %v683
        %v688 = vsel %vm378, %v684, %v685
        %v689 = vsel %vm380, %v687, %v688
        %v690 = vsel %vm376, %v681, %v686
        %v693 = vmul.f32 %v673, %v689
        %v694 = vmul.f32 %v674, %v690
        %695 = vst [vmem:[#allocation2] sm:$0x1] 0
        %698 = vst [vmem:[#allocation1] ss:$4 sm:$0xff] %v693
        %s699 = scalar_lea.vmem [#allocation1], 32
        %700 = vst [vmem:[%s699] ss:$4 sm:$0xff] %v694
        %v701 = vld.sshfl [vmem:[#allocation1] sm:$0xff pattern:$0x73625140]
        %v702 = vld.sshfl [vmem:[#allocation1 + $0x8] sm:$0xff pattern:$0x73625140]
        %v703 = vld.sshfl [vmem:[#allocation1 + $0x10] sm:$0xff pattern:$0x73625140]
        %v704 = vld.sshfl [vmem:[#allocation1 + $0x18] sm:$0xff pattern:$0x73625140]
        %v705 = vld.sshfl [vmem:[#allocation1 + $0x20] sm:$0xff pattern:$0x73625140]
        %v706 = vld.sshfl [vmem:[#allocation1 + $0x28] sm:$0xff pattern:$0x73625140]
        %v713 = vpack.c.bf16 %v702, %v701
        %v714 = vpack.c.bf16 %v704, %v703
        %v715 = vpack.c.bf16 %v706, %v705
        %v719 = vrot.slane %v713, 3
        %v720 = vrot.slane %v714, 6
        %v721 = vrot.slane %v714, 1
        %v722 = vrot.slane %v715, 4
        %v723 = vrot.slane %v715, 7
        %vm724 = vcmask 1040384
        %v727 = vsel %vm724, %v713, %v719
        %v729 = vsel %vm376, %v727, %v720
        %vm730 = vcmask 1043459
        %v733 = vsel %vm730, %v721, %v722
        %vm734 = vcmask 1044483
        %v736 = vsel %vm734, %v733, %v723
        %vm737 = vcmask 1042432
        %v738 = vsel %vm737, %v729, %v736
        %740 = vst [vmem:[#allocation2 + $0x1] sm:$0x3f] %v738
        %741 = vst [vmem:[#allocation2 + $0x7] sm:$0x1] 0
        %v742 = vld [vmem:[#allocation2] sm:$0x7f]
        %v743 = vld [vmem:[%s3] sm:$0x1]
        %s744 = scalar_lea.vmem %s3, 1
        %v745 = vld [vmem:[%s744] sm:$0x1]
        %747 = vst [vmem:[#allocation1] ss:$9 sm:$0xff] %v742
        %v748 = vld [vmem:[#allocation1] sm:$0xff]
        %v750 = vld [vmem:[#allocation1 + $0x9] sm:$0xff]
        %v752 = vld [vmem:[#allocation1 + $0x12] sm:$0xff]
        %v754 = vld [vmem:[#allocation1 + $0x1b] sm:$0xff]
        %v756 = vld [vmem:[#allocation1 + $0x24] sm:$0xff]
        %v758 = vld [vmem:[#allocation1 + $0x2d] sm:$0xff]
        %v760 = vld [vmem:[#allocation1 + $0x36] sm:$0xff]
        %762 = vrot.lane.b32.xlu0 %v748, 18
        %v763 = vpop.permute.xlu0 %762
        %764 = vrot.lane.b32.xlu0 %v750, 18
        %v765 = vpop.permute.xlu0 %764
        %766 = vrot.lane.b32.xlu0 %v752, 18
        %v767 = vpop.permute.xlu0 %766
        %768 = vrot.lane.b32.xlu0 %v754, 18
        %v769 = vpop.permute.xlu0 %768
        %770 = vrot.lane.b32.xlu0 %v756, 18
        %v771 = vpop.permute.xlu0 %770
        %772 = vrot.lane.b32.xlu0 %v758, 18
        %v773 = vpop.permute.xlu0 %772
        %774 = vrot.lane.b32.xlu0 %v760, 18
        %v775 = vpop.permute.xlu0 %774
        %vm776 = vcmask 146432
        %v777 = vsel %vm776, %v763, %v765
        %v778 = vsel %vm776, %v765, %v767
        %v779 = vsel %vm776, %v767, %v769
        %v780 = vsel %vm776, %v769, %v771
        %v781 = vsel %vm776, %v771, %v773
        %v782 = vsel %vm776, %v773, %v775
        %vm783 = vcmask 15360
        %v785 = vsel %vm783, %v745, 0
        %v788 = vsel %vm724, %v777, 0
        %v791 = vsel %vm724, %v778, 0
        %v794 = vsel %vm724, %v779, 0
        %v797 = vsel %vm724, %v780, 0
        %v800 = vsel %vm724, %v781, 0
        %v803 = vsel %vm724, %v782, 0
        %805 = vmatpush.bf16.msra.mxu0 0
        %806 = vmatpush.bf16.msra.mxu0 0
        %807 = vmatpush.bf16.msra.mxu0 0
        %808 = vmatpush.bf16.msra.mxu0 0
        %809 = vmatpush.bf16.msra.mxu0 0
        %810 = vmatpush.bf16.msra.mxu0 0
        %811 = vmatpush.bf16.msra.mxu0 0
        %812 = vmatpush.bf16.msra.mxu0 %v788
        %813 = vmatmul.bf16.gmra.mxu0 %v785
        %v814 = vpop.f32.mrf.mxu0
        %v815 = vadd.f32 0.0, %v814
        %v816 = vpop.f32.mrf.mxu0
        %817 = vdwg.mxu0
        %818 = vmatpush.bf16.msra.mxu0 0
        %819 = vmatpush.bf16.msra.mxu0 0
        %820 = vmatpush.bf16.msra.mxu0 0
        %821 = vmatpush.bf16.msra.mxu0 0
        %822 = vmatpush.bf16.msra.mxu0 0
        %823 = vmatpush.bf16.msra.mxu0 0
        %824 = vmatpush.bf16.msra.mxu0 0
        %825 = vmatpush.bf16.msra.mxu0 %v791
        %826 = vmatmul.bf16.gmra.mxu0 %v785
        %v827 = vpop.f32.mrf.mxu0
        %v828 = vadd.f32 0.0, %v827
        %v829 = vpop.f32.mrf.mxu0
        %830 = vdwg.mxu0
        %831 = vmatpush.bf16.msra.mxu0 0
        %832 = vmatpush.bf16.msra.mxu0 0
        %833 = vmatpush.bf16.msra.mxu0 0
        %834 = vmatpush.bf16.msra.mxu0 0
        %835 = vmatpush.bf16.msra.mxu0 0
        %836 = vmatpush.bf16.msra.mxu0 0
        %837 = vmatpush.bf16.msra.mxu0 0
        %838 = vmatpush.bf16.msra.mxu0 %v794
        %839 = vmatmul.bf16.gmra.mxu0 %v785
        %v840 = vpop.f32.mrf.mxu0
        %v841 = vadd.f32 0.0, %v840
        %v842 = vpop.f32.mrf.mxu0
        %843 = vdwg.mxu0
        %844 = vmatpush.bf16.msra.mxu0 0
        %845 = vmatpush.bf16.msra.mxu0 0
        %846 = vmatpush.bf16.msra.mxu0 0
        %847 = vmatpush.bf16.msra.mxu0 0
        %848 = vmatpush.bf16.msra.mxu0 0
        %849 = vmatpush.bf16.msra.mxu0 0
        %850 = vmatpush.bf16.msra.mxu0 0
        %851 = vmatpush.bf16.msra.mxu0 %v797
        %852 = vmatmul.bf16.gmra.mxu0 %v785
        %v853 = vpop.f32.mrf.mxu0
        %v854 = vadd.f32 0.0, %v853
        %v855 = vpop.f32.mrf.mxu0
        %856 = vdwg.mxu0
        %857 = vmatpush.bf16.msra.mxu0 0
        %858 = vmatpush.bf16.msra.mxu0 0
        %859 = vmatpush.bf16.msra.mxu0 0
        %860 = vmatpush.bf16.msra.mxu0 0
        %861 = vmatpush.bf16.msra.mxu0 0
        %862 = vmatpush.bf16.msra.mxu0 0
        %863 = vmatpush.bf16.msra.mxu0 0
        %864 = vmatpush.bf16.msra.mxu0 %v800
        %865 = vmatmul.bf16.gmra.mxu0 %v785
        %v866 = vpop.f32.mrf.mxu0
        %v867 = vadd.f32 0.0, %v866
        %v868 = vpop.f32.mrf.mxu0
        %869 = vdwg.mxu0
        %870 = vmatpush.bf16.msra.mxu0 0
        %871 = vmatpush.bf16.msra.mxu0 0
        %872 = vmatpush.bf16.msra.mxu0 0
        %873 = vmatpush.bf16.msra.mxu0 0
        %874 = vmatpush.bf16.msra.mxu0 0
        %875 = vmatpush.bf16.msra.mxu0 0
        %876 = vmatpush.bf16.msra.mxu0 0
        %877 = vmatpush.bf16.msra.mxu0 %v803
        %878 = vmatmul.bf16.gmra.mxu0 %v785
        %v879 = vpop.f32.mrf.mxu0
        %v880 = vadd.f32 0.0, %v879
        %v881 = vpop.f32.mrf.mxu0
        %882 = vdwg.mxu0
        %883 = vst [vmem:[#allocation1] ss:$9 sm:$0xff] %v742
        %v884 = vld [vmem:[#allocation1] sm:$0xff]
        %v886 = vld [vmem:[#allocation1 + $0x9] sm:$0xff]
        %v888 = vld [vmem:[#allocation1 + $0x12] sm:$0xff]
        %v890 = vld [vmem:[#allocation1 + $0x1b] sm:$0xff]
        %v892 = vld [vmem:[#allocation1 + $0x24] sm:$0xff]
        %v894 = vld [vmem:[#allocation1 + $0x2d] sm:$0xff]
        %v896 = vld [vmem:[#allocation1 + $0x36] sm:$0xff]
        %898 = vrot.lane.b32.xlu0 %v884, 19
        %v899 = vpop.permute.xlu0 %898
        %900 = vrot.lane.b32.xlu0 %v886, 19
        %v901 = vpop.permute.xlu0 %900
        %902 = vrot.lane.b32.xlu0 %v888, 19
        %v903 = vpop.permute.xlu0 %902
        %904 = vrot.lane.b32.xlu0 %v890, 19
        %v905 = vpop.permute.xlu0 %904
        %906 = vrot.lane.b32.xlu0 %v892, 19
        %v907 = vpop.permute.xlu0 %906
        %908 = vrot.lane.b32.xlu0 %v894, 19
        %v909 = vpop.permute.xlu0 %908
        %910 = vrot.lane.b32.xlu0 %v896, 19
        %v911 = vpop.permute.xlu0 %910
        %vm912 = vcmask 154624
        %v913 = vsel %vm912, %v899, %v901
        %v914 = vsel %vm912, %v901, %v903
        %v915 = vsel %vm912, %v903, %v905
        %v916 = vsel %vm912, %v905, %v907
        %v917 = vsel %vm912, %v907, %v909
        %v918 = vsel %vm912, %v909, %v911
        %v920 = vsel %vm783, %v743, 0
        %v923 = vsel %vm724, %v913, 0
        %v926 = vsel %vm724, %v914, 0
        %v929 = vsel %vm724, %v915, 0
        %v932 = vsel %vm724, %v916, 0
        %v935 = vsel %vm724, %v917, 0
        %v938 = vsel %vm724, %v918, 0
        %940 = vmatpush.bf16.msra.mxu0 0
        %941 = vmatpush.bf16.msra.mxu0 0
        %942 = vmatpush.bf16.msra.mxu0 0
        %943 = vmatpush.bf16.msra.mxu0 0
        %944 = vmatpush.bf16.msra.mxu0 0
        %945 = vmatpush.bf16.msra.mxu0 0
        %946 = vmatpush.bf16.msra.mxu0 0
        %947 = vmatpush.bf16.msra.mxu0 %v923
        %948 = vmatmul.bf16.gmra.mxu0 %v920
        %v949 = vpop.f32.mrf.mxu0
        %v950 = vadd.f32 %v815, %v949
        %v951 = vpop.f32.mrf.mxu0
        %952 = vdwg.mxu0
        %953 = vmatpush.bf16.msra.mxu0 0
        %954 = vmatpush.bf16.msra.mxu0 0
        %955 = vmatpush.bf16.msra.mxu0 0
        %956 = vmatpush.bf16.msra.mxu0 0
        %957 = vmatpush.bf16.msra.mxu0 0
        %958 = vmatpush.bf16.msra.mxu0 0
        %959 = vmatpush.bf16.msra.mxu0 0
        %960 = vmatpush.bf16.msra.mxu0 %v926
        %961 = vmatmul.bf16.gmra.mxu0 %v920
        %v962 = vpop.f32.mrf.mxu0
        %v963 = vadd.f32 %v828, %v962
        %v964 = vpop.f32.mrf.mxu0
        %965 = vdwg.mxu0
        %966 = vmatpush.bf16.msra.mxu0 0
        %967 = vmatpush.bf16.msra.mxu0 0
        %968 = vmatpush.bf16.msra.mxu0 0
        %969 = vmatpush.bf16.msra.mxu0 0
        %970 = vmatpush.bf16.msra.mxu0 0
        %971 = vmatpush.bf16.msra.mxu0 0
        %972 = vmatpush.bf16.msra.mxu0 0
        %973 = vmatpush.bf16.msra.mxu0 %v929
        %974 = vmatmul.bf16.gmra.mxu0 %v920
        %v975 = vpop.f32.mrf.mxu0
        %v976 = vadd.f32 %v841, %v975
        %v977 = vpop.f32.mrf.mxu0
        %978 = vdwg.mxu0
        %979 = vmatpush.bf16.msra.mxu0 0
        %980 = vmatpush.bf16.msra.mxu0 0
        %981 = vmatpush.bf16.msra.mxu0 0
        %982 = vmatpush.bf16.msra.mxu0 0
        %983 = vmatpush.bf16.msra.mxu0 0
        %984 = vmatpush.bf16.msra.mxu0 0
        %985 = vmatpush.bf16.msra.mxu0 0
        %986 = vmatpush.bf16.msra.mxu0 %v932
        %987 = vmatmul.bf16.gmra.mxu0 %v920
        %v988 = vpop.f32.mrf.mxu0
        %v989 = vadd.f32 %v854, %v988
        %v990 = vpop.f32.mrf.mxu0
        %991 = vdwg.mxu0
        %992 = vmatpush.bf16.msra.mxu0 0
        %993 = vmatpush.bf16.msra.mxu0 0
        %994 = vmatpush.bf16.msra.mxu0 0
        %995 = vmatpush.bf16.msra.mxu0 0
        %996 = vmatpush.bf16.msra.mxu0 0
        %997 = vmatpush.bf16.msra.mxu0 0
        %998 = vmatpush.bf16.msra.mxu0 0
        %999 = vmatpush.bf16.msra.mxu0 %v935
        %1000 = vmatmul.bf16.gmra.mxu0 %v920
        %v1001 = vpop.f32.mrf.mxu0
        %v1002 = vadd.f32 %v867, %v1001
        %v1003 = vpop.f32.mrf.mxu0
        %1004 = vdwg.mxu0
        %1005 = vmatpush.bf16.msra.mxu0 0
        %1006 = vmatpush.bf16.msra.mxu0 0
        %1007 = vmatpush.bf16.msra.mxu0 0
        %1008 = vmatpush.bf16.msra.mxu0 0
        %1009 = vmatpush.bf16.msra.mxu0 0
        %1010 = vmatpush.bf16.msra.mxu0 0
        %1011 = vmatpush.bf16.msra.mxu0 0
        %1012 = vmatpush.bf16.msra.mxu0 %v938
        %1013 = vmatmul.bf16.gmra.mxu0 %v920
        %v1014 = vpop.f32.mrf.mxu0
        %v1015 = vadd.f32 %v880, %v1014
        %v1016 = vpop.f32.mrf.mxu0
        %1017 = vdwg.mxu0
        %v1018 = vld [vmem:[#allocation2] sm:$0x7f]
        %s1019 = scalar_lea.vmem %s3, 2
        %v1020 = vld [vmem:[%s1019] sm:$0x1]
        %1022 = vst [vmem:[#allocation1] ss:$9 sm:$0xff] %v1018
        %v1023 = vld [vmem:[#allocation1] sm:$0xff]
        %v1025 = vld [vmem:[#allocation1 + $0x9] sm:$0xff]
        %v1027 = vld [vmem:[#allocation1 + $0x12] sm:$0xff]
        %v1029 = vld [vmem:[#allocation1 + $0x1b] sm:$0xff]
        %v1031 = vld [vmem:[#allocation1 + $0x24] sm:$0xff]
        %v1033 = vld [vmem:[#allocation1 + $0x2d] sm:$0xff]
        %v1035 = vld [vmem:[#allocation1 + $0x36] sm:$0xff]
        %1037 = vrot.lane.b32.xlu0 %v1023, 17
        %v1038 = vpop.permute.xlu0 %1037
        %1039 = vrot.lane.b32.xlu0 %v1025, 17
        %v1040 = vpop.permute.xlu0 %1039
        %1041 = vrot.lane.b32.xlu0 %v1027, 17
        %v1042 = vpop.permute.xlu0 %1041
        %1043 = vrot.lane.b32.xlu0 %v1029, 17
        %v1044 = vpop.permute.xlu0 %1043
        %1045 = vrot.lane.b32.xlu0 %v1031, 17
        %v1046 = vpop.permute.xlu0 %1045
        %1047 = vrot.lane.b32.xlu0 %v1033, 17
        %v1048 = vpop.permute.xlu0 %1047
        %1049 = vrot.lane.b32.xlu0 %v1035, 17
        %v1050 = vpop.permute.xlu0 %1049
        %vm1051 = vcmask 138240
        %v1052 = vsel %vm1051, %v1038, %v1040
        %v1053 = vsel %vm1051, %v1040, %v1042
        %v1054 = vsel %vm1051, %v1042, %v1044
        %v1055 = vsel %vm1051, %v1044, %v1046
        %v1056 = vsel %vm1051, %v1046, %v1048
        %v1057 = vsel %vm1051, %v1048, %v1050
        %v1059 = vsel %vm783, %v1020, 0
        %v1062 = vsel %vm724, %v1052, 0
        %v1065 = vsel %vm724, %v1053, 0
        %v1068 = vsel %vm724, %v1054, 0
        %v1071 = vsel %vm724, %v1055, 0
        %v1074 = vsel %vm724, %v1056, 0
        %v1077 = vsel %vm724, %v1057, 0
        %1079 = vmatpush.bf16.msra.mxu0 0
        %1080 = vmatpush.bf16.msra.mxu0 0
        %1081 = vmatpush.bf16.msra.mxu0 0
        %1082 = vmatpush.bf16.msra.mxu0 0
        %1083 = vmatpush.bf16.msra.mxu0 0
        %1084 = vmatpush.bf16.msra.mxu0 0
        %1085 = vmatpush.bf16.msra.mxu0 0
        %1086 = vmatpush.bf16.msra.mxu0 %v1062
        %1087 = vmatmul.bf16.gmra.mxu0 %v1059
        %v1088 = vpop.f32.mrf.mxu0
        %v1089 = vadd.f32 0.0, %v1088
        %v1090 = vpop.f32.mrf.mxu0
        %1091 = vdwg.mxu0
        %1092 = vmatpush.bf16.msra.mxu0 0
        %1093 = vmatpush.bf16.msra.mxu0 0
        %1094 = vmatpush.bf16.msra.mxu0 0
        %1095 = vmatpush.bf16.msra.mxu0 0
        %1096 = vmatpush.bf16.msra.mxu0 0
        %1097 = vmatpush.bf16.msra.mxu0 0
        %1098 = vmatpush.bf16.msra.mxu0 0
        %1099 = vmatpush.bf16.msra.mxu0 %v1065
        %1100 = vmatmul.bf16.gmra.mxu0 %v1059
        %v1101 = vpop.f32.mrf.mxu0
        %v1102 = vadd.f32 0.0, %v1101
        %v1103 = vpop.f32.mrf.mxu0
        %1104 = vdwg.mxu0
        %1105 = vmatpush.bf16.msra.mxu0 0
        %1106 = vmatpush.bf16.msra.mxu0 0
        %1107 = vmatpush.bf16.msra.mxu0 0
        %1108 = vmatpush.bf16.msra.mxu0 0
        %1109 = vmatpush.bf16.msra.mxu0 0
        %1110 = vmatpush.bf16.msra.mxu0 0
        %1111 = vmatpush.bf16.msra.mxu0 0
        %1112 = vmatpush.bf16.msra.mxu0 %v1068
        %1113 = vmatmul.bf16.gmra.mxu0 %v1059
        %v1114 = vpop.f32.mrf.mxu0
        %v1115 = vadd.f32 0.0, %v1114
        %v1116 = vpop.f32.mrf.mxu0
        %1117 = vdwg.mxu0
        %1118 = vmatpush.bf16.msra.mxu0 0
        %1119 = vmatpush.bf16.msra.mxu0 0
        %1120 = vmatpush.bf16.msra.mxu0 0
        %1121 = vmatpush.bf16.msra.mxu0 0
        %1122 = vmatpush.bf16.msra.mxu0 0
        %1123 = vmatpush.bf16.msra.mxu0 0
        %1124 = vmatpush.bf16.msra.mxu0 0
        %1125 = vmatpush.bf16.msra.mxu0 %v1071
        %1126 = vmatmul.bf16.gmra.mxu0 %v1059
        %v1127 = vpop.f32.mrf.mxu0
        %v1128 = vadd.f32 0.0, %v1127
        %v1129 = vpop.f32.mrf.mxu0
        %1130 = vdwg.mxu0
        %1131 = vmatpush.bf16.msra.mxu0 0
        %1132 = vmatpush.bf16.msra.mxu0 0
        %1133 = vmatpush.bf16.msra.mxu0 0
        %1134 = vmatpush.bf16.msra.mxu0 0
        %1135 = vmatpush.bf16.msra.mxu0 0
        %1136 = vmatpush.bf16.msra.mxu0 0
        %1137 = vmatpush.bf16.msra.mxu0 0
        %1138 = vmatpush.bf16.msra.mxu0 %v1074
        %1139 = vmatmul.bf16.gmra.mxu0 %v1059
        %v1140 = vpop.f32.mrf.mxu0
        %v1141 = vadd.f32 0.0, %v1140
        %v1142 = vpop.f32.mrf.mxu0
        %1143 = vdwg.mxu0
        %1144 = vmatpush.bf16.msra.mxu0 0
        %1145 = vmatpush.bf16.msra.mxu0 0
        %1146 = vmatpush.bf16.msra.mxu0 0
        %1147 = vmatpush.bf16.msra.mxu0 0
        %1148 = vmatpush.bf16.msra.mxu0 0
        %1149 = vmatpush.bf16.msra.mxu0 0
        %1150 = vmatpush.bf16.msra.mxu0 0
        %1151 = vmatpush.bf16.msra.mxu0 %v1077
        %1152 = vmatmul.bf16.gmra.mxu0 %v1059
        %v1153 = vpop.f32.mrf.mxu0
        %v1154 = vadd.f32 0.0, %v1153
        %v1155 = vpop.f32.mrf.mxu0
        %1156 = vdwg.mxu0
        %v1157 = vadd.f32 %v950, %v1089
        %v1158 = vadd.f32 %v963, %v1102
        %v1159 = vadd.f32 %v976, %v1115
        %v1160 = vadd.f32 %v989, %v1128
        %v1161 = vadd.f32 %v1002, %v1141
        %v1162 = vadd.f32 %v1015, %v1154
        %v1163 = vld [vmem:[#allocation2] sm:$0x7f]
        %s1164 = scalar_lea.vmem %s3, 3
        %v1165 = vld [vmem:[%s1164] sm:$0x1]
        %1167 = vst [vmem:[#allocation1] ss:$9 sm:$0xff] %v1163
        %v1168 = vld [vmem:[#allocation1] sm:$0xff]
        %v1170 = vld [vmem:[#allocation1 + $0x9] sm:$0xff]
        %v1172 = vld [vmem:[#allocation1 + $0x12] sm:$0xff]
        %v1174 = vld [vmem:[#allocation1 + $0x1b] sm:$0xff]
        %v1176 = vld [vmem:[#allocation1 + $0x24] sm:$0xff]
        %v1178 = vld [vmem:[#allocation1 + $0x2d] sm:$0xff]
        %v1180 = vld [vmem:[#allocation1 + $0x36] sm:$0xff]
        %1182 = vrot.lane.b32.xlu0 %v1168, 1
        %v1183 = vpop.permute.xlu0 %1182
        %1184 = vrot.lane.b32.xlu0 %v1170, 1
        %v1185 = vpop.permute.xlu0 %1184
        %1186 = vrot.lane.b32.xlu0 %v1172, 1
        %v1187 = vpop.permute.xlu0 %1186
        %1188 = vrot.lane.b32.xlu0 %v1174, 1
        %v1189 = vpop.permute.xlu0 %1188
        %1190 = vrot.lane.b32.xlu0 %v1176, 1
        %v1191 = vpop.permute.xlu0 %1190
        %1192 = vrot.lane.b32.xlu0 %v1178, 1
        %v1193 = vpop.permute.xlu0 %1192
        %1194 = vrot.lane.b32.xlu0 %v1180, 1
        %v1195 = vpop.permute.xlu0 %1194
        %vm1196 = vcmask 7168
        %v1197 = vsel %vm1196, %v1183, %v1185
        %v1198 = vsel %vm1196, %v1185, %v1187
        %v1199 = vsel %vm1196, %v1187, %v1189
        %v1200 = vsel %vm1196, %v1189, %v1191
        %v1201 = vsel %vm1196, %v1191, %v1193
        %v1202 = vsel %vm1196, %v1193, %v1195
        %v1204 = vsel %vm783, %v1165, 0
        %v1207 = vsel %vm724, %v1197, 0
        %v1210 = vsel %vm724, %v1198, 0
        %v1213 = vsel %vm724, %v1199, 0
        %v1216 = vsel %vm724, %v1200, 0
        %v1219 = vsel %vm724, %v1201, 0
        %v1222 = vsel %vm724, %v1202, 0
        %1224 = vmatpush.bf16.msra.mxu0 0
        %1225 = vmatpush.bf16.msra.mxu0 0
        %1226 = vmatpush.bf16.msra.mxu0 0
        %1227 = vmatpush.bf16.msra.mxu0 0
        %1228 = vmatpush.bf16.msra.mxu0 0
        %1229 = vmatpush.bf16.msra.mxu0 0
        %1230 = vmatpush.bf16.msra.mxu0 0
        %1231 = vmatpush.bf16.msra.mxu0 %v1207
        %1232 = vmatmul.bf16.gmra.mxu0 %v1204
        %v1233 = vpop.f32.mrf.mxu0
        %v1234 = vadd.f32 0.0, %v1233
        %v1235 = vpop.f32.mrf.mxu0
        %1236 = vdwg.mxu0
        %1237 = vmatpush.bf16.msra.mxu0 0
        %1238 = vmatpush.bf16.msra.mxu0 0
        %1239 = vmatpush.bf16.msra.mxu0 0
        %1240 = vmatpush.bf16.msra.mxu0 0
        %1241 = vmatpush.bf16.msra.mxu0 0
        %1242 = vmatpush.bf16.msra.mxu0 0
        %1243 = vmatpush.bf16.msra.mxu0 0
        %1244 = vmatpush.bf16.msra.mxu0 %v1210
        %1245 = vmatmul.bf16.gmra.mxu0 %v1204
        %v1246 = vpop.f32.mrf.mxu0
        %v1247 = vadd.f32 0.0, %v1246
        %v1248 = vpop.f32.mrf.mxu0
        %1249 = vdwg.mxu0
        %1250 = vmatpush.bf16.msra.mxu0 0
        %1251 = vmatpush.bf16.msra.mxu0 0
        %1252 = vmatpush.bf16.msra.mxu0 0
        %1253 = vmatpush.bf16.msra.mxu0 0
        %1254 = vmatpush.bf16.msra.mxu0 0
        %1255 = vmatpush.bf16.msra.mxu0 0
        %1256 = vmatpush.bf16.msra.mxu0 0
        %1257 = vmatpush.bf16.msra.mxu0 %v1213
        %1258 = vmatmul.bf16.gmra.mxu0 %v1204
        %v1259 = vpop.f32.mrf.mxu0
        %v1260 = vadd.f32 0.0, %v1259
        %v1261 = vpop.f32.mrf.mxu0
        %1262 = vdwg.mxu0
        %1263 = vmatpush.bf16.msra.mxu0 0
        %1264 = vmatpush.bf16.msra.mxu0 0
        %1265 = vmatpush.bf16.msra.mxu0 0
        %1266 = vmatpush.bf16.msra.mxu0 0
        %1267 = vmatpush.bf16.msra.mxu0 0
        %1268 = vmatpush.bf16.msra.mxu0 0
        %1269 = vmatpush.bf16.msra.mxu0 0
        %1270 = vmatpush.bf16.msra.mxu0 %v1216
        %1271 = vmatmul.bf16.gmra.mxu0 %v1204
        %v1272 = vpop.f32.mrf.mxu0
        %v1273 = vadd.f32 0.0, %v1272
        %v1274 = vpop.f32.mrf.mxu0
        %1275 = vdwg.mxu0
        %1276 = vmatpush.bf16.msra.mxu0 0
        %1277 = vmatpush.bf16.msra.mxu0 0
        %1278 = vmatpush.bf16.msra.mxu0 0
        %1279 = vmatpush.bf16.msra.mxu0 0
        %1280 = vmatpush.bf16.msra.mxu0 0
        %1281 = vmatpush.bf16.msra.mxu0 0
        %1282 = vmatpush.bf16.msra.mxu0 0
        %1283 = vmatpush.bf16.msra.mxu0 %v1219
        %1284 = vmatmul.bf16.gmra.mxu0 %v1204
        %v1285 = vpop.f32.mrf.mxu0
        %v1286 = vadd.f32 0.0, %v1285
        %v1287 = vpop.f32.mrf.mxu0
        %1288 = vdwg.mxu0
        %1289 = vmatpush.bf16.msra.mxu0 0
        %1290 = vmatpush.bf16.msra.mxu0 0
        %1291 = vmatpush.bf16.msra.mxu0 0
        %1292 = vmatpush.bf16.msra.mxu0 0
        %1293 = vmatpush.bf16.msra.mxu0 0
        %1294 = vmatpush.bf16.msra.mxu0 0
        %1295 = vmatpush.bf16.msra.mxu0 0
        %1296 = vmatpush.bf16.msra.mxu0 %v1222
        %1297 = vmatmul.bf16.gmra.mxu0 %v1204
        %v1298 = vpop.f32.mrf.mxu0
        %v1299 = vadd.f32 0.0, %v1298
        %v1300 = vpop.f32.mrf.mxu0
        %1301 = vdwg.mxu0
        %v1302 = vadd.f32 %v1157, %v1234
        %v1303 = vadd.f32 %v1158, %v1247
        %v1304 = vadd.f32 %v1159, %v1260
        %v1305 = vadd.f32 %v1160, %v1273
        %v1306 = vadd.f32 %v1161, %v1286
        %v1307 = vadd.f32 %v1162, %v1299
        %v1308 = vld [vmem:[#allocation2 + $0x1] sm:$0x3f]
        %s1309 = scalar_lea.vmem %s3, 4
        %v1310 = vld [vmem:[%s1309] sm:$0x1]
        %1312 = vst [vmem:[#allocation1] ss:$9 sm:$0xff] %v1308
        %v1313 = vld [vmem:[#allocation1] sm:$0xff]
        %v1314 = vld [vmem:[#allocation1 + $0x9] sm:$0xff]
        %v1315 = vld [vmem:[#allocation1 + $0x12] sm:$0xff]
        %v1316 = vld [vmem:[#allocation1 + $0x1b] sm:$0xff]
        %v1317 = vld [vmem:[#allocation1 + $0x24] sm:$0xff]
        %v1318 = vld [vmem:[#allocation1 + $0x2d] sm:$0xff]
        %v1320 = vsel %vm783, %v1310, 0
        %v1322 = vsel %vm724, %v1313, 0
        %v1324 = vsel %vm724, %v1314, 0
        %v1326 = vsel %vm724, %v1315, 0
        %v1328 = vsel %vm724, %v1316, 0
        %v1330 = vsel %vm724, %v1317, 0
        %v1332 = vsel %vm724, %v1318, 0
        %1334 = vmatpush.bf16.msra.mxu0 0
        %1335 = vmatpush.bf16.msra.mxu0 0
        %1336 = vmatpush.bf16.msra.mxu0 0
        %1337 = vmatpush.bf16.msra.mxu0 0
        %1338 = vmatpush.bf16.msra.mxu0 0
        %1339 = vmatpush.bf16.msra.mxu0 0
        %1340 = vmatpush.bf16.msra.mxu0 0
        %1341 = vmatpush.bf16.msra.mxu0 %v1322
        %1342 = vmatmul.bf16.gmra.mxu0 %v1320
        %v1343 = vpop.f32.mrf.mxu0
        %v1344 = vadd.f32 0.0, %v1343
        %v1345 = vpop.f32.mrf.mxu0
        %1346 = vdwg.mxu0
        %1347 = vmatpush.bf16.msra.mxu0 0
        %1348 = vmatpush.bf16.msra.mxu0 0
        %1349 = vmatpush.bf16.msra.mxu0 0
        %1350 = vmatpush.bf16.msra.mxu0 0
        %1351 = vmatpush.bf16.msra.mxu0 0
        %1352 = vmatpush.bf16.msra.mxu0 0
        %1353 = vmatpush.bf16.msra.mxu0 0
        %1354 = vmatpush.bf16.msra.mxu0 %v1324
        %1355 = vmatmul.bf16.gmra.mxu0 %v1320
        %v1356 = vpop.f32.mrf.mxu0
        %v1357 = vadd.f32 0.0, %v1356
        %v1358 = vpop.f32.mrf.mxu0
        %1359 = vdwg.mxu0
        %1360 = vmatpush.bf16.msra.mxu0 0
        %1361 = vmatpush.bf16.msra.mxu0 0
        %1362 = vmatpush.bf16.msra.mxu0 0
        %1363 = vmatpush.bf16.msra.mxu0 0
        %1364 = vmatpush.bf16.msra.mxu0 0
        %1365 = vmatpush.bf16.msra.mxu0 0
        %1366 = vmatpush.bf16.msra.mxu0 0
        %1367 = vmatpush.bf16.msra.mxu0 %v1326
        %1368 = vmatmul.bf16.gmra.mxu0 %v1320
        %v1369 = vpop.f32.mrf.mxu0
        %v1370 = vadd.f32 0.0, %v1369
        %v1371 = vpop.f32.mrf.mxu0
        %1372 = vdwg.mxu0
        %1373 = vmatpush.bf16.msra.mxu0 0
        %1374 = vmatpush.bf16.msra.mxu0 0
        %1375 = vmatpush.bf16.msra.mxu0 0
        %1376 = vmatpush.bf16.msra.mxu0 0
        %1377 = vmatpush.bf16.msra.mxu0 0
        %1378 = vmatpush.bf16.msra.mxu0 0
        %1379 = vmatpush.bf16.msra.mxu0 0
        %1380 = vmatpush.bf16.msra.mxu0 %v1328
        %1381 = vmatmul.bf16.gmra.mxu0 %v1320
        %v1382 = vpop.f32.mrf.mxu0
        %v1383 = vadd.f32 0.0, %v1382
        %v1384 = vpop.f32.mrf.mxu0
        %1385 = vdwg.mxu0
        %1386 = vmatpush.bf16.msra.mxu0 0
        %1387 = vmatpush.bf16.msra.mxu0 0
        %1388 = vmatpush.bf16.msra.mxu0 0
        %1389 = vmatpush.bf16.msra.mxu0 0
        %1390 = vmatpush.bf16.msra.mxu0 0
        %1391 = vmatpush.bf16.msra.mxu0 0
        %1392 = vmatpush.bf16.msra.mxu0 0
        %1393 = vmatpush.bf16.msra.mxu0 %v1330
        %1394 = vmatmul.bf16.gmra.mxu0 %v1320
        %v1395 = vpop.f32.mrf.mxu0
        %v1396 = vadd.f32 0.0, %v1395
        %v1397 = vpop.f32.mrf.mxu0
        %1398 = vdwg.mxu0
        %1399 = vmatpush.bf16.msra.mxu0 0
        %1400 = vmatpush.bf16.msra.mxu0 0
        %1401 = vmatpush.bf16.msra.mxu0 0
        %1402 = vmatpush.bf16.msra.mxu0 0
        %1403 = vmatpush.bf16.msra.mxu0 0
        %1404 = vmatpush.bf16.msra.mxu0 0
        %1405 = vmatpush.bf16.msra.mxu0 0
        %1406 = vmatpush.bf16.msra.mxu0 %v1332
        %1407 = vmatmul.bf16.gmra.mxu0 %v1320
        %v1408 = vpop.f32.mrf.mxu0
        %v1409 = vadd.f32 0.0, %v1408
        %v1410 = vpop.f32.mrf.mxu0
        %1411 = vdwg.mxu0
        %v1412 = vadd.f32 %v1302, %v1344
        %v1413 = vadd.f32 %v1303, %v1357
        %v1414 = vadd.f32 %v1304, %v1370
        %v1415 = vadd.f32 %v1305, %v1383
        %v1416 = vadd.f32 %v1306, %v1396
        %v1417 = vadd.f32 %v1307, %v1409
        %v1418 = vld [vmem:[#allocation2 + $0x1] sm:$0x7f]
        %s1419 = scalar_lea.vmem %s3, 5
        %v1420 = vld [vmem:[%s1419] sm:$0x1]
        %1422 = vst [vmem:[#allocation1] ss:$9 sm:$0xff] %v1418
        %v1423 = vld [vmem:[#allocation1] sm:$0xff]
        %v1425 = vld [vmem:[#allocation1 + $0x9] sm:$0xff]
        %v1427 = vld [vmem:[#allocation1 + $0x12] sm:$0xff]
        %v1429 = vld [vmem:[#allocation1 + $0x1b] sm:$0xff]
        %v1431 = vld [vmem:[#allocation1 + $0x24] sm:$0xff]
        %v1433 = vld [vmem:[#allocation1 + $0x2d] sm:$0xff]
        %v1435 = vld [vmem:[#allocation1 + $0x36] sm:$0xff]
        %1437 = vrot.lane.b32.xlu0 %v1423, 127
        %v1438 = vpop.permute.xlu0 %1437
        %1439 = vrot.lane.b32.xlu0 %v1425, 127
        %v1440 = vpop.permute.xlu0 %1439
        %1441 = vrot.lane.b32.xlu0 %v1427, 127
        %v1442 = vpop.permute.xlu0 %1441
        %1443 = vrot.lane.b32.xlu0 %v1429, 127
        %v1444 = vpop.permute.xlu0 %1443
        %1445 = vrot.lane.b32.xlu0 %v1431, 127
        %v1446 = vpop.permute.xlu0 %1445
        %1447 = vrot.lane.b32.xlu0 %v1433, 127
        %v1448 = vpop.permute.xlu0 %1447
        %1449 = vrot.lane.b32.xlu0 %v1435, 127
        %v1450 = vpop.permute.xlu0 %1449
        %vm1451 = vcmask 1039360
        %v1452 = vsel %vm1451, %v1438, %v1440
        %v1453 = vsel %vm1451, %v1440, %v1442
        %v1454 = vsel %vm1451, %v1442, %v1444
        %v1455 = vsel %vm1451, %v1444, %v1446
        %v1456 = vsel %vm1451, %v1446, %v1448
        %v1457 = vsel %vm1451, %v1448, %v1450
        %v1459 = vsel %vm783, %v1420, 0
        %v1462 = vsel %vm724, %v1452, 0
        %v1465 = vsel %vm724, %v1453, 0
        %v1468 = vsel %vm724, %v1454, 0
        %v1471 = vsel %vm724, %v1455, 0
        %v1474 = vsel %vm724, %v1456, 0
        %v1477 = vsel %vm724, %v1457, 0
        %1479 = vmatpush.bf16.msra.mxu0 0
        %1480 = vmatpush.bf16.msra.mxu0 0
        %1481 = vmatpush.bf16.msra.mxu0 0
        %1482 = vmatpush.bf16.msra.mxu0 0
        %1483 = vmatpush.bf16.msra.mxu0 0
        %1484 = vmatpush.bf16.msra.mxu0 0
        %1485 = vmatpush.bf16.msra.mxu0 0
        %1486 = vmatpush.bf16.msra.mxu0 %v1462
        %1487 = vmatmul.bf16.gmra.mxu0 %v1459
        %v1488 = vpop.f32.mrf.mxu0
        %v1489 = vadd.f32 0.0, %v1488
        %v1490 = vpop.f32.mrf.mxu0
        %1491 = vdwg.mxu0
        %1492 = vmatpush.bf16.msra.mxu0 0
        %1493 = vmatpush.bf16.msra.mxu0 0
        %1494 = vmatpush.bf16.msra.mxu0 0
        %1495 = vmatpush.bf16.msra.mxu0 0
        %1496 = vmatpush.bf16.msra.mxu0 0
        %1497 = vmatpush.bf16.msra.mxu0 0
        %1498 = vmatpush.bf16.msra.mxu0 0
        %1499 = vmatpush.bf16.msra.mxu0 %v1465
        %1500 = vmatmul.bf16.gmra.mxu0 %v1459
        %v1501 = vpop.f32.mrf.mxu0
        %v1502 = vadd.f32 0.0, %v1501
        %v1503 = vpop.f32.mrf.mxu0
        %1504 = vdwg.mxu0
        %1505 = vmatpush.bf16.msra.mxu0 0
        %1506 = vmatpush.bf16.msra.mxu0 0
        %1507 = vmatpush.bf16.msra.mxu0 0
        %1508 = vmatpush.bf16.msra.mxu0 0
        %1509 = vmatpush.bf16.msra.mxu0 0
        %1510 = vmatpush.bf16.msra.mxu0 0
        %1511 = vmatpush.bf16.msra.mxu0 0
        %1512 = vmatpush.bf16.msra.mxu0 %v1468
        %1513 = vmatmul.bf16.gmra.mxu0 %v1459
        %v1514 = vpop.f32.mrf.mxu0
        %v1515 = vadd.f32 0.0, %v1514
        %v1516 = vpop.f32.mrf.mxu0
        %1517 = vdwg.mxu0
        %1518 = vmatpush.bf16.msra.mxu0 0
        %1519 = vmatpush.bf16.msra.mxu0 0
        %1520 = vmatpush.bf16.msra.mxu0 0
        %1521 = vmatpush.bf16.msra.mxu0 0
        %1522 = vmatpush.bf16.msra.mxu0 0
        %1523 = vmatpush.bf16.msra.mxu0 0
        %1524 = vmatpush.bf16.msra.mxu0 0
        %1525 = vmatpush.bf16.msra.mxu0 %v1471
        %1526 = vmatmul.bf16.gmra.mxu0 %v1459
        %v1527 = vpop.f32.mrf.mxu0
        %v1528 = vadd.f32 0.0, %v1527
        %v1529 = vpop.f32.mrf.mxu0
        %1530 = vdwg.mxu0
        %1531 = vmatpush.bf16.msra.mxu0 0
        %1532 = vmatpush.bf16.msra.mxu0 0
        %1533 = vmatpush.bf16.msra.mxu0 0
        %1534 = vmatpush.bf16.msra.mxu0 0
        %1535 = vmatpush.bf16.msra.mxu0 0
        %1536 = vmatpush.bf16.msra.mxu0 0
        %1537 = vmatpush.bf16.msra.mxu0 0
        %1538 = vmatpush.bf16.msra.mxu0 %v1474
        %1539 = vmatmul.bf16.gmra.mxu0 %v1459
        %v1540 = vpop.f32.mrf.mxu0
        %v1541 = vadd.f32 0.0, %v1540
        %v1542 = vpop.f32.mrf.mxu0
        %1543 = vdwg.mxu0
        %1544 = vmatpush.bf16.msra.mxu0 0
        %1545 = vmatpush.bf16.msra.mxu0 0
        %1546 = vmatpush.bf16.msra.mxu0 0
        %1547 = vmatpush.bf16.msra.mxu0 0
        %1548 = vmatpush.bf16.msra.mxu0 0
        %1549 = vmatpush.bf16.msra.mxu0 0
        %1550 = vmatpush.bf16.msra.mxu0 0
        %1551 = vmatpush.bf16.msra.mxu0 %v1477
        %1552 = vmatmul.bf16.gmra.mxu0 %v1459
        %v1553 = vpop.f32.mrf.mxu0
        %v1554 = vadd.f32 0.0, %v1553
        %v1555 = vpop.f32.mrf.mxu0
        %1556 = vdwg.mxu0
        %v1557 = vadd.f32 %v1412, %v1489
        %v1558 = vadd.f32 %v1413, %v1502
        %v1559 = vadd.f32 %v1414, %v1515
        %v1560 = vadd.f32 %v1415, %v1528
        %v1561 = vadd.f32 %v1416, %v1541
        %v1562 = vadd.f32 %v1417, %v1554
        %v1563 = vld [vmem:[#allocation2 + $0x1] sm:$0x7f]
        %s1564 = scalar_lea.vmem %s3, 6
        %v1565 = vld [vmem:[%s1564] sm:$0x1]
        %1567 = vst [vmem:[#allocation1] ss:$9 sm:$0xff] %v1563
        %v1568 = vld [vmem:[#allocation1] sm:$0xff]
        %v1570 = vld [vmem:[#allocation1 + $0x9] sm:$0xff]
        %v1572 = vld [vmem:[#allocation1 + $0x12] sm:$0xff]
        %v1574 = vld [vmem:[#allocation1 + $0x1b] sm:$0xff]
        %v1576 = vld [vmem:[#allocation1 + $0x24] sm:$0xff]
        %v1578 = vld [vmem:[#allocation1 + $0x2d] sm:$0xff]
        %v1580 = vld [vmem:[#allocation1 + $0x36] sm:$0xff]
        %1582 = vrot.lane.b32.xlu0 %v1568, 111
        %v1583 = vpop.permute.xlu0 %1582
        %1584 = vrot.lane.b32.xlu0 %v1570, 111
        %v1585 = vpop.permute.xlu0 %1584
        %1586 = vrot.lane.b32.xlu0 %v1572, 111
        %v1587 = vpop.permute.xlu0 %1586
        %1588 = vrot.lane.b32.xlu0 %v1574, 111
        %v1589 = vpop.permute.xlu0 %1588
        %1590 = vrot.lane.b32.xlu0 %v1576, 111
        %v1591 = vpop.permute.xlu0 %1590
        %1592 = vrot.lane.b32.xlu0 %v1578, 111
        %v1593 = vpop.permute.xlu0 %1592
        %1594 = vrot.lane.b32.xlu0 %v1580, 111
        %v1595 = vpop.permute.xlu0 %1594
        %vm1596 = vcmask 908288
        %v1597 = vsel %vm1596, %v1583, %v1585
        %v1598 = vsel %vm1596, %v1585, %v1587
        %v1599 = vsel %vm1596, %v1587, %v1589
        %v1600 = vsel %vm1596, %v1589, %v1591
        %v1601 = vsel %vm1596, %v1591, %v1593
        %v1602 = vsel %vm1596, %v1593, %v1595
        %v1604 = vsel %vm783, %v1565, 0
        %v1607 = vsel %vm724, %v1597, 0
        %v1610 = vsel %vm724, %v1598, 0
        %v1613 = vsel %vm724, %v1599, 0
        %v1616 = vsel %vm724, %v1600, 0
        %v1619 = vsel %vm724, %v1601, 0
        %v1622 = vsel %vm724, %v1602, 0
        %1624 = vmatpush.bf16.msra.mxu0 0
        %1625 = vmatpush.bf16.msra.mxu0 0
        %1626 = vmatpush.bf16.msra.mxu0 0
        %1627 = vmatpush.bf16.msra.mxu0 0
        %1628 = vmatpush.bf16.msra.mxu0 0
        %1629 = vmatpush.bf16.msra.mxu0 0
        %1630 = vmatpush.bf16.msra.mxu0 0
        %1631 = vmatpush.bf16.msra.mxu0 %v1607
        %1632 = vmatmul.bf16.gmra.mxu0 %v1604
        %v1633 = vpop.f32.mrf.mxu0
        %v1634 = vadd.f32 0.0, %v1633
        %v1635 = vpop.f32.mrf.mxu0
        %1636 = vdwg.mxu0
        %1637 = vmatpush.bf16.msra.mxu0 0
        %1638 = vmatpush.bf16.msra.mxu0 0
        %1639 = vmatpush.bf16.msra.mxu0 0
        %1640 = vmatpush.bf16.msra.mxu0 0
        %1641 = vmatpush.bf16.msra.mxu0 0
        %1642 = vmatpush.bf16.msra.mxu0 0
        %1643 = vmatpush.bf16.msra.mxu0 0
        %1644 = vmatpush.bf16.msra.mxu0 %v1610
        %1645 = vmatmul.bf16.gmra.mxu0 %v1604
        %v1646 = vpop.f32.mrf.mxu0
        %v1647 = vadd.f32 0.0, %v1646
        %v1648 = vpop.f32.mrf.mxu0
        %1649 = vdwg.mxu0
        %1650 = vmatpush.bf16.msra.mxu0 0
        %1651 = vmatpush.bf16.msra.mxu0 0
        %1652 = vmatpush.bf16.msra.mxu0 0
        %1653 = vmatpush.bf16.msra.mxu0 0
        %1654 = vmatpush.bf16.msra.mxu0 0
        %1655 = vmatpush.bf16.msra.mxu0 0
        %1656 = vmatpush.bf16.msra.mxu0 0
        %1657 = vmatpush.bf16.msra.mxu0 %v1613
        %1658 = vmatmul.bf16.gmra.mxu0 %v1604
        %v1659 = vpop.f32.mrf.mxu0
        %v1660 = vadd.f32 0.0, %v1659
        %v1661 = vpop.f32.mrf.mxu0
        %1662 = vdwg.mxu0
        %1663 = vmatpush.bf16.msra.mxu0 0
        %1664 = vmatpush.bf16.msra.mxu0 0
        %1665 = vmatpush.bf16.msra.mxu0 0
        %1666 = vmatpush.bf16.msra.mxu0 0
        %1667 = vmatpush.bf16.msra.mxu0 0
        %1668 = vmatpush.bf16.msra.mxu0 0
        %1669 = vmatpush.bf16.msra.mxu0 0
        %1670 = vmatpush.bf16.msra.mxu0 %v1616
        %1671 = vmatmul.bf16.gmra.mxu0 %v1604
        %v1672 = vpop.f32.mrf.mxu0
        %v1673 = vadd.f32 0.0, %v1672
        %v1674 = vpop.f32.mrf.mxu0
        %1675 = vdwg.mxu0
        %1676 = vmatpush.bf16.msra.mxu0 0
        %1677 = vmatpush.bf16.msra.mxu0 0
        %1678 = vmatpush.bf16.msra.mxu0 0
        %1679 = vmatpush.bf16.msra.mxu0 0
        %1680 = vmatpush.bf16.msra.mxu0 0
        %1681 = vmatpush.bf16.msra.mxu0 0
        %1682 = vmatpush.bf16.msra.mxu0 0
        %1683 = vmatpush.bf16.msra.mxu0 %v1619
        %1684 = vmatmul.bf16.gmra.mxu0 %v1604
        %v1685 = vpop.f32.mrf.mxu0
        %v1686 = vadd.f32 0.0, %v1685
        %v1687 = vpop.f32.mrf.mxu0
        %1688 = vdwg.mxu0
        %1689 = vmatpush.bf16.msra.mxu0 0
        %1690 = vmatpush.bf16.msra.mxu0 0
        %1691 = vmatpush.bf16.msra.mxu0 0
        %1692 = vmatpush.bf16.msra.mxu0 0
        %1693 = vmatpush.bf16.msra.mxu0 0
        %1694 = vmatpush.bf16.msra.mxu0 0
        %1695 = vmatpush.bf16.msra.mxu0 0
        %1696 = vmatpush.bf16.msra.mxu0 %v1622
        %1697 = vmatmul.bf16.gmra.mxu0 %v1604
        %v1698 = vpop.f32.mrf.mxu0
        %v1699 = vadd.f32 0.0, %v1698
        %v1700 = vpop.f32.mrf.mxu0
        %1701 = vdwg.mxu0
        %v1702 = vadd.f32 %v1557, %v1634
        %v1703 = vadd.f32 %v1558, %v1647
        %v1704 = vadd.f32 %v1559, %v1660
        %v1705 = vadd.f32 %v1560, %v1673
        %v1706 = vadd.f32 %v1561, %v1686
        %v1707 = vadd.f32 %v1562, %v1699
        %v1708 = vld [vmem:[#allocation2 + $0x1] sm:$0x7f]
        %s1709 = scalar_lea.vmem %s3, 7
        %v1710 = vld [vmem:[%s1709] sm:$0x1]
        %1712 = vst [vmem:[#allocation1] ss:$9 sm:$0xff] %v1708
        %v1713 = vld [vmem:[#allocation1] sm:$0xff]
        %v1715 = vld [vmem:[#allocation1 + $0x9] sm:$0xff]
        %v1717 = vld [vmem:[#allocation1 + $0x12] sm:$0xff]
        %v1719 = vld [vmem:[#allocation1 + $0x1b] sm:$0xff]
        %v1721 = vld [vmem:[#allocation1 + $0x24] sm:$0xff]
        %v1723 = vld [vmem:[#allocation1 + $0x2d] sm:$0xff]
        %v1725 = vld [vmem:[#allocation1 + $0x36] sm:$0xff]
        %1727 = vrot.lane.b32.xlu0 %v1713, 110
        %v1728 = vpop.permute.xlu0 %1727
        %1729 = vrot.lane.b32.xlu0 %v1715, 110
        %v1730 = vpop.permute.xlu0 %1729
        %1731 = vrot.lane.b32.xlu0 %v1717, 110
        %v1732 = vpop.permute.xlu0 %1731
        %1733 = vrot.lane.b32.xlu0 %v1719, 110
        %v1734 = vpop.permute.xlu0 %1733
        %1735 = vrot.lane.b32.xlu0 %v1721, 110
        %v1736 = vpop.permute.xlu0 %1735
        %1737 = vrot.lane.b32.xlu0 %v1723, 110
        %v1738 = vpop.permute.xlu0 %1737
        %1739 = vrot.lane.b32.xlu0 %v1725, 110
        %v1740 = vpop.permute.xlu0 %1739
        %vm1741 = vcmask 900096
        %v1742 = vsel %vm1741, %v1728, %v1730
        %v1743 = vsel %vm1741, %v1730, %v1732
        %v1744 = vsel %vm1741, %v1732, %v1734
        %v1745 = vsel %vm1741, %v1734, %v1736
        %v1746 = vsel %vm1741, %v1736, %v1738
        %v1747 = vsel %vm1741, %v1738, %v1740
        %v1749 = vsel %vm783, %v1710, 0
        %v1752 = vsel %vm724, %v1742, 0
        %v1755 = vsel %vm724, %v1743, 0
        %v1758 = vsel %vm724, %v1744, 0
        %v1761 = vsel %vm724, %v1745, 0
        %v1764 = vsel %vm724, %v1746, 0
        %v1767 = vsel %vm724, %v1747, 0
        %1769 = vmatpush.bf16.msra.mxu0 0
        %1770 = vmatpush.bf16.msra.mxu0 0
        %1771 = vmatpush.bf16.msra.mxu0 0
        %1772 = vmatpush.bf16.msra.mxu0 0
        %1773 = vmatpush.bf16.msra.mxu0 0
        %1774 = vmatpush.bf16.msra.mxu0 0
        %1775 = vmatpush.bf16.msra.mxu0 0
        %1776 = vmatpush.bf16.msra.mxu0 %v1752
        %1777 = vmatmul.bf16.gmra.mxu0 %v1749
        %v1778 = vpop.f32.mrf.mxu0
        %v1779 = vadd.f32 0.0, %v1778
        %v1780 = vpop.f32.mrf.mxu0
        %1781 = vdwg.mxu0
        %1782 = vmatpush.bf16.msra.mxu0 0
        %1783 = vmatpush.bf16.msra.mxu0 0
        %1784 = vmatpush.bf16.msra.mxu0 0
        %1785 = vmatpush.bf16.msra.mxu0 0
        %1786 = vmatpush.bf16.msra.mxu0 0
        %1787 = vmatpush.bf16.msra.mxu0 0
        %1788 = vmatpush.bf16.msra.mxu0 0
        %1789 = vmatpush.bf16.msra.mxu0 %v1755
        %1790 = vmatmul.bf16.gmra.mxu0 %v1749
        %v1791 = vpop.f32.mrf.mxu0
        %v1792 = vadd.f32 0.0, %v1791
        %v1793 = vpop.f32.mrf.mxu0
        %1794 = vdwg.mxu0
        %1795 = vmatpush.bf16.msra.mxu0 0
        %1796 = vmatpush.bf16.msra.mxu0 0
        %1797 = vmatpush.bf16.msra.mxu0 0
        %1798 = vmatpush.bf16.msra.mxu0 0
        %1799 = vmatpush.bf16.msra.mxu0 0
        %1800 = vmatpush.bf16.msra.mxu0 0
        %1801 = vmatpush.bf16.msra.mxu0 0
        %1802 = vmatpush.bf16.msra.mxu0 %v1758
        %1803 = vmatmul.bf16.gmra.mxu0 %v1749
        %v1804 = vpop.f32.mrf.mxu0
        %v1805 = vadd.f32 0.0, %v1804
        %v1806 = vpop.f32.mrf.mxu0
        %1807 = vdwg.mxu0
        %1808 = vmatpush.bf16.msra.mxu0 0
        %1809 = vmatpush.bf16.msra.mxu0 0
        %1810 = vmatpush.bf16.msra.mxu0 0
        %1811 = vmatpush.bf16.msra.mxu0 0
        %1812 = vmatpush.bf16.msra.mxu0 0
        %1813 = vmatpush.bf16.msra.mxu0 0
        %1814 = vmatpush.bf16.msra.mxu0 0
        %1815 = vmatpush.bf16.msra.mxu0 %v1761
        %1816 = vmatmul.bf16.gmra.mxu0 %v1749
        %v1817 = vpop.f32.mrf.mxu0
        %v1818 = vadd.f32 0.0, %v1817
        %v1819 = vpop.f32.mrf.mxu0
        %1820 = vdwg.mxu0
        %1821 = vmatpush.bf16.msra.mxu0 0
        %1822 = vmatpush.bf16.msra.mxu0 0
        %1823 = vmatpush.bf16.msra.mxu0 0
        %1824 = vmatpush.bf16.msra.mxu0 0
        %1825 = vmatpush.bf16.msra.mxu0 0
        %1826 = vmatpush.bf16.msra.mxu0 0
        %1827 = vmatpush.bf16.msra.mxu0 0
        %1828 = vmatpush.bf16.msra.mxu0 %v1764
        %1829 = vmatmul.bf16.gmra.mxu0 %v1749
        %v1830 = vpop.f32.mrf.mxu0
        %v1831 = vadd.f32 0.0, %v1830
        %v1832 = vpop.f32.mrf.mxu0
        %1833 = vdwg.mxu0
        %1834 = vmatpush.bf16.msra.mxu0 0
        %1835 = vmatpush.bf16.msra.mxu0 0
        %1836 = vmatpush.bf16.msra.mxu0 0
        %1837 = vmatpush.bf16.msra.mxu0 0
        %1838 = vmatpush.bf16.msra.mxu0 0
        %1839 = vmatpush.bf16.msra.mxu0 0
        %1840 = vmatpush.bf16.msra.mxu0 0
        %1841 = vmatpush.bf16.msra.mxu0 %v1767
        %1842 = vmatmul.bf16.gmra.mxu0 %v1749
        %v1843 = vpop.f32.mrf.mxu0
        %v1844 = vadd.f32 0.0, %v1843
        %v1845 = vpop.f32.mrf.mxu0
        %1846 = vdwg.mxu0
        %v1847 = vadd.f32 %v1702, %v1779
        %v1848 = vadd.f32 %v1703, %v1792
        %v1849 = vadd.f32 %v1704, %v1805
        %v1850 = vadd.f32 %v1705, %v1818
        %v1851 = vadd.f32 %v1706, %v1831
        %v1852 = vadd.f32 %v1707, %v1844
        %v1853 = vld [vmem:[#allocation2 + $0x1] sm:$0x7f]
        %s1854 = scalar_lea.vmem %s3, 8
        %v1855 = vld [vmem:[%s1854] sm:$0x1]
        %1857 = vst [vmem:[#allocation1] ss:$9 sm:$0xff] %v1853
        %v1858 = vld [vmem:[#allocation1] sm:$0xff]
        %v1860 = vld [vmem:[#allocation1 + $0x9] sm:$0xff]
        %v1862 = vld [vmem:[#allocation1 + $0x12] sm:$0xff]
        %v1864 = vld [vmem:[#allocation1 + $0x1b] sm:$0xff]
        %v1866 = vld [vmem:[#allocation1 + $0x24] sm:$0xff]
        %v1868 = vld [vmem:[#allocation1 + $0x2d] sm:$0xff]
        %v1870 = vld [vmem:[#allocation1 + $0x36] sm:$0xff]
        %1872 = vrot.lane.b32.xlu0 %v1858, 109
        %v1873 = vpop.permute.xlu0 %1872
        %1874 = vrot.lane.b32.xlu0 %v1860, 109
        %v1875 = vpop.permute.xlu0 %1874
        %1876 = vrot.lane.b32.xlu0 %v1862, 109
        %v1877 = vpop.permute.xlu0 %1876
        %1878 = vrot.lane.b32.xlu0 %v1864, 109
        %v1879 = vpop.permute.xlu0 %1878
        %1880 = vrot.lane.b32.xlu0 %v1866, 109
        %v1881 = vpop.permute.xlu0 %1880
        %1882 = vrot.lane.b32.xlu0 %v1868, 109
        %v1883 = vpop.permute.xlu0 %1882
        %1884 = vrot.lane.b32.xlu0 %v1870, 109
        %v1885 = vpop.permute.xlu0 %1884
        %vm1886 = vcmask 891904
        %v1887 = vsel %vm1886, %v1873, %v1875
        %v1888 = vsel %vm1886, %v1875, %v1877
        %v1889 = vsel %vm1886, %v1877, %v1879
        %v1890 = vsel %vm1886, %v1879, %v1881
        %v1891 = vsel %vm1886, %v1881, %v1883
        %v1892 = vsel %vm1886, %v1883, %v1885
        %v1894 = vsel %vm783, %v1855, 0
        %v1897 = vsel %vm724, %v1887, 0
        %v1900 = vsel %vm724, %v1888, 0
        %v1903 = vsel %vm724, %v1889, 0
        %v1906 = vsel %vm724, %v1890, 0
        %v1909 = vsel %vm724, %v1891, 0
        %v1912 = vsel %vm724, %v1892, 0
        %1914 = vmatpush.bf16.msra.mxu0 0
        %1915 = vmatpush.bf16.msra.mxu0 0
        %1916 = vmatpush.bf16.msra.mxu0 0
        %1917 = vmatpush.bf16.msra.mxu0 0
        %1918 = vmatpush.bf16.msra.mxu0 0
        %1919 = vmatpush.bf16.msra.mxu0 0
        %1920 = vmatpush.bf16.msra.mxu0 0
        %1921 = vmatpush.bf16.msra.mxu0 %v1897
        %1922 = vmatmul.bf16.gmra.mxu0 %v1894
        %v1923 = vpop.f32.mrf.mxu0
        %v1924 = vadd.f32 0.0, %v1923
        %v1925 = vpop.f32.mrf.mxu0
        %1926 = vdwg.mxu0
        %1927 = vmatpush.bf16.msra.mxu0 0
        %1928 = vmatpush.bf16.msra.mxu0 0
        %1929 = vmatpush.bf16.msra.mxu0 0
        %1930 = vmatpush.bf16.msra.mxu0 0
        %1931 = vmatpush.bf16.msra.mxu0 0
        %1932 = vmatpush.bf16.msra.mxu0 0
        %1933 = vmatpush.bf16.msra.mxu0 0
        %1934 = vmatpush.bf16.msra.mxu0 %v1900
        %1935 = vmatmul.bf16.gmra.mxu0 %v1894
        %v1936 = vpop.f32.mrf.mxu0
        %v1937 = vadd.f32 0.0, %v1936
        %v1938 = vpop.f32.mrf.mxu0
        %1939 = vdwg.mxu0
        %1940 = vmatpush.bf16.msra.mxu0 0
        %1941 = vmatpush.bf16.msra.mxu0 0
        %1942 = vmatpush.bf16.msra.mxu0 0
        %1943 = vmatpush.bf16.msra.mxu0 0
        %1944 = vmatpush.bf16.msra.mxu0 0
        %1945 = vmatpush.bf16.msra.mxu0 0
        %1946 = vmatpush.bf16.msra.mxu0 0
        %1947 = vmatpush.bf16.msra.mxu0 %v1903
        %1948 = vmatmul.bf16.gmra.mxu0 %v1894
        %v1949 = vpop.f32.mrf.mxu0
        %v1950 = vadd.f32 0.0, %v1949
        %v1951 = vpop.f32.mrf.mxu0
        %1952 = vdwg.mxu0
        %1953 = vmatpush.bf16.msra.mxu0 0
        %1954 = vmatpush.bf16.msra.mxu0 0
        %1955 = vmatpush.bf16.msra.mxu0 0
        %1956 = vmatpush.bf16.msra.mxu0 0
        %1957 = vmatpush.bf16.msra.mxu0 0
        %1958 = vmatpush.bf16.msra.mxu0 0
        %1959 = vmatpush.bf16.msra.mxu0 0
        %1960 = vmatpush.bf16.msra.mxu0 %v1906
        %1961 = vmatmul.bf16.gmra.mxu0 %v1894
        %v1962 = vpop.f32.mrf.mxu0
        %v1963 = vadd.f32 0.0, %v1962
        %v1964 = vpop.f32.mrf.mxu0
        %1965 = vdwg.mxu0
        %1966 = vmatpush.bf16.msra.mxu0 0
        %1967 = vmatpush.bf16.msra.mxu0 0
        %1968 = vmatpush.bf16.msra.mxu0 0
        %1969 = vmatpush.bf16.msra.mxu0 0
        %1970 = vmatpush.bf16.msra.mxu0 0
        %1971 = vmatpush.bf16.msra.mxu0 0
        %1972 = vmatpush.bf16.msra.mxu0 0
        %1973 = vmatpush.bf16.msra.mxu0 %v1909
        %1974 = vmatmul.bf16.gmra.mxu0 %v1894
        %v1975 = vpop.f32.mrf.mxu0
        %v1976 = vadd.f32 0.0, %v1975
        %v1977 = vpop.f32.mrf.mxu0
        %1978 = vdwg.mxu0
        %1979 = vmatpush.bf16.msra.mxu0 0
        %1980 = vmatpush.bf16.msra.mxu0 0
        %1981 = vmatpush.bf16.msra.mxu0 0
        %1982 = vmatpush.bf16.msra.mxu0 0
        %1983 = vmatpush.bf16.msra.mxu0 0
        %1984 = vmatpush.bf16.msra.mxu0 0
        %1985 = vmatpush.bf16.msra.mxu0 0
        %1986 = vmatpush.bf16.msra.mxu0 %v1912
        %1987 = vmatmul.bf16.gmra.mxu0 %v1894
        %v1988 = vpop.f32.mrf.mxu0
        %v1989 = vadd.f32 0.0, %v1988
        %v1990 = vpop.f32.mrf.mxu0
        %1991 = vdwg.mxu0
        %v1992 = vadd.f32 %v1847, %v1924
        %v1993 = vadd.f32 %v1848, %v1937
        %v1994 = vadd.f32 %v1849, %v1950
        %v1995 = vadd.f32 %v1850, %v1963
        %v1996 = vadd.f32 %v1851, %v1976
        %v1997 = vadd.f32 %v1852, %v1989
        %v1998 = vld [vmem:[%s4] sm:$0x3]
        %2000 = vset.pattern.permute.xlu0 0
        %2001 = vperm.xlu0 %2000, %v1998
        %v2002 = vpop.permute.xlu0 %2001
        %v2004 = vadd.f32 %v1992, %v2002
        %v2005 = vadd.f32 %v1993, %v2002
        %v2006 = vadd.f32 %v1994, %v2002
        %v2007 = vadd.f32 %v1995, %v2002
        %v2008 = vadd.f32 %v1996, %v2002
        %v2009 = vadd.f32 %v1997, %v2002
        %vm2010 = vcmp.ge.f32.partialorder %v2004, 0.0
        %vm2011 = vcmp.ge.f32.partialorder %v2005, 0.0
        %vm2012 = vcmp.ge.f32.partialorder %v2006, 0.0
        %vm2013 = vcmp.ge.f32.partialorder %v2007, 0.0
        %vm2014 = vcmp.ge.f32.partialorder %v2008, 0.0
        %vm2015 = vcmp.ge.f32.partialorder %v2009, 0.0
        %v2016 = vmul.f32 %v2004, 0.01
        %v2017 = vmul.f32 %v2005, 0.01
        %v2018 = vmul.f32 %v2006, 0.01
        %v2019 = vmul.f32 %v2007, 0.01
        %v2020 = vmul.f32 %v2008, 0.01
        %v2021 = vmul.f32 %v2009, 0.01
        %v2022 = vsel %vm2010, %v2004, %v2016
        %v2023 = vsel %vm2011, %v2005, %v2017
        %v2024 = vsel %vm2012, %v2006, %v2018
        %v2025 = vsel %vm2013, %v2007, %v2019
        %v2026 = vsel %vm2014, %v2008, %v2020
        %v2027 = vsel %vm2015, %v2009, %v2021
        %v2034 = vrot.slane %v2023, 6
        %v2035 = vrot.slane %v2024, 4
        %v2036 = vrot.slane %v2025, 2
        %v2037 = vrot.slane %v2027, 6
        %v2038 = vsel %vm376, %v2022, %v2034
        %v2039 = vsel %vm378, %v2035, %v2036
        %v2040 = vsel %vm380, %v2038, %v2039
        %v2041 = vsel %vm376, %v2026, %v2037
        %2044 = vst [vmem:[%s326] sm:$0xff] %v2040
        %2045 = vst [vmem:[%s326 + $0x8] sm:$0xf] %v2041
        %v2046 = vpack.c.bf16 %v2022, %v2022
        %v2047 = vpack.c.bf16 %v2023, %v2023
        %v2048 = vpack.c.bf16 %v2024, %v2024
        %v2049 = vpack.c.bf16 %v2025, %v2025
        %v2050 = vpack.c.bf16 %v2026, %v2026
        %v2051 = vpack.c.bf16 %v2027, %v2027
        %v2052 = vld [vmem:[#allocation3] sm:$0xff]
        %v2053 = vld [vmem:[#allocation3 + $0x8] sm:$0xf]
        %v2054 = vld [vmem:[#allocation3 + $0xc] sm:$0xff]
        %v2055 = vld [vmem:[#allocation3 + $0x14] sm:$0xf]
        %v2056 = vld [vmem:[#allocation3 + $0x18] sm:$0xff]
        %v2057 = vld [vmem:[#allocation3 + $0x20] sm:$0xf]
        %v2058 = vld [vmem:[#allocation3 + $0x24] sm:$0xff]
        %v2059 = vld [vmem:[#allocation3 + $0x2c] sm:$0xf]
        %v2060 = vld [vmem:[#allocation3 + $0x30] sm:$0xff]
        %v2061 = vld [vmem:[#allocation3 + $0x38] sm:$0xf]
        %v2062 = vld [vmem:[#allocation3 + $0x3c] sm:$0xff]
        %v2063 = vld [vmem:[#allocation3 + $0x44] sm:$0xf]
        %v2064 = vld [vmem:[#allocation3 + $0x48] sm:$0xff]
        %v2065 = vld [vmem:[#allocation3 + $0x50] sm:$0xf]
        %v2066 = vld [vmem:[#allocation3 + $0x54] sm:$0xff]
        %v2067 = vld [vmem:[#allocation3 + $0x5c] sm:$0xf]
        %v2068 = vld [vmem:[#allocation3 + $0x60] sm:$0xff]
        %v2069 = vld [vmem:[#allocation3 + $0x68] sm:$0xf]
        %v2070 = vld [vmem:[#allocation3 + $0x6c] sm:$0xff]
        %v2071 = vld [vmem:[#allocation3 + $0x74] sm:$0xf]
        %v2072 = vld [vmem:[#allocation3 + $0x78] sm:$0xff]
        %v2073 = vld [vmem:[#allocation3 + $0x80] sm:$0xf]
        %v2074 = vld [vmem:[#allocation3 + $0x84] sm:$0xff]
        %v2075 = vld [vmem:[#allocation3 + $0x8c] sm:$0xf]
        %v2076 = vld [vmem:[#allocation3 + $0x90] sm:$0xff]
        %v2077 = vld [vmem:[#allocation3 + $0x98] sm:$0xf]
        %v2078 = vld [vmem:[#allocation3 + $0x9c] sm:$0xff]
        %v2079 = vld [vmem:[#allocation3 + $0xa4] sm:$0xf]
        %v2080 = vld [vmem:[#allocation3 + $0xa8] sm:$0xff]
        %v2081 = vld [vmem:[#allocation3 + $0xb0] sm:$0xf]
        %v2082 = vld [vmem:[#allocation3 + $0xb4] sm:$0xff]
        %v2083 = vld [vmem:[#allocation3 + $0xbc] sm:$0xf]
        %v2084 = vld [vmem:[#allocation3 + $0xc0] sm:$0xff]
        %v2085 = vld [vmem:[#allocation3 + $0xc8] sm:$0xf]
        %v2086 = vld [vmem:[#allocation3 + $0xcc] sm:$0xff]
        %v2087 = vld [vmem:[#allocation3 + $0xd4] sm:$0xf]
        %v2088 = vld [vmem:[#allocation3 + $0xd8] sm:$0xff]
        %v2089 = vld [vmem:[#allocation3 + $0xe0] sm:$0xf]
        %v2090 = vld [vmem:[#allocation3 + $0xe4] sm:$0xff]
        %v2091 = vld [vmem:[#allocation3 + $0xec] sm:$0xf]
        %v2092 = vld [vmem:[#allocation3 + $0xf0] sm:$0xff]
        %v2093 = vld [vmem:[#allocation3 + $0xf8] sm:$0xf]
        %v2094 = vld [vmem:[#allocation3 + $0xfc] sm:$0xff]
        %v2095 = vld [vmem:[#allocation3 + $0x104] sm:$0xf]
        %v2096 = vld [vmem:[#allocation3 + $0x108] sm:$0xff]
        %v2097 = vld [vmem:[#allocation3 + $0x110] sm:$0xf]
        %v2098 = vld [vmem:[#allocation3 + $0x114] sm:$0xff]
        %v2099 = vld [vmem:[#allocation3 + $0x11c] sm:$0xf]
        %v2100 = vld [vmem:[#allocation3 + $0x120] sm:$0xff]
        %v2101 = vld [vmem:[#allocation3 + $0x128] sm:$0xf]
        %v2102 = vld [vmem:[#allocation3 + $0x12c] sm:$0xff]
        %v2103 = vld [vmem:[#allocation3 + $0x134] sm:$0xf]
        %v2104 = vld [vmem:[#allocation3 + $0x138] sm:$0xff]
        %v2105 = vld [vmem:[#allocation3 + $0x140] sm:$0xf]
        %v2106 = vld [vmem:[#allocation3 + $0x144] sm:$0xff]
        %v2107 = vld [vmem:[#allocation3 + $0x14c] sm:$0xf]
        %v2108 = vld [vmem:[#allocation3 + $0x150] sm:$0xff]
        %v2109 = vld [vmem:[#allocation3 + $0x158] sm:$0xf]
        %v2110 = vld [vmem:[#allocation3 + $0x15c] sm:$0xff]
        %v2111 = vld [vmem:[#allocation3 + $0x164] sm:$0xf]
        %v2112 = vld [vmem:[#allocation3 + $0x168] sm:$0xff]
        %v2113 = vld [vmem:[#allocation3 + $0x170] sm:$0xf]
        %v2114 = vld [vmem:[#allocation3 + $0x174] sm:$0xff]
        %v2115 = vld [vmem:[#allocation3 + $0x17c] sm:$0xf]
        %v2116 = vld [vmem:[#allocation3 + $0x180] sm:$0xff]
        %v2117 = vld [vmem:[#allocation3 + $0x188] sm:$0xf]
        %v2118 = vld [vmem:[#allocation3 + $0x18c] sm:$0xff]
        %v2119 = vld [vmem:[#allocation3 + $0x194] sm:$0xf]
        %v2120 = vld [vmem:[#allocation3 + $0x198] sm:$0xff]
        %v2121 = vld [vmem:[#allocation3 + $0x1a0] sm:$0xf]
        %v2122 = vld [vmem:[#allocation3 + $0x1a4] sm:$0xff]
        %v2123 = vld [vmem:[#allocation3 + $0x1ac] sm:$0xf]
        %v2124 = vld [vmem:[#allocation3 + $0x1b0] sm:$0xff]
        %v2125 = vld [vmem:[#allocation3 + $0x1b8] sm:$0xf]
        %v2126 = vld [vmem:[#allocation3 + $0x1bc] sm:$0xff]
        %v2127 = vld [vmem:[#allocation3 + $0x1c4] sm:$0xf]
        %v2128 = vld [vmem:[#allocation3 + $0x1c8] sm:$0xff]
        %v2129 = vld [vmem:[#allocation3 + $0x1d0] sm:$0xf]
        %v2130 = vld [vmem:[#allocation3 + $0x1d4] sm:$0xff]
        %v2131 = vld [vmem:[#allocation3 + $0x1dc] sm:$0xf]
        %v2132 = vld [vmem:[#allocation3 + $0x1e0] sm:$0xff]
        %v2133 = vld [vmem:[#allocation3 + $0x1e8] sm:$0xf]
        %v2134 = vld [vmem:[#allocation3 + $0x1ec] sm:$0xff]
        %v2135 = vld [vmem:[#allocation3 + $0x1f4] sm:$0xf]
        %v2136 = vld [vmem:[#allocation3 + $0x1f8] sm:$0xff]
        %v2137 = vld [vmem:[#allocation3 + $0x200] sm:$0xf]
        %v2138 = vld [vmem:[#allocation3 + $0x204] sm:$0xff]
        %v2139 = vld [vmem:[#allocation3 + $0x20c] sm:$0xf]
        %v2140 = vld [vmem:[#allocation3 + $0x210] sm:$0xff]
        %v2141 = vld [vmem:[#allocation3 + $0x218] sm:$0xf]
        %v2142 = vld [vmem:[#allocation3 + $0x21c] sm:$0xff]
        %v2143 = vld [vmem:[#allocation3 + $0x224] sm:$0xf]
        %v2144 = vld [vmem:[#allocation3 + $0x228] sm:$0xff]
        %v2145 = vld [vmem:[#allocation3 + $0x230] sm:$0xf]
        %v2146 = vld [vmem:[#allocation3 + $0x234] sm:$0xff]
        %v2147 = vld [vmem:[#allocation3 + $0x23c] sm:$0xf]
        %v2148 = vld [vmem:[#allocation3 + $0x240] sm:$0xff]
        %v2149 = vld [vmem:[#allocation3 + $0x248] sm:$0xf]
        %v2150 = vld [vmem:[#allocation3 + $0x24c] sm:$0xff]
        %v2151 = vld [vmem:[#allocation3 + $0x254] sm:$0xf]
        %v2152 = vld [vmem:[#allocation3 + $0x258] sm:$0xff]
        %v2153 = vld [vmem:[#allocation3 + $0x260] sm:$0xf]
        %v2154 = vld [vmem:[#allocation3 + $0x264] sm:$0xff]
        %v2155 = vld [vmem:[#allocation3 + $0x26c] sm:$0xf]
        %v2156 = vld [vmem:[#allocation3 + $0x270] sm:$0xff]
        %v2157 = vld [vmem:[#allocation3 + $0x278] sm:$0xf]
        %v2158 = vld [vmem:[#allocation3 + $0x27c] sm:$0xff]
        %v2159 = vld [vmem:[#allocation3 + $0x284] sm:$0xf]
        %v2160 = vld [vmem:[#allocation3 + $0x288] sm:$0xff]
        %v2161 = vld [vmem:[#allocation3 + $0x290] sm:$0xf]
        %v2162 = vld [vmem:[#allocation3 + $0x294] sm:$0xff]
        %v2163 = vld [vmem:[#allocation3 + $0x29c] sm:$0xf]
        %v2164 = vld [vmem:[#allocation3 + $0x2a0] sm:$0xff]
        %v2165 = vld [vmem:[#allocation3 + $0x2a8] sm:$0xf]
        %v2166 = vld [vmem:[#allocation3 + $0x2ac] sm:$0xff]
        %v2167 = vld [vmem:[#allocation3 + $0x2b4] sm:$0xf]
        %v2168 = vld [vmem:[#allocation3 + $0x2b8] sm:$0xff]
        %v2169 = vld [vmem:[#allocation3 + $0x2c0] sm:$0xf]
        %v2170 = vld [vmem:[#allocation3 + $0x2c4] sm:$0xff]
        %v2171 = vld [vmem:[#allocation3 + $0x2cc] sm:$0xf]
        %v2172 = vld [vmem:[#allocation3 + $0x2d0] sm:$0xff]
        %v2173 = vld [vmem:[#allocation3 + $0x2d8] sm:$0xf]
        %v2174 = vld [vmem:[#allocation3 + $0x2dc] sm:$0xff]
        %v2175 = vld [vmem:[#allocation3 + $0x2e4] sm:$0xf]
        %v2176 = vld [vmem:[#allocation3 + $0x2e8] sm:$0xff]
        %v2177 = vld [vmem:[#allocation3 + $0x2f0] sm:$0xf]
        %v2178 = vld [vmem:[#allocation3 + $0x2f4] sm:$0xff]
        %v2179 = vld [vmem:[#allocation3 + $0x2fc] sm:$0xf]
        %v2180 = vld [vmem:[#allocation3 + $0x300] sm:$0xff]
        %v2181 = vld [vmem:[#allocation3 + $0x308] sm:$0xf]
        %v2182 = vld [vmem:[#allocation3 + $0x30c] sm:$0xff]
        %v2183 = vld [vmem:[#allocation3 + $0x314] sm:$0xf]
        %v2184 = vld [vmem:[#allocation3 + $0x318] sm:$0xff]
        %v2185 = vld [vmem:[#allocation3 + $0x320] sm:$0xf]
        %v2186 = vld [vmem:[#allocation3 + $0x324] sm:$0xff]
        %v2187 = vld [vmem:[#allocation3 + $0x32c] sm:$0xf]
        %v2188 = vld [vmem:[#allocation3 + $0x330] sm:$0xff]
        %v2189 = vld [vmem:[#allocation3 + $0x338] sm:$0xf]
        %v2190 = vld [vmem:[#allocation3 + $0x33c] sm:$0xff]
        %v2191 = vld [vmem:[#allocation3 + $0x344] sm:$0xf]
        %v2192 = vld [vmem:[#allocation3 + $0x348] sm:$0xff]
        %v2193 = vld [vmem:[#allocation3 + $0x350] sm:$0xf]
        %v2194 = vld [vmem:[#allocation3 + $0x354] sm:$0xff]
        %v2195 = vld [vmem:[#allocation3 + $0x35c] sm:$0xf]
        %v2196 = vld [vmem:[#allocation3 + $0x360] sm:$0xff]
        %v2197 = vld [vmem:[#allocation3 + $0x368] sm:$0xf]
        %v2198 = vld [vmem:[#allocation3 + $0x36c] sm:$0xff]
        %v2199 = vld [vmem:[#allocation3 + $0x374] sm:$0xf]
        %v2200 = vld [vmem:[#allocation3 + $0x378] sm:$0xff]
        %v2201 = vld [vmem:[#allocation3 + $0x380] sm:$0xf]
        %v2202 = vld [vmem:[#allocation3 + $0x384] sm:$0xff]
        %v2203 = vld [vmem:[#allocation3 + $0x38c] sm:$0xf]
        %v2204 = vld [vmem:[#allocation3 + $0x390] sm:$0xff]
        %v2205 = vld [vmem:[#allocation3 + $0x398] sm:$0xf]
        %v2206 = vld [vmem:[#allocation3 + $0x39c] sm:$0xff]
        %v2207 = vld [vmem:[#allocation3 + $0x3a4] sm:$0xf]
        %v2208 = vld [vmem:[#allocation3 + $0x3a8] sm:$0xff]
        %v2209 = vld [vmem:[#allocation3 + $0x3b0] sm:$0xf]
        %v2210 = vld [vmem:[#allocation3 + $0x3b4] sm:$0xff]
        %v2211 = vld [vmem:[#allocation3 + $0x3bc] sm:$0xf]
        %v2212 = vld [vmem:[#allocation3 + $0x3c0] sm:$0xff]
        %v2213 = vld [vmem:[#allocation3 + $0x3c8] sm:$0xf]
        %v2214 = vld [vmem:[#allocation3 + $0x3cc] sm:$0xff]
        %v2215 = vld [vmem:[#allocation3 + $0x3d4] sm:$0xf]
        %v2216 = vld [vmem:[#allocation3 + $0x3d8] sm:$0xff]
        %v2217 = vld [vmem:[#allocation3 + $0x3e0] sm:$0xf]
        %v2218 = vld [vmem:[#allocation3 + $0x3e4] sm:$0xff]
        %v2219 = vld [vmem:[#allocation3 + $0x3ec] sm:$0xf]
        %v2220 = vld [vmem:[#allocation3 + $0x3f0] sm:$0xff]
        %v2221 = vld [vmem:[#allocation3 + $0x3f8] sm:$0xf]
        %v2222 = vld [vmem:[#allocation3 + $0x3fc] sm:$0xff]
        %v2223 = vld [vmem:[#allocation3 + $0x404] sm:$0xf]
        %v2224 = vld [vmem:[#allocation3 + $0x408] sm:$0xff]
        %v2225 = vld [vmem:[#allocation3 + $0x410] sm:$0xf]
        %v2226 = vld [vmem:[#allocation3 + $0x414] sm:$0xff]
        %v2227 = vld [vmem:[#allocation3 + $0x41c] sm:$0xf]
        %v2228 = vld [vmem:[#allocation3 + $0x420] sm:$0xff]
        %v2229 = vld [vmem:[#allocation3 + $0x428] sm:$0xf]
        %v2230 = vld [vmem:[#allocation3 + $0x42c] sm:$0xff]
        %v2231 = vld [vmem:[#allocation3 + $0x434] sm:$0xf]
        %v2232 = vld [vmem:[#allocation3 + $0x438] sm:$0xff]
        %v2233 = vld [vmem:[#allocation3 + $0x440] sm:$0xf]
        %v2234 = vld [vmem:[#allocation3 + $0x444] sm:$0xff]
        %v2235 = vld [vmem:[#allocation3 + $0x44c] sm:$0xf]
        %v2236 = vld [vmem:[#allocation3 + $0x450] sm:$0xff]
        %v2237 = vld [vmem:[#allocation3 + $0x458] sm:$0xf]
        %v2238 = vld [vmem:[#allocation3 + $0x45c] sm:$0xff]
        %v2239 = vld [vmem:[#allocation3 + $0x464] sm:$0xf]
        %v2240 = vld [vmem:[#allocation3 + $0x468] sm:$0xff]
        %v2241 = vld [vmem:[#allocation3 + $0x470] sm:$0xf]
        %v2242 = vld [vmem:[#allocation3 + $0x474] sm:$0xff]
        %v2243 = vld [vmem:[#allocation3 + $0x47c] sm:$0xf]
        %v2436 = vunpack.c.l.b16 %v2052
        %v2437 = vunpack.c.h.b16 %v2052
        %v2438 = vunpack.c.l.b16 %v2053
        %v2439 = vunpack.c.l.b16 %v2054
        %v2440 = vunpack.c.h.b16 %v2054
        %v2441 = vunpack.c.l.b16 %v2055
        %v2442 = vunpack.c.l.b16 %v2056
        %v2443 = vunpack.c.h.b16 %v2056
        %v2444 = vunpack.c.l.b16 %v2057
        %v2445 = vunpack.c.l.b16 %v2058
        %v2446 = vunpack.c.h.b16 %v2058
        %v2447 = vunpack.c.l.b16 %v2059
        %v2448 = vunpack.c.l.b16 %v2060
        %v2449 = vunpack.c.h.b16 %v2060
        %v2450 = vunpack.c.l.b16 %v2061
        %v2451 = vunpack.c.l.b16 %v2062
        %v2452 = vunpack.c.h.b16 %v2062
        %v2453 = vunpack.c.l.b16 %v2063
        %v2454 = vunpack.c.l.b16 %v2064
        %v2455 = vunpack.c.h.b16 %v2064
        %v2456 = vunpack.c.l.b16 %v2065
        %v2457 = vunpack.c.l.b16 %v2066
        %v2458 = vunpack.c.h.b16 %v2066
        %v2459 = vunpack.c.l.b16 %v2067
        %v2460 = vunpack.c.l.b16 %v2068
        %v2461 = vunpack.c.h.b16 %v2068
        %v2462 = vunpack.c.l.b16 %v2069
        %v2463 = vunpack.c.l.b16 %v2070
        %v2464 = vunpack.c.h.b16 %v2070
        %v2465 = vunpack.c.l.b16 %v2071
        %v2466 = vunpack.c.l.b16 %v2072
        %v2467 = vunpack.c.h.b16 %v2072
        %v2468 = vunpack.c.l.b16 %v2073
        %v2469 = vunpack.c.l.b16 %v2074
        %v2470 = vunpack.c.h.b16 %v2074
        %v2471 = vunpack.c.l.b16 %v2075
        %v2472 = vunpack.c.l.b16 %v2076
        %v2473 = vunpack.c.h.b16 %v2076
        %v2474 = vunpack.c.l.b16 %v2077
        %v2475 = vunpack.c.l.b16 %v2078
        %v2476 = vunpack.c.h.b16 %v2078
        %v2477 = vunpack.c.l.b16 %v2079
        %v2478 = vunpack.c.l.b16 %v2080
        %v2479 = vunpack.c.h.b16 %v2080
        %v2480 = vunpack.c.l.b16 %v2081
        %v2481 = vunpack.c.l.b16 %v2082
        %v2482 = vunpack.c.h.b16 %v2082
        %v2483 = vunpack.c.l.b16 %v2083
        %v2484 = vunpack.c.l.b16 %v2084
        %v2485 = vunpack.c.h.b16 %v2084
        %v2486 = vunpack.c.l.b16 %v2085
        %v2487 = vunpack.c.l.b16 %v2086
        %v2488 = vunpack.c.h.b16 %v2086
        %v2489 = vunpack.c.l.b16 %v2087
        %v2490 = vunpack.c.l.b16 %v2088
        %v2491 = vunpack.c.h.b16 %v2088
        %v2492 = vunpack.c.l.b16 %v2089
        %v2493 = vunpack.c.l.b16 %v2090
        %v2494 = vunpack.c.h.b16 %v2090
        %v2495 = vunpack.c.l.b16 %v2091
        %v2496 = vunpack.c.l.b16 %v2092
        %v2497 = vunpack.c.h.b16 %v2092
        %v2498 = vunpack.c.l.b16 %v2093
        %v2499 = vunpack.c.l.b16 %v2094
        %v2500 = vunpack.c.h.b16 %v2094
        %v2501 = vunpack.c.l.b16 %v2095
        %v2502 = vunpack.c.l.b16 %v2096
        %v2503 = vunpack.c.h.b16 %v2096
        %v2504 = vunpack.c.l.b16 %v2097
        %v2505 = vunpack.c.l.b16 %v2098
        %v2506 = vunpack.c.h.b16 %v2098
        %v2507 = vunpack.c.l.b16 %v2099
        %v2508 = vunpack.c.l.b16 %v2100
        %v2509 = vunpack.c.h.b16 %v2100
        %v2510 = vunpack.c.l.b16 %v2101
        %v2511 = vunpack.c.l.b16 %v2102
        %v2512 = vunpack.c.h.b16 %v2102
        %v2513 = vunpack.c.l.b16 %v2103
        %v2514 = vunpack.c.l.b16 %v2104
        %v2515 = vunpack.c.h.b16 %v2104
        %v2516 = vunpack.c.l.b16 %v2105
        %v2517 = vunpack.c.l.b16 %v2106
        %v2518 = vunpack.c.h.b16 %v2106
        %v2519 = vunpack.c.l.b16 %v2107
        %v2520 = vunpack.c.l.b16 %v2108
        %v2521 = vunpack.c.h.b16 %v2108
        %v2522 = vunpack.c.l.b16 %v2109
        %v2523 = vunpack.c.l.b16 %v2110
        %v2524 = vunpack.c.h.b16 %v2110
        %v2525 = vunpack.c.l.b16 %v2111
        %v2526 = vunpack.c.l.b16 %v2112
        %v2527 = vunpack.c.h.b16 %v2112
        %v2528 = vunpack.c.l.b16 %v2113
        %v2529 = vunpack.c.l.b16 %v2114
        %v2530 = vunpack.c.h.b16 %v2114
        %v2531 = vunpack.c.l.b16 %v2115
        %v2532 = vunpack.c.l.b16 %v2116
        %v2533 = vunpack.c.h.b16 %v2116
        %v2534 = vunpack.c.l.b16 %v2117
        %v2535 = vunpack.c.l.b16 %v2118
        %v2536 = vunpack.c.h.b16 %v2118
        %v2537 = vunpack.c.l.b16 %v2119
        %v2538 = vunpack.c.l.b16 %v2120
        %v2539 = vunpack.c.h.b16 %v2120
        %v2540 = vunpack.c.l.b16 %v2121
        %v2541 = vunpack.c.l.b16 %v2122
        %v2542 = vunpack.c.h.b16 %v2122
        %v2543 = vunpack.c.l.b16 %v2123
        %v2544 = vunpack.c.l.b16 %v2124
        %v2545 = vunpack.c.h.b16 %v2124
        %v2546 = vunpack.c.l.b16 %v2125
        %v2547 = vunpack.c.l.b16 %v2126
        %v2548 = vunpack.c.h.b16 %v2126
        %v2549 = vunpack.c.l.b16 %v2127
        %v2550 = vunpack.c.l.b16 %v2128
        %v2551 = vunpack.c.h.b16 %v2128
        %v2552 = vunpack.c.l.b16 %v2129
        %v2553 = vunpack.c.l.b16 %v2130
        %v2554 = vunpack.c.h.b16 %v2130
        %v2555 = vunpack.c.l.b16 %v2131
        %v2556 = vunpack.c.l.b16 %v2132
        %v2557 = vunpack.c.h.b16 %v2132
        %v2558 = vunpack.c.l.b16 %v2133
        %v2559 = vunpack.c.l.b16 %v2134
        %v2560 = vunpack.c.h.b16 %v2134
        %v2561 = vunpack.c.l.b16 %v2135
        %v2562 = vunpack.c.l.b16 %v2136
        %v2563 = vunpack.c.h.b16 %v2136
        %v2564 = vunpack.c.l.b16 %v2137
        %v2565 = vunpack.c.l.b16 %v2138
        %v2566 = vunpack.c.h.b16 %v2138
        %v2567 = vunpack.c.l.b16 %v2139
        %v2568 = vunpack.c.l.b16 %v2140
        %v2569 = vunpack.c.h.b16 %v2140
        %v2570 = vunpack.c.l.b16 %v2141
        %v2571 = vunpack.c.l.b16 %v2142
        %v2572 = vunpack.c.h.b16 %v2142
        %v2573 = vunpack.c.l.b16 %v2143
        %v2574 = vunpack.c.l.b16 %v2144
        %v2575 = vunpack.c.h.b16 %v2144
        %v2576 = vunpack.c.l.b16 %v2145
        %v2577 = vunpack.c.l.b16 %v2146
        %v2578 = vunpack.c.h.b16 %v2146
        %v2579 = vunpack.c.l.b16 %v2147
        %v2580 = vunpack.c.l.b16 %v2148
        %v2581 = vunpack.c.h.b16 %v2148
        %v2582 = vunpack.c.l.b16 %v2149
        %v2583 = vunpack.c.l.b16 %v2150
        %v2584 = vunpack.c.h.b16 %v2150
        %v2585 = vunpack.c.l.b16 %v2151
        %v2586 = vunpack.c.l.b16 %v2152
        %v2587 = vunpack.c.h.b16 %v2152
        %v2588 = vunpack.c.l.b16 %v2153
        %v2589 = vunpack.c.l.b16 %v2154
        %v2590 = vunpack.c.h.b16 %v2154
        %v2591 = vunpack.c.l.b16 %v2155
        %v2592 = vunpack.c.l.b16 %v2156
        %v2593 = vunpack.c.h.b16 %v2156
        %v2594 = vunpack.c.l.b16 %v2157
        %v2595 = vunpack.c.l.b16 %v2158
        %v2596 = vunpack.c.h.b16 %v2158
        %v2597 = vunpack.c.l.b16 %v2159
        %v2598 = vunpack.c.l.b16 %v2160
        %v2599 = vunpack.c.h.b16 %v2160
        %v2600 = vunpack.c.l.b16 %v2161
        %v2601 = vunpack.c.l.b16 %v2162
        %v2602 = vunpack.c.h.b16 %v2162
        %v2603 = vunpack.c.l.b16 %v2163
        %v2604 = vunpack.c.l.b16 %v2164
        %v2605 = vunpack.c.h.b16 %v2164
        %v2606 = vunpack.c.l.b16 %v2165
        %v2607 = vunpack.c.l.b16 %v2166
        %v2608 = vunpack.c.h.b16 %v2166
        %v2609 = vunpack.c.l.b16 %v2167
        %v2610 = vunpack.c.l.b16 %v2168
        %v2611 = vunpack.c.h.b16 %v2168
        %v2612 = vunpack.c.l.b16 %v2169
        %v2613 = vunpack.c.l.b16 %v2170
        %v2614 = vunpack.c.h.b16 %v2170
        %v2615 = vunpack.c.l.b16 %v2171
        %v2616 = vunpack.c.l.b16 %v2172
        %v2617 = vunpack.c.h.b16 %v2172
        %v2618 = vunpack.c.l.b16 %v2173
        %v2619 = vunpack.c.l.b16 %v2174
        %v2620 = vunpack.c.h.b16 %v2174
        %v2621 = vunpack.c.l.b16 %v2175
        %v2622 = vunpack.c.l.b16 %v2176
        %v2623 = vunpack.c.h.b16 %v2176
        %v2624 = vunpack.c.l.b16 %v2177
        %v2625 = vunpack.c.l.b16 %v2178
        %v2626 = vunpack.c.h.b16 %v2178
        %v2627 = vunpack.c.l.b16 %v2179
        %v2628 = vunpack.c.l.b16 %v2180
        %v2629 = vunpack.c.h.b16 %v2180
        %v2630 = vunpack.c.l.b16 %v2181
        %v2631 = vunpack.c.l.b16 %v2182
        %v2632 = vunpack.c.h.b16 %v2182
        %v2633 = vunpack.c.l.b16 %v2183
        %v2634 = vunpack.c.l.b16 %v2184
        %v2635 = vunpack.c.h.b16 %v2184
        %v2636 = vunpack.c.l.b16 %v2185
        %v2637 = vunpack.c.l.b16 %v2186
        %v2638 = vunpack.c.h.b16 %v2186
        %v2639 = vunpack.c.l.b16 %v2187
        %v2640 = vunpack.c.l.b16 %v2188
        %v2641 = vunpack.c.h.b16 %v2188
        %v2642 = vunpack.c.l.b16 %v2189
        %v2643 = vunpack.c.l.b16 %v2190
        %v2644 = vunpack.c.h.b16 %v2190
        %v2645 = vunpack.c.l.b16 %v2191
        %v2646 = vunpack.c.l.b16 %v2192
        %v2647 = vunpack.c.h.b16 %v2192
        %v2648 = vunpack.c.l.b16 %v2193
        %v2649 = vunpack.c.l.b16 %v2194
        %v2650 = vunpack.c.h.b16 %v2194
        %v2651 = vunpack.c.l.b16 %v2195
        %v2652 = vunpack.c.l.b16 %v2196
        %v2653 = vunpack.c.h.b16 %v2196
        %v2654 = vunpack.c.l.b16 %v2197
        %v2655 = vunpack.c.l.b16 %v2198
        %v2656 = vunpack.c.h.b16 %v2198
        %v2657 = vunpack.c.l.b16 %v2199
        %v2658 = vunpack.c.l.b16 %v2200
        %v2659 = vunpack.c.h.b16 %v2200
        %v2660 = vunpack.c.l.b16 %v2201
        %v2661 = vunpack.c.l.b16 %v2202
        %v2662 = vunpack.c.h.b16 %v2202
        %v2663 = vunpack.c.l.b16 %v2203
        %v2664 = vunpack.c.l.b16 %v2204
        %v2665 = vunpack.c.h.b16 %v2204
        %v2666 = vunpack.c.l.b16 %v2205
        %v2667 = vunpack.c.l.b16 %v2206
        %v2668 = vunpack.c.h.b16 %v2206
        %v2669 = vunpack.c.l.b16 %v2207
        %v2670 = vunpack.c.l.b16 %v2208
        %v2671 = vunpack.c.h.b16 %v2208
        %v2672 = vunpack.c.l.b16 %v2209
        %v2673 = vunpack.c.l.b16 %v2210
        %v2674 = vunpack.c.h.b16 %v2210
        %v2675 = vunpack.c.l.b16 %v2211
        %v2676 = vunpack.c.l.b16 %v2212
        %v2677 = vunpack.c.h.b16 %v2212
        %v2678 = vunpack.c.l.b16 %v2213
        %v2679 = vunpack.c.l.b16 %v2214
        %v2680 = vunpack.c.h.b16 %v2214
        %v2681 = vunpack.c.l.b16 %v2215
        %v2682 = vunpack.c.l.b16 %v2216
        %v2683 = vunpack.c.h.b16 %v2216
        %v2684 = vunpack.c.l.b16 %v2217
        %v2685 = vunpack.c.l.b16 %v2218
        %v2686 = vunpack.c.h.b16 %v2218
        %v2687 = vunpack.c.l.b16 %v2219
        %v2688 = vunpack.c.l.b16 %v2220
        %v2689 = vunpack.c.h.b16 %v2220
        %v2690 = vunpack.c.l.b16 %v2221
        %v2691 = vunpack.c.l.b16 %v2222
        %v2692 = vunpack.c.h.b16 %v2222
        %v2693 = vunpack.c.l.b16 %v2223
        %v2694 = vunpack.c.l.b16 %v2224
        %v2695 = vunpack.c.h.b16 %v2224
        %v2696 = vunpack.c.l.b16 %v2225
        %v2697 = vunpack.c.l.b16 %v2226
        %v2698 = vunpack.c.h.b16 %v2226
        %v2699 = vunpack.c.l.b16 %v2227
        %v2700 = vunpack.c.l.b16 %v2228
        %v2701 = vunpack.c.h.b16 %v2228
        %v2702 = vunpack.c.l.b16 %v2229
        %v2703 = vunpack.c.l.b16 %v2230
        %v2704 = vunpack.c.h.b16 %v2230
        %v2705 = vunpack.c.l.b16 %v2231
        %v2706 = vunpack.c.l.b16 %v2232
        %v2707 = vunpack.c.h.b16 %v2232
        %v2708 = vunpack.c.l.b16 %v2233
        %v2709 = vunpack.c.l.b16 %v2234
        %v2710 = vunpack.c.h.b16 %v2234
        %v2711 = vunpack.c.l.b16 %v2235
        %v2712 = vunpack.c.l.b16 %v2236
        %v2713 = vunpack.c.h.b16 %v2236
        %v2714 = vunpack.c.l.b16 %v2237
        %v2715 = vunpack.c.l.b16 %v2238
        %v2716 = vunpack.c.h.b16 %v2238
        %v2717 = vunpack.c.l.b16 %v2239
        %v2718 = vunpack.c.l.b16 %v2240
        %v2719 = vunpack.c.h.b16 %v2240
        %v2720 = vunpack.c.l.b16 %v2241
        %v2721 = vunpack.c.l.b16 %v2242
        %v2722 = vunpack.c.h.b16 %v2242
        %v2723 = vunpack.c.l.b16 %v2243
        %v2724 = vpack.c.b16 %v2439, %v2436
        %v2725 = vpack.c.b16 %v2440, %v2437
        %v2726 = vpack.c.b16 %v2441, %v2438
        %v2727 = vpack.c.b16 %v2445, %v2442
        %v2728 = vpack.c.b16 %v2446, %v2443
        %v2729 = vpack.c.b16 %v2447, %v2444
        %v2730 = vpack.c.b16 %v2451, %v2448
        %v2731 = vpack.c.b16 %v2452, %v2449
        %v2732 = vpack.c.b16 %v2453, %v2450
        %v2733 = vpack.c.b16 %v2457, %v2454
        %v2734 = vpack.c.b16 %v2458, %v2455
        %v2735 = vpack.c.b16 %v2459, %v2456
        %v2736 = vpack.c.b16 %v2463, %v2460
        %v2737 = vpack.c.b16 %v2464, %v2461
        %v2738 = vpack.c.b16 %v2465, %v2462
        %v2739 = vpack.c.b16 %v2469, %v2466
        %v2740 = vpack.c.b16 %v2470, %v2467
        %v2741 = vpack.c.b16 %v2471, %v2468
        %v2742 = vpack.c.b16 %v2475, %v2472
        %v2743 = vpack.c.b16 %v2476, %v2473
        %v2744 = vpack.c.b16 %v2477, %v2474
        %v2745 = vpack.c.b16 %v2481, %v2478
        %v2746 = vpack.c.b16 %v2482, %v2479
        %v2747 = vpack.c.b16 %v2483, %v2480
        %v2748 = vpack.c.b16 %v2487, %v2484
        %v2749 = vpack.c.b16 %v2488, %v2485
        %v2750 = vpack.c.b16 %v2489, %v2486
        %v2751 = vpack.c.b16 %v2493, %v2490
        %v2752 = vpack.c.b16 %v2494, %v2491
        %v2753 = vpack.c.b16 %v2495, %v2492
        %v2754 = vpack.c.b16 %v2499, %v2496
        %v2755 = vpack.c.b16 %v2500, %v2497
        %v2756 = vpack.c.b16 %v2501, %v2498
        %v2757 = vpack.c.b16 %v2505, %v2502
        %v2758 = vpack.c.b16 %v2506, %v2503
        %v2759 = vpack.c.b16 %v2507, %v2504
        %v2760 = vpack.c.b16 %v2511, %v2508
        %v2761 = vpack.c.b16 %v2512, %v2509
        %v2762 = vpack.c.b16 %v2513, %v2510
        %v2763 = vpack.c.b16 %v2517, %v2514
        %v2764 = vpack.c.b16 %v2518, %v2515
        %v2765 = vpack.c.b16 %v2519, %v2516
        %v2766 = vpack.c.b16 %v2523, %v2520
        %v2767 = vpack.c.b16 %v2524, %v2521
        %v2768 = vpack.c.b16 %v2525, %v2522
        %v2769 = vpack.c.b16 %v2529, %v2526
        %v2770 = vpack.c.b16 %v2530, %v2527
        %v2771 = vpack.c.b16 %v2531, %v2528
        %v2772 = vpack.c.b16 %v2535, %v2532
        %v2773 = vpack.c.b16 %v2536, %v2533
        %v2774 = vpack.c.b16 %v2537, %v2534
        %v2775 = vpack.c.b16 %v2541, %v2538
        %v2776 = vpack.c.b16 %v2542, %v2539
        %v2777 = vpack.c.b16 %v2543, %v2540
        %v2778 = vpack.c.b16 %v2547, %v2544
        %v2779 = vpack.c.b16 %v2548, %v2545
        %v2780 = vpack.c.b16 %v2549, %v2546
        %v2781 = vpack.c.b16 %v2553, %v2550
        %v2782 = vpack.c.b16 %v2554, %v2551
        %v2783 = vpack.c.b16 %v2555, %v2552
        %v2784 = vpack.c.b16 %v2559, %v2556
        %v2785 = vpack.c.b16 %v2560, %v2557
        %v2786 = vpack.c.b16 %v2561, %v2558
        %v2787 = vpack.c.b16 %v2565, %v2562
        %v2788 = vpack.c.b16 %v2566, %v2563
        %v2789 = vpack.c.b16 %v2567, %v2564
        %v2790 = vpack.c.b16 %v2571, %v2568
        %v2791 = vpack.c.b16 %v2572, %v2569
        %v2792 = vpack.c.b16 %v2573, %v2570
        %v2793 = vpack.c.b16 %v2577, %v2574
        %v2794 = vpack.c.b16 %v2578, %v2575
        %v2795 = vpack.c.b16 %v2579, %v2576
        %v2796 = vpack.c.b16 %v2583, %v2580
        %v2797 = vpack.c.b16 %v2584, %v2581
        %v2798 = vpack.c.b16 %v2585, %v2582
        %v2799 = vpack.c.b16 %v2589, %v2586
        %v2800 = vpack.c.b16 %v2590, %v2587
        %v2801 = vpack.c.b16 %v2591, %v2588
        %v2802 = vpack.c.b16 %v2595, %v2592
        %v2803 = vpack.c.b16 %v2596, %v2593
        %v2804 = vpack.c.b16 %v2597, %v2594
        %v2805 = vpack.c.b16 %v2601, %v2598
        %v2806 = vpack.c.b16 %v2602, %v2599
        %v2807 = vpack.c.b16 %v2603, %v2600
        %v2808 = vpack.c.b16 %v2607, %v2604
        %v2809 = vpack.c.b16 %v2608, %v2605
        %v2810 = vpack.c.b16 %v2609, %v2606
        %v2811 = vpack.c.b16 %v2613, %v2610
        %v2812 = vpack.c.b16 %v2614, %v2611
        %v2813 = vpack.c.b16 %v2615, %v2612
        %v2814 = vpack.c.b16 %v2619, %v2616
        %v2815 = vpack.c.b16 %v2620, %v2617
        %v2816 = vpack.c.b16 %v2621, %v2618
        %v2817 = vpack.c.b16 %v2625, %v2622
        %v2818 = vpack.c.b16 %v2626, %v2623
        %v2819 = vpack.c.b16 %v2627, %v2624
        %v2820 = vpack.c.b16 %v2631, %v2628
        %v2821 = vpack.c.b16 %v2632, %v2629
        %v2822 = vpack.c.b16 %v2633, %v2630
        %v2823 = vpack.c.b16 %v2637, %v2634
        %v2824 = vpack.c.b16 %v2638, %v2635
        %v2825 = vpack.c.b16 %v2639, %v2636
        %v2826 = vpack.c.b16 %v2643, %v2640
        %v2827 = vpack.c.b16 %v2644, %v2641
        %v2828 = vpack.c.b16 %v2645, %v2642
        %v2829 = vpack.c.b16 %v2649, %v2646
        %v2830 = vpack.c.b16 %v2650, %v2647
        %v2831 = vpack.c.b16 %v2651, %v2648
        %v2832 = vpack.c.b16 %v2655, %v2652
        %v2833 = vpack.c.b16 %v2656, %v2653
        %v2834 = vpack.c.b16 %v2657, %v2654
        %v2835 = vpack.c.b16 %v2661, %v2658
        %v2836 = vpack.c.b16 %v2662, %v2659
        %v2837 = vpack.c.b16 %v2663, %v2660
        %v2838 = vpack.c.b16 %v2667, %v2664
        %v2839 = vpack.c.b16 %v2668, %v2665
        %v2840 = vpack.c.b16 %v2669, %v2666
        %v2841 = vpack.c.b16 %v2673, %v2670
        %v2842 = vpack.c.b16 %v2674, %v2671
        %v2843 = vpack.c.b16 %v2675, %v2672
        %v2844 = vpack.c.b16 %v2679, %v2676
        %v2845 = vpack.c.b16 %v2680, %v2677
        %v2846 = vpack.c.b16 %v2681, %v2678
        %v2847 = vpack.c.b16 %v2685, %v2682
        %v2848 = vpack.c.b16 %v2686, %v2683
        %v2849 = vpack.c.b16 %v2687, %v2684
        %v2850 = vpack.c.b16 %v2691, %v2688
        %v2851 = vpack.c.b16 %v2692, %v2689
        %v2852 = vpack.c.b16 %v2693, %v2690
        %v2853 = vpack.c.b16 %v2697, %v2694
        %v2854 = vpack.c.b16 %v2698, %v2695
        %v2855 = vpack.c.b16 %v2699, %v2696
        %v2856 = vpack.c.b16 %v2703, %v2700
        %v2857 = vpack.c.b16 %v2704, %v2701
        %v2858 = vpack.c.b16 %v2705, %v2702
        %v2859 = vpack.c.b16 %v2709, %v2706
        %v2860 = vpack.c.b16 %v2710, %v2707
        %v2861 = vpack.c.b16 %v2711, %v2708
        %v2862 = vpack.c.b16 %v2715, %v2712
        %v2863 = vpack.c.b16 %v2716, %v2713
        %v2864 = vpack.c.b16 %v2717, %v2714
        %v2865 = vpack.c.b16 %v2721, %v2718
        %v2866 = vpack.c.b16 %v2722, %v2719
        %v2867 = vpack.c.b16 %v2723, %v2720
        %3012 = vmatpush.bf16.msra.mxu0 %v2745
        %3013 = vmatpush.bf16.msra.mxu0 %v2742
        %3014 = vmatpush.bf16.msra.mxu0 %v2739
        %3015 = vmatpush.bf16.msra.mxu0 %v2736
        %3016 = vmatpush.bf16.msra.mxu0 %v2733
        %3017 = vmatpush.bf16.msra.mxu0 %v2730
        %3018 = vmatpush.bf16.msra.mxu0 %v2727
        %3019 = vmatpush.bf16.msra.mxu0 %v2724
        %3020 = vmatmul.bf16.gmra.mxu0 %v2046
        %v3021 = vpop.f32.mrf.mxu0
        %v3022 = vadd.f32 0.0, %v3021
        %v3023 = vpop.f32.mrf.mxu0
        %3024 = vdwg.mxu0
        %3025 = vmatpush.bf16.msra.mxu0 %v2769
        %3026 = vmatpush.bf16.msra.mxu0 %v2766
        %3027 = vmatpush.bf16.msra.mxu0 %v2763
        %3028 = vmatpush.bf16.msra.mxu0 %v2760
        %3029 = vmatpush.bf16.msra.mxu0 %v2757
        %3030 = vmatpush.bf16.msra.mxu0 %v2754
        %3031 = vmatpush.bf16.msra.mxu0 %v2751
        %3032 = vmatpush.bf16.msra.mxu0 %v2748
        %3033 = vmatmul.bf16.gmra.mxu0 %v2047
        %v3034 = vpop.f32.mrf.mxu0
        %v3035 = vadd.f32 %v3022, %v3034
        %v3036 = vpop.f32.mrf.mxu0
        %3037 = vdwg.mxu0
        %3038 = vmatpush.bf16.msra.mxu0 %v2793
        %3039 = vmatpush.bf16.msra.mxu0 %v2790
        %3040 = vmatpush.bf16.msra.mxu0 %v2787
        %3041 = vmatpush.bf16.msra.mxu0 %v2784
        %3042 = vmatpush.bf16.msra.mxu0 %v2781
        %3043 = vmatpush.bf16.msra.mxu0 %v2778
        %3044 = vmatpush.bf16.msra.mxu0 %v2775
        %3045 = vmatpush.bf16.msra.mxu0 %v2772
        %3046 = vmatmul.bf16.gmra.mxu0 %v2048
        %v3047 = vpop.f32.mrf.mxu0
        %v3048 = vadd.f32 %v3035, %v3047
        %v3049 = vpop.f32.mrf.mxu0
        %3050 = vdwg.mxu0
        %3051 = vmatpush.bf16.msra.mxu0 %v2817
        %3052 = vmatpush.bf16.msra.mxu0 %v2814
        %3053 = vmatpush.bf16.msra.mxu0 %v2811
        %3054 = vmatpush.bf16.msra.mxu0 %v2808
        %3055 = vmatpush.bf16.msra.mxu0 %v2805
        %3056 = vmatpush.bf16.msra.mxu0 %v2802
        %3057 = vmatpush.bf16.msra.mxu0 %v2799
        %3058 = vmatpush.bf16.msra.mxu0 %v2796
        %3059 = vmatmul.bf16.gmra.mxu0 %v2049
        %v3060 = vpop.f32.mrf.mxu0
        %v3061 = vadd.f32 %v3048, %v3060
        %v3062 = vpop.f32.mrf.mxu0
        %3063 = vdwg.mxu0
        %3064 = vmatpush.bf16.msra.mxu0 %v2841
        %3065 = vmatpush.bf16.msra.mxu0 %v2838
        %3066 = vmatpush.bf16.msra.mxu0 %v2835
        %3067 = vmatpush.bf16.msra.mxu0 %v2832
        %3068 = vmatpush.bf16.msra.mxu0 %v2829
        %3069 = vmatpush.bf16.msra.mxu0 %v2826
        %3070 = vmatpush.bf16.msra.mxu0 %v2823
        %3071 = vmatpush.bf16.msra.mxu0 %v2820
        %3072 = vmatmul.bf16.gmra.mxu0 %v2050
        %v3073 = vpop.f32.mrf.mxu0
        %v3074 = vadd.f32 %v3061, %v3073
        %v3075 = vpop.f32.mrf.mxu0
        %3076 = vdwg.mxu0
        %3077 = vmatpush.bf16.msra.mxu0 %v2865
        %3078 = vmatpush.bf16.msra.mxu0 %v2862
        %3079 = vmatpush.bf16.msra.mxu0 %v2859
        %3080 = vmatpush.bf16.msra.mxu0 %v2856
        %3081 = vmatpush.bf16.msra.mxu0 %v2853
        %3082 = vmatpush.bf16.msra.mxu0 %v2850
        %3083 = vmatpush.bf16.msra.mxu0 %v2847
        %3084 = vmatpush.bf16.msra.mxu0 %v2844
        %3085 = vmatmul.bf16.gmra.mxu0 %v2051
        %v3086 = vpop.f32.mrf.mxu0
        %v3087 = vadd.f32 %v3074, %v3086
        %v3088 = vpop.f32.mrf.mxu0
        %3089 = vdwg.mxu0
        %3090 = vmatpush.bf16.msra.mxu0 %v2746
        %3091 = vmatpush.bf16.msra.mxu0 %v2743
        %3092 = vmatpush.bf16.msra.mxu0 %v2740
        %3093 = vmatpush.bf16.msra.mxu0 %v2737
        %3094 = vmatpush.bf16.msra.mxu0 %v2734
        %3095 = vmatpush.bf16.msra.mxu0 %v2731
        %3096 = vmatpush.bf16.msra.mxu0 %v2728
        %3097 = vmatpush.bf16.msra.mxu0 %v2725
        %3098 = vmatmul.bf16.gmra.mxu0 %v2046
        %v3099 = vpop.f32.mrf.mxu0
        %v3100 = vadd.f32 0.0, %v3099
        %v3101 = vpop.f32.mrf.mxu0
        %3102 = vdwg.mxu0
        %3103 = vmatpush.bf16.msra.mxu0 %v2770
        %3104 = vmatpush.bf16.msra.mxu0 %v2767
        %3105 = vmatpush.bf16.msra.mxu0 %v2764
        %3106 = vmatpush.bf16.msra.mxu0 %v2761
        %3107 = vmatpush.bf16.msra.mxu0 %v2758
        %3108 = vmatpush.bf16.msra.mxu0 %v2755
        %3109 = vmatpush.bf16.msra.mxu0 %v2752
        %3110 = vmatpush.bf16.msra.mxu0 %v2749
        %3111 = vmatmul.bf16.gmra.mxu0 %v2047
        %v3112 = vpop.f32.mrf.mxu0
        %v3113 = vadd.f32 %v3100, %v3112
        %v3114 = vpop.f32.mrf.mxu0
        %3115 = vdwg.mxu0
        %3116 = vmatpush.bf16.msra.mxu0 %v2794
        %3117 = vmatpush.bf16.msra.mxu0 %v2791
        %3118 = vmatpush.bf16.msra.mxu0 %v2788
        %3119 = vmatpush.bf16.msra.mxu0 %v2785
        %3120 = vmatpush.bf16.msra.mxu0 %v2782
        %3121 = vmatpush.bf16.msra.mxu0 %v2779
        %3122 = vmatpush.bf16.msra.mxu0 %v2776
        %3123 = vmatpush.bf16.msra.mxu0 %v2773
        %3124 = vmatmul.bf16.gmra.mxu0 %v2048
        %v3125 = vpop.f32.mrf.mxu0
        %v3126 = vadd.f32 %v3113, %v3125
        %v3127 = vpop.f32.mrf.mxu0
        %3128 = vdwg.mxu0
        %3129 = vmatpush.bf16.msra.mxu0 %v2818
        %3130 = vmatpush.bf16.msra.mxu0 %v2815
        %3131 = vmatpush.bf16.msra.mxu0 %v2812
        %3132 = vmatpush.bf16.msra.mxu0 %v2809
        %3133 = vmatpush.bf16.msra.mxu0 %v2806
        %3134 = vmatpush.bf16.msra.mxu0 %v2803
        %3135 = vmatpush.bf16.msra.mxu0 %v2800
        %3136 = vmatpush.bf16.msra.mxu0 %v2797
        %3137 = vmatmul.bf16.gmra.mxu0 %v2049
        %v3138 = vpop.f32.mrf.mxu0
        %v3139 = vadd.f32 %v3126, %v3138
        %v3140 = vpop.f32.mrf.mxu0
        %3141 = vdwg.mxu0
        %3142 = vmatpush.bf16.msra.mxu0 %v2842
        %3143 = vmatpush.bf16.msra.mxu0 %v2839
        %3144 = vmatpush.bf16.msra.mxu0 %v2836
        %3145 = vmatpush.bf16.msra.mxu0 %v2833
        %3146 = vmatpush.bf16.msra.mxu0 %v2830
        %3147 = vmatpush.bf16.msra.mxu0 %v2827
        %3148 = vmatpush.bf16.msra.mxu0 %v2824
        %3149 = vmatpush.bf16.msra.mxu0 %v2821
        %3150 = vmatmul.bf16.gmra.mxu0 %v2050
        %v3151 = vpop.f32.mrf.mxu0
        %v3152 = vadd.f32 %v3139, %v3151
        %v3153 = vpop.f32.mrf.mxu0
        %3154 = vdwg.mxu0
        %3155 = vmatpush.bf16.msra.mxu0 %v2866
        %3156 = vmatpush.bf16.msra.mxu0 %v2863
        %3157 = vmatpush.bf16.msra.mxu0 %v2860
        %3158 = vmatpush.bf16.msra.mxu0 %v2857
        %3159 = vmatpush.bf16.msra.mxu0 %v2854
        %3160 = vmatpush.bf16.msra.mxu0 %v2851
        %3161 = vmatpush.bf16.msra.mxu0 %v2848
        %3162 = vmatpush.bf16.msra.mxu0 %v2845
        %3163 = vmatmul.bf16.gmra.mxu0 %v2051
        %v3164 = vpop.f32.mrf.mxu0
        %v3165 = vadd.f32 %v3152, %v3164
        %v3166 = vpop.f32.mrf.mxu0
        %3167 = vdwg.mxu0
        %3168 = vmatpush.bf16.msra.mxu0 %v2747
        %3169 = vmatpush.bf16.msra.mxu0 %v2744
        %3170 = vmatpush.bf16.msra.mxu0 %v2741
        %3171 = vmatpush.bf16.msra.mxu0 %v2738
        %3172 = vmatpush.bf16.msra.mxu0 %v2735
        %3173 = vmatpush.bf16.msra.mxu0 %v2732
        %3174 = vmatpush.bf16.msra.mxu0 %v2729
        %3175 = vmatpush.bf16.msra.mxu0 %v2726
        %3176 = vmatmul.bf16.gmra.mxu0 %v2046
        %v3177 = vpop.f32.mrf.mxu0
        %v3178 = vadd.f32 0.0, %v3177
        %v3179 = vpop.f32.mrf.mxu0
        %3180 = vdwg.mxu0
        %3181 = vmatpush.bf16.msra.mxu0 %v2771
        %3182 = vmatpush.bf16.msra.mxu0 %v2768
        %3183 = vmatpush.bf16.msra.mxu0 %v2765
        %3184 = vmatpush.bf16.msra.mxu0 %v2762
        %3185 = vmatpush.bf16.msra.mxu0 %v2759
        %3186 = vmatpush.bf16.msra.mxu0 %v2756
        %3187 = vmatpush.bf16.msra.mxu0 %v2753
        %3188 = vmatpush.bf16.msra.mxu0 %v2750
        %3189 = vmatmul.bf16.gmra.mxu0 %v2047
        %v3190 = vpop.f32.mrf.mxu0
        %v3191 = vadd.f32 %v3178, %v3190
        %v3192 = vpop.f32.mrf.mxu0
        %3193 = vdwg.mxu0
        %3194 = vmatpush.bf16.msra.mxu0 %v2795
        %3195 = vmatpush.bf16.msra.mxu0 %v2792
        %3196 = vmatpush.bf16.msra.mxu0 %v2789
        %3197 = vmatpush.bf16.msra.mxu0 %v2786
        %3198 = vmatpush.bf16.msra.mxu0 %v2783
        %3199 = vmatpush.bf16.msra.mxu0 %v2780
        %3200 = vmatpush.bf16.msra.mxu0 %v2777
        %3201 = vmatpush.bf16.msra.mxu0 %v2774
        %3202 = vmatmul.bf16.gmra.mxu0 %v2048
        %v3203 = vpop.f32.mrf.mxu0
        %v3204 = vadd.f32 %v3191, %v3203
        %v3205 = vpop.f32.mrf.mxu0
        %3206 = vdwg.mxu0
        %3207 = vmatpush.bf16.msra.mxu0 %v2819
        %3208 = vmatpush.bf16.msra.mxu0 %v2816
        %3209 = vmatpush.bf16.msra.mxu0 %v2813
        %3210 = vmatpush.bf16.msra.mxu0 %v2810
        %3211 = vmatpush.bf16.msra.mxu0 %v2807
        %3212 = vmatpush.bf16.msra.mxu0 %v2804
        %3213 = vmatpush.bf16.msra.mxu0 %v2801
        %3214 = vmatpush.bf16.msra.mxu0 %v2798
        %3215 = vmatmul.bf16.gmra.mxu0 %v2049
        %v3216 = vpop.f32.mrf.mxu0
        %v3217 = vadd.f32 %v3204, %v3216
        %v3218 = vpop.f32.mrf.mxu0
        %3219 = vdwg.mxu0
        %3220 = vmatpush.bf16.msra.mxu0 %v2843
        %3221 = vmatpush.bf16.msra.mxu0 %v2840
        %3222 = vmatpush.bf16.msra.mxu0 %v2837
        %3223 = vmatpush.bf16.msra.mxu0 %v2834
        %3224 = vmatpush.bf16.msra.mxu0 %v2831
        %3225 = vmatpush.bf16.msra.mxu0 %v2828
        %3226 = vmatpush.bf16.msra.mxu0 %v2825
        %3227 = vmatpush.bf16.msra.mxu0 %v2822
        %3228 = vmatmul.bf16.gmra.mxu0 %v2050
        %v3229 = vpop.f32.mrf.mxu0
        %v3230 = vadd.f32 %v3217, %v3229
        %v3231 = vpop.f32.mrf.mxu0
        %3232 = vdwg.mxu0
        %3233 = vmatpush.bf16.msra.mxu0 %v2867
        %3234 = vmatpush.bf16.msra.mxu0 %v2864
        %3235 = vmatpush.bf16.msra.mxu0 %v2861
        %3236 = vmatpush.bf16.msra.mxu0 %v2858
        %3237 = vmatpush.bf16.msra.mxu0 %v2855
        %3238 = vmatpush.bf16.msra.mxu0 %v2852
        %3239 = vmatpush.bf16.msra.mxu0 %v2849
        %3240 = vmatpush.bf16.msra.mxu0 %v2846
        %3241 = vmatmul.bf16.gmra.mxu0 %v2051
        %v3242 = vpop.f32.mrf.mxu0
        %v3243 = vadd.f32 %v3230, %v3242
        %v3244 = vpop.f32.mrf.mxu0
        %3245 = vdwg.mxu0
        %v3246 = vpack.c.bf16 %v3165, %v3087
        %v3247 = vpack.c.bf16 %v3243, %v3243
        %v3250 = vrot.slane %v3246, 3
        %v3251 = vrot.slane %v3247, 6
        %v3252 = vrot.slane %v3247, 1
        %v3255 = vsel %vm724, %v3246, %v3250
        %vm3256 = vcmask 1042434
        %v3259 = vsel %vm3256, %v3251, %v3252
        %v3260 = vsel %vm376, %v3255, %v3259
        %3262 = vst [vmem:[%s330] sm:$0x7] %v3260
        %p3263 = scmp.lt.s32.totalorder %s21, 1
        %s3264 = scalar_select %p3263, %s21, 1
        %s3265 = smul.addr %s3264, 6
        %s3266 = smul.addr %s3265, 2
        %s3267 = scalar_lea.vmem %s7, %s3266
        %p3268 = scmp.lt.s32.totalorder %s21, 1
        %s3269 = scalar_select %p3268, %s21, 1
        %s3270 = smul.addr %s3269, 3
        %s3271 = scalar_lea.vmem %s8, %s3270
        // Predicated region
        $region53: #{encoding_pyramid_forward.3} parent=47 // pred_check
          %p3272 = pneg %p191
        $region54: #{encoding_pyramid_forward.3} parent=47 // pred_check_branch
          %3274 = sbr.rel (%p3272) target = $region56
        $region55: #{encoding_pyramid_forward.3} parent=47 // pred_region
          _
        $region56: #{encoding_pyramid_forward.3} parent=47 // pred_fallthru
          _
        // Predicated region
        $region57: #{encoding_pyramid_forward.3} parent=47 // pred_check
          %p3275 = pneg %p217
        $region58: #{encoding_pyramid_forward.3} parent=47 // pred_check_branch
          %3277 = sbr.rel (%p3275) target = $region60
        $region59: #{encoding_pyramid_forward.3} parent=47 // pred_region
          _
        $region60: #{encoding_pyramid_forward.3} parent=47 // pred_fallthru
          _
      $region48: #{encoding_pyramid_forward.3} parent=5 // pred_fallthru
        _
      %p3278 = scmp.le.s32.totalorder 2, %s16
      // Predicated region
      $region61: #{encoding_pyramid_forward.3} parent=5 // pred_check
        %p3279 = pneg %p3278
      $region62: #{encoding_pyramid_forward.3} parent=5 // pred_check_branch
        %3281 = sbr.rel (%p3279) target = $region64
      $region63: #{encoding_pyramid_forward.3} parent=5 // pred_region
        %s3282 = ssub.s32 %s16, 2
        // Predicated region
        $region65: #{encoding_pyramid_forward.3} parent=63 // pred_check
          %p3283 = pneg %p197
        $region66: #{encoding_pyramid_forward.3} parent=63 // pred_check_branch
          %3285 = sbr.rel (%p3283) target = $region68
        $region67: #{encoding_pyramid_forward.3} parent=63 // pred_region
          %p3286 = scmp.lt.s32.totalorder %s22, 1
          %s3287 = scalar_select %p3286, %s22, 1
          %s3288 = smul.addr %s3287, 6
          %s3289 = smul.addr %s3288, 2
          %s3290 = scalar_lea.vmem %s7, %s3289
        $region68: #{encoding_pyramid_forward.3} parent=63 // pred_fallthru
          _
        // Predicated region
        $region69: #{encoding_pyramid_forward.3} parent=63 // pred_check
          %p3291 = pneg %p223
        $region70: #{encoding_pyramid_forward.3} parent=63 // pred_check_branch
          %3293 = sbr.rel (%p3291) target = $region72
        $region71: #{encoding_pyramid_forward.3} parent=63 // pred_region
          %p3294 = scmp.lt.s32.totalorder %s22, 1
          %s3295 = scalar_select %p3294, %s22, 1
          %s3296 = smul.addr %s3295, 3
          %s3297 = scalar_lea.vmem %s8, %s3296
        $region72: #{encoding_pyramid_forward.3} parent=63 // pred_fallthru
          _
      $region64: #{encoding_pyramid_forward.3} parent=5 // pred_fallthru
        _
    $region6: #{encoding_pyramid_forward.3} parent=1 // loop_footer
      %s20 = sadd.s32 1, %s16
    $region7: #{encoding_pyramid_forward.3} parent=1 // loop_footer_branch
      %15 = sbr.rel target = $region3
    $region8: #{encoding_pyramid_forward.3} parent=1 // loop_exit
      _
    %3298 = vsyncpa [#allocation4], 1
    %s3299 = scalar_lea.sflag [#allocation4], 1
    %3300 = vsyncpa %s3299, 1

</llo_original>
